<compile_context>
chip_gen: v5e
topology: v5e:2x2
jax: 0.10.0
libtpu: 0.0.40
codegen_flags: <defaults>
</compile_context>

<pallas_src>
import jax
import jax.numpy as jnp
from jax import lax
from jax.experimental import pallas as pl
from jax.experimental.pallas import tpu as pltpu


# -----------------------------------------------------------------------------
# Fused kernel: 6 packed LSTM chains (batch row 0) + 2-layer FFN.
# -----------------------------------------------------------------------------
def _fused_kernel(x_ref, w_ref, b_ref, w1_ref, b1_ref, w2_ref, b2_ref, out_ref):
    """Shapes:
      x_ref  : (T, 8, E)    f32   packed inputs; row 2e = encoder-e fwd input at
                                  time s, row 2e+1 = encoder-e bwd input at time
                                  T-1-s, rows 6,7 zero padding.
      w_ref  : (6, H+E, 4H) bf16  per-chain [whh ; wih], gate cols (i, f, o, g).
      b_ref  : (8, 4H)      f32   per-chain bias rows (b_ih + b_hh), rows 6,7 = 0.
      w1_ref : (8H, F)      bf16  folded FFN layer 1 for feat=[he1|he2|he1*he2|hs].
      b1_ref : (1, F)       f32
      w2_ref : (F, 128)     bf16  classifier padded to 128 lanes.
      b2_ref : (1, 128)     f32
      out_ref: (T, 128)     f32
    """
    T = x_ref.shape[0]
    H4 = b_ref.shape[1]
    H = H4 // 4
    H3 = 3 * H

    row_iota = lax.broadcasted_iota(jnp.int32, (8, H4), 0)    # chain id / sublane
    time_iota = lax.broadcasted_iota(jnp.int32, (T, H), 0)    # time id  / sublane

    # All 6 chains packed along sublanes (rows 0..5 valid, 6..7 padding).
    h = jnp.zeros((8, H), jnp.float32)
    c = jnp.zeros((8, H), jnp.float32)
    # Time-aligned per-direction outputs kept as vreg-resident values
    # (one (T, H) vreg each): F0, B0, F1, B1, F2, B2.  No scratch stores.
    acc = [jnp.zeros((T, H), jnp.float32) for _ in range(6)]

    for s in range(T):                      # T is static & small -> full unroll
        tb = T - 1 - s
        # Shared augmented LHS [h | x_s] for all 6 chains; bf16 for native MXU.
        lhs = jnp.concatenate([h, x_ref[s]], axis=1).astype(jnp.bfloat16)  # (8, H+E)
        # 6 per-chain MXU dots (bf16 in / f32 acc); weights indexed at point of
        # use so no weight-sized values stay live across the unrolled loop.
        res = [jnp.dot(lhs, w_ref[k], preferred_element_type=jnp.float32)
               for k in range(6)]                                          # (8, 4H) each
        # Row k of res[k] is chain k's gates row and already sits at sublane k:
        # gather with a depth-3 select tree (no sublane movement).
        g01 = jnp.where(row_iota >= 1, res[1], res[0])
        g23 = jnp.where(row_iota >= 3, res[3], res[2])
        g45 = jnp.where(row_iota >= 5, res[5], res[4])
        gates = jnp.where(row_iota >= 4, g45,
                          jnp.where(row_iota >= 2, g23, g01)) + b_ref[...]
        # ONE sigmoid over (8, 3H) and ONE tanh over (8, H) for all 6 chains.
        sig = jax.nn.sigmoid(gates[:, :H3])
        i_g = sig[:, 0:H]
        f_g = sig[:, H:2 * H]
        o_g = sig[:, 2 * H:H3]
        g_g = jnp.tanh(gates[:, H3:])
        c = f_g * c + i_g * g_g                       # (8, H) f32
        h = o_g * jnp.tanh(c)                         # (8, H) f32
        # Scatter the 6 valid rows into time-aligned accumulators (masked
        # selects on otherwise-idle VPU/XLU slots; fwd -> time s, bwd -> T-1-s).
        for e in range(3):
            acc[2 * e] = jnp.where(time_iota == s,
                                   h[2 * e:2 * e + 1, :], acc[2 * e])
            acc[2 * e + 1] = jnp.where(time_iota == tb,
                                       h[2 * e + 1:2 * e + 2, :], acc[2 * e + 1])

    # ---- FFN epilogue (Dropout = eval-mode identity): one fused K=8H matmul --
    he1 = jnp.concatenate([acc[0], acc[1]], axis=1)          # (T, 2H)
    he2 = jnp.concatenate([acc[2], acc[3]], axis=1)
    hs = jnp.concatenate([acc[4], acc[5]], axis=1)
    feat = jnp.concatenate([he1, he2, he1 * he2, hs], axis=1)  # (T, 8H)
    hid = jnp.dot(feat.astype(jnp.bfloat16), w1_ref[...],
                  preferred_element_type=jnp.float32) + b1_ref[...]
    hid = jnp.maximum(hid, 0.0)
    out_ref[...] = (jnp.dot(hid.astype(jnp.bfloat16), w2_ref[...],
                            preferred_element_type=jnp.float32) + b2_ref[...])


# -----------------------------------------------------------------------------
# Trace-time weight preparation (gate permutation, chain stacking, FFN folding,
# bf16 cast of MXU operands, lane padding of the classifier).
# -----------------------------------------------------------------------------
def _permute_gates(w):
    """Permute last-dim gate blocks from PyTorch (i, f, g, o) to (i, f, o, g)."""
    H = w.shape[-1] // 4
    return jnp.concatenate([w[..., :2 * H], w[..., 3 * H:], w[..., 2 * H:3 * H]],
                           axis=-1)


def _prepare(params):
    enc_names = ("lstm_head", "lstm_tail", "lstm_src_text")
    w_all, b_rows = [], []
    for name in enc_names:                   # chain order: head_f, head_b, ...
        p = params[name]
        for d in ("f", "b"):
            w_all.append(jnp.concatenate([_permute_gates(p["whh_" + d]),
                                          _permute_gates(p["wih_" + d])], axis=0))
            b_rows.append(_permute_gates(p["b_" + d]))
    w_all = jnp.stack(w_all).astype(jnp.bfloat16)                  # (6, H+E, 4H)
    H4 = b_rows[0].shape[-1]
    b_packed = jnp.concatenate(b_rows + [jnp.zeros((2, H4), jnp.float32)],
                               axis=0)                             # (8, 4H)

    H2 = H4 // 2
    f = params["fnn"]
    w1 = f["w1"]                                                   # (10H, F)
    a = w1[0 * H2:1 * H2]
    b = w1[1 * H2:2 * H2]
    cb = w1[2 * H2:3 * H2]
    d = w1[3 * H2:4 * H2]
    e = w1[4 * H2:5 * H2]
    # feat@w1 = he1@A + he2@B + (he1-he2)@C + (he1*he2)@D + hs@E
    #         = [he1 | he2 | he1*he2 | hs] @ [[A+C],[B-C],[D],[E]]
    w1f = jnp.concatenate([a + cb, b - cb, d, e], axis=0).astype(jnp.bfloat16)
    c_num = f["w2"].shape[1]
    pad = 128 - c_num
    w2p = jnp.pad(f["w2"], ((0, 0), (0, pad))).astype(jnp.bfloat16)  # (F, 128)
    b2p = jnp.pad(f["b2"], ((0, 0), (0, pad)))                       # (1, 128)
    return w_all, b_packed, w1f, f["b1"], w2p, b2p


# -----------------------------------------------------------------------------
# Full forward.
# -----------------------------------------------------------------------------
@jax.jit
def lstm_relation_predictor(head_embed, tail_embed, src_embed, params):
    # Only batch element 0 is consumed downstream (output[:, 0, :]); LSTM batch
    # rows are independent, so slice batch 0 before the kernel.  Pack the 6
    # chain input streams along sublanes, time-aligned per direction
    # (pure layout plumbing in the XLA wrapper on tiny arrays).
    h0 = head_embed[:, 0, :]
    t0 = tail_embed[:, 0, :]
    s0 = src_embed[:, 0, :]
    T, E = h0.shape
    xp = jnp.stack([h0, h0[::-1], t0, t0[::-1], s0, s0[::-1]], axis=1)  # (T, 6, E)
    xp = jnp.concatenate([xp, jnp.zeros((T, 2, E), xp.dtype)], axis=1)  # (T, 8, E)

    w_all, b_packed, w1f, b1, w2p, b2p = _prepare(params)
    H = b_packed.shape[1] // 4
    C = params["fnn"]["w2"].shape[1]
    # Layout assumptions: gate / chain slices stay 128-lane aligned.
    assert H % 128 == 0 and E % 128 == 0 and C <= 128, (H, E, C)

    vmem = pl.BlockSpec(memory_space=pltpu.MemorySpace.VMEM)
    out = pl.pallas_call(
        _fused_kernel,
        out_shape=jax.ShapeDtypeStruct((T, 128), jnp.float32),  # lane-dense output
        in_specs=[vmem] * 7,
        out_specs=vmem,
    )(xp, w_all, b_packed, w1f, b1, w2p, b2p)
    return out[:, :C]


# -----------------------------------------------------------------------------
# Deterministic parameter init (PyTorch-style uniform(-1/sqrt(H), 1/sqrt(H))).
# -----------------------------------------------------------------------------
def init_params(key, embedding_dim, lstm_hidden_dim, ffn_hidden_dim, class_num):
    E, H, F, C = embedding_dim, lstm_hidden_dim, ffn_hidden_dim, class_num
    k = 1.0 / (H ** 0.5)

    def u(key, shape, bound):
        return jax.random.uniform(key, shape, jnp.float32, -bound, bound)

    def init_lstm(key):
        ks = jax.random.split(key, 8)
        return {
            "wih_f": u(ks[0], (E, 4 * H), k),
            "whh_f": u(ks[1], (H, 4 * H), k),
            "b_f": u(ks[2], (1, 4 * H), k) + u(ks[3], (1, 4 * H), k),  # b_ih + b_hh
            "wih_b": u(ks[4], (E, 4 * H), k),
            "whh_b": u(ks[5], (H, 4 * H), k),
            "b_b": u(ks[6], (1, 4 * H), k) + u(ks[7], (1, 4 * H), k),
        }

    k_head, k_tail, k_src, k_fnn = jax.random.split(key, 4)
    kf = jax.random.split(k_fnn, 4)
    k1 = 1.0 / ((10 * H) ** 0.5)
    k2 = 1.0 / (F ** 0.5)
    return {
        "lstm_head": init_lstm(k_head),
        "lstm_tail": init_lstm(k_tail),
        "lstm_src_text": init_lstm(k_src),
        "fnn": {
            "w1": u(kf[0], (10 * H, F), k1),
            "b1": u(kf[1], (1, F), k1),
            "w2": u(kf[2], (F, C), k2),
            "b2": u(kf[3], (1, C), k2),
        },
    }


# -----------------------------------------------------------------------------
# Pure-JAX reference (original PyTorch layout / gate order, full f32, full batch).
# -----------------------------------------------------------------------------
def _ref_lstm_dir(x, wih, whh, b, reverse):
    H = whh.shape[0]
    B = x.shape[1]

    def step(carry, x_t):
        h, c = carry
        gates = x_t @ wih + h @ whh + b
        i = jax.nn.sigmoid(gates[:, 0 * H:1 * H])
        f = jax.nn.sigmoid(gates[:, 1 * H:2 * H])
        g = jnp.tanh(gates[:, 2 * H:3 * H])
        o = jax.nn.sigmoid(gates[:, 3 * H:4 * H])
        c = f * c + i * g
        h = o * jnp.tanh(c)
        return (h, c), h

    init = (jnp.zeros((B, H), jnp.float32), jnp.zeros((B, H), jnp.float32))
    _, hs = lax.scan(step, init, x, reverse=reverse)
    return hs  # (T, B, H)


def _ref_forward(head, tail, src, params):
    def enc(x, p):
        of = _ref_lstm_dir(x, p["wih_f"], p["whh_f"], p["b_f"], reverse=False)
        ob = _ref_lstm_dir(x, p["wih_b"], p["whh_b"], p["b_b"], reverse=True)
        out = jnp.concatenate([of, ob], axis=-1)
        return out[:, 0, :]

    h_e1 = enc(head, params["lstm_head"])
    h_e2 = enc(tail, params["lstm_tail"])
    h_s = enc(src, params["lstm_src_text"])
    p = params["fnn"]
    feat = jnp.concatenate([h_e1, h_e2, h_e1 - h_e2, h_e1 * h_e2, h_s], axis=1)
    hid = jnp.maximum(feat @ p["w1"] + p["b1"], 0.0)
    return hid @ p["w2"] + p["b2"]


if __name__ == "__main__":
    T, B, E, H, F, C = 8, 2, 128, 128, 256, 2  # small, TPU-friendly shapes

    key = jax.random.PRNGKey(0)
    k_par, k_h, k_t, k_s = jax.random.split(key, 4)
    params = init_params(k_par, E, H, F, C)

    head_embed = jax.random.normal(k_h, (T, B, E), jnp.float32)
    tail_embed = jax.random.normal(k_t, (T, B, E), jnp.float32)
    src_embed = jax.random.normal(k_s, (T, B, E), jnp.float32)

    logits = lstm_relation_predictor(head_embed, tail_embed, src_embed, params)
    logits = jax.block_until_ready(logits)
    assert logits.shape == (T, C), logits.shape

    ref = jax.block_until_ready(_ref_forward(head_embed, tail_embed, src_embed, params))
    max_diff = float(jnp.max(jnp.abs(logits - ref)))
    # Kernel uses bf16 MXU operands with f32 accumulation (f32 elementwise), so
    # the tolerance vs. the pure-f32 reference is looser than an all-f32 check;
    # structural bugs (gate order, weight folding, time alignment) produce
    # O(0.05-1) errors on these ~0.06-magnitude logits and are still caught.
    assert jnp.allclose(logits, ref, atol=1e-2, rtol=1e-2), max_diff

    print("KERNEL_OK")
</pallas_src>

<mosaic_0001>
module attributes {stable_mosaic.version = 11 : i64} {
  func.func @_fused_kernel(%arg0: memref<8x8x128xf32, #tpu.memory_space<vmem>>, %arg1: memref<6x256x512xbf16, #tpu.memory_space<vmem>>, %arg2: memref<8x512xf32, #tpu.memory_space<vmem>>, %arg3: memref<1024x256xbf16, #tpu.memory_space<vmem>>, %arg4: memref<1x256xf32, #tpu.memory_space<vmem>>, %arg5: memref<256x128xbf16, #tpu.memory_space<vmem>>, %arg6: memref<1x128xf32, #tpu.memory_space<vmem>>, %arg7: memref<8x128xf32, #tpu.memory_space<vmem>>) attributes {dimension_semantics = [], scalar_prefetch = 0 : i64, scratch_operands = 0 : i64, tpu.core_type = #tpu.core_type<tc>} {
    %0 = tpu.iota {dimensions = array<i32: 0>} : vector<8x512xi32>
    %1 = tpu.iota {dimensions = array<i32: 0>} : vector<8x128xi32>
    %cst = arith.constant 0.000000e+00 : f32
    %2 = vector.broadcast %cst : f32 to vector<8x128xf32>
    %cst_0 = arith.constant 0.000000e+00 : f32
    %3 = vector.broadcast %cst_0 : f32 to vector<8x128xf32>
    %cst_1 = arith.constant 0.000000e+00 : f32
    %4 = vector.broadcast %cst_1 : f32 to vector<8x128xf32>
    %cst_2 = arith.constant 0.000000e+00 : f32
    %5 = vector.broadcast %cst_2 : f32 to vector<8x128xf32>
    %cst_3 = arith.constant 0.000000e+00 : f32
    %6 = vector.broadcast %cst_3 : f32 to vector<8x128xf32>
    %cst_4 = arith.constant 0.000000e+00 : f32
    %7 = vector.broadcast %cst_4 : f32 to vector<8x128xf32>
    %cst_5 = arith.constant 0.000000e+00 : f32
    %8 = vector.broadcast %cst_5 : f32 to vector<8x128xf32>
    %cst_6 = arith.constant 0.000000e+00 : f32
    %9 = vector.broadcast %cst_6 : f32 to vector<8x128xf32>
    %c0 = arith.constant 0 : index
    %c0_7 = arith.constant 0 : index
    %c0_8 = arith.constant 0 : index
    %10 = vector.load %arg0[%c0, %c0_7, %c0_8] : memref<8x8x128xf32, #tpu.memory_space<vmem>>, vector<1x8x128xf32>
    %11 = vector.shape_cast %10 : vector<1x8x128xf32> to vector<8x128xf32>
    %12 = tpu.concatenate %2, %11 in 1 : vector<8x128xf32>, vector<8x128xf32> -> vector<8x256xf32>
    %13 = arith.truncf %12 : vector<8x256xf32> to vector<8x256xbf16>
    %c0_9 = arith.constant 0 : index
    %c0_10 = arith.constant 0 : index
    %c0_11 = arith.constant 0 : index
    %14 = vector.load %arg1[%c0_9, %c0_10, %c0_11] : memref<6x256x512xbf16, #tpu.memory_space<vmem>>, vector<1x256x512xbf16>
    %15 = vector.shape_cast %14 : vector<1x256x512xbf16> to vector<256x512xbf16>
    %cst_12 = arith.constant dense<0.000000e+00> : vector<8x512xf32>
    %16 = tpu.matmul %13, %15, %cst_12 {dimension_numbers = #tpu.dot_dimension_numbers<[1], [0], [0], [1], [0, 0, 1, 1], [], []>} : vector<8x256xbf16>, vector<256x512xbf16>, vector<8x512xf32> -> vector<8x512xf32>
    %c1 = arith.constant 1 : index
    %c0_13 = arith.constant 0 : index
    %c0_14 = arith.constant 0 : index
    %17 = vector.load %arg1[%c1, %c0_13, %c0_14] : memref<6x256x512xbf16, #tpu.memory_space<vmem>>, vector<1x256x512xbf16>
    %18 = vector.shape_cast %17 : vector<1x256x512xbf16> to vector<256x512xbf16>
    %cst_15 = arith.constant dense<0.000000e+00> : vector<8x512xf32>
    %19 = tpu.matmul %13, %18, %cst_15 {dimension_numbers = #tpu.dot_dimension_numbers<[1], [0], [0], [1], [0, 0, 1, 1], [], []>} : vector<8x256xbf16>, vector<256x512xbf16>, vector<8x512xf32> -> vector<8x512xf32>
    %c2 = arith.constant 2 : index
    %c0_16 = arith.constant 0 : index
    %c0_17 = arith.constant 0 : index
    %20 = vector.load %arg1[%c2, %c0_16, %c0_17] : memref<6x256x512xbf16, #tpu.memory_space<vmem>>, vector<1x256x512xbf16>
    %21 = vector.shape_cast %20 : vector<1x256x512xbf16> to vector<256x512xbf16>
    %cst_18 = arith.constant dense<0.000000e+00> : vector<8x512xf32>
    %22 = tpu.matmul %13, %21, %cst_18 {dimension_numbers = #tpu.dot_dimension_numbers<[1], [0], [0], [1], [0, 0, 1, 1], [], []>} : vector<8x256xbf16>, vector<256x512xbf16>, vector<8x512xf32> -> vector<8x512xf32>
    %c3 = arith.constant 3 : index
    %c0_19 = arith.constant 0 : index
    %c0_20 = arith.constant 0 : index
    %23 = vector.load %arg1[%c3, %c0_19, %c0_20] : memref<6x256x512xbf16, #tpu.memory_space<vmem>>, vector<1x256x512xbf16>
    %24 = vector.shape_cast %23 : vector<1x256x512xbf16> to vector<256x512xbf16>
    %cst_21 = arith.constant dense<0.000000e+00> : vector<8x512xf32>
    %25 = tpu.matmul %13, %24, %cst_21 {dimension_numbers = #tpu.dot_dimension_numbers<[1], [0], [0], [1], [0, 0, 1, 1], [], []>} : vector<8x256xbf16>, vector<256x512xbf16>, vector<8x512xf32> -> vector<8x512xf32>
    %c4 = arith.constant 4 : index
    %c0_22 = arith.constant 0 : index
    %c0_23 = arith.constant 0 : index
    %26 = vector.load %arg1[%c4, %c0_22, %c0_23] : memref<6x256x512xbf16, #tpu.memory_space<vmem>>, vector<1x256x512xbf16>
    %27 = vector.shape_cast %26 : vector<1x256x512xbf16> to vector<256x512xbf16>
    %cst_24 = arith.constant dense<0.000000e+00> : vector<8x512xf32>
    %28 = tpu.matmul %13, %27, %cst_24 {dimension_numbers = #tpu.dot_dimension_numbers<[1], [0], [0], [1], [0, 0, 1, 1], [], []>} : vector<8x256xbf16>, vector<256x512xbf16>, vector<8x512xf32> -> vector<8x512xf32>
    %c5 = arith.constant 5 : index
    %c0_25 = arith.constant 0 : index
    %c0_26 = arith.constant 0 : index
    %29 = vector.load %arg1[%c5, %c0_25, %c0_26] : memref<6x256x512xbf16, #tpu.memory_space<vmem>>, vector<1x256x512xbf16>
    %30 = vector.shape_cast %29 : vector<1x256x512xbf16> to vector<256x512xbf16>
    %cst_27 = arith.constant dense<0.000000e+00> : vector<8x512xf32>
    %31 = tpu.matmul %13, %30, %cst_27 {dimension_numbers = #tpu.dot_dimension_numbers<[1], [0], [0], [1], [0, 0, 1, 1], [], []>} : vector<8x256xbf16>, vector<256x512xbf16>, vector<8x512xf32> -> vector<8x512xf32>
    %c1_i32 = arith.constant 1 : i32
    %32 = vector.broadcast %c1_i32 : i32 to vector<8x512xi32>
    %33 = arith.cmpi sge, %0, %32 : vector<8x512xi32>
    %34 = arith.select %33, %19, %16 : vector<8x512xi1>, vector<8x512xf32>
    %c3_i32 = arith.constant 3 : i32
    %35 = vector.broadcast %c3_i32 : i32 to vector<8x512xi32>
    %36 = arith.cmpi sge, %0, %35 : vector<8x512xi32>
    %37 = arith.select %36, %25, %22 : vector<8x512xi1>, vector<8x512xf32>
    %c5_i32 = arith.constant 5 : i32
    %38 = vector.broadcast %c5_i32 : i32 to vector<8x512xi32>
    %39 = arith.cmpi sge, %0, %38 : vector<8x512xi32>
    %40 = arith.select %39, %31, %28 : vector<8x512xi1>, vector<8x512xf32>
    %c4_i32 = arith.constant 4 : i32
    %41 = vector.broadcast %c4_i32 : i32 to vector<8x512xi32>
    %42 = arith.cmpi sge, %0, %41 : vector<8x512xi32>
    %c2_i32 = arith.constant 2 : i32
    %43 = vector.broadcast %c2_i32 : i32 to vector<8x512xi32>
    %44 = arith.cmpi sge, %0, %43 : vector<8x512xi32>
    %45 = arith.select %44, %37, %34 : vector<8x512xi1>, vector<8x512xf32>
    %46 = arith.select %42, %40, %45 : vector<8x512xi1>, vector<8x512xf32>
    %c0_28 = arith.constant 0 : index
    %c0_29 = arith.constant 0 : index
    %47 = vector.load %arg2[%c0_28, %c0_29] : memref<8x512xf32, #tpu.memory_space<vmem>>, vector<8x512xf32>
    %48 = arith.addf %46, %47 : vector<8x512xf32>
    %49 = vector.extract_strided_slice %48 {offsets = [0, 0], sizes = [8, 384], strides = [1, 1]} : vector<8x512xf32> to vector<8x384xf32>
    %50 = arith.negf %49 : vector<8x384xf32>
    %51 = math.exp %50 : vector<8x384xf32>
    %cst_30 = arith.constant 1.000000e+00 : f32
    %52 = vector.broadcast %cst_30 : f32 to vector<8x384xf32>
    %53 = arith.addf %52, %51 : vector<8x384xf32>
    %54 = arith.divf %52, %53 : vector<8x384xf32>
    %55 = vector.extract_strided_slice %54 {offsets = [0, 0], sizes = [8, 128], strides = [1, 1]} : vector<8x384xf32> to vector<8x128xf32>
    %56 = vector.extract_strided_slice %54 {offsets = [0, 128], sizes = [8, 128], strides = [1, 1]} : vector<8x384xf32> to vector<8x128xf32>
    %57 = vector.extract_strided_slice %54 {offsets = [0, 256], sizes = [8, 128], strides = [1, 1]} : vector<8x384xf32> to vector<8x128xf32>
    %58 = vector.extract_strided_slice %48 {offsets = [0, 384], sizes = [8, 128], strides = [1, 1]} : vector<8x512xf32> to vector<8x128xf32>
    %59 = math.tanh %58 : vector<8x128xf32>
    %60 = arith.mulf %56, %3 : vector<8x128xf32>
    %61 = arith.mulf %55, %59 : vector<8x128xf32>
    %62 = arith.addf %60, %61 : vector<8x128xf32>
    %63 = math.tanh %62 : vector<8x128xf32>
    %64 = arith.mulf %57, %63 : vector<8x128xf32>
    %c0_i32 = arith.constant 0 : i32
    %65 = vector.broadcast %c0_i32 : i32 to vector<8x128xi32>
    %66 = arith.cmpi eq, %1, %65 : vector<8x128xi32>
    %67 = vector.extract_strided_slice %64 {offsets = [0, 0], sizes = [1, 128], strides = [1, 1]} : vector<8x128xf32> to vector<1x128xf32>
    %68 = vector.shape_cast %67 : vector<1x128xf32> to vector<1x128xf32>
    %69 = vector.broadcast %68 : vector<1x128xf32> to vector<8x128xf32>
    %70 = arith.select %66, %69, %4 : vector<8x128xi1>, vector<8x128xf32>
    %c7_i32 = arith.constant 7 : i32
    %71 = vector.broadcast %c7_i32 : i32 to vector<8x128xi32>
    %72 = arith.cmpi eq, %1, %71 : vector<8x128xi32>
    %73 = vector.extract_strided_slice %64 {offsets = [1, 0], sizes = [1, 128], strides = [1, 1]} : vector<8x128xf32> to vector<1x128xf32>
    %74 = vector.shape_cast %73 : vector<1x128xf32> to vector<1x128xf32>
    %75 = vector.broadcast %74 : vector<1x128xf32> to vector<8x128xf32>
    %76 = arith.select %72, %75, %5 : vector<8x128xi1>, vector<8x128xf32>
    %c0_i32_31 = arith.constant 0 : i32
    %77 = vector.broadcast %c0_i32_31 : i32 to vector<8x128xi32>
    %78 = arith.cmpi eq, %1, %77 : vector<8x128xi32>
    %79 = vector.extract_strided_slice %64 {offsets = [2, 0], sizes = [1, 128], strides = [1, 1]} : vector<8x128xf32> to vector<1x128xf32>
    %80 = vector.shape_cast %79 : vector<1x128xf32> to vector<1x128xf32>
    %81 = vector.broadcast %80 : vector<1x128xf32> to vector<8x128xf32>
    %82 = arith.select %78, %81, %6 : vector<8x128xi1>, vector<8x128xf32>
    %c7_i32_32 = arith.constant 7 : i32
    %83 = vector.broadcast %c7_i32_32 : i32 to vector<8x128xi32>
    %84 = arith.cmpi eq, %1, %83 : vector<8x128xi32>
    %85 = vector.extract_strided_slice %64 {offsets = [3, 0], sizes = [1, 128], strides = [1, 1]} : vector<8x128xf32> to vector<1x128xf32>
    %86 = vector.shape_cast %85 : vector<1x128xf32> to vector<1x128xf32>
    %87 = vector.broadcast %86 : vector<1x128xf32> to vector<8x128xf32>
    %88 = arith.select %84, %87, %7 : vector<8x128xi1>, vector<8x128xf32>
    %c0_i32_33 = arith.constant 0 : i32
    %89 = vector.broadcast %c0_i32_33 : i32 to vector<8x128xi32>
    %90 = arith.cmpi eq, %1, %89 : vector<8x128xi32>
    %91 = vector.extract_strided_slice %64 {offsets = [4, 0], sizes = [1, 128], strides = [1, 1]} : vector<8x128xf32> to vector<1x128xf32>
    %92 = vector.shape_cast %91 : vector<1x128xf32> to vector<1x128xf32>
    %93 = vector.broadcast %92 : vector<1x128xf32> to vector<8x128xf32>
    %94 = arith.select %90, %93, %8 : vector<8x128xi1>, vector<8x128xf32>
    %c7_i32_34 = arith.constant 7 : i32
    %95 = vector.broadcast %c7_i32_34 : i32 to vector<8x128xi32>
    %96 = arith.cmpi eq, %1, %95 : vector<8x128xi32>
    %97 = vector.extract_strided_slice %64 {offsets = [5, 0], sizes = [1, 128], strides = [1, 1]} : vector<8x128xf32> to vector<1x128xf32>
    %98 = vector.shape_cast %97 : vector<1x128xf32> to vector<1x128xf32>
    %99 = vector.broadcast %98 : vector<1x128xf32> to vector<8x128xf32>
    %100 = arith.select %96, %99, %9 : vector<8x128xi1>, vector<8x128xf32>
    %c1_35 = arith.constant 1 : index
    %c0_36 = arith.constant 0 : index
    %c0_37 = arith.constant 0 : index
    %101 = vector.load %arg0[%c1_35, %c0_36, %c0_37] : memref<8x8x128xf32, #tpu.memory_space<vmem>>, vector<1x8x128xf32>
    %102 = vector.shape_cast %101 : vector<1x8x128xf32> to vector<8x128xf32>
    %103 = tpu.concatenate %64, %102 in 1 : vector<8x128xf32>, vector<8x128xf32> -> vector<8x256xf32>
    %104 = arith.truncf %103 : vector<8x256xf32> to vector<8x256xbf16>
    %c0_38 = arith.constant 0 : index
    %c0_39 = arith.constant 0 : index
    %c0_40 = arith.constant 0 : index
    %105 = vector.load %arg1[%c0_38, %c0_39, %c0_40] : memref<6x256x512xbf16, #tpu.memory_space<vmem>>, vector<1x256x512xbf16>
    %106 = vector.shape_cast %105 : vector<1x256x512xbf16> to vector<256x512xbf16>
    %cst_41 = arith.constant dense<0.000000e+00> : vector<8x512xf32>
    %107 = tpu.matmul %104, %106, %cst_41 {dimension_numbers = #tpu.dot_dimension_numbers<[1], [0], [0], [1], [0, 0, 1, 1], [], []>} : vector<8x256xbf16>, vector<256x512xbf16>, vector<8x512xf32> -> vector<8x512xf32>
    %c1_42 = arith.constant 1 : index
    %c0_43 = arith.constant 0 : index
    %c0_44 = arith.constant 0 : index
    %108 = vector.load %arg1[%c1_42, %c0_43, %c0_44] : memref<6x256x512xbf16, #tpu.memory_space<vmem>>, vector<1x256x512xbf16>
    %109 = vector.shape_cast %108 : vector<1x256x512xbf16> to vector<256x512xbf16>
    %cst_45 = arith.constant dense<0.000000e+00> : vector<8x512xf32>
    %110 = tpu.matmul %104, %109, %cst_45 {dimension_numbers = #tpu.dot_dimension_numbers<[1], [0], [0], [1], [0, 0, 1, 1], [], []>} : vector<8x256xbf16>, vector<256x512xbf16>, vector<8x512xf32> -> vector<8x512xf32>
    %c2_46 = arith.constant 2 : index
    %c0_47 = arith.constant 0 : index
    %c0_48 = arith.constant 0 : index
    %111 = vector.load %arg1[%c2_46, %c0_47, %c0_48] : memref<6x256x512xbf16, #tpu.memory_space<vmem>>, vector<1x256x512xbf16>
    %112 = vector.shape_cast %111 : vector<1x256x512xbf16> to vector<256x512xbf16>
    %cst_49 = arith.constant dense<0.000000e+00> : vector<8x512xf32>
    %113 = tpu.matmul %104, %112, %cst_49 {dimension_numbers = #tpu.dot_dimension_numbers<[1], [0], [0], [1], [0, 0, 1, 1], [], []>} : vector<8x256xbf16>, vector<256x512xbf16>, vector<8x512xf32> -> vector<8x512xf32>
    %c3_50 = arith.constant 3 : index
    %c0_51 = arith.constant 0 : index
    %c0_52 = arith.constant 0 : index
    %114 = vector.load %arg1[%c3_50, %c0_51, %c0_52] : memref<6x256x512xbf16, #tpu.memory_space<vmem>>, vector<1x256x512xbf16>
    %115 = vector.shape_cast %114 : vector<1x256x512xbf16> to vector<256x512xbf16>
    %cst_53 = arith.constant dense<0.000000e+00> : vector<8x512xf32>
    %116 = tpu.matmul %104, %115, %cst_53 {dimension_numbers = #tpu.dot_dimension_numbers<[1], [0], [0], [1], [0, 0, 1, 1], [], []>} : vector<8x256xbf16>, vector<256x512xbf16>, vector<8x512xf32> -> vector<8x512xf32>
    %c4_54 = arith.constant 4 : index
    %c0_55 = arith.constant 0 : index
    %c0_56 = arith.constant 0 : index
    %117 = vector.load %arg1[%c4_54, %c0_55, %c0_56] : memref<6x256x512xbf16, #tpu.memory_space<vmem>>, vector<1x256x512xbf16>
    %118 = vector.shape_cast %117 : vector<1x256x512xbf16> to vector<256x512xbf16>
    %cst_57 = arith.constant dense<0.000000e+00> : vector<8x512xf32>
    %119 = tpu.matmul %104, %118, %cst_57 {dimension_numbers = #tpu.dot_dimension_numbers<[1], [0], [0], [1], [0, 0, 1, 1], [], []>} : vector<8x256xbf16>, vector<256x512xbf16>, vector<8x512xf32> -> vector<8x512xf32>
    %c5_58 = arith.constant 5 : index
    %c0_59 = arith.constant 0 : index
    %c0_60 = arith.constant 0 : index
    %120 = vector.load %arg1[%c5_58, %c0_59, %c0_60] : memref<6x256x512xbf16, #tpu.memory_space<vmem>>, vector<1x256x512xbf16>
    %121 = vector.shape_cast %120 : vector<1x256x512xbf16> to vector<256x512xbf16>
    %cst_61 = arith.constant dense<0.000000e+00> : vector<8x512xf32>
    %122 = tpu.matmul %104, %121, %cst_61 {dimension_numbers = #tpu.dot_dimension_numbers<[1], [0], [0], [1], [0, 0, 1, 1], [], []>} : vector<8x256xbf16>, vector<256x512xbf16>, vector<8x512xf32> -> vector<8x512xf32>
    %c1_i32_62 = arith.constant 1 : i32
    %123 = vector.broadcast %c1_i32_62 : i32 to vector<8x512xi32>
    %124 = arith.cmpi sge, %0, %123 : vector<8x512xi32>
    %125 = arith.select %124, %110, %107 : vector<8x512xi1>, vector<8x512xf32>
    %c3_i32_63 = arith.constant 3 : i32
    %126 = vector.broadcast %c3_i32_63 : i32 to vector<8x512xi32>
    %127 = arith.cmpi sge, %0, %126 : vector<8x512xi32>
    %128 = arith.select %127, %116, %113 : vector<8x512xi1>, vector<8x512xf32>
    %c5_i32_64 = arith.constant 5 : i32
    %129 = vector.broadcast %c5_i32_64 : i32 to vector<8x512xi32>
    %130 = arith.cmpi sge, %0, %129 : vector<8x512xi32>
    %131 = arith.select %130, %122, %119 : vector<8x512xi1>, vector<8x512xf32>
    %c4_i32_65 = arith.constant 4 : i32
    %132 = vector.broadcast %c4_i32_65 : i32 to vector<8x512xi32>
    %133 = arith.cmpi sge, %0, %132 : vector<8x512xi32>
    %c2_i32_66 = arith.constant 2 : i32
    %134 = vector.broadcast %c2_i32_66 : i32 to vector<8x512xi32>
    %135 = arith.cmpi sge, %0, %134 : vector<8x512xi32>
    %136 = arith.select %135, %128, %125 : vector<8x512xi1>, vector<8x512xf32>
    %137 = arith.select %133, %131, %136 : vector<8x512xi1>, vector<8x512xf32>
    %c0_67 = arith.constant 0 : index
    %c0_68 = arith.constant 0 : index
    %138 = vector.load %arg2[%c0_67, %c0_68] : memref<8x512xf32, #tpu.memory_space<vmem>>, vector<8x512xf32>
    %139 = arith.addf %137, %138 : vector<8x512xf32>
    %140 = vector.extract_strided_slice %139 {offsets = [0, 0], sizes = [8, 384], strides = [1, 1]} : vector<8x512xf32> to vector<8x384xf32>
    %141 = arith.negf %140 : vector<8x384xf32>
    %142 = math.exp %141 : vector<8x384xf32>
    %cst_69 = arith.constant 1.000000e+00 : f32
    %143 = vector.broadcast %cst_69 : f32 to vector<8x384xf32>
    %144 = arith.addf %143, %142 : vector<8x384xf32>
    %145 = arith.divf %143, %144 : vector<8x384xf32>
    %146 = vector.extract_strided_slice %145 {offsets = [0, 0], sizes = [8, 128], strides = [1, 1]} : vector<8x384xf32> to vector<8x128xf32>
    %147 = vector.extract_strided_slice %145 {offsets = [0, 128], sizes = [8, 128], strides = [1, 1]} : vector<8x384xf32> to vector<8x128xf32>
    %148 = vector.extract_strided_slice %145 {offsets = [0, 256], sizes = [8, 128], strides = [1, 1]} : vector<8x384xf32> to vector<8x128xf32>
    %149 = vector.extract_strided_slice %139 {offsets = [0, 384], sizes = [8, 128], strides = [1, 1]} : vector<8x512xf32> to vector<8x128xf32>
    %150 = math.tanh %149 : vector<8x128xf32>
    %151 = arith.mulf %147, %62 : vector<8x128xf32>
    %152 = arith.mulf %146, %150 : vector<8x128xf32>
    %153 = arith.addf %151, %152 : vector<8x128xf32>
    %154 = math.tanh %153 : vector<8x128xf32>
    %155 = arith.mulf %148, %154 : vector<8x128xf32>
    %c1_i32_70 = arith.constant 1 : i32
    %156 = vector.broadcast %c1_i32_70 : i32 to vector<8x128xi32>
    %157 = arith.cmpi eq, %1, %156 : vector<8x128xi32>
    %158 = vector.extract_strided_slice %155 {offsets = [0, 0], sizes = [1, 128], strides = [1, 1]} : vector<8x128xf32> to vector<1x128xf32>
    %159 = vector.shape_cast %158 : vector<1x128xf32> to vector<1x128xf32>
    %160 = vector.broadcast %159 : vector<1x128xf32> to vector<8x128xf32>
    %161 = arith.select %157, %160, %70 : vector<8x128xi1>, vector<8x128xf32>
    %c6_i32 = arith.constant 6 : i32
    %162 = vector.broadcast %c6_i32 : i32 to vector<8x128xi32>
    %163 = arith.cmpi eq, %1, %162 : vector<8x128xi32>
    %164 = vector.extract_strided_slice %155 {offsets = [1, 0], sizes = [1, 128], strides = [1, 1]} : vector<8x128xf32> to vector<1x128xf32>
    %165 = vector.shape_cast %164 : vector<1x128xf32> to vector<1x128xf32>
    %166 = vector.broadcast %165 : vector<1x128xf32> to vector<8x128xf32>
    %167 = arith.select %163, %166, %76 : vector<8x128xi1>, vector<8x128xf32>
    %c1_i32_71 = arith.constant 1 : i32
    %168 = vector.broadcast %c1_i32_71 : i32 to vector<8x128xi32>
    %169 = arith.cmpi eq, %1, %168 : vector<8x128xi32>
    %170 = vector.extract_strided_slice %155 {offsets = [2, 0], sizes = [1, 128], strides = [1, 1]} : vector<8x128xf32> to vector<1x128xf32>
    %171 = vector.shape_cast %170 : vector<1x128xf32> to vector<1x128xf32>
    %172 = vector.broadcast %171 : vector<1x128xf32> to vector<8x128xf32>
    %173 = arith.select %169, %172, %82 : vector<8x128xi1>, vector<8x128xf32>
    %c6_i32_72 = arith.constant 6 : i32
    %174 = vector.broadcast %c6_i32_72 : i32 to vector<8x128xi32>
    %175 = arith.cmpi eq, %1, %174 : vector<8x128xi32>
    %176 = vector.extract_strided_slice %155 {offsets = [3, 0], sizes = [1, 128], strides = [1, 1]} : vector<8x128xf32> to vector<1x128xf32>
    %177 = vector.shape_cast %176 : vector<1x128xf32> to vector<1x128xf32>
    %178 = vector.broadcast %177 : vector<1x128xf32> to vector<8x128xf32>
    %179 = arith.select %175, %178, %88 : vector<8x128xi1>, vector<8x128xf32>
    %c1_i32_73 = arith.constant 1 : i32
    %180 = vector.broadcast %c1_i32_73 : i32 to vector<8x128xi32>
    %181 = arith.cmpi eq, %1, %180 : vector<8x128xi32>
    %182 = vector.extract_strided_slice %155 {offsets = [4, 0], sizes = [1, 128], strides = [1, 1]} : vector<8x128xf32> to vector<1x128xf32>
    %183 = vector.shape_cast %182 : vector<1x128xf32> to vector<1x128xf32>
    %184 = vector.broadcast %183 : vector<1x128xf32> to vector<8x128xf32>
    %185 = arith.select %181, %184, %94 : vector<8x128xi1>, vector<8x128xf32>
    %c6_i32_74 = arith.constant 6 : i32
    %186 = vector.broadcast %c6_i32_74 : i32 to vector<8x128xi32>
    %187 = arith.cmpi eq, %1, %186 : vector<8x128xi32>
    %188 = vector.extract_strided_slice %155 {offsets = [5, 0], sizes = [1, 128], strides = [1, 1]} : vector<8x128xf32> to vector<1x128xf32>
    %189 = vector.shape_cast %188 : vector<1x128xf32> to vector<1x128xf32>
    %190 = vector.broadcast %189 : vector<1x128xf32> to vector<8x128xf32>
    %191 = arith.select %187, %190, %100 : vector<8x128xi1>, vector<8x128xf32>
    %c2_75 = arith.constant 2 : index
    %c0_76 = arith.constant 0 : index
    %c0_77 = arith.constant 0 : index
    %192 = vector.load %arg0[%c2_75, %c0_76, %c0_77] : memref<8x8x128xf32, #tpu.memory_space<vmem>>, vector<1x8x128xf32>
    %193 = vector.shape_cast %192 : vector<1x8x128xf32> to vector<8x128xf32>
    %194 = tpu.concatenate %155, %193 in 1 : vector<8x128xf32>, vector<8x128xf32> -> vector<8x256xf32>
    %195 = arith.truncf %194 : vector<8x256xf32> to vector<8x256xbf16>
    %c0_78 = arith.constant 0 : index
    %c0_79 = arith.constant 0 : index
    %c0_80 = arith.constant 0 : index
    %196 = vector.load %arg1[%c0_78, %c0_79, %c0_80] : memref<6x256x512xbf16, #tpu.memory_space<vmem>>, vector<1x256x512xbf16>
    %197 = vector.shape_cast %196 : vector<1x256x512xbf16> to vector<256x512xbf16>
    %cst_81 = arith.constant dense<0.000000e+00> : vector<8x512xf32>
    %198 = tpu.matmul %195, %197, %cst_81 {dimension_numbers = #tpu.dot_dimension_numbers<[1], [0], [0], [1], [0, 0, 1, 1], [], []>} : vector<8x256xbf16>, vector<256x512xbf16>, vector<8x512xf32> -> vector<8x512xf32>
    %c1_82 = arith.constant 1 : index
    %c0_83 = arith.constant 0 : index
    %c0_84 = arith.constant 0 : index
    %199 = vector.load %arg1[%c1_82, %c0_83, %c0_84] : memref<6x256x512xbf16, #tpu.memory_space<vmem>>, vector<1x256x512xbf16>
    %200 = vector.shape_cast %199 : vector<1x256x512xbf16> to vector<256x512xbf16>
    %cst_85 = arith.constant dense<0.000000e+00> : vector<8x512xf32>
    %201 = tpu.matmul %195, %200, %cst_85 {dimension_numbers = #tpu.dot_dimension_numbers<[1], [0], [0], [1], [0, 0, 1, 1], [], []>} : vector<8x256xbf16>, vector<256x512xbf16>, vector<8x512xf32> -> vector<8x512xf32>
    %c2_86 = arith.constant 2 : index
    %c0_87 = arith.constant 0 : index
    %c0_88 = arith.constant 0 : index
    %202 = vector.load %arg1[%c2_86, %c0_87, %c0_88] : memref<6x256x512xbf16, #tpu.memory_space<vmem>>, vector<1x256x512xbf16>
    %203 = vector.shape_cast %202 : vector<1x256x512xbf16> to vector<256x512xbf16>
    %cst_89 = arith.constant dense<0.000000e+00> : vector<8x512xf32>
    %204 = tpu.matmul %195, %203, %cst_89 {dimension_numbers = #tpu.dot_dimension_numbers<[1], [0], [0], [1], [0, 0, 1, 1], [], []>} : vector<8x256xbf16>, vector<256x512xbf16>, vector<8x512xf32> -> vector<8x512xf32>
    %c3_90 = arith.constant 3 : index
    %c0_91 = arith.constant 0 : index
    %c0_92 = arith.constant 0 : index
    %205 = vector.load %arg1[%c3_90, %c0_91, %c0_92] : memref<6x256x512xbf16, #tpu.memory_space<vmem>>, vector<1x256x512xbf16>
    %206 = vector.shape_cast %205 : vector<1x256x512xbf16> to vector<256x512xbf16>
    %cst_93 = arith.constant dense<0.000000e+00> : vector<8x512xf32>
    %207 = tpu.matmul %195, %206, %cst_93 {dimension_numbers = #tpu.dot_dimension_numbers<[1], [0], [0], [1], [0, 0, 1, 1], [], []>} : vector<8x256xbf16>, vector<256x512xbf16>, vector<8x512xf32> -> vector<8x512xf32>
    %c4_94 = arith.constant 4 : index
    %c0_95 = arith.constant 0 : index
    %c0_96 = arith.constant 0 : index
    %208 = vector.load %arg1[%c4_94, %c0_95, %c0_96] : memref<6x256x512xbf16, #tpu.memory_space<vmem>>, vector<1x256x512xbf16>
    %209 = vector.shape_cast %208 : vector<1x256x512xbf16> to vector<256x512xbf16>
    %cst_97 = arith.constant dense<0.000000e+00> : vector<8x512xf32>
    %210 = tpu.matmul %195, %209, %cst_97 {dimension_numbers = #tpu.dot_dimension_numbers<[1], [0], [0], [1], [0, 0, 1, 1], [], []>} : vector<8x256xbf16>, vector<256x512xbf16>, vector<8x512xf32> -> vector<8x512xf32>
    %c5_98 = arith.constant 5 : index
    %c0_99 = arith.constant 0 : index
    %c0_100 = arith.constant 0 : index
    %211 = vector.load %arg1[%c5_98, %c0_99, %c0_100] : memref<6x256x512xbf16, #tpu.memory_space<vmem>>, vector<1x256x512xbf16>
    %212 = vector.shape_cast %211 : vector<1x256x512xbf16> to vector<256x512xbf16>
    %cst_101 = arith.constant dense<0.000000e+00> : vector<8x512xf32>
    %213 = tpu.matmul %195, %212, %cst_101 {dimension_numbers = #tpu.dot_dimension_numbers<[1], [0], [0], [1], [0, 0, 1, 1], [], []>} : vector<8x256xbf16>, vector<256x512xbf16>, vector<8x512xf32> -> vector<8x512xf32>
    %c1_i32_102 = arith.constant 1 : i32
    %214 = vector.broadcast %c1_i32_102 : i32 to vector<8x512xi32>
    %215 = arith.cmpi sge, %0, %214 : vector<8x512xi32>
    %216 = arith.select %215, %201, %198 : vector<8x512xi1>, vector<8x512xf32>
    %c3_i32_103 = arith.constant 3 : i32
    %217 = vector.broadcast %c3_i32_103 : i32 to vector<8x512xi32>
    %218 = arith.cmpi sge, %0, %217 : vector<8x512xi32>
    %219 = arith.select %218, %207, %204 : vector<8x512xi1>, vector<8x512xf32>
    %c5_i32_104 = arith.constant 5 : i32
    %220 = vector.broadcast %c5_i32_104 : i32 to vector<8x512xi32>
    %221 = arith.cmpi sge, %0, %220 : vector<8x512xi32>
    %222 = arith.select %221, %213, %210 : vector<8x512xi1>, vector<8x512xf32>
    %c4_i32_105 = arith.constant 4 : i32
    %223 = vector.broadcast %c4_i32_105 : i32 to vector<8x512xi32>
    %224 = arith.cmpi sge, %0, %223 : vector<8x512xi32>
    %c2_i32_106 = arith.constant 2 : i32
    %225 = vector.broadcast %c2_i32_106 : i32 to vector<8x512xi32>
    %226 = arith.cmpi sge, %0, %225 : vector<8x512xi32>
    %227 = arith.select %226, %219, %216 : vector<8x512xi1>, vector<8x512xf32>
    %228 = arith.select %224, %222, %227 : vector<8x512xi1>, vector<8x512xf32>
    %c0_107 = arith.constant 0 : index
    %c0_108 = arith.constant 0 : index
    %229 = vector.load %arg2[%c0_107, %c0_108] : memref<8x512xf32, #tpu.memory_space<vmem>>, vector<8x512xf32>
    %230 = arith.addf %228, %229 : vector<8x512xf32>
    %231 = vector.extract_strided_slice %230 {offsets = [0, 0], sizes = [8, 384], strides = [1, 1]} : vector<8x512xf32> to vector<8x384xf32>
    %232 = arith.negf %231 : vector<8x384xf32>
    %233 = math.exp %232 : vector<8x384xf32>
    %cst_109 = arith.constant 1.000000e+00 : f32
    %234 = vector.broadcast %cst_109 : f32 to vector<8x384xf32>
    %235 = arith.addf %234, %233 : vector<8x384xf32>
    %236 = arith.divf %234, %235 : vector<8x384xf32>
    %237 = vector.extract_strided_slice %236 {offsets = [0, 0], sizes = [8, 128], strides = [1, 1]} : vector<8x384xf32> to vector<8x128xf32>
    %238 = vector.extract_strided_slice %236 {offsets = [0, 128], sizes = [8, 128], strides = [1, 1]} : vector<8x384xf32> to vector<8x128xf32>
    %239 = vector.extract_strided_slice %236 {offsets = [0, 256], sizes = [8, 128], strides = [1, 1]} : vector<8x384xf32> to vector<8x128xf32>
    %240 = vector.extract_strided_slice %230 {offsets = [0, 384], sizes = [8, 128], strides = [1, 1]} : vector<8x512xf32> to vector<8x128xf32>
    %241 = math.tanh %240 : vector<8x128xf32>
    %242 = arith.mulf %238, %153 : vector<8x128xf32>
    %243 = arith.mulf %237, %241 : vector<8x128xf32>
    %244 = arith.addf %242, %243 : vector<8x128xf32>
    %245 = math.tanh %244 : vector<8x128xf32>
    %246 = arith.mulf %239, %245 : vector<8x128xf32>
    %c2_i32_110 = arith.constant 2 : i32
    %247 = vector.broadcast %c2_i32_110 : i32 to vector<8x128xi32>
    %248 = arith.cmpi eq, %1, %247 : vector<8x128xi32>
    %249 = vector.extract_strided_slice %246 {offsets = [0, 0], sizes = [1, 128], strides = [1, 1]} : vector<8x128xf32> to vector<1x128xf32>
    %250 = vector.shape_cast %249 : vector<1x128xf32> to vector<1x128xf32>
    %251 = vector.broadcast %250 : vector<1x128xf32> to vector<8x128xf32>
    %252 = arith.select %248, %251, %161 : vector<8x128xi1>, vector<8x128xf32>
    %c5_i32_111 = arith.constant 5 : i32
    %253 = vector.broadcast %c5_i32_111 : i32 to vector<8x128xi32>
    %254 = arith.cmpi eq, %1, %253 : vector<8x128xi32>
    %255 = vector.extract_strided_slice %246 {offsets = [1, 0], sizes = [1, 128], strides = [1, 1]} : vector<8x128xf32> to vector<1x128xf32>
    %256 = vector.shape_cast %255 : vector<1x128xf32> to vector<1x128xf32>
    %257 = vector.broadcast %256 : vector<1x128xf32> to vector<8x128xf32>
    %258 = arith.select %254, %257, %167 : vector<8x128xi1>, vector<8x128xf32>
    %c2_i32_112 = arith.constant 2 : i32
    %259 = vector.broadcast %c2_i32_112 : i32 to vector<8x128xi32>
    %260 = arith.cmpi eq, %1, %259 : vector<8x128xi32>
    %261 = vector.extract_strided_slice %246 {offsets = [2, 0], sizes = [1, 128], strides = [1, 1]} : vector<8x128xf32> to vector<1x128xf32>
    %262 = vector.shape_cast %261 : vector<1x128xf32> to vector<1x128xf32>
    %263 = vector.broadcast %262 : vector<1x128xf32> to vector<8x128xf32>
    %264 = arith.select %260, %263, %173 : vector<8x128xi1>, vector<8x128xf32>
    %c5_i32_113 = arith.constant 5 : i32
    %265 = vector.broadcast %c5_i32_113 : i32 to vector<8x128xi32>
    %266 = arith.cmpi eq, %1, %265 : vector<8x128xi32>
    %267 = vector.extract_strided_slice %246 {offsets = [3, 0], sizes = [1, 128], strides = [1, 1]} : vector<8x128xf32> to vector<1x128xf32>
    %268 = vector.shape_cast %267 : vector<1x128xf32> to vector<1x128xf32>
    %269 = vector.broadcast %268 : vector<1x128xf32> to vector<8x128xf32>
    %270 = arith.select %266, %269, %179 : vector<8x128xi1>, vector<8x128xf32>
    %c2_i32_114 = arith.constant 2 : i32
    %271 = vector.broadcast %c2_i32_114 : i32 to vector<8x128xi32>
    %272 = arith.cmpi eq, %1, %271 : vector<8x128xi32>
    %273 = vector.extract_strided_slice %246 {offsets = [4, 0], sizes = [1, 128], strides = [1, 1]} : vector<8x128xf32> to vector<1x128xf32>
    %274 = vector.shape_cast %273 : vector<1x128xf32> to vector<1x128xf32>
    %275 = vector.broadcast %274 : vector<1x128xf32> to vector<8x128xf32>
    %276 = arith.select %272, %275, %185 : vector<8x128xi1>, vector<8x128xf32>
    %c5_i32_115 = arith.constant 5 : i32
    %277 = vector.broadcast %c5_i32_115 : i32 to vector<8x128xi32>
    %278 = arith.cmpi eq, %1, %277 : vector<8x128xi32>
    %279 = vector.extract_strided_slice %246 {offsets = [5, 0], sizes = [1, 128], strides = [1, 1]} : vector<8x128xf32> to vector<1x128xf32>
    %280 = vector.shape_cast %279 : vector<1x128xf32> to vector<1x128xf32>
    %281 = vector.broadcast %280 : vector<1x128xf32> to vector<8x128xf32>
    %282 = arith.select %278, %281, %191 : vector<8x128xi1>, vector<8x128xf32>
    %c3_116 = arith.constant 3 : index
    %c0_117 = arith.constant 0 : index
    %c0_118 = arith.constant 0 : index
    %283 = vector.load %arg0[%c3_116, %c0_117, %c0_118] : memref<8x8x128xf32, #tpu.memory_space<vmem>>, vector<1x8x128xf32>
    %284 = vector.shape_cast %283 : vector<1x8x128xf32> to vector<8x128xf32>
    %285 = tpu.concatenate %246, %284 in 1 : vector<8x128xf32>, vector<8x128xf32> -> vector<8x256xf32>
    %286 = arith.truncf %285 : vector<8x256xf32> to vector<8x256xbf16>
    %c0_119 = arith.constant 0 : index
    %c0_120 = arith.constant 0 : index
    %c0_121 = arith.constant 0 : index
    %287 = vector.load %arg1[%c0_119, %c0_120, %c0_121] : memref<6x256x512xbf16, #tpu.memory_space<vmem>>, vector<1x256x512xbf16>
    %288 = vector.shape_cast %287 : vector<1x256x512xbf16> to vector<256x512xbf16>
    %cst_122 = arith.constant dense<0.000000e+00> : vector<8x512xf32>
    %289 = tpu.matmul %286, %288, %cst_122 {dimension_numbers = #tpu.dot_dimension_numbers<[1], [0], [0], [1], [0, 0, 1, 1], [], []>} : vector<8x256xbf16>, vector<256x512xbf16>, vector<8x512xf32> -> vector<8x512xf32>
    %c1_123 = arith.constant 1 : index
    %c0_124 = arith.constant 0 : index
    %c0_125 = arith.constant 0 : index
    %290 = vector.load %arg1[%c1_123, %c0_124, %c0_125] : memref<6x256x512xbf16, #tpu.memory_space<vmem>>, vector<1x256x512xbf16>
    %291 = vector.shape_cast %290 : vector<1x256x512xbf16> to vector<256x512xbf16>
    %cst_126 = arith.constant dense<0.000000e+00> : vector<8x512xf32>
    %292 = tpu.matmul %286, %291, %cst_126 {dimension_numbers = #tpu.dot_dimension_numbers<[1], [0], [0], [1], [0, 0, 1, 1], [], []>} : vector<8x256xbf16>, vector<256x512xbf16>, vector<8x512xf32> -> vector<8x512xf32>
    %c2_127 = arith.constant 2 : index
    %c0_128 = arith.constant 0 : index
    %c0_129 = arith.constant 0 : index
    %293 = vector.load %arg1[%c2_127, %c0_128, %c0_129] : memref<6x256x512xbf16, #tpu.memory_space<vmem>>, vector<1x256x512xbf16>
    %294 = vector.shape_cast %293 : vector<1x256x512xbf16> to vector<256x512xbf16>
    %cst_130 = arith.constant dense<0.000000e+00> : vector<8x512xf32>
    %295 = tpu.matmul %286, %294, %cst_130 {dimension_numbers = #tpu.dot_dimension_numbers<[1], [0], [0], [1], [0, 0, 1, 1], [], []>} : vector<8x256xbf16>, vector<256x512xbf16>, vector<8x512xf32> -> vector<8x512xf32>
    %c3_131 = arith.constant 3 : index
    %c0_132 = arith.constant 0 : index
    %c0_133 = arith.constant 0 : index
    %296 = vector.load %arg1[%c3_131, %c0_132, %c0_133] : memref<6x256x512xbf16, #tpu.memory_space<vmem>>, vector<1x256x512xbf16>
    %297 = vector.shape_cast %296 : vector<1x256x512xbf16> to vector<256x512xbf16>
    %cst_134 = arith.constant dense<0.000000e+00> : vector<8x512xf32>
    %298 = tpu.matmul %286, %297, %cst_134 {dimension_numbers = #tpu.dot_dimension_numbers<[1], [0], [0], [1], [0, 0, 1, 1], [], []>} : vector<8x256xbf16>, vector<256x512xbf16>, vector<8x512xf32> -> vector<8x512xf32>
    %c4_135 = arith.constant 4 : index
    %c0_136 = arith.constant 0 : index
    %c0_137 = arith.constant 0 : index
    %299 = vector.load %arg1[%c4_135, %c0_136, %c0_137] : memref<6x256x512xbf16, #tpu.memory_space<vmem>>, vector<1x256x512xbf16>
    %300 = vector.shape_cast %299 : vector<1x256x512xbf16> to vector<256x512xbf16>
    %cst_138 = arith.constant dense<0.000000e+00> : vector<8x512xf32>
    %301 = tpu.matmul %286, %300, %cst_138 {dimension_numbers = #tpu.dot_dimension_numbers<[1], [0], [0], [1], [0, 0, 1, 1], [], []>} : vector<8x256xbf16>, vector<256x512xbf16>, vector<8x512xf32> -> vector<8x512xf32>
    %c5_139 = arith.constant 5 : index
    %c0_140 = arith.constant 0 : index
    %c0_141 = arith.constant 0 : index
    %302 = vector.load %arg1[%c5_139, %c0_140, %c0_141] : memref<6x256x512xbf16, #tpu.memory_space<vmem>>, vector<1x256x512xbf16>
    %303 = vector.shape_cast %302 : vector<1x256x512xbf16> to vector<256x512xbf16>
    %cst_142 = arith.constant dense<0.000000e+00> : vector<8x512xf32>
    %304 = tpu.matmul %286, %303, %cst_142 {dimension_numbers = #tpu.dot_dimension_numbers<[1], [0], [0], [1], [0, 0, 1, 1], [], []>} : vector<8x256xbf16>, vector<256x512xbf16>, vector<8x512xf32> -> vector<8x512xf32>
    %c1_i32_143 = arith.constant 1 : i32
    %305 = vector.broadcast %c1_i32_143 : i32 to vector<8x512xi32>
    %306 = arith.cmpi sge, %0, %305 : vector<8x512xi32>
    %307 = arith.select %306, %292, %289 : vector<8x512xi1>, vector<8x512xf32>
    %c3_i32_144 = arith.constant 3 : i32
    %308 = vector.broadcast %c3_i32_144 : i32 to vector<8x512xi32>
    %309 = arith.cmpi sge, %0, %308 : vector<8x512xi32>
    %310 = arith.select %309, %298, %295 : vector<8x512xi1>, vector<8x512xf32>
    %c5_i32_145 = arith.constant 5 : i32
    %311 = vector.broadcast %c5_i32_145 : i32 to vector<8x512xi32>
    %312 = arith.cmpi sge, %0, %311 : vector<8x512xi32>
    %313 = arith.select %312, %304, %301 : vector<8x512xi1>, vector<8x512xf32>
    %c4_i32_146 = arith.constant 4 : i32
    %314 = vector.broadcast %c4_i32_146 : i32 to vector<8x512xi32>
    %315 = arith.cmpi sge, %0, %314 : vector<8x512xi32>
    %c2_i32_147 = arith.constant 2 : i32
    %316 = vector.broadcast %c2_i32_147 : i32 to vector<8x512xi32>
    %317 = arith.cmpi sge, %0, %316 : vector<8x512xi32>
    %318 = arith.select %317, %310, %307 : vector<8x512xi1>, vector<8x512xf32>
    %319 = arith.select %315, %313, %318 : vector<8x512xi1>, vector<8x512xf32>
    %c0_148 = arith.constant 0 : index
    %c0_149 = arith.constant 0 : index
    %320 = vector.load %arg2[%c0_148, %c0_149] : memref<8x512xf32, #tpu.memory_space<vmem>>, vector<8x512xf32>
    %321 = arith.addf %319, %320 : vector<8x512xf32>
    %322 = vector.extract_strided_slice %321 {offsets = [0, 0], sizes = [8, 384], strides = [1, 1]} : vector<8x512xf32> to vector<8x384xf32>
    %323 = arith.negf %322 : vector<8x384xf32>
    %324 = math.exp %323 : vector<8x384xf32>
    %cst_150 = arith.constant 1.000000e+00 : f32
    %325 = vector.broadcast %cst_150 : f32 to vector<8x384xf32>
    %326 = arith.addf %325, %324 : vector<8x384xf32>
    %327 = arith.divf %325, %326 : vector<8x384xf32>
    %328 = vector.extract_strided_slice %327 {offsets = [0, 0], sizes = [8, 128], strides = [1, 1]} : vector<8x384xf32> to vector<8x128xf32>
    %329 = vector.extract_strided_slice %327 {offsets = [0, 128], sizes = [8, 128], strides = [1, 1]} : vector<8x384xf32> to vector<8x128xf32>
    %330 = vector.extract_strided_slice %327 {offsets = [0, 256], sizes = [8, 128], strides = [1, 1]} : vector<8x384xf32> to vector<8x128xf32>
    %331 = vector.extract_strided_slice %321 {offsets = [0, 384], sizes = [8, 128], strides = [1, 1]} : vector<8x512xf32> to vector<8x128xf32>
    %332 = math.tanh %331 : vector<8x128xf32>
    %333 = arith.mulf %329, %244 : vector<8x128xf32>
    %334 = arith.mulf %328, %332 : vector<8x128xf32>
    %335 = arith.addf %333, %334 : vector<8x128xf32>
    %336 = math.tanh %335 : vector<8x128xf32>
    %337 = arith.mulf %330, %336 : vector<8x128xf32>
    %c3_i32_151 = arith.constant 3 : i32
    %338 = vector.broadcast %c3_i32_151 : i32 to vector<8x128xi32>
    %339 = arith.cmpi eq, %1, %338 : vector<8x128xi32>
    %340 = vector.extract_strided_slice %337 {offsets = [0, 0], sizes = [1, 128], strides = [1, 1]} : vector<8x128xf32> to vector<1x128xf32>
    %341 = vector.shape_cast %340 : vector<1x128xf32> to vector<1x128xf32>
    %342 = vector.broadcast %341 : vector<1x128xf32> to vector<8x128xf32>
    %343 = arith.select %339, %342, %252 : vector<8x128xi1>, vector<8x128xf32>
    %c4_i32_152 = arith.constant 4 : i32
    %344 = vector.broadcast %c4_i32_152 : i32 to vector<8x128xi32>
    %345 = arith.cmpi eq, %1, %344 : vector<8x128xi32>
    %346 = vector.extract_strided_slice %337 {offsets = [1, 0], sizes = [1, 128], strides = [1, 1]} : vector<8x128xf32> to vector<1x128xf32>
    %347 = vector.shape_cast %346 : vector<1x128xf32> to vector<1x128xf32>
    %348 = vector.broadcast %347 : vector<1x128xf32> to vector<8x128xf32>
    %349 = arith.select %345, %348, %258 : vector<8x128xi1>, vector<8x128xf32>
    %c3_i32_153 = arith.constant 3 : i32
    %350 = vector.broadcast %c3_i32_153 : i32 to vector<8x128xi32>
    %351 = arith.cmpi eq, %1, %350 : vector<8x128xi32>
    %352 = vector.extract_strided_slice %337 {offsets = [2, 0], sizes = [1, 128], strides = [1, 1]} : vector<8x128xf32> to vector<1x128xf32>
    %353 = vector.shape_cast %352 : vector<1x128xf32> to vector<1x128xf32>
    %354 = vector.broadcast %353 : vector<1x128xf32> to vector<8x128xf32>
    %355 = arith.select %351, %354, %264 : vector<8x128xi1>, vector<8x128xf32>
    %c4_i32_154 = arith.constant 4 : i32
    %356 = vector.broadcast %c4_i32_154 : i32 to vector<8x128xi32>
    %357 = arith.cmpi eq, %1, %356 : vector<8x128xi32>
    %358 = vector.extract_strided_slice %337 {offsets = [3, 0], sizes = [1, 128], strides = [1, 1]} : vector<8x128xf32> to vector<1x128xf32>
    %359 = vector.shape_cast %358 : vector<1x128xf32> to vector<1x128xf32>
    %360 = vector.broadcast %359 : vector<1x128xf32> to vector<8x128xf32>
    %361 = arith.select %357, %360, %270 : vector<8x128xi1>, vector<8x128xf32>
    %c3_i32_155 = arith.constant 3 : i32
    %362 = vector.broadcast %c3_i32_155 : i32 to vector<8x128xi32>
    %363 = arith.cmpi eq, %1, %362 : vector<8x128xi32>
    %364 = vector.extract_strided_slice %337 {offsets = [4, 0], sizes = [1, 128], strides = [1, 1]} : vector<8x128xf32> to vector<1x128xf32>
    %365 = vector.shape_cast %364 : vector<1x128xf32> to vector<1x128xf32>
    %366 = vector.broadcast %365 : vector<1x128xf32> to vector<8x128xf32>
    %367 = arith.select %363, %366, %276 : vector<8x128xi1>, vector<8x128xf32>
    %c4_i32_156 = arith.constant 4 : i32
    %368 = vector.broadcast %c4_i32_156 : i32 to vector<8x128xi32>
    %369 = arith.cmpi eq, %1, %368 : vector<8x128xi32>
    %370 = vector.extract_strided_slice %337 {offsets = [5, 0], sizes = [1, 128], strides = [1, 1]} : vector<8x128xf32> to vector<1x128xf32>
    %371 = vector.shape_cast %370 : vector<1x128xf32> to vector<1x128xf32>
    %372 = vector.broadcast %371 : vector<1x128xf32> to vector<8x128xf32>
    %373 = arith.select %369, %372, %282 : vector<8x128xi1>, vector<8x128xf32>
    %c4_157 = arith.constant 4 : index
    %c0_158 = arith.constant 0 : index
    %c0_159 = arith.constant 0 : index
    %374 = vector.load %arg0[%c4_157, %c0_158, %c0_159] : memref<8x8x128xf32, #tpu.memory_space<vmem>>, vector<1x8x128xf32>
    %375 = vector.shape_cast %374 : vector<1x8x128xf32> to vector<8x128xf32>
    %376 = tpu.concatenate %337, %375 in 1 : vector<8x128xf32>, vector<8x128xf32> -> vector<8x256xf32>
    %377 = arith.truncf %376 : vector<8x256xf32> to vector<8x256xbf16>
    %c0_160 = arith.constant 0 : index
    %c0_161 = arith.constant 0 : index
    %c0_162 = arith.constant 0 : index
    %378 = vector.load %arg1[%c0_160, %c0_161, %c0_162] : memref<6x256x512xbf16, #tpu.memory_space<vmem>>, vector<1x256x512xbf16>
    %379 = vector.shape_cast %378 : vector<1x256x512xbf16> to vector<256x512xbf16>
    %cst_163 = arith.constant dense<0.000000e+00> : vector<8x512xf32>
    %380 = tpu.matmul %377, %379, %cst_163 {dimension_numbers = #tpu.dot_dimension_numbers<[1], [0], [0], [1], [0, 0, 1, 1], [], []>} : vector<8x256xbf16>, vector<256x512xbf16>, vector<8x512xf32> -> vector<8x512xf32>
    %c1_164 = arith.constant 1 : index
    %c0_165 = arith.constant 0 : index
    %c0_166 = arith.constant 0 : index
    %381 = vector.load %arg1[%c1_164, %c0_165, %c0_166] : memref<6x256x512xbf16, #tpu.memory_space<vmem>>, vector<1x256x512xbf16>
    %382 = vector.shape_cast %381 : vector<1x256x512xbf16> to vector<256x512xbf16>
    %cst_167 = arith.constant dense<0.000000e+00> : vector<8x512xf32>
    %383 = tpu.matmul %377, %382, %cst_167 {dimension_numbers = #tpu.dot_dimension_numbers<[1], [0], [0], [1], [0, 0, 1, 1], [], []>} : vector<8x256xbf16>, vector<256x512xbf16>, vector<8x512xf32> -> vector<8x512xf32>
    %c2_168 = arith.constant 2 : index
    %c0_169 = arith.constant 0 : index
    %c0_170 = arith.constant 0 : index
    %384 = vector.load %arg1[%c2_168, %c0_169, %c0_170] : memref<6x256x512xbf16, #tpu.memory_space<vmem>>, vector<1x256x512xbf16>
    %385 = vector.shape_cast %384 : vector<1x256x512xbf16> to vector<256x512xbf16>
    %cst_171 = arith.constant dense<0.000000e+00> : vector<8x512xf32>
    %386 = tpu.matmul %377, %385, %cst_171 {dimension_numbers = #tpu.dot_dimension_numbers<[1], [0], [0], [1], [0, 0, 1, 1], [], []>} : vector<8x256xbf16>, vector<256x512xbf16>, vector<8x512xf32> -> vector<8x512xf32>
    %c3_172 = arith.constant 3 : index
    %c0_173 = arith.constant 0 : index
    %c0_174 = arith.constant 0 : index
    %387 = vector.load %arg1[%c3_172, %c0_173, %c0_174] : memref<6x256x512xbf16, #tpu.memory_space<vmem>>, vector<1x256x512xbf16>
    %388 = vector.shape_cast %387 : vector<1x256x512xbf16> to vector<256x512xbf16>
    %cst_175 = arith.constant dense<0.000000e+00> : vector<8x512xf32>
    %389 = tpu.matmul %377, %388, %cst_175 {dimension_numbers = #tpu.dot_dimension_numbers<[1], [0], [0], [1], [0, 0, 1, 1], [], []>} : vector<8x256xbf16>, vector<256x512xbf16>, vector<8x512xf32> -> vector<8x512xf32>
    %c4_176 = arith.constant 4 : index
    %c0_177 = arith.constant 0 : index
    %c0_178 = arith.constant 0 : index
    %390 = vector.load %arg1[%c4_176, %c0_177, %c0_178] : memref<6x256x512xbf16, #tpu.memory_space<vmem>>, vector<1x256x512xbf16>
    %391 = vector.shape_cast %390 : vector<1x256x512xbf16> to vector<256x512xbf16>
    %cst_179 = arith.constant dense<0.000000e+00> : vector<8x512xf32>
    %392 = tpu.matmul %377, %391, %cst_179 {dimension_numbers = #tpu.dot_dimension_numbers<[1], [0], [0], [1], [0, 0, 1, 1], [], []>} : vector<8x256xbf16>, vector<256x512xbf16>, vector<8x512xf32> -> vector<8x512xf32>
    %c5_180 = arith.constant 5 : index
    %c0_181 = arith.constant 0 : index
    %c0_182 = arith.constant 0 : index
    %393 = vector.load %arg1[%c5_180, %c0_181, %c0_182] : memref<6x256x512xbf16, #tpu.memory_space<vmem>>, vector<1x256x512xbf16>
    %394 = vector.shape_cast %393 : vector<1x256x512xbf16> to vector<256x512xbf16>
    %cst_183 = arith.constant dense<0.000000e+00> : vector<8x512xf32>
    %395 = tpu.matmul %377, %394, %cst_183 {dimension_numbers = #tpu.dot_dimension_numbers<[1], [0], [0], [1], [0, 0, 1, 1], [], []>} : vector<8x256xbf16>, vector<256x512xbf16>, vector<8x512xf32> -> vector<8x512xf32>
    %c1_i32_184 = arith.constant 1 : i32
    %396 = vector.broadcast %c1_i32_184 : i32 to vector<8x512xi32>
    %397 = arith.cmpi sge, %0, %396 : vector<8x512xi32>
    %398 = arith.select %397, %383, %380 : vector<8x512xi1>, vector<8x512xf32>
    %c3_i32_185 = arith.constant 3 : i32
    %399 = vector.broadcast %c3_i32_185 : i32 to vector<8x512xi32>
    %400 = arith.cmpi sge, %0, %399 : vector<8x512xi32>
    %401 = arith.select %400, %389, %386 : vector<8x512xi1>, vector<8x512xf32>
    %c5_i32_186 = arith.constant 5 : i32
    %402 = vector.broadcast %c5_i32_186 : i32 to vector<8x512xi32>
    %403 = arith.cmpi sge, %0, %402 : vector<8x512xi32>
    %404 = arith.select %403, %395, %392 : vector<8x512xi1>, vector<8x512xf32>
    %c4_i32_187 = arith.constant 4 : i32
    %405 = vector.broadcast %c4_i32_187 : i32 to vector<8x512xi32>
    %406 = arith.cmpi sge, %0, %405 : vector<8x512xi32>
    %c2_i32_188 = arith.constant 2 : i32
    %407 = vector.broadcast %c2_i32_188 : i32 to vector<8x512xi32>
    %408 = arith.cmpi sge, %0, %407 : vector<8x512xi32>
    %409 = arith.select %408, %401, %398 : vector<8x512xi1>, vector<8x512xf32>
    %410 = arith.select %406, %404, %409 : vector<8x512xi1>, vector<8x512xf32>
    %c0_189 = arith.constant 0 : index
    %c0_190 = arith.constant 0 : index
    %411 = vector.load %arg2[%c0_189, %c0_190] : memref<8x512xf32, #tpu.memory_space<vmem>>, vector<8x512xf32>
    %412 = arith.addf %410, %411 : vector<8x512xf32>
    %413 = vector.extract_strided_slice %412 {offsets = [0, 0], sizes = [8, 384], strides = [1, 1]} : vector<8x512xf32> to vector<8x384xf32>
    %414 = arith.negf %413 : vector<8x384xf32>
    %415 = math.exp %414 : vector<8x384xf32>
    %cst_191 = arith.constant 1.000000e+00 : f32
    %416 = vector.broadcast %cst_191 : f32 to vector<8x384xf32>
    %417 = arith.addf %416, %415 : vector<8x384xf32>
    %418 = arith.divf %416, %417 : vector<8x384xf32>
    %419 = vector.extract_strided_slice %418 {offsets = [0, 0], sizes = [8, 128], strides = [1, 1]} : vector<8x384xf32> to vector<8x128xf32>
    %420 = vector.extract_strided_slice %418 {offsets = [0, 128], sizes = [8, 128], strides = [1, 1]} : vector<8x384xf32> to vector<8x128xf32>
    %421 = vector.extract_strided_slice %418 {offsets = [0, 256], sizes = [8, 128], strides = [1, 1]} : vector<8x384xf32> to vector<8x128xf32>
    %422 = vector.extract_strided_slice %412 {offsets = [0, 384], sizes = [8, 128], strides = [1, 1]} : vector<8x512xf32> to vector<8x128xf32>
    %423 = math.tanh %422 : vector<8x128xf32>
    %424 = arith.mulf %420, %335 : vector<8x128xf32>
    %425 = arith.mulf %419, %423 : vector<8x128xf32>
    %426 = arith.addf %424, %425 : vector<8x128xf32>
    %427 = math.tanh %426 : vector<8x128xf32>
    %428 = arith.mulf %421, %427 : vector<8x128xf32>
    %c4_i32_192 = arith.constant 4 : i32
    %429 = vector.broadcast %c4_i32_192 : i32 to vector<8x128xi32>
    %430 = arith.cmpi eq, %1, %429 : vector<8x128xi32>
    %431 = vector.extract_strided_slice %428 {offsets = [0, 0], sizes = [1, 128], strides = [1, 1]} : vector<8x128xf32> to vector<1x128xf32>
    %432 = vector.shape_cast %431 : vector<1x128xf32> to vector<1x128xf32>
    %433 = vector.broadcast %432 : vector<1x128xf32> to vector<8x128xf32>
    %434 = arith.select %430, %433, %343 : vector<8x128xi1>, vector<8x128xf32>
    %c3_i32_193 = arith.constant 3 : i32
    %435 = vector.broadcast %c3_i32_193 : i32 to vector<8x128xi32>
    %436 = arith.cmpi eq, %1, %435 : vector<8x128xi32>
    %437 = vector.extract_strided_slice %428 {offsets = [1, 0], sizes = [1, 128], strides = [1, 1]} : vector<8x128xf32> to vector<1x128xf32>
    %438 = vector.shape_cast %437 : vector<1x128xf32> to vector<1x128xf32>
    %439 = vector.broadcast %438 : vector<1x128xf32> to vector<8x128xf32>
    %440 = arith.select %436, %439, %349 : vector<8x128xi1>, vector<8x128xf32>
    %c4_i32_194 = arith.constant 4 : i32
    %441 = vector.broadcast %c4_i32_194 : i32 to vector<8x128xi32>
    %442 = arith.cmpi eq, %1, %441 : vector<8x128xi32>
    %443 = vector.extract_strided_slice %428 {offsets = [2, 0], sizes = [1, 128], strides = [1, 1]} : vector<8x128xf32> to vector<1x128xf32>
    %444 = vector.shape_cast %443 : vector<1x128xf32> to vector<1x128xf32>
    %445 = vector.broadcast %444 : vector<1x128xf32> to vector<8x128xf32>
    %446 = arith.select %442, %445, %355 : vector<8x128xi1>, vector<8x128xf32>
    %c3_i32_195 = arith.constant 3 : i32
    %447 = vector.broadcast %c3_i32_195 : i32 to vector<8x128xi32>
    %448 = arith.cmpi eq, %1, %447 : vector<8x128xi32>
    %449 = vector.extract_strided_slice %428 {offsets = [3, 0], sizes = [1, 128], strides = [1, 1]} : vector<8x128xf32> to vector<1x128xf32>
    %450 = vector.shape_cast %449 : vector<1x128xf32> to vector<1x128xf32>
    %451 = vector.broadcast %450 : vector<1x128xf32> to vector<8x128xf32>
    %452 = arith.select %448, %451, %361 : vector<8x128xi1>, vector<8x128xf32>
    %c4_i32_196 = arith.constant 4 : i32
    %453 = vector.broadcast %c4_i32_196 : i32 to vector<8x128xi32>
    %454 = arith.cmpi eq, %1, %453 : vector<8x128xi32>
    %455 = vector.extract_strided_slice %428 {offsets = [4, 0], sizes = [1, 128], strides = [1, 1]} : vector<8x128xf32> to vector<1x128xf32>
    %456 = vector.shape_cast %455 : vector<1x128xf32> to vector<1x128xf32>
    %457 = vector.broadcast %456 : vector<1x128xf32> to vector<8x128xf32>
    %458 = arith.select %454, %457, %367 : vector<8x128xi1>, vector<8x128xf32>
    %c3_i32_197 = arith.constant 3 : i32
    %459 = vector.broadcast %c3_i32_197 : i32 to vector<8x128xi32>
    %460 = arith.cmpi eq, %1, %459 : vector<8x128xi32>
    %461 = vector.extract_strided_slice %428 {offsets = [5, 0], sizes = [1, 128], strides = [1, 1]} : vector<8x128xf32> to vector<1x128xf32>
    %462 = vector.shape_cast %461 : vector<1x128xf32> to vector<1x128xf32>
    %463 = vector.broadcast %462 : vector<1x128xf32> to vector<8x128xf32>
    %464 = arith.select %460, %463, %373 : vector<8x128xi1>, vector<8x128xf32>
    %c5_198 = arith.constant 5 : index
    %c0_199 = arith.constant 0 : index
    %c0_200 = arith.constant 0 : index
    %465 = vector.load %arg0[%c5_198, %c0_199, %c0_200] : memref<8x8x128xf32, #tpu.memory_space<vmem>>, vector<1x8x128xf32>
    %466 = vector.shape_cast %465 : vector<1x8x128xf32> to vector<8x128xf32>
    %467 = tpu.concatenate %428, %466 in 1 : vector<8x128xf32>, vector<8x128xf32> -> vector<8x256xf32>
    %468 = arith.truncf %467 : vector<8x256xf32> to vector<8x256xbf16>
    %c0_201 = arith.constant 0 : index
    %c0_202 = arith.constant 0 : index
    %c0_203 = arith.constant 0 : index
    %469 = vector.load %arg1[%c0_201, %c0_202, %c0_203] : memref<6x256x512xbf16, #tpu.memory_space<vmem>>, vector<1x256x512xbf16>
    %470 = vector.shape_cast %469 : vector<1x256x512xbf16> to vector<256x512xbf16>
    %cst_204 = arith.constant dense<0.000000e+00> : vector<8x512xf32>
    %471 = tpu.matmul %468, %470, %cst_204 {dimension_numbers = #tpu.dot_dimension_numbers<[1], [0], [0], [1], [0, 0, 1, 1], [], []>} : vector<8x256xbf16>, vector<256x512xbf16>, vector<8x512xf32> -> vector<8x512xf32>
    %c1_205 = arith.constant 1 : index
    %c0_206 = arith.constant 0 : index
    %c0_207 = arith.constant 0 : index
    %472 = vector.load %arg1[%c1_205, %c0_206, %c0_207] : memref<6x256x512xbf16, #tpu.memory_space<vmem>>, vector<1x256x512xbf16>
    %473 = vector.shape_cast %472 : vector<1x256x512xbf16> to vector<256x512xbf16>
    %cst_208 = arith.constant dense<0.000000e+00> : vector<8x512xf32>
    %474 = tpu.matmul %468, %473, %cst_208 {dimension_numbers = #tpu.dot_dimension_numbers<[1], [0], [0], [1], [0, 0, 1, 1], [], []>} : vector<8x256xbf16>, vector<256x512xbf16>, vector<8x512xf32> -> vector<8x512xf32>
    %c2_209 = arith.constant 2 : index
    %c0_210 = arith.constant 0 : index
    %c0_211 = arith.constant 0 : index
    %475 = vector.load %arg1[%c2_209, %c0_210, %c0_211] : memref<6x256x512xbf16, #tpu.memory_space<vmem>>, vector<1x256x512xbf16>
    %476 = vector.shape_cast %475 : vector<1x256x512xbf16> to vector<256x512xbf16>
    %cst_212 = arith.constant dense<0.000000e+00> : vector<8x512xf32>
    %477 = tpu.matmul %468, %476, %cst_212 {dimension_numbers = #tpu.dot_dimension_numbers<[1], [0], [0], [1], [0, 0, 1, 1], [], []>} : vector<8x256xbf16>, vector<256x512xbf16>, vector<8x512xf32> -> vector<8x512xf32>
    %c3_213 = arith.constant 3 : index
    %c0_214 = arith.constant 0 : index
    %c0_215 = arith.constant 0 : index
    %478 = vector.load %arg1[%c3_213, %c0_214, %c0_215] : memref<6x256x512xbf16, #tpu.memory_space<vmem>>, vector<1x256x512xbf16>
    %479 = vector.shape_cast %478 : vector<1x256x512xbf16> to vector<256x512xbf16>
    %cst_216 = arith.constant dense<0.000000e+00> : vector<8x512xf32>
    %480 = tpu.matmul %468, %479, %cst_216 {dimension_numbers = #tpu.dot_dimension_numbers<[1], [0], [0], [1], [0, 0, 1, 1], [], []>} : vector<8x256xbf16>, vector<256x512xbf16>, vector<8x512xf32> -> vector<8x512xf32>
    %c4_217 = arith.constant 4 : index
    %c0_218 = arith.constant 0 : index
    %c0_219 = arith.constant 0 : index
    %481 = vector.load %arg1[%c4_217, %c0_218, %c0_219] : memref<6x256x512xbf16, #tpu.memory_space<vmem>>, vector<1x256x512xbf16>
    %482 = vector.shape_cast %481 : vector<1x256x512xbf16> to vector<256x512xbf16>
    %cst_220 = arith.constant dense<0.000000e+00> : vector<8x512xf32>
    %483 = tpu.matmul %468, %482, %cst_220 {dimension_numbers = #tpu.dot_dimension_numbers<[1], [0], [0], [1], [0, 0, 1, 1], [], []>} : vector<8x256xbf16>, vector<256x512xbf16>, vector<8x512xf32> -> vector<8x512xf32>
    %c5_221 = arith.constant 5 : index
    %c0_222 = arith.constant 0 : index
    %c0_223 = arith.constant 0 : index
    %484 = vector.load %arg1[%c5_221, %c0_222, %c0_223] : memref<6x256x512xbf16, #tpu.memory_space<vmem>>, vector<1x256x512xbf16>
    %485 = vector.shape_cast %484 : vector<1x256x512xbf16> to vector<256x512xbf16>
    %cst_224 = arith.constant dense<0.000000e+00> : vector<8x512xf32>
    %486 = tpu.matmul %468, %485, %cst_224 {dimension_numbers = #tpu.dot_dimension_numbers<[1], [0], [0], [1], [0, 0, 1, 1], [], []>} : vector<8x256xbf16>, vector<256x512xbf16>, vector<8x512xf32> -> vector<8x512xf32>
    %c1_i32_225 = arith.constant 1 : i32
    %487 = vector.broadcast %c1_i32_225 : i32 to vector<8x512xi32>
    %488 = arith.cmpi sge, %0, %487 : vector<8x512xi32>
    %489 = arith.select %488, %474, %471 : vector<8x512xi1>, vector<8x512xf32>
    %c3_i32_226 = arith.constant 3 : i32
    %490 = vector.broadcast %c3_i32_226 : i32 to vector<8x512xi32>
    %491 = arith.cmpi sge, %0, %490 : vector<8x512xi32>
    %492 = arith.select %491, %480, %477 : vector<8x512xi1>, vector<8x512xf32>
    %c5_i32_227 = arith.constant 5 : i32
    %493 = vector.broadcast %c5_i32_227 : i32 to vector<8x512xi32>
    %494 = arith.cmpi sge, %0, %493 : vector<8x512xi32>
    %495 = arith.select %494, %486, %483 : vector<8x512xi1>, vector<8x512xf32>
    %c4_i32_228 = arith.constant 4 : i32
    %496 = vector.broadcast %c4_i32_228 : i32 to vector<8x512xi32>
    %497 = arith.cmpi sge, %0, %496 : vector<8x512xi32>
    %c2_i32_229 = arith.constant 2 : i32
    %498 = vector.broadcast %c2_i32_229 : i32 to vector<8x512xi32>
    %499 = arith.cmpi sge, %0, %498 : vector<8x512xi32>
    %500 = arith.select %499, %492, %489 : vector<8x512xi1>, vector<8x512xf32>
    %501 = arith.select %497, %495, %500 : vector<8x512xi1>, vector<8x512xf32>
    %c0_230 = arith.constant 0 : index
    %c0_231 = arith.constant 0 : index
    %502 = vector.load %arg2[%c0_230, %c0_231] : memref<8x512xf32, #tpu.memory_space<vmem>>, vector<8x512xf32>
    %503 = arith.addf %501, %502 : vector<8x512xf32>
    %504 = vector.extract_strided_slice %503 {offsets = [0, 0], sizes = [8, 384], strides = [1, 1]} : vector<8x512xf32> to vector<8x384xf32>
    %505 = arith.negf %504 : vector<8x384xf32>
    %506 = math.exp %505 : vector<8x384xf32>
    %cst_232 = arith.constant 1.000000e+00 : f32
    %507 = vector.broadcast %cst_232 : f32 to vector<8x384xf32>
    %508 = arith.addf %507, %506 : vector<8x384xf32>
    %509 = arith.divf %507, %508 : vector<8x384xf32>
    %510 = vector.extract_strided_slice %509 {offsets = [0, 0], sizes = [8, 128], strides = [1, 1]} : vector<8x384xf32> to vector<8x128xf32>
    %511 = vector.extract_strided_slice %509 {offsets = [0, 128], sizes = [8, 128], strides = [1, 1]} : vector<8x384xf32> to vector<8x128xf32>
    %512 = vector.extract_strided_slice %509 {offsets = [0, 256], sizes = [8, 128], strides = [1, 1]} : vector<8x384xf32> to vector<8x128xf32>
    %513 = vector.extract_strided_slice %503 {offsets = [0, 384], sizes = [8, 128], strides = [1, 1]} : vector<8x512xf32> to vector<8x128xf32>
    %514 = math.tanh %513 : vector<8x128xf32>
    %515 = arith.mulf %511, %426 : vector<8x128xf32>
    %516 = arith.mulf %510, %514 : vector<8x128xf32>
    %517 = arith.addf %515, %516 : vector<8x128xf32>
    %518 = math.tanh %517 : vector<8x128xf32>
    %519 = arith.mulf %512, %518 : vector<8x128xf32>
    %c5_i32_233 = arith.constant 5 : i32
    %520 = vector.broadcast %c5_i32_233 : i32 to vector<8x128xi32>
    %521 = arith.cmpi eq, %1, %520 : vector<8x128xi32>
    %522 = vector.extract_strided_slice %519 {offsets = [0, 0], sizes = [1, 128], strides = [1, 1]} : vector<8x128xf32> to vector<1x128xf32>
    %523 = vector.shape_cast %522 : vector<1x128xf32> to vector<1x128xf32>
    %524 = vector.broadcast %523 : vector<1x128xf32> to vector<8x128xf32>
    %525 = arith.select %521, %524, %434 : vector<8x128xi1>, vector<8x128xf32>
    %c2_i32_234 = arith.constant 2 : i32
    %526 = vector.broadcast %c2_i32_234 : i32 to vector<8x128xi32>
    %527 = arith.cmpi eq, %1, %526 : vector<8x128xi32>
    %528 = vector.extract_strided_slice %519 {offsets = [1, 0], sizes = [1, 128], strides = [1, 1]} : vector<8x128xf32> to vector<1x128xf32>
    %529 = vector.shape_cast %528 : vector<1x128xf32> to vector<1x128xf32>
    %530 = vector.broadcast %529 : vector<1x128xf32> to vector<8x128xf32>
    %531 = arith.select %527, %530, %440 : vector<8x128xi1>, vector<8x128xf32>
    %c5_i32_235 = arith.constant 5 : i32
    %532 = vector.broadcast %c5_i32_235 : i32 to vector<8x128xi32>
    %533 = arith.cmpi eq, %1, %532 : vector<8x128xi32>
    %534 = vector.extract_strided_slice %519 {offsets = [2, 0], sizes = [1, 128], strides = [1, 1]} : vector<8x128xf32> to vector<1x128xf32>
    %535 = vector.shape_cast %534 : vector<1x128xf32> to vector<1x128xf32>
    %536 = vector.broadcast %535 : vector<1x128xf32> to vector<8x128xf32>
    %537 = arith.select %533, %536, %446 : vector<8x128xi1>, vector<8x128xf32>
    %c2_i32_236 = arith.constant 2 : i32
    %538 = vector.broadcast %c2_i32_236 : i32 to vector<8x128xi32>
    %539 = arith.cmpi eq, %1, %538 : vector<8x128xi32>
    %540 = vector.extract_strided_slice %519 {offsets = [3, 0], sizes = [1, 128], strides = [1, 1]} : vector<8x128xf32> to vector<1x128xf32>
    %541 = vector.shape_cast %540 : vector<1x128xf32> to vector<1x128xf32>
    %542 = vector.broadcast %541 : vector<1x128xf32> to vector<8x128xf32>
    %543 = arith.select %539, %542, %452 : vector<8x128xi1>, vector<8x128xf32>
    %c5_i32_237 = arith.constant 5 : i32
    %544 = vector.broadcast %c5_i32_237 : i32 to vector<8x128xi32>
    %545 = arith.cmpi eq, %1, %544 : vector<8x128xi32>
    %546 = vector.extract_strided_slice %519 {offsets = [4, 0], sizes = [1, 128], strides = [1, 1]} : vector<8x128xf32> to vector<1x128xf32>
    %547 = vector.shape_cast %546 : vector<1x128xf32> to vector<1x128xf32>
    %548 = vector.broadcast %547 : vector<1x128xf32> to vector<8x128xf32>
    %549 = arith.select %545, %548, %458 : vector<8x128xi1>, vector<8x128xf32>
    %c2_i32_238 = arith.constant 2 : i32
    %550 = vector.broadcast %c2_i32_238 : i32 to vector<8x128xi32>
    %551 = arith.cmpi eq, %1, %550 : vector<8x128xi32>
    %552 = vector.extract_strided_slice %519 {offsets = [5, 0], sizes = [1, 128], strides = [1, 1]} : vector<8x128xf32> to vector<1x128xf32>
    %553 = vector.shape_cast %552 : vector<1x128xf32> to vector<1x128xf32>
    %554 = vector.broadcast %553 : vector<1x128xf32> to vector<8x128xf32>
    %555 = arith.select %551, %554, %464 : vector<8x128xi1>, vector<8x128xf32>
    %c6 = arith.constant 6 : index
    %c0_239 = arith.constant 0 : index
    %c0_240 = arith.constant 0 : index
    %556 = vector.load %arg0[%c6, %c0_239, %c0_240] : memref<8x8x128xf32, #tpu.memory_space<vmem>>, vector<1x8x128xf32>
    %557 = vector.shape_cast %556 : vector<1x8x128xf32> to vector<8x128xf32>
    %558 = tpu.concatenate %519, %557 in 1 : vector<8x128xf32>, vector<8x128xf32> -> vector<8x256xf32>
    %559 = arith.truncf %558 : vector<8x256xf32> to vector<8x256xbf16>
    %c0_241 = arith.constant 0 : index
    %c0_242 = arith.constant 0 : index
    %c0_243 = arith.constant 0 : index
    %560 = vector.load %arg1[%c0_241, %c0_242, %c0_243] : memref<6x256x512xbf16, #tpu.memory_space<vmem>>, vector<1x256x512xbf16>
    %561 = vector.shape_cast %560 : vector<1x256x512xbf16> to vector<256x512xbf16>
    %cst_244 = arith.constant dense<0.000000e+00> : vector<8x512xf32>
    %562 = tpu.matmul %559, %561, %cst_244 {dimension_numbers = #tpu.dot_dimension_numbers<[1], [0], [0], [1], [0, 0, 1, 1], [], []>} : vector<8x256xbf16>, vector<256x512xbf16>, vector<8x512xf32> -> vector<8x512xf32>
    %c1_245 = arith.constant 1 : index
    %c0_246 = arith.constant 0 : index
    %c0_247 = arith.constant 0 : index
    %563 = vector.load %arg1[%c1_245, %c0_246, %c0_247] : memref<6x256x512xbf16, #tpu.memory_space<vmem>>, vector<1x256x512xbf16>
    %564 = vector.shape_cast %563 : vector<1x256x512xbf16> to vector<256x512xbf16>
    %cst_248 = arith.constant dense<0.000000e+00> : vector<8x512xf32>
    %565 = tpu.matmul %559, %564, %cst_248 {dimension_numbers = #tpu.dot_dimension_numbers<[1], [0], [0], [1], [0, 0, 1, 1], [], []>} : vector<8x256xbf16>, vector<256x512xbf16>, vector<8x512xf32> -> vector<8x512xf32>
    %c2_249 = arith.constant 2 : index
    %c0_250 = arith.constant 0 : index
    %c0_251 = arith.constant 0 : index
    %566 = vector.load %arg1[%c2_249, %c0_250, %c0_251] : memref<6x256x512xbf16, #tpu.memory_space<vmem>>, vector<1x256x512xbf16>
    %567 = vector.shape_cast %566 : vector<1x256x512xbf16> to vector<256x512xbf16>
    %cst_252 = arith.constant dense<0.000000e+00> : vector<8x512xf32>
    %568 = tpu.matmul %559, %567, %cst_252 {dimension_numbers = #tpu.dot_dimension_numbers<[1], [0], [0], [1], [0, 0, 1, 1], [], []>} : vector<8x256xbf16>, vector<256x512xbf16>, vector<8x512xf32> -> vector<8x512xf32>
    %c3_253 = arith.constant 3 : index
    %c0_254 = arith.constant 0 : index
    %c0_255 = arith.constant 0 : index
    %569 = vector.load %arg1[%c3_253, %c0_254, %c0_255] : memref<6x256x512xbf16, #tpu.memory_space<vmem>>, vector<1x256x512xbf16>
    %570 = vector.shape_cast %569 : vector<1x256x512xbf16> to vector<256x512xbf16>
    %cst_256 = arith.constant dense<0.000000e+00> : vector<8x512xf32>
    %571 = tpu.matmul %559, %570, %cst_256 {dimension_numbers = #tpu.dot_dimension_numbers<[1], [0], [0], [1], [0, 0, 1, 1], [], []>} : vector<8x256xbf16>, vector<256x512xbf16>, vector<8x512xf32> -> vector<8x512xf32>
    %c4_257 = arith.constant 4 : index
    %c0_258 = arith.constant 0 : index
    %c0_259 = arith.constant 0 : index
    %572 = vector.load %arg1[%c4_257, %c0_258, %c0_259] : memref<6x256x512xbf16, #tpu.memory_space<vmem>>, vector<1x256x512xbf16>
    %573 = vector.shape_cast %572 : vector<1x256x512xbf16> to vector<256x512xbf16>
    %cst_260 = arith.constant dense<0.000000e+00> : vector<8x512xf32>
    %574 = tpu.matmul %559, %573, %cst_260 {dimension_numbers = #tpu.dot_dimension_numbers<[1], [0], [0], [1], [0, 0, 1, 1], [], []>} : vector<8x256xbf16>, vector<256x512xbf16>, vector<8x512xf32> -> vector<8x512xf32>
    %c5_261 = arith.constant 5 : index
    %c0_262 = arith.constant 0 : index
    %c0_263 = arith.constant 0 : index
    %575 = vector.load %arg1[%c5_261, %c0_262, %c0_263] : memref<6x256x512xbf16, #tpu.memory_space<vmem>>, vector<1x256x512xbf16>
    %576 = vector.shape_cast %575 : vector<1x256x512xbf16> to vector<256x512xbf16>
    %cst_264 = arith.constant dense<0.000000e+00> : vector<8x512xf32>
    %577 = tpu.matmul %559, %576, %cst_264 {dimension_numbers = #tpu.dot_dimension_numbers<[1], [0], [0], [1], [0, 0, 1, 1], [], []>} : vector<8x256xbf16>, vector<256x512xbf16>, vector<8x512xf32> -> vector<8x512xf32>
    %c1_i32_265 = arith.constant 1 : i32
    %578 = vector.broadcast %c1_i32_265 : i32 to vector<8x512xi32>
    %579 = arith.cmpi sge, %0, %578 : vector<8x512xi32>
    %580 = arith.select %579, %565, %562 : vector<8x512xi1>, vector<8x512xf32>
    %c3_i32_266 = arith.constant 3 : i32
    %581 = vector.broadcast %c3_i32_266 : i32 to vector<8x512xi32>
    %582 = arith.cmpi sge, %0, %581 : vector<8x512xi32>
    %583 = arith.select %582, %571, %568 : vector<8x512xi1>, vector<8x512xf32>
    %c5_i32_267 = arith.constant 5 : i32
    %584 = vector.broadcast %c5_i32_267 : i32 to vector<8x512xi32>
    %585 = arith.cmpi sge, %0, %584 : vector<8x512xi32>
    %586 = arith.select %585, %577, %574 : vector<8x512xi1>, vector<8x512xf32>
    %c4_i32_268 = arith.constant 4 : i32
    %587 = vector.broadcast %c4_i32_268 : i32 to vector<8x512xi32>
    %588 = arith.cmpi sge, %0, %587 : vector<8x512xi32>
    %c2_i32_269 = arith.constant 2 : i32
    %589 = vector.broadcast %c2_i32_269 : i32 to vector<8x512xi32>
    %590 = arith.cmpi sge, %0, %589 : vector<8x512xi32>
    %591 = arith.select %590, %583, %580 : vector<8x512xi1>, vector<8x512xf32>
    %592 = arith.select %588, %586, %591 : vector<8x512xi1>, vector<8x512xf32>
    %c0_270 = arith.constant 0 : index
    %c0_271 = arith.constant 0 : index
    %593 = vector.load %arg2[%c0_270, %c0_271] : memref<8x512xf32, #tpu.memory_space<vmem>>, vector<8x512xf32>
    %594 = arith.addf %592, %593 : vector<8x512xf32>
    %595 = vector.extract_strided_slice %594 {offsets = [0, 0], sizes = [8, 384], strides = [1, 1]} : vector<8x512xf32> to vector<8x384xf32>
    %596 = arith.negf %595 : vector<8x384xf32>
    %597 = math.exp %596 : vector<8x384xf32>
    %cst_272 = arith.constant 1.000000e+00 : f32
    %598 = vector.broadcast %cst_272 : f32 to vector<8x384xf32>
    %599 = arith.addf %598, %597 : vector<8x384xf32>
    %600 = arith.divf %598, %599 : vector<8x384xf32>
    %601 = vector.extract_strided_slice %600 {offsets = [0, 0], sizes = [8, 128], strides = [1, 1]} : vector<8x384xf32> to vector<8x128xf32>
    %602 = vector.extract_strided_slice %600 {offsets = [0, 128], sizes = [8, 128], strides = [1, 1]} : vector<8x384xf32> to vector<8x128xf32>
    %603 = vector.extract_strided_slice %600 {offsets = [0, 256], sizes = [8, 128], strides = [1, 1]} : vector<8x384xf32> to vector<8x128xf32>
    %604 = vector.extract_strided_slice %594 {offsets = [0, 384], sizes = [8, 128], strides = [1, 1]} : vector<8x512xf32> to vector<8x128xf32>
    %605 = math.tanh %604 : vector<8x128xf32>
    %606 = arith.mulf %602, %517 : vector<8x128xf32>
    %607 = arith.mulf %601, %605 : vector<8x128xf32>
    %608 = arith.addf %606, %607 : vector<8x128xf32>
    %609 = math.tanh %608 : vector<8x128xf32>
    %610 = arith.mulf %603, %609 : vector<8x128xf32>
    %c6_i32_273 = arith.constant 6 : i32
    %611 = vector.broadcast %c6_i32_273 : i32 to vector<8x128xi32>
    %612 = arith.cmpi eq, %1, %611 : vector<8x128xi32>
    %613 = vector.extract_strided_slice %610 {offsets = [0, 0], sizes = [1, 128], strides = [1, 1]} : vector<8x128xf32> to vector<1x128xf32>
    %614 = vector.shape_cast %613 : vector<1x128xf32> to vector<1x128xf32>
    %615 = vector.broadcast %614 : vector<1x128xf32> to vector<8x128xf32>
    %616 = arith.select %612, %615, %525 : vector<8x128xi1>, vector<8x128xf32>
    %c1_i32_274 = arith.constant 1 : i32
    %617 = vector.broadcast %c1_i32_274 : i32 to vector<8x128xi32>
    %618 = arith.cmpi eq, %1, %617 : vector<8x128xi32>
    %619 = vector.extract_strided_slice %610 {offsets = [1, 0], sizes = [1, 128], strides = [1, 1]} : vector<8x128xf32> to vector<1x128xf32>
    %620 = vector.shape_cast %619 : vector<1x128xf32> to vector<1x128xf32>
    %621 = vector.broadcast %620 : vector<1x128xf32> to vector<8x128xf32>
    %622 = arith.select %618, %621, %531 : vector<8x128xi1>, vector<8x128xf32>
    %c6_i32_275 = arith.constant 6 : i32
    %623 = vector.broadcast %c6_i32_275 : i32 to vector<8x128xi32>
    %624 = arith.cmpi eq, %1, %623 : vector<8x128xi32>
    %625 = vector.extract_strided_slice %610 {offsets = [2, 0], sizes = [1, 128], strides = [1, 1]} : vector<8x128xf32> to vector<1x128xf32>
    %626 = vector.shape_cast %625 : vector<1x128xf32> to vector<1x128xf32>
    %627 = vector.broadcast %626 : vector<1x128xf32> to vector<8x128xf32>
    %628 = arith.select %624, %627, %537 : vector<8x128xi1>, vector<8x128xf32>
    %c1_i32_276 = arith.constant 1 : i32
    %629 = vector.broadcast %c1_i32_276 : i32 to vector<8x128xi32>
    %630 = arith.cmpi eq, %1, %629 : vector<8x128xi32>
    %631 = vector.extract_strided_slice %610 {offsets = [3, 0], sizes = [1, 128], strides = [1, 1]} : vector<8x128xf32> to vector<1x128xf32>
    %632 = vector.shape_cast %631 : vector<1x128xf32> to vector<1x128xf32>
    %633 = vector.broadcast %632 : vector<1x128xf32> to vector<8x128xf32>
    %634 = arith.select %630, %633, %543 : vector<8x128xi1>, vector<8x128xf32>
    %c6_i32_277 = arith.constant 6 : i32
    %635 = vector.broadcast %c6_i32_277 : i32 to vector<8x128xi32>
    %636 = arith.cmpi eq, %1, %635 : vector<8x128xi32>
    %637 = vector.extract_strided_slice %610 {offsets = [4, 0], sizes = [1, 128], strides = [1, 1]} : vector<8x128xf32> to vector<1x128xf32>
    %638 = vector.shape_cast %637 : vector<1x128xf32> to vector<1x128xf32>
    %639 = vector.broadcast %638 : vector<1x128xf32> to vector<8x128xf32>
    %640 = arith.select %636, %639, %549 : vector<8x128xi1>, vector<8x128xf32>
    %c1_i32_278 = arith.constant 1 : i32
    %641 = vector.broadcast %c1_i32_278 : i32 to vector<8x128xi32>
    %642 = arith.cmpi eq, %1, %641 : vector<8x128xi32>
    %643 = vector.extract_strided_slice %610 {offsets = [5, 0], sizes = [1, 128], strides = [1, 1]} : vector<8x128xf32> to vector<1x128xf32>
    %644 = vector.shape_cast %643 : vector<1x128xf32> to vector<1x128xf32>
    %645 = vector.broadcast %644 : vector<1x128xf32> to vector<8x128xf32>
    %646 = arith.select %642, %645, %555 : vector<8x128xi1>, vector<8x128xf32>
    %c7 = arith.constant 7 : index
    %c0_279 = arith.constant 0 : index
    %c0_280 = arith.constant 0 : index
    %647 = vector.load %arg0[%c7, %c0_279, %c0_280] : memref<8x8x128xf32, #tpu.memory_space<vmem>>, vector<1x8x128xf32>
    %648 = vector.shape_cast %647 : vector<1x8x128xf32> to vector<8x128xf32>
    %649 = tpu.concatenate %610, %648 in 1 : vector<8x128xf32>, vector<8x128xf32> -> vector<8x256xf32>
    %650 = arith.truncf %649 : vector<8x256xf32> to vector<8x256xbf16>
    %c0_281 = arith.constant 0 : index
    %c0_282 = arith.constant 0 : index
    %c0_283 = arith.constant 0 : index
    %651 = vector.load %arg1[%c0_281, %c0_282, %c0_283] : memref<6x256x512xbf16, #tpu.memory_space<vmem>>, vector<1x256x512xbf16>
    %652 = vector.shape_cast %651 : vector<1x256x512xbf16> to vector<256x512xbf16>
    %cst_284 = arith.constant dense<0.000000e+00> : vector<8x512xf32>
    %653 = tpu.matmul %650, %652, %cst_284 {dimension_numbers = #tpu.dot_dimension_numbers<[1], [0], [0], [1], [0, 0, 1, 1], [], []>} : vector<8x256xbf16>, vector<256x512xbf16>, vector<8x512xf32> -> vector<8x512xf32>
    %c1_285 = arith.constant 1 : index
    %c0_286 = arith.constant 0 : index
    %c0_287 = arith.constant 0 : index
    %654 = vector.load %arg1[%c1_285, %c0_286, %c0_287] : memref<6x256x512xbf16, #tpu.memory_space<vmem>>, vector<1x256x512xbf16>
    %655 = vector.shape_cast %654 : vector<1x256x512xbf16> to vector<256x512xbf16>
    %cst_288 = arith.constant dense<0.000000e+00> : vector<8x512xf32>
    %656 = tpu.matmul %650, %655, %cst_288 {dimension_numbers = #tpu.dot_dimension_numbers<[1], [0], [0], [1], [0, 0, 1, 1], [], []>} : vector<8x256xbf16>, vector<256x512xbf16>, vector<8x512xf32> -> vector<8x512xf32>
    %c2_289 = arith.constant 2 : index
    %c0_290 = arith.constant 0 : index
    %c0_291 = arith.constant 0 : index
    %657 = vector.load %arg1[%c2_289, %c0_290, %c0_291] : memref<6x256x512xbf16, #tpu.memory_space<vmem>>, vector<1x256x512xbf16>
    %658 = vector.shape_cast %657 : vector<1x256x512xbf16> to vector<256x512xbf16>
    %cst_292 = arith.constant dense<0.000000e+00> : vector<8x512xf32>
    %659 = tpu.matmul %650, %658, %cst_292 {dimension_numbers = #tpu.dot_dimension_numbers<[1], [0], [0], [1], [0, 0, 1, 1], [], []>} : vector<8x256xbf16>, vector<256x512xbf16>, vector<8x512xf32> -> vector<8x512xf32>
    %c3_293 = arith.constant 3 : index
    %c0_294 = arith.constant 0 : index
    %c0_295 = arith.constant 0 : index
    %660 = vector.load %arg1[%c3_293, %c0_294, %c0_295] : memref<6x256x512xbf16, #tpu.memory_space<vmem>>, vector<1x256x512xbf16>
    %661 = vector.shape_cast %660 : vector<1x256x512xbf16> to vector<256x512xbf16>
    %cst_296 = arith.constant dense<0.000000e+00> : vector<8x512xf32>
    %662 = tpu.matmul %650, %661, %cst_296 {dimension_numbers = #tpu.dot_dimension_numbers<[1], [0], [0], [1], [0, 0, 1, 1], [], []>} : vector<8x256xbf16>, vector<256x512xbf16>, vector<8x512xf32> -> vector<8x512xf32>
    %c4_297 = arith.constant 4 : index
    %c0_298 = arith.constant 0 : index
    %c0_299 = arith.constant 0 : index
    %663 = vector.load %arg1[%c4_297, %c0_298, %c0_299] : memref<6x256x512xbf16, #tpu.memory_space<vmem>>, vector<1x256x512xbf16>
    %664 = vector.shape_cast %663 : vector<1x256x512xbf16> to vector<256x512xbf16>
    %cst_300 = arith.constant dense<0.000000e+00> : vector<8x512xf32>
    %665 = tpu.matmul %650, %664, %cst_300 {dimension_numbers = #tpu.dot_dimension_numbers<[1], [0], [0], [1], [0, 0, 1, 1], [], []>} : vector<8x256xbf16>, vector<256x512xbf16>, vector<8x512xf32> -> vector<8x512xf32>
    %c5_301 = arith.constant 5 : index
    %c0_302 = arith.constant 0 : index
    %c0_303 = arith.constant 0 : index
    %666 = vector.load %arg1[%c5_301, %c0_302, %c0_303] : memref<6x256x512xbf16, #tpu.memory_space<vmem>>, vector<1x256x512xbf16>
    %667 = vector.shape_cast %666 : vector<1x256x512xbf16> to vector<256x512xbf16>
    %cst_304 = arith.constant dense<0.000000e+00> : vector<8x512xf32>
    %668 = tpu.matmul %650, %667, %cst_304 {dimension_numbers = #tpu.dot_dimension_numbers<[1], [0], [0], [1], [0, 0, 1, 1], [], []>} : vector<8x256xbf16>, vector<256x512xbf16>, vector<8x512xf32> -> vector<8x512xf32>
    %c1_i32_305 = arith.constant 1 : i32
    %669 = vector.broadcast %c1_i32_305 : i32 to vector<8x512xi32>
    %670 = arith.cmpi sge, %0, %669 : vector<8x512xi32>
    %671 = arith.select %670, %656, %653 : vector<8x512xi1>, vector<8x512xf32>
    %c3_i32_306 = arith.constant 3 : i32
    %672 = vector.broadcast %c3_i32_306 : i32 to vector<8x512xi32>
    %673 = arith.cmpi sge, %0, %672 : vector<8x512xi32>
    %674 = arith.select %673, %662, %659 : vector<8x512xi1>, vector<8x512xf32>
    %c5_i32_307 = arith.constant 5 : i32
    %675 = vector.broadcast %c5_i32_307 : i32 to vector<8x512xi32>
    %676 = arith.cmpi sge, %0, %675 : vector<8x512xi32>
    %677 = arith.select %676, %668, %665 : vector<8x512xi1>, vector<8x512xf32>
    %c4_i32_308 = arith.constant 4 : i32
    %678 = vector.broadcast %c4_i32_308 : i32 to vector<8x512xi32>
    %679 = arith.cmpi sge, %0, %678 : vector<8x512xi32>
    %c2_i32_309 = arith.constant 2 : i32
    %680 = vector.broadcast %c2_i32_309 : i32 to vector<8x512xi32>
    %681 = arith.cmpi sge, %0, %680 : vector<8x512xi32>
    %682 = arith.select %681, %674, %671 : vector<8x512xi1>, vector<8x512xf32>
    %683 = arith.select %679, %677, %682 : vector<8x512xi1>, vector<8x512xf32>
    %c0_310 = arith.constant 0 : index
    %c0_311 = arith.constant 0 : index
    %684 = vector.load %arg2[%c0_310, %c0_311] : memref<8x512xf32, #tpu.memory_space<vmem>>, vector<8x512xf32>
    %685 = arith.addf %683, %684 : vector<8x512xf32>
    %686 = vector.extract_strided_slice %685 {offsets = [0, 0], sizes = [8, 384], strides = [1, 1]} : vector<8x512xf32> to vector<8x384xf32>
    %687 = arith.negf %686 : vector<8x384xf32>
    %688 = math.exp %687 : vector<8x384xf32>
    %cst_312 = arith.constant 1.000000e+00 : f32
    %689 = vector.broadcast %cst_312 : f32 to vector<8x384xf32>
    %690 = arith.addf %689, %688 : vector<8x384xf32>
    %691 = arith.divf %689, %690 : vector<8x384xf32>
    %692 = vector.extract_strided_slice %691 {offsets = [0, 0], sizes = [8, 128], strides = [1, 1]} : vector<8x384xf32> to vector<8x128xf32>
    %693 = vector.extract_strided_slice %691 {offsets = [0, 128], sizes = [8, 128], strides = [1, 1]} : vector<8x384xf32> to vector<8x128xf32>
    %694 = vector.extract_strided_slice %691 {offsets = [0, 256], sizes = [8, 128], strides = [1, 1]} : vector<8x384xf32> to vector<8x128xf32>
    %695 = vector.extract_strided_slice %685 {offsets = [0, 384], sizes = [8, 128], strides = [1, 1]} : vector<8x512xf32> to vector<8x128xf32>
    %696 = math.tanh %695 : vector<8x128xf32>
    %697 = arith.mulf %693, %608 : vector<8x128xf32>
    %698 = arith.mulf %692, %696 : vector<8x128xf32>
    %699 = arith.addf %697, %698 : vector<8x128xf32>
    %700 = math.tanh %699 : vector<8x128xf32>
    %701 = arith.mulf %694, %700 : vector<8x128xf32>
    %c7_i32_313 = arith.constant 7 : i32
    %702 = vector.broadcast %c7_i32_313 : i32 to vector<8x128xi32>
    %703 = arith.cmpi eq, %1, %702 : vector<8x128xi32>
    %704 = vector.extract_strided_slice %701 {offsets = [0, 0], sizes = [1, 128], strides = [1, 1]} : vector<8x128xf32> to vector<1x128xf32>
    %705 = vector.shape_cast %704 : vector<1x128xf32> to vector<1x128xf32>
    %706 = vector.broadcast %705 : vector<1x128xf32> to vector<8x128xf32>
    %707 = arith.select %703, %706, %616 : vector<8x128xi1>, vector<8x128xf32>
    %c0_i32_314 = arith.constant 0 : i32
    %708 = vector.broadcast %c0_i32_314 : i32 to vector<8x128xi32>
    %709 = arith.cmpi eq, %1, %708 : vector<8x128xi32>
    %710 = vector.extract_strided_slice %701 {offsets = [1, 0], sizes = [1, 128], strides = [1, 1]} : vector<8x128xf32> to vector<1x128xf32>
    %711 = vector.shape_cast %710 : vector<1x128xf32> to vector<1x128xf32>
    %712 = vector.broadcast %711 : vector<1x128xf32> to vector<8x128xf32>
    %713 = arith.select %709, %712, %622 : vector<8x128xi1>, vector<8x128xf32>
    %c7_i32_315 = arith.constant 7 : i32
    %714 = vector.broadcast %c7_i32_315 : i32 to vector<8x128xi32>
    %715 = arith.cmpi eq, %1, %714 : vector<8x128xi32>
    %716 = vector.extract_strided_slice %701 {offsets = [2, 0], sizes = [1, 128], strides = [1, 1]} : vector<8x128xf32> to vector<1x128xf32>
    %717 = vector.shape_cast %716 : vector<1x128xf32> to vector<1x128xf32>
    %718 = vector.broadcast %717 : vector<1x128xf32> to vector<8x128xf32>
    %719 = arith.select %715, %718, %628 : vector<8x128xi1>, vector<8x128xf32>
    %c0_i32_316 = arith.constant 0 : i32
    %720 = vector.broadcast %c0_i32_316 : i32 to vector<8x128xi32>
    %721 = arith.cmpi eq, %1, %720 : vector<8x128xi32>
    %722 = vector.extract_strided_slice %701 {offsets = [3, 0], sizes = [1, 128], strides = [1, 1]} : vector<8x128xf32> to vector<1x128xf32>
    %723 = vector.shape_cast %722 : vector<1x128xf32> to vector<1x128xf32>
    %724 = vector.broadcast %723 : vector<1x128xf32> to vector<8x128xf32>
    %725 = arith.select %721, %724, %634 : vector<8x128xi1>, vector<8x128xf32>
    %c7_i32_317 = arith.constant 7 : i32
    %726 = vector.broadcast %c7_i32_317 : i32 to vector<8x128xi32>
    %727 = arith.cmpi eq, %1, %726 : vector<8x128xi32>
    %728 = vector.extract_strided_slice %701 {offsets = [4, 0], sizes = [1, 128], strides = [1, 1]} : vector<8x128xf32> to vector<1x128xf32>
    %729 = vector.shape_cast %728 : vector<1x128xf32> to vector<1x128xf32>
    %730 = vector.broadcast %729 : vector<1x128xf32> to vector<8x128xf32>
    %731 = arith.select %727, %730, %640 : vector<8x128xi1>, vector<8x128xf32>
    %c0_i32_318 = arith.constant 0 : i32
    %732 = vector.broadcast %c0_i32_318 : i32 to vector<8x128xi32>
    %733 = arith.cmpi eq, %1, %732 : vector<8x128xi32>
    %734 = vector.extract_strided_slice %701 {offsets = [5, 0], sizes = [1, 128], strides = [1, 1]} : vector<8x128xf32> to vector<1x128xf32>
    %735 = vector.shape_cast %734 : vector<1x128xf32> to vector<1x128xf32>
    %736 = vector.broadcast %735 : vector<1x128xf32> to vector<8x128xf32>
    %737 = arith.select %733, %736, %646 : vector<8x128xi1>, vector<8x128xf32>
    %738 = tpu.concatenate %707, %713 in 1 : vector<8x128xf32>, vector<8x128xf32> -> vector<8x256xf32>
    %739 = tpu.concatenate %719, %725 in 1 : vector<8x128xf32>, vector<8x128xf32> -> vector<8x256xf32>
    %740 = tpu.concatenate %731, %737 in 1 : vector<8x128xf32>, vector<8x128xf32> -> vector<8x256xf32>
    %741 = arith.mulf %738, %739 : vector<8x256xf32>
    %742 = tpu.concatenate %738, %739, %741, %740 in 1 : vector<8x256xf32>, vector<8x256xf32>, vector<8x256xf32>, vector<8x256xf32> -> vector<8x1024xf32>
    %743 = arith.truncf %742 : vector<8x1024xf32> to vector<8x1024xbf16>
    %c0_319 = arith.constant 0 : index
    %c0_320 = arith.constant 0 : index
    %744 = vector.load %arg3[%c0_319, %c0_320] : memref<1024x256xbf16, #tpu.memory_space<vmem>>, vector<1024x256xbf16>
    %cst_321 = arith.constant dense<0.000000e+00> : vector<8x256xf32>
    %745 = tpu.matmul %743, %744, %cst_321 {dimension_numbers = #tpu.dot_dimension_numbers<[1], [0], [0], [1], [0, 0, 1, 1], [], []>} : vector<8x1024xbf16>, vector<1024x256xbf16>, vector<8x256xf32> -> vector<8x256xf32>
    %c0_322 = arith.constant 0 : index
    %c0_323 = arith.constant 0 : index
    %746 = vector.load %arg4[%c0_322, %c0_323] : memref<1x256xf32, #tpu.memory_space<vmem>>, vector<1x256xf32>
    %747 = vector.broadcast %746 : vector<1x256xf32> to vector<8x256xf32>
    %748 = arith.addf %745, %747 : vector<8x256xf32>
    %cst_324 = arith.constant 0.000000e+00 : f32
    %749 = vector.broadcast %cst_324 : f32 to vector<8x256xf32>
    %750 = arith.maximumf %748, %749 : vector<8x256xf32>
    %751 = arith.truncf %750 : vector<8x256xf32> to vector<8x256xbf16>
    %c0_325 = arith.constant 0 : index
    %c0_326 = arith.constant 0 : index
    %752 = vector.load %arg5[%c0_325, %c0_326] : memref<256x128xbf16, #tpu.memory_space<vmem>>, vector<256x128xbf16>
    %cst_327 = arith.constant dense<0.000000e+00> : vector<8x128xf32>
    %753 = tpu.matmul %751, %752, %cst_327 {dimension_numbers = #tpu.dot_dimension_numbers<[1], [0], [0], [1], [0, 0, 1, 1], [], []>} : vector<8x256xbf16>, vector<256x128xbf16>, vector<8x128xf32> -> vector<8x128xf32>
    %c0_328 = arith.constant 0 : index
    %c0_329 = arith.constant 0 : index
    %754 = vector.load %arg6[%c0_328, %c0_329] : memref<1x128xf32, #tpu.memory_space<vmem>>, vector<1x128xf32>
    %755 = vector.broadcast %754 : vector<1x128xf32> to vector<8x128xf32>
    %756 = arith.addf %753, %755 : vector<8x128xf32>
    %c0_330 = arith.constant 0 : index
    %c0_331 = arith.constant 0 : index
    %757 = vector.load %arg7[%c0_330, %c0_331] : memref<8x128xf32, #tpu.memory_space<vmem>>, vector<8x128xf32>
    tpu.vector_store %arg7[%c0_330, %c0_331], %756 {strides = array<i32>} : memref<8x128xf32, #tpu.memory_space<vmem>>, vector<8x128xf32>,
    return
  }
}

</mosaic_0001>

<llo_original>
// kernel: lstm_relation_predictor.1
$region0: #{lstm_relation_predictor.1}
  #allocation0 [shape = 'u32[]', space=smem, size = 0x4, offset = 0x4, fixed_abs, tag = 'smem constant byte address 0x4 - core index']
  #allocation1 [shape = 'u32[72,128]{1,0:T(1,128)}', space=vmem, size = 0x9000, scoped, tag = 'internal scratch']
  %s0 = inlined_call_operand.vmem [shape: f32[8,8,128], index: 0, kind: input, shape index: {}]
  %s1 = inlined_call_operand.vmem [shape: bf16[6,256,512], index: 1, kind: input, shape index: {}]
  %s2 = inlined_call_operand.vmem [shape: f32[8,512], index: 2, kind: input, shape index: {}]
  %s3 = inlined_call_operand.vmem [shape: bf16[1024,256], index: 3, kind: input, shape index: {}]
  %s4 = inlined_call_operand.vmem [shape: f32[1,256], index: 4, kind: input, shape index: {}]
  %s5 = inlined_call_operand.vmem [shape: bf16[256,128], index: 5, kind: input, shape index: {}]
  %s6 = inlined_call_operand.vmem [shape: f32[1,128], index: 6, kind: input, shape index: {}]
  %s7 = inlined_call_operand.vmem [shape: f32[8,128], index: 7, kind: output, shape index: {}]
  %s8 = sld [smem:[#allocation0]]
  $region38: #{lstm_relation_predictor.1} parent=0
    _
  %s10 = ssub.s32 1, %s8
  %s11 = scalar_select 0, %s10, %s8
  // Predicated region
  $region2: #{lstm_relation_predictor.1} parent=0 // pred_check
    _
  $region3: #{lstm_relation_predictor.1} parent=0 // pred_check_branch
    %13 = sbr.rel (0) target = $region5
  $region4: #{lstm_relation_predictor.1} parent=0 // pred_region
    _
  $region5: #{lstm_relation_predictor.1} parent=0 // pred_fallthru
    _
  // Predicated region
  $region6: #{lstm_relation_predictor.1} parent=0 // pred_check
    _
  $region7: #{lstm_relation_predictor.1} parent=0 // pred_check_branch
    %15 = sbr.rel (0) target = $region9
  $region8: #{lstm_relation_predictor.1} parent=0 // pred_region
    _
  $region9: #{lstm_relation_predictor.1} parent=0 // pred_fallthru
    _
  // Predicated region
  $region10: #{lstm_relation_predictor.1} parent=0 // pred_check
    _
  $region11: #{lstm_relation_predictor.1} parent=0 // pred_check_branch
    %17 = sbr.rel (0) target = $region13
  $region12: #{lstm_relation_predictor.1} parent=0 // pred_region
    _
  $region13: #{lstm_relation_predictor.1} parent=0 // pred_fallthru
    _
  // Predicated region
  $region14: #{lstm_relation_predictor.1} parent=0 // pred_check
    _
  $region15: #{lstm_relation_predictor.1} parent=0 // pred_check_branch
    %19 = sbr.rel (0) target = $region17
  $region16: #{lstm_relation_predictor.1} parent=0 // pred_region
    _
  $region17: #{lstm_relation_predictor.1} parent=0 // pred_fallthru
    _
  // Predicated region
  $region18: #{lstm_relation_predictor.1} parent=0 // pred_check
    _
  $region19: #{lstm_relation_predictor.1} parent=0 // pred_check_branch
    %21 = sbr.rel (0) target = $region21
  $region20: #{lstm_relation_predictor.1} parent=0 // pred_region
    _
  $region21: #{lstm_relation_predictor.1} parent=0 // pred_fallthru
    _
  // Predicated region
  $region22: #{lstm_relation_predictor.1} parent=0 // pred_check
    _
  $region23: #{lstm_relation_predictor.1} parent=0 // pred_check_branch
    %23 = sbr.rel (0) target = $region25
  $region24: #{lstm_relation_predictor.1} parent=0 // pred_region
    _
  $region25: #{lstm_relation_predictor.1} parent=0 // pred_fallthru
    _
  // Predicated region
  $region26: #{lstm_relation_predictor.1} parent=0 // pred_check
    _
  $region27: #{lstm_relation_predictor.1} parent=0 // pred_check_branch
    %25 = sbr.rel (0) target = $region29
  $region28: #{lstm_relation_predictor.1} parent=0 // pred_region
    _
  $region29: #{lstm_relation_predictor.1} parent=0 // pred_fallthru
    _
  %v26 = vlaneseq
  %v27 = vshrl.u32 %v26, 7
  %v28 = vld [vmem:[%s0] sm:$0xff]
  %v29 = vpack.c.bf16 0.0, 0.0
  %v30 = vpack.c.bf16 %v28, %v28
  %v31 = vld [vmem:[%s1] sm:$0xff]
  %v32 = vld [vmem:[%s1 + $0x8] sm:$0xff]
  %v33 = vld [vmem:[%s1 + $0x10] sm:$0xff]
  %v34 = vld [vmem:[%s1 + $0x18] sm:$0xff]
  %v35 = vld [vmem:[%s1 + $0x20] sm:$0xff]
  %v36 = vld [vmem:[%s1 + $0x28] sm:$0xff]
  %v37 = vld [vmem:[%s1 + $0x30] sm:$0xff]
  %v38 = vld [vmem:[%s1 + $0x38] sm:$0xff]
  %v39 = vld [vmem:[%s1 + $0x40] sm:$0xff]
  %v40 = vld [vmem:[%s1 + $0x48] sm:$0xff]
  %v41 = vld [vmem:[%s1 + $0x50] sm:$0xff]
  %v42 = vld [vmem:[%s1 + $0x58] sm:$0xff]
  %v43 = vld [vmem:[%s1 + $0x60] sm:$0xff]
  %v44 = vld [vmem:[%s1 + $0x68] sm:$0xff]
  %v45 = vld [vmem:[%s1 + $0x70] sm:$0xff]
  %v46 = vld [vmem:[%s1 + $0x78] sm:$0xff]
  %v47 = vld [vmem:[%s1 + $0x80] sm:$0xff]
  %v48 = vld [vmem:[%s1 + $0x88] sm:$0xff]
  %v49 = vld [vmem:[%s1 + $0x90] sm:$0xff]
  %v50 = vld [vmem:[%s1 + $0x98] sm:$0xff]
  %v51 = vld [vmem:[%s1 + $0xa0] sm:$0xff]
  %v52 = vld [vmem:[%s1 + $0xa8] sm:$0xff]
  %v53 = vld [vmem:[%s1 + $0xb0] sm:$0xff]
  %v54 = vld [vmem:[%s1 + $0xb8] sm:$0xff]
  %v55 = vld [vmem:[%s1 + $0xc0] sm:$0xff]
  %v56 = vld [vmem:[%s1 + $0xc8] sm:$0xff]
  %v57 = vld [vmem:[%s1 + $0xd0] sm:$0xff]
  %v58 = vld [vmem:[%s1 + $0xd8] sm:$0xff]
  %v59 = vld [vmem:[%s1 + $0xe0] sm:$0xff]
  %v60 = vld [vmem:[%s1 + $0xe8] sm:$0xff]
  %v61 = vld [vmem:[%s1 + $0xf0] sm:$0xff]
  %v62 = vld [vmem:[%s1 + $0xf8] sm:$0xff]
  %v63 = vld [vmem:[%s1 + $0x100] sm:$0xff]
  %v64 = vld [vmem:[%s1 + $0x108] sm:$0xff]
  %v65 = vld [vmem:[%s1 + $0x110] sm:$0xff]
  %v66 = vld [vmem:[%s1 + $0x118] sm:$0xff]
  %v67 = vld [vmem:[%s1 + $0x120] sm:$0xff]
  %v68 = vld [vmem:[%s1 + $0x128] sm:$0xff]
  %v69 = vld [vmem:[%s1 + $0x130] sm:$0xff]
  %v70 = vld [vmem:[%s1 + $0x138] sm:$0xff]
  %v71 = vld [vmem:[%s1 + $0x140] sm:$0xff]
  %v72 = vld [vmem:[%s1 + $0x148] sm:$0xff]
  %v73 = vld [vmem:[%s1 + $0x150] sm:$0xff]
  %v74 = vld [vmem:[%s1 + $0x158] sm:$0xff]
  %v75 = vld [vmem:[%s1 + $0x160] sm:$0xff]
  %v76 = vld [vmem:[%s1 + $0x168] sm:$0xff]
  %v77 = vld [vmem:[%s1 + $0x170] sm:$0xff]
  %v78 = vld [vmem:[%s1 + $0x178] sm:$0xff]
  %v79 = vld [vmem:[%s1 + $0x180] sm:$0xff]
  %v80 = vld [vmem:[%s1 + $0x188] sm:$0xff]
  %v81 = vld [vmem:[%s1 + $0x190] sm:$0xff]
  %v82 = vld [vmem:[%s1 + $0x198] sm:$0xff]
  %v83 = vld [vmem:[%s1 + $0x1a0] sm:$0xff]
  %v84 = vld [vmem:[%s1 + $0x1a8] sm:$0xff]
  %v85 = vld [vmem:[%s1 + $0x1b0] sm:$0xff]
  %v86 = vld [vmem:[%s1 + $0x1b8] sm:$0xff]
  %v87 = vld [vmem:[%s1 + $0x1c0] sm:$0xff]
  %v88 = vld [vmem:[%s1 + $0x1c8] sm:$0xff]
  %v89 = vld [vmem:[%s1 + $0x1d0] sm:$0xff]
  %v90 = vld [vmem:[%s1 + $0x1d8] sm:$0xff]
  %v91 = vld [vmem:[%s1 + $0x1e0] sm:$0xff]
  %v92 = vld [vmem:[%s1 + $0x1e8] sm:$0xff]
  %v93 = vld [vmem:[%s1 + $0x1f0] sm:$0xff]
  %v94 = vld [vmem:[%s1 + $0x1f8] sm:$0xff]
  %v159 = vunpack.c.l.b16 %v31
  %v160 = vunpack.c.h.b16 %v31
  %v161 = vunpack.c.l.b16 %v32
  %v162 = vunpack.c.h.b16 %v32
  %v163 = vunpack.c.l.b16 %v33
  %v164 = vunpack.c.h.b16 %v33
  %v165 = vunpack.c.l.b16 %v34
  %v166 = vunpack.c.h.b16 %v34
  %v167 = vunpack.c.l.b16 %v35
  %v168 = vunpack.c.h.b16 %v35
  %v169 = vunpack.c.l.b16 %v36
  %v170 = vunpack.c.h.b16 %v36
  %v171 = vunpack.c.l.b16 %v37
  %v172 = vunpack.c.h.b16 %v37
  %v173 = vunpack.c.l.b16 %v38
  %v174 = vunpack.c.h.b16 %v38
  %v175 = vunpack.c.l.b16 %v39
  %v176 = vunpack.c.h.b16 %v39
  %v177 = vunpack.c.l.b16 %v40
  %v178 = vunpack.c.h.b16 %v40
  %v179 = vunpack.c.l.b16 %v41
  %v180 = vunpack.c.h.b16 %v41
  %v181 = vunpack.c.l.b16 %v42
  %v182 = vunpack.c.h.b16 %v42
  %v183 = vunpack.c.l.b16 %v43
  %v184 = vunpack.c.h.b16 %v43
  %v185 = vunpack.c.l.b16 %v44
  %v186 = vunpack.c.h.b16 %v44
  %v187 = vunpack.c.l.b16 %v45
  %v188 = vunpack.c.h.b16 %v45
  %v189 = vunpack.c.l.b16 %v46
  %v190 = vunpack.c.h.b16 %v46
  %v191 = vunpack.c.l.b16 %v47
  %v192 = vunpack.c.h.b16 %v47
  %v193 = vunpack.c.l.b16 %v48
  %v194 = vunpack.c.h.b16 %v48
  %v195 = vunpack.c.l.b16 %v49
  %v196 = vunpack.c.h.b16 %v49
  %v197 = vunpack.c.l.b16 %v50
  %v198 = vunpack.c.h.b16 %v50
  %v199 = vunpack.c.l.b16 %v51
  %v200 = vunpack.c.h.b16 %v51
  %v201 = vunpack.c.l.b16 %v52
  %v202 = vunpack.c.h.b16 %v52
  %v203 = vunpack.c.l.b16 %v53
  %v204 = vunpack.c.h.b16 %v53
  %v205 = vunpack.c.l.b16 %v54
  %v206 = vunpack.c.h.b16 %v54
  %v207 = vunpack.c.l.b16 %v55
  %v208 = vunpack.c.h.b16 %v55
  %v209 = vunpack.c.l.b16 %v56
  %v210 = vunpack.c.h.b16 %v56
  %v211 = vunpack.c.l.b16 %v57
  %v212 = vunpack.c.h.b16 %v57
  %v213 = vunpack.c.l.b16 %v58
  %v214 = vunpack.c.h.b16 %v58
  %v215 = vunpack.c.l.b16 %v59
  %v216 = vunpack.c.h.b16 %v59
  %v217 = vunpack.c.l.b16 %v60
  %v218 = vunpack.c.h.b16 %v60
  %v219 = vunpack.c.l.b16 %v61
  %v220 = vunpack.c.h.b16 %v61
  %v221 = vunpack.c.l.b16 %v62
  %v222 = vunpack.c.h.b16 %v62
  %v223 = vunpack.c.l.b16 %v63
  %v224 = vunpack.c.h.b16 %v63
  %v225 = vunpack.c.l.b16 %v64
  %v226 = vunpack.c.h.b16 %v64
  %v227 = vunpack.c.l.b16 %v65
  %v228 = vunpack.c.h.b16 %v65
  %v229 = vunpack.c.l.b16 %v66
  %v230 = vunpack.c.h.b16 %v66
  %v231 = vunpack.c.l.b16 %v67
  %v232 = vunpack.c.h.b16 %v67
  %v233 = vunpack.c.l.b16 %v68
  %v234 = vunpack.c.h.b16 %v68
  %v235 = vunpack.c.l.b16 %v69
  %v236 = vunpack.c.h.b16 %v69
  %v237 = vunpack.c.l.b16 %v70
  %v238 = vunpack.c.h.b16 %v70
  %v239 = vunpack.c.l.b16 %v71
  %v240 = vunpack.c.h.b16 %v71
  %v241 = vunpack.c.l.b16 %v72
  %v242 = vunpack.c.h.b16 %v72
  %v243 = vunpack.c.l.b16 %v73
  %v244 = vunpack.c.h.b16 %v73
  %v245 = vunpack.c.l.b16 %v74
  %v246 = vunpack.c.h.b16 %v74
  %v247 = vunpack.c.l.b16 %v75
  %v248 = vunpack.c.h.b16 %v75
  %v249 = vunpack.c.l.b16 %v76
  %v250 = vunpack.c.h.b16 %v76
  %v251 = vunpack.c.l.b16 %v77
  %v252 = vunpack.c.h.b16 %v77
  %v253 = vunpack.c.l.b16 %v78
  %v254 = vunpack.c.h.b16 %v78
  %v255 = vunpack.c.l.b16 %v79
  %v256 = vunpack.c.h.b16 %v79
  %v257 = vunpack.c.l.b16 %v80
  %v258 = vunpack.c.h.b16 %v80
  %v259 = vunpack.c.l.b16 %v81
  %v260 = vunpack.c.h.b16 %v81
  %v261 = vunpack.c.l.b16 %v82
  %v262 = vunpack.c.h.b16 %v82
  %v263 = vunpack.c.l.b16 %v83
  %v264 = vunpack.c.h.b16 %v83
  %v265 = vunpack.c.l.b16 %v84
  %v266 = vunpack.c.h.b16 %v84
  %v267 = vunpack.c.l.b16 %v85
  %v268 = vunpack.c.h.b16 %v85
  %v269 = vunpack.c.l.b16 %v86
  %v270 = vunpack.c.h.b16 %v86
  %v271 = vunpack.c.l.b16 %v87
  %v272 = vunpack.c.h.b16 %v87
  %v273 = vunpack.c.l.b16 %v88
  %v274 = vunpack.c.h.b16 %v88
  %v275 = vunpack.c.l.b16 %v89
  %v276 = vunpack.c.h.b16 %v89
  %v277 = vunpack.c.l.b16 %v90
  %v278 = vunpack.c.h.b16 %v90
  %v279 = vunpack.c.l.b16 %v91
  %v280 = vunpack.c.h.b16 %v91
  %v281 = vunpack.c.l.b16 %v92
  %v282 = vunpack.c.h.b16 %v92
  %v283 = vunpack.c.l.b16 %v93
  %v284 = vunpack.c.h.b16 %v93
  %v285 = vunpack.c.l.b16 %v94
  %v286 = vunpack.c.h.b16 %v94
  %v287 = vpack.c.b16 %v163, %v159
  %v288 = vpack.c.b16 %v164, %v160
  %v289 = vpack.c.b16 %v165, %v161
  %v290 = vpack.c.b16 %v166, %v162
  %v291 = vpack.c.b16 %v171, %v167
  %v292 = vpack.c.b16 %v172, %v168
  %v293 = vpack.c.b16 %v173, %v169
  %v294 = vpack.c.b16 %v174, %v170
  %v295 = vpack.c.b16 %v179, %v175
  %v296 = vpack.c.b16 %v180, %v176
  %v297 = vpack.c.b16 %v181, %v177
  %v298 = vpack.c.b16 %v182, %v178
  %v299 = vpack.c.b16 %v187, %v183
  %v300 = vpack.c.b16 %v188, %v184
  %v301 = vpack.c.b16 %v189, %v185
  %v302 = vpack.c.b16 %v190, %v186
  %v303 = vpack.c.b16 %v195, %v191
  %v304 = vpack.c.b16 %v196, %v192
  %v305 = vpack.c.b16 %v197, %v193
  %v306 = vpack.c.b16 %v198, %v194
  %v307 = vpack.c.b16 %v203, %v199
  %v308 = vpack.c.b16 %v204, %v200
  %v309 = vpack.c.b16 %v205, %v201
  %v310 = vpack.c.b16 %v206, %v202
  %v311 = vpack.c.b16 %v211, %v207
  %v312 = vpack.c.b16 %v212, %v208
  %v313 = vpack.c.b16 %v213, %v209
  %v314 = vpack.c.b16 %v214, %v210
  %v315 = vpack.c.b16 %v219, %v215
  %v316 = vpack.c.b16 %v220, %v216
  %v317 = vpack.c.b16 %v221, %v217
  %v318 = vpack.c.b16 %v222, %v218
  %v319 = vpack.c.b16 %v227, %v223
  %v320 = vpack.c.b16 %v228, %v224
  %v321 = vpack.c.b16 %v229, %v225
  %v322 = vpack.c.b16 %v230, %v226
  %v323 = vpack.c.b16 %v235, %v231
  %v324 = vpack.c.b16 %v236, %v232
  %v325 = vpack.c.b16 %v237, %v233
  %v326 = vpack.c.b16 %v238, %v234
  %v327 = vpack.c.b16 %v243, %v239
  %v328 = vpack.c.b16 %v244, %v240
  %v329 = vpack.c.b16 %v245, %v241
  %v330 = vpack.c.b16 %v246, %v242
  %v331 = vpack.c.b16 %v251, %v247
  %v332 = vpack.c.b16 %v252, %v248
  %v333 = vpack.c.b16 %v253, %v249
  %v334 = vpack.c.b16 %v254, %v250
  %v335 = vpack.c.b16 %v259, %v255
  %v336 = vpack.c.b16 %v260, %v256
  %v337 = vpack.c.b16 %v261, %v257
  %v338 = vpack.c.b16 %v262, %v258
  %v339 = vpack.c.b16 %v267, %v263
  %v340 = vpack.c.b16 %v268, %v264
  %v341 = vpack.c.b16 %v269, %v265
  %v342 = vpack.c.b16 %v270, %v266
  %v343 = vpack.c.b16 %v275, %v271
  %v344 = vpack.c.b16 %v276, %v272
  %v345 = vpack.c.b16 %v277, %v273
  %v346 = vpack.c.b16 %v278, %v274
  %v347 = vpack.c.b16 %v283, %v279
  %v348 = vpack.c.b16 %v284, %v280
  %v349 = vpack.c.b16 %v285, %v281
  %v350 = vpack.c.b16 %v286, %v282
  %415 = vmatpush.bf16.msra.mxu0 %v315
  %416 = vmatpush.bf16.msra.mxu0 %v311
  %417 = vmatpush.bf16.msra.mxu0 %v307
  %418 = vmatpush.bf16.msra.mxu0 %v303
  %419 = vmatpush.bf16.msra.mxu0 %v299
  %420 = vmatpush.bf16.msra.mxu0 %v295
  %421 = vmatpush.bf16.msra.mxu0 %v291
  %422 = vmatpush.bf16.msra.mxu0 %v287
  %423 = vmatmul.bf16.gmra.mxu0 %v29
  %v424 = vpop.f32.mrf.mxu0
  %v425 = vadd.f32 0.0, %v424
  %v426 = vpop.f32.mrf.mxu0
  %427 = vdwg.mxu0
  %428 = vmatpush.bf16.msra.mxu0 %v347
  %429 = vmatpush.bf16.msra.mxu0 %v343
  %430 = vmatpush.bf16.msra.mxu0 %v339
  %431 = vmatpush.bf16.msra.mxu0 %v335
  %432 = vmatpush.bf16.msra.mxu0 %v331
  %433 = vmatpush.bf16.msra.mxu0 %v327
  %434 = vmatpush.bf16.msra.mxu0 %v323
  %435 = vmatpush.bf16.msra.mxu0 %v319
  %436 = vmatmul.bf16.gmra.mxu0 %v30
  %v437 = vpop.f32.mrf.mxu0
  %v438 = vadd.f32 %v425, %v437
  %v439 = vpop.f32.mrf.mxu0
  %440 = vdwg.mxu0
  %441 = vmatpush.bf16.msra.mxu0 %v316
  %442 = vmatpush.bf16.msra.mxu0 %v312
  %443 = vmatpush.bf16.msra.mxu0 %v308
  %444 = vmatpush.bf16.msra.mxu0 %v304
  %445 = vmatpush.bf16.msra.mxu0 %v300
  %446 = vmatpush.bf16.msra.mxu0 %v296
  %447 = vmatpush.bf16.msra.mxu0 %v292
  %448 = vmatpush.bf16.msra.mxu0 %v288
  %449 = vmatmul.bf16.gmra.mxu0 %v29
  %v450 = vpop.f32.mrf.mxu0
  %v451 = vadd.f32 0.0, %v450
  %v452 = vpop.f32.mrf.mxu0
  %453 = vdwg.mxu0
  %454 = vmatpush.bf16.msra.mxu0 %v348
  %455 = vmatpush.bf16.msra.mxu0 %v344
  %456 = vmatpush.bf16.msra.mxu0 %v340
  %457 = vmatpush.bf16.msra.mxu0 %v336
  %458 = vmatpush.bf16.msra.mxu0 %v332
  %459 = vmatpush.bf16.msra.mxu0 %v328
  %460 = vmatpush.bf16.msra.mxu0 %v324
  %461 = vmatpush.bf16.msra.mxu0 %v320
  %462 = vmatmul.bf16.gmra.mxu0 %v30
  %v463 = vpop.f32.mrf.mxu0
  %v464 = vadd.f32 %v451, %v463
  %v465 = vpop.f32.mrf.mxu0
  %466 = vdwg.mxu0
  %467 = vmatpush.bf16.msra.mxu0 %v317
  %468 = vmatpush.bf16.msra.mxu0 %v313
  %469 = vmatpush.bf16.msra.mxu0 %v309
  %470 = vmatpush.bf16.msra.mxu0 %v305
  %471 = vmatpush.bf16.msra.mxu0 %v301
  %472 = vmatpush.bf16.msra.mxu0 %v297
  %473 = vmatpush.bf16.msra.mxu0 %v293
  %474 = vmatpush.bf16.msra.mxu0 %v289
  %475 = vmatmul.bf16.gmra.mxu0 %v29
  %v476 = vpop.f32.mrf.mxu0
  %v477 = vadd.f32 0.0, %v476
  %v478 = vpop.f32.mrf.mxu0
  %479 = vdwg.mxu0
  %480 = vmatpush.bf16.msra.mxu0 %v349
  %481 = vmatpush.bf16.msra.mxu0 %v345
  %482 = vmatpush.bf16.msra.mxu0 %v341
  %483 = vmatpush.bf16.msra.mxu0 %v337
  %484 = vmatpush.bf16.msra.mxu0 %v333
  %485 = vmatpush.bf16.msra.mxu0 %v329
  %486 = vmatpush.bf16.msra.mxu0 %v325
  %487 = vmatpush.bf16.msra.mxu0 %v321
  %488 = vmatmul.bf16.gmra.mxu0 %v30
  %v489 = vpop.f32.mrf.mxu0
  %v490 = vadd.f32 %v477, %v489
  %v491 = vpop.f32.mrf.mxu0
  %492 = vdwg.mxu0
  %493 = vmatpush.bf16.msra.mxu0 %v318
  %494 = vmatpush.bf16.msra.mxu0 %v314
  %495 = vmatpush.bf16.msra.mxu0 %v310
  %496 = vmatpush.bf16.msra.mxu0 %v306
  %497 = vmatpush.bf16.msra.mxu0 %v302
  %498 = vmatpush.bf16.msra.mxu0 %v298
  %499 = vmatpush.bf16.msra.mxu0 %v294
  %500 = vmatpush.bf16.msra.mxu0 %v290
  %501 = vmatmul.bf16.gmra.mxu0 %v29
  %v502 = vpop.f32.mrf.mxu0
  %v503 = vadd.f32 0.0, %v502
  %v504 = vpop.f32.mrf.mxu0
  %505 = vdwg.mxu0
  %506 = vmatpush.bf16.msra.mxu0 %v350
  %507 = vmatpush.bf16.msra.mxu0 %v346
  %508 = vmatpush.bf16.msra.mxu0 %v342
  %509 = vmatpush.bf16.msra.mxu0 %v338
  %510 = vmatpush.bf16.msra.mxu0 %v334
  %511 = vmatpush.bf16.msra.mxu0 %v330
  %512 = vmatpush.bf16.msra.mxu0 %v326
  %513 = vmatpush.bf16.msra.mxu0 %v322
  %514 = vmatmul.bf16.gmra.mxu0 %v30
  %v515 = vpop.f32.mrf.mxu0
  %v516 = vadd.f32 %v503, %v515
  %v517 = vpop.f32.mrf.mxu0
  %518 = vdwg.mxu0
  %s519 = scalar_lea.vmem %s1, 512
  %v520 = vld [vmem:[%s519] sm:$0xff]
  %v521 = vld [vmem:[%s519 + $0x8] sm:$0xff]
  %v522 = vld [vmem:[%s519 + $0x10] sm:$0xff]
  %v523 = vld [vmem:[%s519 + $0x18] sm:$0xff]
  %v524 = vld [vmem:[%s519 + $0x20] sm:$0xff]
  %v525 = vld [vmem:[%s519 + $0x28] sm:$0xff]
  %v526 = vld [vmem:[%s519 + $0x30] sm:$0xff]
  %v527 = vld [vmem:[%s519 + $0x38] sm:$0xff]
  %v528 = vld [vmem:[%s519 + $0x40] sm:$0xff]
  %v529 = vld [vmem:[%s519 + $0x48] sm:$0xff]
  %v530 = vld [vmem:[%s519 + $0x50] sm:$0xff]
  %v531 = vld [vmem:[%s519 + $0x58] sm:$0xff]
  %v532 = vld [vmem:[%s519 + $0x60] sm:$0xff]
  %v533 = vld [vmem:[%s519 + $0x68] sm:$0xff]
  %v534 = vld [vmem:[%s519 + $0x70] sm:$0xff]
  %v535 = vld [vmem:[%s519 + $0x78] sm:$0xff]
  %v536 = vld [vmem:[%s519 + $0x80] sm:$0xff]
  %v537 = vld [vmem:[%s519 + $0x88] sm:$0xff]
  %v538 = vld [vmem:[%s519 + $0x90] sm:$0xff]
  %v539 = vld [vmem:[%s519 + $0x98] sm:$0xff]
  %v540 = vld [vmem:[%s519 + $0xa0] sm:$0xff]
  %v541 = vld [vmem:[%s519 + $0xa8] sm:$0xff]
  %v542 = vld [vmem:[%s519 + $0xb0] sm:$0xff]
  %v543 = vld [vmem:[%s519 + $0xb8] sm:$0xff]
  %v544 = vld [vmem:[%s519 + $0xc0] sm:$0xff]
  %v545 = vld [vmem:[%s519 + $0xc8] sm:$0xff]
  %v546 = vld [vmem:[%s519 + $0xd0] sm:$0xff]
  %v547 = vld [vmem:[%s519 + $0xd8] sm:$0xff]
  %v548 = vld [vmem:[%s519 + $0xe0] sm:$0xff]
  %v549 = vld [vmem:[%s519 + $0xe8] sm:$0xff]
  %v550 = vld [vmem:[%s519 + $0xf0] sm:$0xff]
  %v551 = vld [vmem:[%s519 + $0xf8] sm:$0xff]
  %v552 = vld [vmem:[%s519 + $0x100] sm:$0xff]
  %v553 = vld [vmem:[%s519 + $0x108] sm:$0xff]
  %v554 = vld [vmem:[%s519 + $0x110] sm:$0xff]
  %v555 = vld [vmem:[%s519 + $0x118] sm:$0xff]
  %v556 = vld [vmem:[%s519 + $0x120] sm:$0xff]
  %v557 = vld [vmem:[%s519 + $0x128] sm:$0xff]
  %v558 = vld [vmem:[%s519 + $0x130] sm:$0xff]
  %v559 = vld [vmem:[%s519 + $0x138] sm:$0xff]
  %v560 = vld [vmem:[%s519 + $0x140] sm:$0xff]
  %v561 = vld [vmem:[%s519 + $0x148] sm:$0xff]
  %v562 = vld [vmem:[%s519 + $0x150] sm:$0xff]
  %v563 = vld [vmem:[%s519 + $0x158] sm:$0xff]
  %v564 = vld [vmem:[%s519 + $0x160] sm:$0xff]
  %v565 = vld [vmem:[%s519 + $0x168] sm:$0xff]
  %v566 = vld [vmem:[%s519 + $0x170] sm:$0xff]
  %v567 = vld [vmem:[%s519 + $0x178] sm:$0xff]
  %v568 = vld [vmem:[%s519 + $0x180] sm:$0xff]
  %v569 = vld [vmem:[%s519 + $0x188] sm:$0xff]
  %v570 = vld [vmem:[%s519 + $0x190] sm:$0xff]
  %v571 = vld [vmem:[%s519 + $0x198] sm:$0xff]
  %v572 = vld [vmem:[%s519 + $0x1a0] sm:$0xff]
  %v573 = vld [vmem:[%s519 + $0x1a8] sm:$0xff]
  %v574 = vld [vmem:[%s519 + $0x1b0] sm:$0xff]
  %v575 = vld [vmem:[%s519 + $0x1b8] sm:$0xff]
  %v576 = vld [vmem:[%s519 + $0x1c0] sm:$0xff]
  %v577 = vld [vmem:[%s519 + $0x1c8] sm:$0xff]
  %v578 = vld [vmem:[%s519 + $0x1d0] sm:$0xff]
  %v579 = vld [vmem:[%s519 + $0x1d8] sm:$0xff]
  %v580 = vld [vmem:[%s519 + $0x1e0] sm:$0xff]
  %v581 = vld [vmem:[%s519 + $0x1e8] sm:$0xff]
  %v582 = vld [vmem:[%s519 + $0x1f0] sm:$0xff]
  %v583 = vld [vmem:[%s519 + $0x1f8] sm:$0xff]
  %v648 = vunpack.c.l.b16 %v520
  %v649 = vunpack.c.h.b16 %v520
  %v650 = vunpack.c.l.b16 %v521
  %v651 = vunpack.c.h.b16 %v521
  %v652 = vunpack.c.l.b16 %v522
  %v653 = vunpack.c.h.b16 %v522
  %v654 = vunpack.c.l.b16 %v523
  %v655 = vunpack.c.h.b16 %v523
  %v656 = vunpack.c.l.b16 %v524
  %v657 = vunpack.c.h.b16 %v524
  %v658 = vunpack.c.l.b16 %v525
  %v659 = vunpack.c.h.b16 %v525
  %v660 = vunpack.c.l.b16 %v526
  %v661 = vunpack.c.h.b16 %v526
  %v662 = vunpack.c.l.b16 %v527
  %v663 = vunpack.c.h.b16 %v527
  %v664 = vunpack.c.l.b16 %v528
  %v665 = vunpack.c.h.b16 %v528
  %v666 = vunpack.c.l.b16 %v529
  %v667 = vunpack.c.h.b16 %v529
  %v668 = vunpack.c.l.b16 %v530
  %v669 = vunpack.c.h.b16 %v530
  %v670 = vunpack.c.l.b16 %v531
  %v671 = vunpack.c.h.b16 %v531
  %v672 = vunpack.c.l.b16 %v532
  %v673 = vunpack.c.h.b16 %v532
  %v674 = vunpack.c.l.b16 %v533
  %v675 = vunpack.c.h.b16 %v533
  %v676 = vunpack.c.l.b16 %v534
  %v677 = vunpack.c.h.b16 %v534
  %v678 = vunpack.c.l.b16 %v535
  %v679 = vunpack.c.h.b16 %v535
  %v680 = vunpack.c.l.b16 %v536
  %v681 = vunpack.c.h.b16 %v536
  %v682 = vunpack.c.l.b16 %v537
  %v683 = vunpack.c.h.b16 %v537
  %v684 = vunpack.c.l.b16 %v538
  %v685 = vunpack.c.h.b16 %v538
  %v686 = vunpack.c.l.b16 %v539
  %v687 = vunpack.c.h.b16 %v539
  %v688 = vunpack.c.l.b16 %v540
  %v689 = vunpack.c.h.b16 %v540
  %v690 = vunpack.c.l.b16 %v541
  %v691 = vunpack.c.h.b16 %v541
  %v692 = vunpack.c.l.b16 %v542
  %v693 = vunpack.c.h.b16 %v542
  %v694 = vunpack.c.l.b16 %v543
  %v695 = vunpack.c.h.b16 %v543
  %v696 = vunpack.c.l.b16 %v544
  %v697 = vunpack.c.h.b16 %v544
  %v698 = vunpack.c.l.b16 %v545
  %v699 = vunpack.c.h.b16 %v545
  %v700 = vunpack.c.l.b16 %v546
  %v701 = vunpack.c.h.b16 %v546
  %v702 = vunpack.c.l.b16 %v547
  %v703 = vunpack.c.h.b16 %v547
  %v704 = vunpack.c.l.b16 %v548
  %v705 = vunpack.c.h.b16 %v548
  %v706 = vunpack.c.l.b16 %v549
  %v707 = vunpack.c.h.b16 %v549
  %v708 = vunpack.c.l.b16 %v550
  %v709 = vunpack.c.h.b16 %v550
  %v710 = vunpack.c.l.b16 %v551
  %v711 = vunpack.c.h.b16 %v551
  %v712 = vunpack.c.l.b16 %v552
  %v713 = vunpack.c.h.b16 %v552
  %v714 = vunpack.c.l.b16 %v553
  %v715 = vunpack.c.h.b16 %v553
  %v716 = vunpack.c.l.b16 %v554
  %v717 = vunpack.c.h.b16 %v554
  %v718 = vunpack.c.l.b16 %v555
  %v719 = vunpack.c.h.b16 %v555
  %v720 = vunpack.c.l.b16 %v556
  %v721 = vunpack.c.h.b16 %v556
  %v722 = vunpack.c.l.b16 %v557
  %v723 = vunpack.c.h.b16 %v557
  %v724 = vunpack.c.l.b16 %v558
  %v725 = vunpack.c.h.b16 %v558
  %v726 = vunpack.c.l.b16 %v559
  %v727 = vunpack.c.h.b16 %v559
  %v728 = vunpack.c.l.b16 %v560
  %v729 = vunpack.c.h.b16 %v560
  %v730 = vunpack.c.l.b16 %v561
  %v731 = vunpack.c.h.b16 %v561
  %v732 = vunpack.c.l.b16 %v562
  %v733 = vunpack.c.h.b16 %v562
  %v734 = vunpack.c.l.b16 %v563
  %v735 = vunpack.c.h.b16 %v563
  %v736 = vunpack.c.l.b16 %v564
  %v737 = vunpack.c.h.b16 %v564
  %v738 = vunpack.c.l.b16 %v565
  %v739 = vunpack.c.h.b16 %v565
  %v740 = vunpack.c.l.b16 %v566
  %v741 = vunpack.c.h.b16 %v566
  %v742 = vunpack.c.l.b16 %v567
  %v743 = vunpack.c.h.b16 %v567
  %v744 = vunpack.c.l.b16 %v568
  %v745 = vunpack.c.h.b16 %v568
  %v746 = vunpack.c.l.b16 %v569
  %v747 = vunpack.c.h.b16 %v569
  %v748 = vunpack.c.l.b16 %v570
  %v749 = vunpack.c.h.b16 %v570
  %v750 = vunpack.c.l.b16 %v571
  %v751 = vunpack.c.h.b16 %v571
  %v752 = vunpack.c.l.b16 %v572
  %v753 = vunpack.c.h.b16 %v572
  %v754 = vunpack.c.l.b16 %v573
  %v755 = vunpack.c.h.b16 %v573
  %v756 = vunpack.c.l.b16 %v574
  %v757 = vunpack.c.h.b16 %v574
  %v758 = vunpack.c.l.b16 %v575
  %v759 = vunpack.c.h.b16 %v575
  %v760 = vunpack.c.l.b16 %v576
  %v761 = vunpack.c.h.b16 %v576
  %v762 = vunpack.c.l.b16 %v577
  %v763 = vunpack.c.h.b16 %v577
  %v764 = vunpack.c.l.b16 %v578
  %v765 = vunpack.c.h.b16 %v578
  %v766 = vunpack.c.l.b16 %v579
  %v767 = vunpack.c.h.b16 %v579
  %v768 = vunpack.c.l.b16 %v580
  %v769 = vunpack.c.h.b16 %v580
  %v770 = vunpack.c.l.b16 %v581
  %v771 = vunpack.c.h.b16 %v581
  %v772 = vunpack.c.l.b16 %v582
  %v773 = vunpack.c.h.b16 %v582
  %v774 = vunpack.c.l.b16 %v583
  %v775 = vunpack.c.h.b16 %v583
  %v776 = vpack.c.b16 %v652, %v648
  %v777 = vpack.c.b16 %v653, %v649
  %v778 = vpack.c.b16 %v654, %v650
  %v779 = vpack.c.b16 %v655, %v651
  %v780 = vpack.c.b16 %v660, %v656
  %v781 = vpack.c.b16 %v661, %v657
  %v782 = vpack.c.b16 %v662, %v658
  %v783 = vpack.c.b16 %v663, %v659
  %v784 = vpack.c.b16 %v668, %v664
  %v785 = vpack.c.b16 %v669, %v665
  %v786 = vpack.c.b16 %v670, %v666
  %v787 = vpack.c.b16 %v671, %v667
  %v788 = vpack.c.b16 %v676, %v672
  %v789 = vpack.c.b16 %v677, %v673
  %v790 = vpack.c.b16 %v678, %v674
  %v791 = vpack.c.b16 %v679, %v675
  %v792 = vpack.c.b16 %v684, %v680
  %v793 = vpack.c.b16 %v685, %v681
  %v794 = vpack.c.b16 %v686, %v682
  %v795 = vpack.c.b16 %v687, %v683
  %v796 = vpack.c.b16 %v692, %v688
  %v797 = vpack.c.b16 %v693, %v689
  %v798 = vpack.c.b16 %v694, %v690
  %v799 = vpack.c.b16 %v695, %v691
  %v800 = vpack.c.b16 %v700, %v696
  %v801 = vpack.c.b16 %v701, %v697
  %v802 = vpack.c.b16 %v702, %v698
  %v803 = vpack.c.b16 %v703, %v699
  %v804 = vpack.c.b16 %v708, %v704
  %v805 = vpack.c.b16 %v709, %v705
  %v806 = vpack.c.b16 %v710, %v706
  %v807 = vpack.c.b16 %v711, %v707
  %v808 = vpack.c.b16 %v716, %v712
  %v809 = vpack.c.b16 %v717, %v713
  %v810 = vpack.c.b16 %v718, %v714
  %v811 = vpack.c.b16 %v719, %v715
  %v812 = vpack.c.b16 %v724, %v720
  %v813 = vpack.c.b16 %v725, %v721
  %v814 = vpack.c.b16 %v726, %v722
  %v815 = vpack.c.b16 %v727, %v723
  %v816 = vpack.c.b16 %v732, %v728
  %v817 = vpack.c.b16 %v733, %v729
  %v818 = vpack.c.b16 %v734, %v730
  %v819 = vpack.c.b16 %v735, %v731
  %v820 = vpack.c.b16 %v740, %v736
  %v821 = vpack.c.b16 %v741, %v737
  %v822 = vpack.c.b16 %v742, %v738
  %v823 = vpack.c.b16 %v743, %v739
  %v824 = vpack.c.b16 %v748, %v744
  %v825 = vpack.c.b16 %v749, %v745
  %v826 = vpack.c.b16 %v750, %v746
  %v827 = vpack.c.b16 %v751, %v747
  %v828 = vpack.c.b16 %v756, %v752
  %v829 = vpack.c.b16 %v757, %v753
  %v830 = vpack.c.b16 %v758, %v754
  %v831 = vpack.c.b16 %v759, %v755
  %v832 = vpack.c.b16 %v764, %v760
  %v833 = vpack.c.b16 %v765, %v761
  %v834 = vpack.c.b16 %v766, %v762
  %v835 = vpack.c.b16 %v767, %v763
  %v836 = vpack.c.b16 %v772, %v768
  %v837 = vpack.c.b16 %v773, %v769
  %v838 = vpack.c.b16 %v774, %v770
  %v839 = vpack.c.b16 %v775, %v771
  %904 = vmatpush.bf16.msra.mxu0 %v804
  %905 = vmatpush.bf16.msra.mxu0 %v800
  %906 = vmatpush.bf16.msra.mxu0 %v796
  %907 = vmatpush.bf16.msra.mxu0 %v792
  %908 = vmatpush.bf16.msra.mxu0 %v788
  %909 = vmatpush.bf16.msra.mxu0 %v784
  %910 = vmatpush.bf16.msra.mxu0 %v780
  %911 = vmatpush.bf16.msra.mxu0 %v776
  %912 = vmatmul.bf16.gmra.mxu0 %v29
  %v913 = vpop.f32.mrf.mxu0
  %v914 = vadd.f32 0.0, %v913
  %v915 = vpop.f32.mrf.mxu0
  %916 = vdwg.mxu0
  %917 = vmatpush.bf16.msra.mxu0 %v836
  %918 = vmatpush.bf16.msra.mxu0 %v832
  %919 = vmatpush.bf16.msra.mxu0 %v828
  %920 = vmatpush.bf16.msra.mxu0 %v824
  %921 = vmatpush.bf16.msra.mxu0 %v820
  %922 = vmatpush.bf16.msra.mxu0 %v816
  %923 = vmatpush.bf16.msra.mxu0 %v812
  %924 = vmatpush.bf16.msra.mxu0 %v808
  %925 = vmatmul.bf16.gmra.mxu0 %v30
  %v926 = vpop.f32.mrf.mxu0
  %v927 = vadd.f32 %v914, %v926
  %v928 = vpop.f32.mrf.mxu0
  %929 = vdwg.mxu0
  %930 = vmatpush.bf16.msra.mxu0 %v805
  %931 = vmatpush.bf16.msra.mxu0 %v801
  %932 = vmatpush.bf16.msra.mxu0 %v797
  %933 = vmatpush.bf16.msra.mxu0 %v793
  %934 = vmatpush.bf16.msra.mxu0 %v789
  %935 = vmatpush.bf16.msra.mxu0 %v785
  %936 = vmatpush.bf16.msra.mxu0 %v781
  %937 = vmatpush.bf16.msra.mxu0 %v777
  %938 = vmatmul.bf16.gmra.mxu0 %v29
  %v939 = vpop.f32.mrf.mxu0
  %v940 = vadd.f32 0.0, %v939
  %v941 = vpop.f32.mrf.mxu0
  %942 = vdwg.mxu0
  %943 = vmatpush.bf16.msra.mxu0 %v837
  %944 = vmatpush.bf16.msra.mxu0 %v833
  %945 = vmatpush.bf16.msra.mxu0 %v829
  %946 = vmatpush.bf16.msra.mxu0 %v825
  %947 = vmatpush.bf16.msra.mxu0 %v821
  %948 = vmatpush.bf16.msra.mxu0 %v817
  %949 = vmatpush.bf16.msra.mxu0 %v813
  %950 = vmatpush.bf16.msra.mxu0 %v809
  %951 = vmatmul.bf16.gmra.mxu0 %v30
  %v952 = vpop.f32.mrf.mxu0
  %v953 = vadd.f32 %v940, %v952
  %v954 = vpop.f32.mrf.mxu0
  %955 = vdwg.mxu0
  %956 = vmatpush.bf16.msra.mxu0 %v806
  %957 = vmatpush.bf16.msra.mxu0 %v802
  %958 = vmatpush.bf16.msra.mxu0 %v798
  %959 = vmatpush.bf16.msra.mxu0 %v794
  %960 = vmatpush.bf16.msra.mxu0 %v790
  %961 = vmatpush.bf16.msra.mxu0 %v786
  %962 = vmatpush.bf16.msra.mxu0 %v782
  %963 = vmatpush.bf16.msra.mxu0 %v778
  %964 = vmatmul.bf16.gmra.mxu0 %v29
  %v965 = vpop.f32.mrf.mxu0
  %v966 = vadd.f32 0.0, %v965
  %v967 = vpop.f32.mrf.mxu0
  %968 = vdwg.mxu0
  %969 = vmatpush.bf16.msra.mxu0 %v838
  %970 = vmatpush.bf16.msra.mxu0 %v834
  %971 = vmatpush.bf16.msra.mxu0 %v830
  %972 = vmatpush.bf16.msra.mxu0 %v826
  %973 = vmatpush.bf16.msra.mxu0 %v822
  %974 = vmatpush.bf16.msra.mxu0 %v818
  %975 = vmatpush.bf16.msra.mxu0 %v814
  %976 = vmatpush.bf16.msra.mxu0 %v810
  %977 = vmatmul.bf16.gmra.mxu0 %v30
  %v978 = vpop.f32.mrf.mxu0
  %v979 = vadd.f32 %v966, %v978
  %v980 = vpop.f32.mrf.mxu0
  %981 = vdwg.mxu0
  %982 = vmatpush.bf16.msra.mxu0 %v807
  %983 = vmatpush.bf16.msra.mxu0 %v803
  %984 = vmatpush.bf16.msra.mxu0 %v799
  %985 = vmatpush.bf16.msra.mxu0 %v795
  %986 = vmatpush.bf16.msra.mxu0 %v791
  %987 = vmatpush.bf16.msra.mxu0 %v787
  %988 = vmatpush.bf16.msra.mxu0 %v783
  %989 = vmatpush.bf16.msra.mxu0 %v779
  %990 = vmatmul.bf16.gmra.mxu0 %v29
  %v991 = vpop.f32.mrf.mxu0
  %v992 = vadd.f32 0.0, %v991
  %v993 = vpop.f32.mrf.mxu0
  %994 = vdwg.mxu0
  %995 = vmatpush.bf16.msra.mxu0 %v839
  %996 = vmatpush.bf16.msra.mxu0 %v835
  %997 = vmatpush.bf16.msra.mxu0 %v831
  %998 = vmatpush.bf16.msra.mxu0 %v827
  %999 = vmatpush.bf16.msra.mxu0 %v823
  %1000 = vmatpush.bf16.msra.mxu0 %v819
  %1001 = vmatpush.bf16.msra.mxu0 %v815
  %1002 = vmatpush.bf16.msra.mxu0 %v811
  %1003 = vmatmul.bf16.gmra.mxu0 %v30
  %v1004 = vpop.f32.mrf.mxu0
  %v1005 = vadd.f32 %v992, %v1004
  %v1006 = vpop.f32.mrf.mxu0
  %1007 = vdwg.mxu0
  %s1008 = scalar_lea.vmem %s1, 1024
  %v1009 = vld [vmem:[%s1008] sm:$0xff]
  %v1010 = vld [vmem:[%s1008 + $0x8] sm:$0xff]
  %v1011 = vld [vmem:[%s1008 + $0x10] sm:$0xff]
  %v1012 = vld [vmem:[%s1008 + $0x18] sm:$0xff]
  %v1013 = vld [vmem:[%s1008 + $0x20] sm:$0xff]
  %v1014 = vld [vmem:[%s1008 + $0x28] sm:$0xff]
  %v1015 = vld [vmem:[%s1008 + $0x30] sm:$0xff]
  %v1016 = vld [vmem:[%s1008 + $0x38] sm:$0xff]
  %v1017 = vld [vmem:[%s1008 + $0x40] sm:$0xff]
  %v1018 = vld [vmem:[%s1008 + $0x48] sm:$0xff]
  %v1019 = vld [vmem:[%s1008 + $0x50] sm:$0xff]
  %v1020 = vld [vmem:[%s1008 + $0x58] sm:$0xff]
  %v1021 = vld [vmem:[%s1008 + $0x60] sm:$0xff]
  %v1022 = vld [vmem:[%s1008 + $0x68] sm:$0xff]
  %v1023 = vld [vmem:[%s1008 + $0x70] sm:$0xff]
  %v1024 = vld [vmem:[%s1008 + $0x78] sm:$0xff]
  %v1025 = vld [vmem:[%s1008 + $0x80] sm:$0xff]
  %v1026 = vld [vmem:[%s1008 + $0x88] sm:$0xff]
  %v1027 = vld [vmem:[%s1008 + $0x90] sm:$0xff]
  %v1028 = vld [vmem:[%s1008 + $0x98] sm:$0xff]
  %v1029 = vld [vmem:[%s1008 + $0xa0] sm:$0xff]
  %v1030 = vld [vmem:[%s1008 + $0xa8] sm:$0xff]
  %v1031 = vld [vmem:[%s1008 + $0xb0] sm:$0xff]
  %v1032 = vld [vmem:[%s1008 + $0xb8] sm:$0xff]
  %v1033 = vld [vmem:[%s1008 + $0xc0] sm:$0xff]
  %v1034 = vld [vmem:[%s1008 + $0xc8] sm:$0xff]
  %v1035 = vld [vmem:[%s1008 + $0xd0] sm:$0xff]
  %v1036 = vld [vmem:[%s1008 + $0xd8] sm:$0xff]
  %v1037 = vld [vmem:[%s1008 + $0xe0] sm:$0xff]
  %v1038 = vld [vmem:[%s1008 + $0xe8] sm:$0xff]
  %v1039 = vld [vmem:[%s1008 + $0xf0] sm:$0xff]
  %v1040 = vld [vmem:[%s1008 + $0xf8] sm:$0xff]
  %v1041 = vld [vmem:[%s1008 + $0x100] sm:$0xff]
  %v1042 = vld [vmem:[%s1008 + $0x108] sm:$0xff]
  %v1043 = vld [vmem:[%s1008 + $0x110] sm:$0xff]
  %v1044 = vld [vmem:[%s1008 + $0x118] sm:$0xff]
  %v1045 = vld [vmem:[%s1008 + $0x120] sm:$0xff]
  %v1046 = vld [vmem:[%s1008 + $0x128] sm:$0xff]
  %v1047 = vld [vmem:[%s1008 + $0x130] sm:$0xff]
  %v1048 = vld [vmem:[%s1008 + $0x138] sm:$0xff]
  %v1049 = vld [vmem:[%s1008 + $0x140] sm:$0xff]
  %v1050 = vld [vmem:[%s1008 + $0x148] sm:$0xff]
  %v1051 = vld [vmem:[%s1008 + $0x150] sm:$0xff]
  %v1052 = vld [vmem:[%s1008 + $0x158] sm:$0xff]
  %v1053 = vld [vmem:[%s1008 + $0x160] sm:$0xff]
  %v1054 = vld [vmem:[%s1008 + $0x168] sm:$0xff]
  %v1055 = vld [vmem:[%s1008 + $0x170] sm:$0xff]
  %v1056 = vld [vmem:[%s1008 + $0x178] sm:$0xff]
  %v1057 = vld [vmem:[%s1008 + $0x180] sm:$0xff]
  %v1058 = vld [vmem:[%s1008 + $0x188] sm:$0xff]
  %v1059 = vld [vmem:[%s1008 + $0x190] sm:$0xff]
  %v1060 = vld [vmem:[%s1008 + $0x198] sm:$0xff]
  %v1061 = vld [vmem:[%s1008 + $0x1a0] sm:$0xff]
  %v1062 = vld [vmem:[%s1008 + $0x1a8] sm:$0xff]
  %v1063 = vld [vmem:[%s1008 + $0x1b0] sm:$0xff]
  %v1064 = vld [vmem:[%s1008 + $0x1b8] sm:$0xff]
  %v1065 = vld [vmem:[%s1008 + $0x1c0] sm:$0xff]
  %v1066 = vld [vmem:[%s1008 + $0x1c8] sm:$0xff]
  %v1067 = vld [vmem:[%s1008 + $0x1d0] sm:$0xff]
  %v1068 = vld [vmem:[%s1008 + $0x1d8] sm:$0xff]
  %v1069 = vld [vmem:[%s1008 + $0x1e0] sm:$0xff]
  %v1070 = vld [vmem:[%s1008 + $0x1e8] sm:$0xff]
  %v1071 = vld [vmem:[%s1008 + $0x1f0] sm:$0xff]
  %v1072 = vld [vmem:[%s1008 + $0x1f8] sm:$0xff]
  %v1137 = vunpack.c.l.b16 %v1009
  %v1138 = vunpack.c.h.b16 %v1009
  %v1139 = vunpack.c.l.b16 %v1010
  %v1140 = vunpack.c.h.b16 %v1010
  %v1141 = vunpack.c.l.b16 %v1011
  %v1142 = vunpack.c.h.b16 %v1011
  %v1143 = vunpack.c.l.b16 %v1012
  %v1144 = vunpack.c.h.b16 %v1012
  %v1145 = vunpack.c.l.b16 %v1013
  %v1146 = vunpack.c.h.b16 %v1013
  %v1147 = vunpack.c.l.b16 %v1014
  %v1148 = vunpack.c.h.b16 %v1014
  %v1149 = vunpack.c.l.b16 %v1015
  %v1150 = vunpack.c.h.b16 %v1015
  %v1151 = vunpack.c.l.b16 %v1016
  %v1152 = vunpack.c.h.b16 %v1016
  %v1153 = vunpack.c.l.b16 %v1017
  %v1154 = vunpack.c.h.b16 %v1017
  %v1155 = vunpack.c.l.b16 %v1018
  %v1156 = vunpack.c.h.b16 %v1018
  %v1157 = vunpack.c.l.b16 %v1019
  %v1158 = vunpack.c.h.b16 %v1019
  %v1159 = vunpack.c.l.b16 %v1020
  %v1160 = vunpack.c.h.b16 %v1020
  %v1161 = vunpack.c.l.b16 %v1021
  %v1162 = vunpack.c.h.b16 %v1021
  %v1163 = vunpack.c.l.b16 %v1022
  %v1164 = vunpack.c.h.b16 %v1022
  %v1165 = vunpack.c.l.b16 %v1023
  %v1166 = vunpack.c.h.b16 %v1023
  %v1167 = vunpack.c.l.b16 %v1024
  %v1168 = vunpack.c.h.b16 %v1024
  %v1169 = vunpack.c.l.b16 %v1025
  %v1170 = vunpack.c.h.b16 %v1025
  %v1171 = vunpack.c.l.b16 %v1026
  %v1172 = vunpack.c.h.b16 %v1026
  %v1173 = vunpack.c.l.b16 %v1027
  %v1174 = vunpack.c.h.b16 %v1027
  %v1175 = vunpack.c.l.b16 %v1028
  %v1176 = vunpack.c.h.b16 %v1028
  %v1177 = vunpack.c.l.b16 %v1029
  %v1178 = vunpack.c.h.b16 %v1029
  %v1179 = vunpack.c.l.b16 %v1030
  %v1180 = vunpack.c.h.b16 %v1030
  %v1181 = vunpack.c.l.b16 %v1031
  %v1182 = vunpack.c.h.b16 %v1031
  %v1183 = vunpack.c.l.b16 %v1032
  %v1184 = vunpack.c.h.b16 %v1032
  %v1185 = vunpack.c.l.b16 %v1033
  %v1186 = vunpack.c.h.b16 %v1033
  %v1187 = vunpack.c.l.b16 %v1034
  %v1188 = vunpack.c.h.b16 %v1034
  %v1189 = vunpack.c.l.b16 %v1035
  %v1190 = vunpack.c.h.b16 %v1035
  %v1191 = vunpack.c.l.b16 %v1036
  %v1192 = vunpack.c.h.b16 %v1036
  %v1193 = vunpack.c.l.b16 %v1037
  %v1194 = vunpack.c.h.b16 %v1037
  %v1195 = vunpack.c.l.b16 %v1038
  %v1196 = vunpack.c.h.b16 %v1038
  %v1197 = vunpack.c.l.b16 %v1039
  %v1198 = vunpack.c.h.b16 %v1039
  %v1199 = vunpack.c.l.b16 %v1040
  %v1200 = vunpack.c.h.b16 %v1040
  %v1201 = vunpack.c.l.b16 %v1041
  %v1202 = vunpack.c.h.b16 %v1041
  %v1203 = vunpack.c.l.b16 %v1042
  %v1204 = vunpack.c.h.b16 %v1042
  %v1205 = vunpack.c.l.b16 %v1043
  %v1206 = vunpack.c.h.b16 %v1043
  %v1207 = vunpack.c.l.b16 %v1044
  %v1208 = vunpack.c.h.b16 %v1044
  %v1209 = vunpack.c.l.b16 %v1045
  %v1210 = vunpack.c.h.b16 %v1045
  %v1211 = vunpack.c.l.b16 %v1046
  %v1212 = vunpack.c.h.b16 %v1046
  %v1213 = vunpack.c.l.b16 %v1047
  %v1214 = vunpack.c.h.b16 %v1047
  %v1215 = vunpack.c.l.b16 %v1048
  %v1216 = vunpack.c.h.b16 %v1048
  %v1217 = vunpack.c.l.b16 %v1049
  %v1218 = vunpack.c.h.b16 %v1049
  %v1219 = vunpack.c.l.b16 %v1050
  %v1220 = vunpack.c.h.b16 %v1050
  %v1221 = vunpack.c.l.b16 %v1051
  %v1222 = vunpack.c.h.b16 %v1051
  %v1223 = vunpack.c.l.b16 %v1052
  %v1224 = vunpack.c.h.b16 %v1052
  %v1225 = vunpack.c.l.b16 %v1053
  %v1226 = vunpack.c.h.b16 %v1053
  %v1227 = vunpack.c.l.b16 %v1054
  %v1228 = vunpack.c.h.b16 %v1054
  %v1229 = vunpack.c.l.b16 %v1055
  %v1230 = vunpack.c.h.b16 %v1055
  %v1231 = vunpack.c.l.b16 %v1056
  %v1232 = vunpack.c.h.b16 %v1056
  %v1233 = vunpack.c.l.b16 %v1057
  %v1234 = vunpack.c.h.b16 %v1057
  %v1235 = vunpack.c.l.b16 %v1058
  %v1236 = vunpack.c.h.b16 %v1058
  %v1237 = vunpack.c.l.b16 %v1059
  %v1238 = vunpack.c.h.b16 %v1059
  %v1239 = vunpack.c.l.b16 %v1060
  %v1240 = vunpack.c.h.b16 %v1060
  %v1241 = vunpack.c.l.b16 %v1061
  %v1242 = vunpack.c.h.b16 %v1061
  %v1243 = vunpack.c.l.b16 %v1062
  %v1244 = vunpack.c.h.b16 %v1062
  %v1245 = vunpack.c.l.b16 %v1063
  %v1246 = vunpack.c.h.b16 %v1063
  %v1247 = vunpack.c.l.b16 %v1064
  %v1248 = vunpack.c.h.b16 %v1064
  %v1249 = vunpack.c.l.b16 %v1065
  %v1250 = vunpack.c.h.b16 %v1065
  %v1251 = vunpack.c.l.b16 %v1066
  %v1252 = vunpack.c.h.b16 %v1066
  %v1253 = vunpack.c.l.b16 %v1067
  %v1254 = vunpack.c.h.b16 %v1067
  %v1255 = vunpack.c.l.b16 %v1068
  %v1256 = vunpack.c.h.b16 %v1068
  %v1257 = vunpack.c.l.b16 %v1069
  %v1258 = vunpack.c.h.b16 %v1069
  %v1259 = vunpack.c.l.b16 %v1070
  %v1260 = vunpack.c.h.b16 %v1070
  %v1261 = vunpack.c.l.b16 %v1071
  %v1262 = vunpack.c.h.b16 %v1071
  %v1263 = vunpack.c.l.b16 %v1072
  %v1264 = vunpack.c.h.b16 %v1072
  %v1265 = vpack.c.b16 %v1141, %v1137
  %v1266 = vpack.c.b16 %v1142, %v1138
  %v1267 = vpack.c.b16 %v1143, %v1139
  %v1268 = vpack.c.b16 %v1144, %v1140
  %v1269 = vpack.c.b16 %v1149, %v1145
  %v1270 = vpack.c.b16 %v1150, %v1146
  %v1271 = vpack.c.b16 %v1151, %v1147
  %v1272 = vpack.c.b16 %v1152, %v1148
  %v1273 = vpack.c.b16 %v1157, %v1153
  %v1274 = vpack.c.b16 %v1158, %v1154
  %v1275 = vpack.c.b16 %v1159, %v1155
  %v1276 = vpack.c.b16 %v1160, %v1156
  %v1277 = vpack.c.b16 %v1165, %v1161
  %v1278 = vpack.c.b16 %v1166, %v1162
  %v1279 = vpack.c.b16 %v1167, %v1163
  %v1280 = vpack.c.b16 %v1168, %v1164
  %v1281 = vpack.c.b16 %v1173, %v1169
  %v1282 = vpack.c.b16 %v1174, %v1170
  %v1283 = vpack.c.b16 %v1175, %v1171
  %v1284 = vpack.c.b16 %v1176, %v1172
  %v1285 = vpack.c.b16 %v1181, %v1177
  %v1286 = vpack.c.b16 %v1182, %v1178
  %v1287 = vpack.c.b16 %v1183, %v1179
  %v1288 = vpack.c.b16 %v1184, %v1180
  %v1289 = vpack.c.b16 %v1189, %v1185
  %v1290 = vpack.c.b16 %v1190, %v1186
  %v1291 = vpack.c.b16 %v1191, %v1187
  %v1292 = vpack.c.b16 %v1192, %v1188
  %v1293 = vpack.c.b16 %v1197, %v1193
  %v1294 = vpack.c.b16 %v1198, %v1194
  %v1295 = vpack.c.b16 %v1199, %v1195
  %v1296 = vpack.c.b16 %v1200, %v1196
  %v1297 = vpack.c.b16 %v1205, %v1201
  %v1298 = vpack.c.b16 %v1206, %v1202
  %v1299 = vpack.c.b16 %v1207, %v1203
  %v1300 = vpack.c.b16 %v1208, %v1204
  %v1301 = vpack.c.b16 %v1213, %v1209
  %v1302 = vpack.c.b16 %v1214, %v1210
  %v1303 = vpack.c.b16 %v1215, %v1211
  %v1304 = vpack.c.b16 %v1216, %v1212
  %v1305 = vpack.c.b16 %v1221, %v1217
  %v1306 = vpack.c.b16 %v1222, %v1218
  %v1307 = vpack.c.b16 %v1223, %v1219
  %v1308 = vpack.c.b16 %v1224, %v1220
  %v1309 = vpack.c.b16 %v1229, %v1225
  %v1310 = vpack.c.b16 %v1230, %v1226
  %v1311 = vpack.c.b16 %v1231, %v1227
  %v1312 = vpack.c.b16 %v1232, %v1228
  %v1313 = vpack.c.b16 %v1237, %v1233
  %v1314 = vpack.c.b16 %v1238, %v1234
  %v1315 = vpack.c.b16 %v1239, %v1235
  %v1316 = vpack.c.b16 %v1240, %v1236
  %v1317 = vpack.c.b16 %v1245, %v1241
  %v1318 = vpack.c.b16 %v1246, %v1242
  %v1319 = vpack.c.b16 %v1247, %v1243
  %v1320 = vpack.c.b16 %v1248, %v1244
  %v1321 = vpack.c.b16 %v1253, %v1249
  %v1322 = vpack.c.b16 %v1254, %v1250
  %v1323 = vpack.c.b16 %v1255, %v1251
  %v1324 = vpack.c.b16 %v1256, %v1252
  %v1325 = vpack.c.b16 %v1261, %v1257
  %v1326 = vpack.c.b16 %v1262, %v1258
  %v1327 = vpack.c.b16 %v1263, %v1259
  %v1328 = vpack.c.b16 %v1264, %v1260
  %1393 = vmatpush.bf16.msra.mxu0 %v1293
  %1394 = vmatpush.bf16.msra.mxu0 %v1289
  %1395 = vmatpush.bf16.msra.mxu0 %v1285
  %1396 = vmatpush.bf16.msra.mxu0 %v1281
  %1397 = vmatpush.bf16.msra.mxu0 %v1277
  %1398 = vmatpush.bf16.msra.mxu0 %v1273
  %1399 = vmatpush.bf16.msra.mxu0 %v1269
  %1400 = vmatpush.bf16.msra.mxu0 %v1265
  %1401 = vmatmul.bf16.gmra.mxu0 %v29
  %v1402 = vpop.f32.mrf.mxu0
  %v1403 = vadd.f32 0.0, %v1402
  %v1404 = vpop.f32.mrf.mxu0
  %1405 = vdwg.mxu0
  %1406 = vmatpush.bf16.msra.mxu0 %v1325
  %1407 = vmatpush.bf16.msra.mxu0 %v1321
  %1408 = vmatpush.bf16.msra.mxu0 %v1317
  %1409 = vmatpush.bf16.msra.mxu0 %v1313
  %1410 = vmatpush.bf16.msra.mxu0 %v1309
  %1411 = vmatpush.bf16.msra.mxu0 %v1305
  %1412 = vmatpush.bf16.msra.mxu0 %v1301
  %1413 = vmatpush.bf16.msra.mxu0 %v1297
  %1414 = vmatmul.bf16.gmra.mxu0 %v30
  %v1415 = vpop.f32.mrf.mxu0
  %v1416 = vadd.f32 %v1403, %v1415
  %v1417 = vpop.f32.mrf.mxu0
  %1418 = vdwg.mxu0
  %1419 = vmatpush.bf16.msra.mxu0 %v1294
  %1420 = vmatpush.bf16.msra.mxu0 %v1290
  %1421 = vmatpush.bf16.msra.mxu0 %v1286
  %1422 = vmatpush.bf16.msra.mxu0 %v1282
  %1423 = vmatpush.bf16.msra.mxu0 %v1278
  %1424 = vmatpush.bf16.msra.mxu0 %v1274
  %1425 = vmatpush.bf16.msra.mxu0 %v1270
  %1426 = vmatpush.bf16.msra.mxu0 %v1266
  %1427 = vmatmul.bf16.gmra.mxu0 %v29
  %v1428 = vpop.f32.mrf.mxu0
  %v1429 = vadd.f32 0.0, %v1428
  %v1430 = vpop.f32.mrf.mxu0
  %1431 = vdwg.mxu0
  %1432 = vmatpush.bf16.msra.mxu0 %v1326
  %1433 = vmatpush.bf16.msra.mxu0 %v1322
  %1434 = vmatpush.bf16.msra.mxu0 %v1318
  %1435 = vmatpush.bf16.msra.mxu0 %v1314
  %1436 = vmatpush.bf16.msra.mxu0 %v1310
  %1437 = vmatpush.bf16.msra.mxu0 %v1306
  %1438 = vmatpush.bf16.msra.mxu0 %v1302
  %1439 = vmatpush.bf16.msra.mxu0 %v1298
  %1440 = vmatmul.bf16.gmra.mxu0 %v30
  %v1441 = vpop.f32.mrf.mxu0
  %v1442 = vadd.f32 %v1429, %v1441
  %v1443 = vpop.f32.mrf.mxu0
  %1444 = vdwg.mxu0
  %1445 = vmatpush.bf16.msra.mxu0 %v1295
  %1446 = vmatpush.bf16.msra.mxu0 %v1291
  %1447 = vmatpush.bf16.msra.mxu0 %v1287
  %1448 = vmatpush.bf16.msra.mxu0 %v1283
  %1449 = vmatpush.bf16.msra.mxu0 %v1279
  %1450 = vmatpush.bf16.msra.mxu0 %v1275
  %1451 = vmatpush.bf16.msra.mxu0 %v1271
  %1452 = vmatpush.bf16.msra.mxu0 %v1267
  %1453 = vmatmul.bf16.gmra.mxu0 %v29
  %v1454 = vpop.f32.mrf.mxu0
  %v1455 = vadd.f32 0.0, %v1454
  %v1456 = vpop.f32.mrf.mxu0
  %1457 = vdwg.mxu0
  %1458 = vmatpush.bf16.msra.mxu0 %v1327
  %1459 = vmatpush.bf16.msra.mxu0 %v1323
  %1460 = vmatpush.bf16.msra.mxu0 %v1319
  %1461 = vmatpush.bf16.msra.mxu0 %v1315
  %1462 = vmatpush.bf16.msra.mxu0 %v1311
  %1463 = vmatpush.bf16.msra.mxu0 %v1307
  %1464 = vmatpush.bf16.msra.mxu0 %v1303
  %1465 = vmatpush.bf16.msra.mxu0 %v1299
  %1466 = vmatmul.bf16.gmra.mxu0 %v30
  %v1467 = vpop.f32.mrf.mxu0
  %v1468 = vadd.f32 %v1455, %v1467
  %v1469 = vpop.f32.mrf.mxu0
  %1470 = vdwg.mxu0
  %1471 = vmatpush.bf16.msra.mxu0 %v1296
  %1472 = vmatpush.bf16.msra.mxu0 %v1292
  %1473 = vmatpush.bf16.msra.mxu0 %v1288
  %1474 = vmatpush.bf16.msra.mxu0 %v1284
  %1475 = vmatpush.bf16.msra.mxu0 %v1280
  %1476 = vmatpush.bf16.msra.mxu0 %v1276
  %1477 = vmatpush.bf16.msra.mxu0 %v1272
  %1478 = vmatpush.bf16.msra.mxu0 %v1268
  %1479 = vmatmul.bf16.gmra.mxu0 %v29
  %v1480 = vpop.f32.mrf.mxu0
  %v1481 = vadd.f32 0.0, %v1480
  %v1482 = vpop.f32.mrf.mxu0
  %1483 = vdwg.mxu0
  %1484 = vmatpush.bf16.msra.mxu0 %v1328
  %1485 = vmatpush.bf16.msra.mxu0 %v1324
  %1486 = vmatpush.bf16.msra.mxu0 %v1320
  %1487 = vmatpush.bf16.msra.mxu0 %v1316
  %1488 = vmatpush.bf16.msra.mxu0 %v1312
  %1489 = vmatpush.bf16.msra.mxu0 %v1308
  %1490 = vmatpush.bf16.msra.mxu0 %v1304
  %1491 = vmatpush.bf16.msra.mxu0 %v1300
  %1492 = vmatmul.bf16.gmra.mxu0 %v30
  %v1493 = vpop.f32.mrf.mxu0
  %v1494 = vadd.f32 %v1481, %v1493
  %v1495 = vpop.f32.mrf.mxu0
  %1496 = vdwg.mxu0
  %s1497 = scalar_lea.vmem %s1, 1536
  %v1498 = vld [vmem:[%s1497] sm:$0xff]
  %v1499 = vld [vmem:[%s1497 + $0x8] sm:$0xff]
  %v1500 = vld [vmem:[%s1497 + $0x10] sm:$0xff]
  %v1501 = vld [vmem:[%s1497 + $0x18] sm:$0xff]
  %v1502 = vld [vmem:[%s1497 + $0x20] sm:$0xff]
  %v1503 = vld [vmem:[%s1497 + $0x28] sm:$0xff]
  %v1504 = vld [vmem:[%s1497 + $0x30] sm:$0xff]
  %v1505 = vld [vmem:[%s1497 + $0x38] sm:$0xff]
  %v1506 = vld [vmem:[%s1497 + $0x40] sm:$0xff]
  %v1507 = vld [vmem:[%s1497 + $0x48] sm:$0xff]
  %v1508 = vld [vmem:[%s1497 + $0x50] sm:$0xff]
  %v1509 = vld [vmem:[%s1497 + $0x58] sm:$0xff]
  %v1510 = vld [vmem:[%s1497 + $0x60] sm:$0xff]
  %v1511 = vld [vmem:[%s1497 + $0x68] sm:$0xff]
  %v1512 = vld [vmem:[%s1497 + $0x70] sm:$0xff]
  %v1513 = vld [vmem:[%s1497 + $0x78] sm:$0xff]
  %v1514 = vld [vmem:[%s1497 + $0x80] sm:$0xff]
  %v1515 = vld [vmem:[%s1497 + $0x88] sm:$0xff]
  %v1516 = vld [vmem:[%s1497 + $0x90] sm:$0xff]
  %v1517 = vld [vmem:[%s1497 + $0x98] sm:$0xff]
  %v1518 = vld [vmem:[%s1497 + $0xa0] sm:$0xff]
  %v1519 = vld [vmem:[%s1497 + $0xa8] sm:$0xff]
  %v1520 = vld [vmem:[%s1497 + $0xb0] sm:$0xff]
  %v1521 = vld [vmem:[%s1497 + $0xb8] sm:$0xff]
  %v1522 = vld [vmem:[%s1497 + $0xc0] sm:$0xff]
  %v1523 = vld [vmem:[%s1497 + $0xc8] sm:$0xff]
  %v1524 = vld [vmem:[%s1497 + $0xd0] sm:$0xff]
  %v1525 = vld [vmem:[%s1497 + $0xd8] sm:$0xff]
  %v1526 = vld [vmem:[%s1497 + $0xe0] sm:$0xff]
  %v1527 = vld [vmem:[%s1497 + $0xe8] sm:$0xff]
  %v1528 = vld [vmem:[%s1497 + $0xf0] sm:$0xff]
  %v1529 = vld [vmem:[%s1497 + $0xf8] sm:$0xff]
  %v1530 = vld [vmem:[%s1497 + $0x100] sm:$0xff]
  %v1531 = vld [vmem:[%s1497 + $0x108] sm:$0xff]
  %v1532 = vld [vmem:[%s1497 + $0x110] sm:$0xff]
  %v1533 = vld [vmem:[%s1497 + $0x118] sm:$0xff]
  %v1534 = vld [vmem:[%s1497 + $0x120] sm:$0xff]
  %v1535 = vld [vmem:[%s1497 + $0x128] sm:$0xff]
  %v1536 = vld [vmem:[%s1497 + $0x130] sm:$0xff]
  %v1537 = vld [vmem:[%s1497 + $0x138] sm:$0xff]
  %v1538 = vld [vmem:[%s1497 + $0x140] sm:$0xff]
  %v1539 = vld [vmem:[%s1497 + $0x148] sm:$0xff]
  %v1540 = vld [vmem:[%s1497 + $0x150] sm:$0xff]
  %v1541 = vld [vmem:[%s1497 + $0x158] sm:$0xff]
  %v1542 = vld [vmem:[%s1497 + $0x160] sm:$0xff]
  %v1543 = vld [vmem:[%s1497 + $0x168] sm:$0xff]
  %v1544 = vld [vmem:[%s1497 + $0x170] sm:$0xff]
  %v1545 = vld [vmem:[%s1497 + $0x178] sm:$0xff]
  %v1546 = vld [vmem:[%s1497 + $0x180] sm:$0xff]
  %v1547 = vld [vmem:[%s1497 + $0x188] sm:$0xff]
  %v1548 = vld [vmem:[%s1497 + $0x190] sm:$0xff]
  %v1549 = vld [vmem:[%s1497 + $0x198] sm:$0xff]
  %v1550 = vld [vmem:[%s1497 + $0x1a0] sm:$0xff]
  %v1551 = vld [vmem:[%s1497 + $0x1a8] sm:$0xff]
  %v1552 = vld [vmem:[%s1497 + $0x1b0] sm:$0xff]
  %v1553 = vld [vmem:[%s1497 + $0x1b8] sm:$0xff]
  %v1554 = vld [vmem:[%s1497 + $0x1c0] sm:$0xff]
  %v1555 = vld [vmem:[%s1497 + $0x1c8] sm:$0xff]
  %v1556 = vld [vmem:[%s1497 + $0x1d0] sm:$0xff]
  %v1557 = vld [vmem:[%s1497 + $0x1d8] sm:$0xff]
  %v1558 = vld [vmem:[%s1497 + $0x1e0] sm:$0xff]
  %v1559 = vld [vmem:[%s1497 + $0x1e8] sm:$0xff]
  %v1560 = vld [vmem:[%s1497 + $0x1f0] sm:$0xff]
  %v1561 = vld [vmem:[%s1497 + $0x1f8] sm:$0xff]
  %v1626 = vunpack.c.l.b16 %v1498
  %v1627 = vunpack.c.h.b16 %v1498
  %v1628 = vunpack.c.l.b16 %v1499
  %v1629 = vunpack.c.h.b16 %v1499
  %v1630 = vunpack.c.l.b16 %v1500
  %v1631 = vunpack.c.h.b16 %v1500
  %v1632 = vunpack.c.l.b16 %v1501
  %v1633 = vunpack.c.h.b16 %v1501
  %v1634 = vunpack.c.l.b16 %v1502
  %v1635 = vunpack.c.h.b16 %v1502
  %v1636 = vunpack.c.l.b16 %v1503
  %v1637 = vunpack.c.h.b16 %v1503
  %v1638 = vunpack.c.l.b16 %v1504
  %v1639 = vunpack.c.h.b16 %v1504
  %v1640 = vunpack.c.l.b16 %v1505
  %v1641 = vunpack.c.h.b16 %v1505
  %v1642 = vunpack.c.l.b16 %v1506
  %v1643 = vunpack.c.h.b16 %v1506
  %v1644 = vunpack.c.l.b16 %v1507
  %v1645 = vunpack.c.h.b16 %v1507
  %v1646 = vunpack.c.l.b16 %v1508
  %v1647 = vunpack.c.h.b16 %v1508
  %v1648 = vunpack.c.l.b16 %v1509
  %v1649 = vunpack.c.h.b16 %v1509
  %v1650 = vunpack.c.l.b16 %v1510
  %v1651 = vunpack.c.h.b16 %v1510
  %v1652 = vunpack.c.l.b16 %v1511
  %v1653 = vunpack.c.h.b16 %v1511
  %v1654 = vunpack.c.l.b16 %v1512
  %v1655 = vunpack.c.h.b16 %v1512
  %v1656 = vunpack.c.l.b16 %v1513
  %v1657 = vunpack.c.h.b16 %v1513
  %v1658 = vunpack.c.l.b16 %v1514
  %v1659 = vunpack.c.h.b16 %v1514
  %v1660 = vunpack.c.l.b16 %v1515
  %v1661 = vunpack.c.h.b16 %v1515
  %v1662 = vunpack.c.l.b16 %v1516
  %v1663 = vunpack.c.h.b16 %v1516
  %v1664 = vunpack.c.l.b16 %v1517
  %v1665 = vunpack.c.h.b16 %v1517
  %v1666 = vunpack.c.l.b16 %v1518
  %v1667 = vunpack.c.h.b16 %v1518
  %v1668 = vunpack.c.l.b16 %v1519
  %v1669 = vunpack.c.h.b16 %v1519
  %v1670 = vunpack.c.l.b16 %v1520
  %v1671 = vunpack.c.h.b16 %v1520
  %v1672 = vunpack.c.l.b16 %v1521
  %v1673 = vunpack.c.h.b16 %v1521
  %v1674 = vunpack.c.l.b16 %v1522
  %v1675 = vunpack.c.h.b16 %v1522
  %v1676 = vunpack.c.l.b16 %v1523
  %v1677 = vunpack.c.h.b16 %v1523
  %v1678 = vunpack.c.l.b16 %v1524
  %v1679 = vunpack.c.h.b16 %v1524
  %v1680 = vunpack.c.l.b16 %v1525
  %v1681 = vunpack.c.h.b16 %v1525
  %v1682 = vunpack.c.l.b16 %v1526
  %v1683 = vunpack.c.h.b16 %v1526
  %v1684 = vunpack.c.l.b16 %v1527
  %v1685 = vunpack.c.h.b16 %v1527
  %v1686 = vunpack.c.l.b16 %v1528
  %v1687 = vunpack.c.h.b16 %v1528
  %v1688 = vunpack.c.l.b16 %v1529
  %v1689 = vunpack.c.h.b16 %v1529
  %v1690 = vunpack.c.l.b16 %v1530
  %v1691 = vunpack.c.h.b16 %v1530
  %v1692 = vunpack.c.l.b16 %v1531
  %v1693 = vunpack.c.h.b16 %v1531
  %v1694 = vunpack.c.l.b16 %v1532
  %v1695 = vunpack.c.h.b16 %v1532
  %v1696 = vunpack.c.l.b16 %v1533
  %v1697 = vunpack.c.h.b16 %v1533
  %v1698 = vunpack.c.l.b16 %v1534
  %v1699 = vunpack.c.h.b16 %v1534
  %v1700 = vunpack.c.l.b16 %v1535
  %v1701 = vunpack.c.h.b16 %v1535
  %v1702 = vunpack.c.l.b16 %v1536
  %v1703 = vunpack.c.h.b16 %v1536
  %v1704 = vunpack.c.l.b16 %v1537
  %v1705 = vunpack.c.h.b16 %v1537
  %v1706 = vunpack.c.l.b16 %v1538
  %v1707 = vunpack.c.h.b16 %v1538
  %v1708 = vunpack.c.l.b16 %v1539
  %v1709 = vunpack.c.h.b16 %v1539
  %v1710 = vunpack.c.l.b16 %v1540
  %v1711 = vunpack.c.h.b16 %v1540
  %v1712 = vunpack.c.l.b16 %v1541
  %v1713 = vunpack.c.h.b16 %v1541
  %v1714 = vunpack.c.l.b16 %v1542
  %v1715 = vunpack.c.h.b16 %v1542
  %v1716 = vunpack.c.l.b16 %v1543
  %v1717 = vunpack.c.h.b16 %v1543
  %v1718 = vunpack.c.l.b16 %v1544
  %v1719 = vunpack.c.h.b16 %v1544
  %v1720 = vunpack.c.l.b16 %v1545
  %v1721 = vunpack.c.h.b16 %v1545
  %v1722 = vunpack.c.l.b16 %v1546
  %v1723 = vunpack.c.h.b16 %v1546
  %v1724 = vunpack.c.l.b16 %v1547
  %v1725 = vunpack.c.h.b16 %v1547
  %v1726 = vunpack.c.l.b16 %v1548
  %v1727 = vunpack.c.h.b16 %v1548
  %v1728 = vunpack.c.l.b16 %v1549
  %v1729 = vunpack.c.h.b16 %v1549
  %v1730 = vunpack.c.l.b16 %v1550
  %v1731 = vunpack.c.h.b16 %v1550
  %v1732 = vunpack.c.l.b16 %v1551
  %v1733 = vunpack.c.h.b16 %v1551
  %v1734 = vunpack.c.l.b16 %v1552
  %v1735 = vunpack.c.h.b16 %v1552
  %v1736 = vunpack.c.l.b16 %v1553
  %v1737 = vunpack.c.h.b16 %v1553
  %v1738 = vunpack.c.l.b16 %v1554
  %v1739 = vunpack.c.h.b16 %v1554
  %v1740 = vunpack.c.l.b16 %v1555
  %v1741 = vunpack.c.h.b16 %v1555
  %v1742 = vunpack.c.l.b16 %v1556
  %v1743 = vunpack.c.h.b16 %v1556
  %v1744 = vunpack.c.l.b16 %v1557
  %v1745 = vunpack.c.h.b16 %v1557
  %v1746 = vunpack.c.l.b16 %v1558
  %v1747 = vunpack.c.h.b16 %v1558
  %v1748 = vunpack.c.l.b16 %v1559
  %v1749 = vunpack.c.h.b16 %v1559
  %v1750 = vunpack.c.l.b16 %v1560
  %v1751 = vunpack.c.h.b16 %v1560
  %v1752 = vunpack.c.l.b16 %v1561
  %v1753 = vunpack.c.h.b16 %v1561
  %v1754 = vpack.c.b16 %v1630, %v1626
  %v1755 = vpack.c.b16 %v1631, %v1627
  %v1756 = vpack.c.b16 %v1632, %v1628
  %v1757 = vpack.c.b16 %v1633, %v1629
  %v1758 = vpack.c.b16 %v1638, %v1634
  %v1759 = vpack.c.b16 %v1639, %v1635
  %v1760 = vpack.c.b16 %v1640, %v1636
  %v1761 = vpack.c.b16 %v1641, %v1637
  %v1762 = vpack.c.b16 %v1646, %v1642
  %v1763 = vpack.c.b16 %v1647, %v1643
  %v1764 = vpack.c.b16 %v1648, %v1644
  %v1765 = vpack.c.b16 %v1649, %v1645
  %v1766 = vpack.c.b16 %v1654, %v1650
  %v1767 = vpack.c.b16 %v1655, %v1651
  %v1768 = vpack.c.b16 %v1656, %v1652
  %v1769 = vpack.c.b16 %v1657, %v1653
  %v1770 = vpack.c.b16 %v1662, %v1658
  %v1771 = vpack.c.b16 %v1663, %v1659
  %v1772 = vpack.c.b16 %v1664, %v1660
  %v1773 = vpack.c.b16 %v1665, %v1661
  %v1774 = vpack.c.b16 %v1670, %v1666
  %v1775 = vpack.c.b16 %v1671, %v1667
  %v1776 = vpack.c.b16 %v1672, %v1668
  %v1777 = vpack.c.b16 %v1673, %v1669
  %v1778 = vpack.c.b16 %v1678, %v1674
  %v1779 = vpack.c.b16 %v1679, %v1675
  %v1780 = vpack.c.b16 %v1680, %v1676
  %v1781 = vpack.c.b16 %v1681, %v1677
  %v1782 = vpack.c.b16 %v1686, %v1682
  %v1783 = vpack.c.b16 %v1687, %v1683
  %v1784 = vpack.c.b16 %v1688, %v1684
  %v1785 = vpack.c.b16 %v1689, %v1685
  %v1786 = vpack.c.b16 %v1694, %v1690
  %v1787 = vpack.c.b16 %v1695, %v1691
  %v1788 = vpack.c.b16 %v1696, %v1692
  %v1789 = vpack.c.b16 %v1697, %v1693
  %v1790 = vpack.c.b16 %v1702, %v1698
  %v1791 = vpack.c.b16 %v1703, %v1699
  %v1792 = vpack.c.b16 %v1704, %v1700
  %v1793 = vpack.c.b16 %v1705, %v1701
  %v1794 = vpack.c.b16 %v1710, %v1706
  %v1795 = vpack.c.b16 %v1711, %v1707
  %v1796 = vpack.c.b16 %v1712, %v1708
  %v1797 = vpack.c.b16 %v1713, %v1709
  %v1798 = vpack.c.b16 %v1718, %v1714
  %v1799 = vpack.c.b16 %v1719, %v1715
  %v1800 = vpack.c.b16 %v1720, %v1716
  %v1801 = vpack.c.b16 %v1721, %v1717
  %v1802 = vpack.c.b16 %v1726, %v1722
  %v1803 = vpack.c.b16 %v1727, %v1723
  %v1804 = vpack.c.b16 %v1728, %v1724
  %v1805 = vpack.c.b16 %v1729, %v1725
  %v1806 = vpack.c.b16 %v1734, %v1730
  %v1807 = vpack.c.b16 %v1735, %v1731
  %v1808 = vpack.c.b16 %v1736, %v1732
  %v1809 = vpack.c.b16 %v1737, %v1733
  %v1810 = vpack.c.b16 %v1742, %v1738
  %v1811 = vpack.c.b16 %v1743, %v1739
  %v1812 = vpack.c.b16 %v1744, %v1740
  %v1813 = vpack.c.b16 %v1745, %v1741
  %v1814 = vpack.c.b16 %v1750, %v1746
  %v1815 = vpack.c.b16 %v1751, %v1747
  %v1816 = vpack.c.b16 %v1752, %v1748
  %v1817 = vpack.c.b16 %v1753, %v1749
  %1882 = vmatpush.bf16.msra.mxu0 %v1782
  %1883 = vmatpush.bf16.msra.mxu0 %v1778
  %1884 = vmatpush.bf16.msra.mxu0 %v1774
  %1885 = vmatpush.bf16.msra.mxu0 %v1770
  %1886 = vmatpush.bf16.msra.mxu0 %v1766
  %1887 = vmatpush.bf16.msra.mxu0 %v1762
  %1888 = vmatpush.bf16.msra.mxu0 %v1758
  %1889 = vmatpush.bf16.msra.mxu0 %v1754
  %1890 = vmatmul.bf16.gmra.mxu0 %v29
  %v1891 = vpop.f32.mrf.mxu0
  %v1892 = vadd.f32 0.0, %v1891
  %v1893 = vpop.f32.mrf.mxu0
  %1894 = vdwg.mxu0
  %1895 = vmatpush.bf16.msra.mxu0 %v1814
  %1896 = vmatpush.bf16.msra.mxu0 %v1810
  %1897 = vmatpush.bf16.msra.mxu0 %v1806
  %1898 = vmatpush.bf16.msra.mxu0 %v1802
  %1899 = vmatpush.bf16.msra.mxu0 %v1798
  %1900 = vmatpush.bf16.msra.mxu0 %v1794
  %1901 = vmatpush.bf16.msra.mxu0 %v1790
  %1902 = vmatpush.bf16.msra.mxu0 %v1786
  %1903 = vmatmul.bf16.gmra.mxu0 %v30
  %v1904 = vpop.f32.mrf.mxu0
  %v1905 = vadd.f32 %v1892, %v1904
  %v1906 = vpop.f32.mrf.mxu0
  %1907 = vdwg.mxu0
  %1908 = vmatpush.bf16.msra.mxu0 %v1783
  %1909 = vmatpush.bf16.msra.mxu0 %v1779
  %1910 = vmatpush.bf16.msra.mxu0 %v1775
  %1911 = vmatpush.bf16.msra.mxu0 %v1771
  %1912 = vmatpush.bf16.msra.mxu0 %v1767
  %1913 = vmatpush.bf16.msra.mxu0 %v1763
  %1914 = vmatpush.bf16.msra.mxu0 %v1759
  %1915 = vmatpush.bf16.msra.mxu0 %v1755
  %1916 = vmatmul.bf16.gmra.mxu0 %v29
  %v1917 = vpop.f32.mrf.mxu0
  %v1918 = vadd.f32 0.0, %v1917
  %v1919 = vpop.f32.mrf.mxu0
  %1920 = vdwg.mxu0
  %1921 = vmatpush.bf16.msra.mxu0 %v1815
  %1922 = vmatpush.bf16.msra.mxu0 %v1811
  %1923 = vmatpush.bf16.msra.mxu0 %v1807
  %1924 = vmatpush.bf16.msra.mxu0 %v1803
  %1925 = vmatpush.bf16.msra.mxu0 %v1799
  %1926 = vmatpush.bf16.msra.mxu0 %v1795
  %1927 = vmatpush.bf16.msra.mxu0 %v1791
  %1928 = vmatpush.bf16.msra.mxu0 %v1787
  %1929 = vmatmul.bf16.gmra.mxu0 %v30
  %v1930 = vpop.f32.mrf.mxu0
  %v1931 = vadd.f32 %v1918, %v1930
  %v1932 = vpop.f32.mrf.mxu0
  %1933 = vdwg.mxu0
  %1934 = vmatpush.bf16.msra.mxu0 %v1784
  %1935 = vmatpush.bf16.msra.mxu0 %v1780
  %1936 = vmatpush.bf16.msra.mxu0 %v1776
  %1937 = vmatpush.bf16.msra.mxu0 %v1772
  %1938 = vmatpush.bf16.msra.mxu0 %v1768
  %1939 = vmatpush.bf16.msra.mxu0 %v1764
  %1940 = vmatpush.bf16.msra.mxu0 %v1760
  %1941 = vmatpush.bf16.msra.mxu0 %v1756
  %1942 = vmatmul.bf16.gmra.mxu0 %v29
  %v1943 = vpop.f32.mrf.mxu0
  %v1944 = vadd.f32 0.0, %v1943
  %v1945 = vpop.f32.mrf.mxu0
  %1946 = vdwg.mxu0
  %1947 = vmatpush.bf16.msra.mxu0 %v1816
  %1948 = vmatpush.bf16.msra.mxu0 %v1812
  %1949 = vmatpush.bf16.msra.mxu0 %v1808
  %1950 = vmatpush.bf16.msra.mxu0 %v1804
  %1951 = vmatpush.bf16.msra.mxu0 %v1800
  %1952 = vmatpush.bf16.msra.mxu0 %v1796
  %1953 = vmatpush.bf16.msra.mxu0 %v1792
  %1954 = vmatpush.bf16.msra.mxu0 %v1788
  %1955 = vmatmul.bf16.gmra.mxu0 %v30
  %v1956 = vpop.f32.mrf.mxu0
  %v1957 = vadd.f32 %v1944, %v1956
  %v1958 = vpop.f32.mrf.mxu0
  %1959 = vdwg.mxu0
  %1960 = vmatpush.bf16.msra.mxu0 %v1785
  %1961 = vmatpush.bf16.msra.mxu0 %v1781
  %1962 = vmatpush.bf16.msra.mxu0 %v1777
  %1963 = vmatpush.bf16.msra.mxu0 %v1773
  %1964 = vmatpush.bf16.msra.mxu0 %v1769
  %1965 = vmatpush.bf16.msra.mxu0 %v1765
  %1966 = vmatpush.bf16.msra.mxu0 %v1761
  %1967 = vmatpush.bf16.msra.mxu0 %v1757
  %1968 = vmatmul.bf16.gmra.mxu0 %v29
  %v1969 = vpop.f32.mrf.mxu0
  %v1970 = vadd.f32 0.0, %v1969
  %v1971 = vpop.f32.mrf.mxu0
  %1972 = vdwg.mxu0
  %1973 = vmatpush.bf16.msra.mxu0 %v1817
  %1974 = vmatpush.bf16.msra.mxu0 %v1813
  %1975 = vmatpush.bf16.msra.mxu0 %v1809
  %1976 = vmatpush.bf16.msra.mxu0 %v1805
  %1977 = vmatpush.bf16.msra.mxu0 %v1801
  %1978 = vmatpush.bf16.msra.mxu0 %v1797
  %1979 = vmatpush.bf16.msra.mxu0 %v1793
  %1980 = vmatpush.bf16.msra.mxu0 %v1789
  %1981 = vmatmul.bf16.gmra.mxu0 %v30
  %v1982 = vpop.f32.mrf.mxu0
  %v1983 = vadd.f32 %v1970, %v1982
  %v1984 = vpop.f32.mrf.mxu0
  %1985 = vdwg.mxu0
  %s1986 = scalar_lea.vmem %s1, 2048
  %v1987 = vld [vmem:[%s1986] sm:$0xff]
  %v1988 = vld [vmem:[%s1986 + $0x8] sm:$0xff]
  %v1989 = vld [vmem:[%s1986 + $0x10] sm:$0xff]
  %v1990 = vld [vmem:[%s1986 + $0x18] sm:$0xff]
  %v1991 = vld [vmem:[%s1986 + $0x20] sm:$0xff]
  %v1992 = vld [vmem:[%s1986 + $0x28] sm:$0xff]
  %v1993 = vld [vmem:[%s1986 + $0x30] sm:$0xff]
  %v1994 = vld [vmem:[%s1986 + $0x38] sm:$0xff]
  %v1995 = vld [vmem:[%s1986 + $0x40] sm:$0xff]
  %v1996 = vld [vmem:[%s1986 + $0x48] sm:$0xff]
  %v1997 = vld [vmem:[%s1986 + $0x50] sm:$0xff]
  %v1998 = vld [vmem:[%s1986 + $0x58] sm:$0xff]
  %v1999 = vld [vmem:[%s1986 + $0x60] sm:$0xff]
  %v2000 = vld [vmem:[%s1986 + $0x68] sm:$0xff]
  %v2001 = vld [vmem:[%s1986 + $0x70] sm:$0xff]
  %v2002 = vld [vmem:[%s1986 + $0x78] sm:$0xff]
  %v2003 = vld [vmem:[%s1986 + $0x80] sm:$0xff]
  %v2004 = vld [vmem:[%s1986 + $0x88] sm:$0xff]
  %v2005 = vld [vmem:[%s1986 + $0x90] sm:$0xff]
  %v2006 = vld [vmem:[%s1986 + $0x98] sm:$0xff]
  %v2007 = vld [vmem:[%s1986 + $0xa0] sm:$0xff]
  %v2008 = vld [vmem:[%s1986 + $0xa8] sm:$0xff]
  %v2009 = vld [vmem:[%s1986 + $0xb0] sm:$0xff]
  %v2010 = vld [vmem:[%s1986 + $0xb8] sm:$0xff]
  %v2011 = vld [vmem:[%s1986 + $0xc0] sm:$0xff]
  %v2012 = vld [vmem:[%s1986 + $0xc8] sm:$0xff]
  %v2013 = vld [vmem:[%s1986 + $0xd0] sm:$0xff]
  %v2014 = vld [vmem:[%s1986 + $0xd8] sm:$0xff]
  %v2015 = vld [vmem:[%s1986 + $0xe0] sm:$0xff]
  %v2016 = vld [vmem:[%s1986 + $0xe8] sm:$0xff]
  %v2017 = vld [vmem:[%s1986 + $0xf0] sm:$0xff]
  %v2018 = vld [vmem:[%s1986 + $0xf8] sm:$0xff]
  %v2019 = vld [vmem:[%s1986 + $0x100] sm:$0xff]
  %v2020 = vld [vmem:[%s1986 + $0x108] sm:$0xff]
  %v2021 = vld [vmem:[%s1986 + $0x110] sm:$0xff]
  %v2022 = vld [vmem:[%s1986 + $0x118] sm:$0xff]
  %v2023 = vld [vmem:[%s1986 + $0x120] sm:$0xff]
  %v2024 = vld [vmem:[%s1986 + $0x128] sm:$0xff]
  %v2025 = vld [vmem:[%s1986 + $0x130] sm:$0xff]
  %v2026 = vld [vmem:[%s1986 + $0x138] sm:$0xff]
  %v2027 = vld [vmem:[%s1986 + $0x140] sm:$0xff]
  %v2028 = vld [vmem:[%s1986 + $0x148] sm:$0xff]
  %v2029 = vld [vmem:[%s1986 + $0x150] sm:$0xff]
  %v2030 = vld [vmem:[%s1986 + $0x158] sm:$0xff]
  %v2031 = vld [vmem:[%s1986 + $0x160] sm:$0xff]
  %v2032 = vld [vmem:[%s1986 + $0x168] sm:$0xff]
  %v2033 = vld [vmem:[%s1986 + $0x170] sm:$0xff]
  %v2034 = vld [vmem:[%s1986 + $0x178] sm:$0xff]
  %v2035 = vld [vmem:[%s1986 + $0x180] sm:$0xff]
  %v2036 = vld [vmem:[%s1986 + $0x188] sm:$0xff]
  %v2037 = vld [vmem:[%s1986 + $0x190] sm:$0xff]
  %v2038 = vld [vmem:[%s1986 + $0x198] sm:$0xff]
  %v2039 = vld [vmem:[%s1986 + $0x1a0] sm:$0xff]
  %v2040 = vld [vmem:[%s1986 + $0x1a8] sm:$0xff]
  %v2041 = vld [vmem:[%s1986 + $0x1b0] sm:$0xff]
  %v2042 = vld [vmem:[%s1986 + $0x1b8] sm:$0xff]
  %v2043 = vld [vmem:[%s1986 + $0x1c0] sm:$0xff]
  %v2044 = vld [vmem:[%s1986 + $0x1c8] sm:$0xff]
  %v2045 = vld [vmem:[%s1986 + $0x1d0] sm:$0xff]
  %v2046 = vld [vmem:[%s1986 + $0x1d8] sm:$0xff]
  %v2047 = vld [vmem:[%s1986 + $0x1e0] sm:$0xff]
  %v2048 = vld [vmem:[%s1986 + $0x1e8] sm:$0xff]
  %v2049 = vld [vmem:[%s1986 + $0x1f0] sm:$0xff]
  %v2050 = vld [vmem:[%s1986 + $0x1f8] sm:$0xff]
  %v2115 = vunpack.c.l.b16 %v1987
  %v2116 = vunpack.c.h.b16 %v1987
  %v2117 = vunpack.c.l.b16 %v1988
  %v2118 = vunpack.c.h.b16 %v1988
  %v2119 = vunpack.c.l.b16 %v1989
  %v2120 = vunpack.c.h.b16 %v1989
  %v2121 = vunpack.c.l.b16 %v1990
  %v2122 = vunpack.c.h.b16 %v1990
  %v2123 = vunpack.c.l.b16 %v1991
  %v2124 = vunpack.c.h.b16 %v1991
  %v2125 = vunpack.c.l.b16 %v1992
  %v2126 = vunpack.c.h.b16 %v1992
  %v2127 = vunpack.c.l.b16 %v1993
  %v2128 = vunpack.c.h.b16 %v1993
  %v2129 = vunpack.c.l.b16 %v1994
  %v2130 = vunpack.c.h.b16 %v1994
  %v2131 = vunpack.c.l.b16 %v1995
  %v2132 = vunpack.c.h.b16 %v1995
  %v2133 = vunpack.c.l.b16 %v1996
  %v2134 = vunpack.c.h.b16 %v1996
  %v2135 = vunpack.c.l.b16 %v1997
  %v2136 = vunpack.c.h.b16 %v1997
  %v2137 = vunpack.c.l.b16 %v1998
  %v2138 = vunpack.c.h.b16 %v1998
  %v2139 = vunpack.c.l.b16 %v1999
  %v2140 = vunpack.c.h.b16 %v1999
  %v2141 = vunpack.c.l.b16 %v2000
  %v2142 = vunpack.c.h.b16 %v2000
  %v2143 = vunpack.c.l.b16 %v2001
  %v2144 = vunpack.c.h.b16 %v2001
  %v2145 = vunpack.c.l.b16 %v2002
  %v2146 = vunpack.c.h.b16 %v2002
  %v2147 = vunpack.c.l.b16 %v2003
  %v2148 = vunpack.c.h.b16 %v2003
  %v2149 = vunpack.c.l.b16 %v2004
  %v2150 = vunpack.c.h.b16 %v2004
  %v2151 = vunpack.c.l.b16 %v2005
  %v2152 = vunpack.c.h.b16 %v2005
  %v2153 = vunpack.c.l.b16 %v2006
  %v2154 = vunpack.c.h.b16 %v2006
  %v2155 = vunpack.c.l.b16 %v2007
  %v2156 = vunpack.c.h.b16 %v2007
  %v2157 = vunpack.c.l.b16 %v2008
  %v2158 = vunpack.c.h.b16 %v2008
  %v2159 = vunpack.c.l.b16 %v2009
  %v2160 = vunpack.c.h.b16 %v2009
  %v2161 = vunpack.c.l.b16 %v2010
  %v2162 = vunpack.c.h.b16 %v2010
  %v2163 = vunpack.c.l.b16 %v2011
  %v2164 = vunpack.c.h.b16 %v2011
  %v2165 = vunpack.c.l.b16 %v2012
  %v2166 = vunpack.c.h.b16 %v2012
  %v2167 = vunpack.c.l.b16 %v2013
  %v2168 = vunpack.c.h.b16 %v2013
  %v2169 = vunpack.c.l.b16 %v2014
  %v2170 = vunpack.c.h.b16 %v2014
  %v2171 = vunpack.c.l.b16 %v2015
  %v2172 = vunpack.c.h.b16 %v2015
  %v2173 = vunpack.c.l.b16 %v2016
  %v2174 = vunpack.c.h.b16 %v2016
  %v2175 = vunpack.c.l.b16 %v2017
  %v2176 = vunpack.c.h.b16 %v2017
  %v2177 = vunpack.c.l.b16 %v2018
  %v2178 = vunpack.c.h.b16 %v2018
  %v2179 = vunpack.c.l.b16 %v2019
  %v2180 = vunpack.c.h.b16 %v2019
  %v2181 = vunpack.c.l.b16 %v2020
  %v2182 = vunpack.c.h.b16 %v2020
  %v2183 = vunpack.c.l.b16 %v2021
  %v2184 = vunpack.c.h.b16 %v2021
  %v2185 = vunpack.c.l.b16 %v2022
  %v2186 = vunpack.c.h.b16 %v2022
  %v2187 = vunpack.c.l.b16 %v2023
  %v2188 = vunpack.c.h.b16 %v2023
  %v2189 = vunpack.c.l.b16 %v2024
  %v2190 = vunpack.c.h.b16 %v2024
  %v2191 = vunpack.c.l.b16 %v2025
  %v2192 = vunpack.c.h.b16 %v2025
  %v2193 = vunpack.c.l.b16 %v2026
  %v2194 = vunpack.c.h.b16 %v2026
  %v2195 = vunpack.c.l.b16 %v2027
  %v2196 = vunpack.c.h.b16 %v2027
  %v2197 = vunpack.c.l.b16 %v2028
  %v2198 = vunpack.c.h.b16 %v2028
  %v2199 = vunpack.c.l.b16 %v2029
  %v2200 = vunpack.c.h.b16 %v2029
  %v2201 = vunpack.c.l.b16 %v2030
  %v2202 = vunpack.c.h.b16 %v2030
  %v2203 = vunpack.c.l.b16 %v2031
  %v2204 = vunpack.c.h.b16 %v2031
  %v2205 = vunpack.c.l.b16 %v2032
  %v2206 = vunpack.c.h.b16 %v2032
  %v2207 = vunpack.c.l.b16 %v2033
  %v2208 = vunpack.c.h.b16 %v2033
  %v2209 = vunpack.c.l.b16 %v2034
  %v2210 = vunpack.c.h.b16 %v2034
  %v2211 = vunpack.c.l.b16 %v2035
  %v2212 = vunpack.c.h.b16 %v2035
  %v2213 = vunpack.c.l.b16 %v2036
  %v2214 = vunpack.c.h.b16 %v2036
  %v2215 = vunpack.c.l.b16 %v2037
  %v2216 = vunpack.c.h.b16 %v2037
  %v2217 = vunpack.c.l.b16 %v2038
  %v2218 = vunpack.c.h.b16 %v2038
  %v2219 = vunpack.c.l.b16 %v2039
  %v2220 = vunpack.c.h.b16 %v2039
  %v2221 = vunpack.c.l.b16 %v2040
  %v2222 = vunpack.c.h.b16 %v2040
  %v2223 = vunpack.c.l.b16 %v2041
  %v2224 = vunpack.c.h.b16 %v2041
  %v2225 = vunpack.c.l.b16 %v2042
  %v2226 = vunpack.c.h.b16 %v2042
  %v2227 = vunpack.c.l.b16 %v2043
  %v2228 = vunpack.c.h.b16 %v2043
  %v2229 = vunpack.c.l.b16 %v2044
  %v2230 = vunpack.c.h.b16 %v2044
  %v2231 = vunpack.c.l.b16 %v2045
  %v2232 = vunpack.c.h.b16 %v2045
  %v2233 = vunpack.c.l.b16 %v2046
  %v2234 = vunpack.c.h.b16 %v2046
  %v2235 = vunpack.c.l.b16 %v2047
  %v2236 = vunpack.c.h.b16 %v2047
  %v2237 = vunpack.c.l.b16 %v2048
  %v2238 = vunpack.c.h.b16 %v2048
  %v2239 = vunpack.c.l.b16 %v2049
  %v2240 = vunpack.c.h.b16 %v2049
  %v2241 = vunpack.c.l.b16 %v2050
  %v2242 = vunpack.c.h.b16 %v2050
  %v2243 = vpack.c.b16 %v2119, %v2115
  %v2244 = vpack.c.b16 %v2120, %v2116
  %v2245 = vpack.c.b16 %v2121, %v2117
  %v2246 = vpack.c.b16 %v2122, %v2118
  %v2247 = vpack.c.b16 %v2127, %v2123
  %v2248 = vpack.c.b16 %v2128, %v2124
  %v2249 = vpack.c.b16 %v2129, %v2125
  %v2250 = vpack.c.b16 %v2130, %v2126
  %v2251 = vpack.c.b16 %v2135, %v2131
  %v2252 = vpack.c.b16 %v2136, %v2132
  %v2253 = vpack.c.b16 %v2137, %v2133
  %v2254 = vpack.c.b16 %v2138, %v2134
  %v2255 = vpack.c.b16 %v2143, %v2139
  %v2256 = vpack.c.b16 %v2144, %v2140
  %v2257 = vpack.c.b16 %v2145, %v2141
  %v2258 = vpack.c.b16 %v2146, %v2142
  %v2259 = vpack.c.b16 %v2151, %v2147
  %v2260 = vpack.c.b16 %v2152, %v2148
  %v2261 = vpack.c.b16 %v2153, %v2149
  %v2262 = vpack.c.b16 %v2154, %v2150
  %v2263 = vpack.c.b16 %v2159, %v2155
  %v2264 = vpack.c.b16 %v2160, %v2156
  %v2265 = vpack.c.b16 %v2161, %v2157
  %v2266 = vpack.c.b16 %v2162, %v2158
  %v2267 = vpack.c.b16 %v2167, %v2163
  %v2268 = vpack.c.b16 %v2168, %v2164
  %v2269 = vpack.c.b16 %v2169, %v2165
  %v2270 = vpack.c.b16 %v2170, %v2166
  %v2271 = vpack.c.b16 %v2175, %v2171
  %v2272 = vpack.c.b16 %v2176, %v2172
  %v2273 = vpack.c.b16 %v2177, %v2173
  %v2274 = vpack.c.b16 %v2178, %v2174
  %v2275 = vpack.c.b16 %v2183, %v2179
  %v2276 = vpack.c.b16 %v2184, %v2180
  %v2277 = vpack.c.b16 %v2185, %v2181
  %v2278 = vpack.c.b16 %v2186, %v2182
  %v2279 = vpack.c.b16 %v2191, %v2187
  %v2280 = vpack.c.b16 %v2192, %v2188
  %v2281 = vpack.c.b16 %v2193, %v2189
  %v2282 = vpack.c.b16 %v2194, %v2190
  %v2283 = vpack.c.b16 %v2199, %v2195
  %v2284 = vpack.c.b16 %v2200, %v2196
  %v2285 = vpack.c.b16 %v2201, %v2197
  %v2286 = vpack.c.b16 %v2202, %v2198
  %v2287 = vpack.c.b16 %v2207, %v2203
  %v2288 = vpack.c.b16 %v2208, %v2204
  %v2289 = vpack.c.b16 %v2209, %v2205
  %v2290 = vpack.c.b16 %v2210, %v2206
  %v2291 = vpack.c.b16 %v2215, %v2211
  %v2292 = vpack.c.b16 %v2216, %v2212
  %v2293 = vpack.c.b16 %v2217, %v2213
  %v2294 = vpack.c.b16 %v2218, %v2214
  %v2295 = vpack.c.b16 %v2223, %v2219
  %v2296 = vpack.c.b16 %v2224, %v2220
  %v2297 = vpack.c.b16 %v2225, %v2221
  %v2298 = vpack.c.b16 %v2226, %v2222
  %v2299 = vpack.c.b16 %v2231, %v2227
  %v2300 = vpack.c.b16 %v2232, %v2228
  %v2301 = vpack.c.b16 %v2233, %v2229
  %v2302 = vpack.c.b16 %v2234, %v2230
  %v2303 = vpack.c.b16 %v2239, %v2235
  %v2304 = vpack.c.b16 %v2240, %v2236
  %v2305 = vpack.c.b16 %v2241, %v2237
  %v2306 = vpack.c.b16 %v2242, %v2238
  %2371 = vmatpush.bf16.msra.mxu0 %v2271
  %2372 = vmatpush.bf16.msra.mxu0 %v2267
  %2373 = vmatpush.bf16.msra.mxu0 %v2263
  %2374 = vmatpush.bf16.msra.mxu0 %v2259
  %2375 = vmatpush.bf16.msra.mxu0 %v2255
  %2376 = vmatpush.bf16.msra.mxu0 %v2251
  %2377 = vmatpush.bf16.msra.mxu0 %v2247
  %2378 = vmatpush.bf16.msra.mxu0 %v2243
  %2379 = vmatmul.bf16.gmra.mxu0 %v29
  %v2380 = vpop.f32.mrf.mxu0
  %v2381 = vadd.f32 0.0, %v2380
  %v2382 = vpop.f32.mrf.mxu0
  %2383 = vdwg.mxu0
  %2384 = vmatpush.bf16.msra.mxu0 %v2303
  %2385 = vmatpush.bf16.msra.mxu0 %v2299
  %2386 = vmatpush.bf16.msra.mxu0 %v2295
  %2387 = vmatpush.bf16.msra.mxu0 %v2291
  %2388 = vmatpush.bf16.msra.mxu0 %v2287
  %2389 = vmatpush.bf16.msra.mxu0 %v2283
  %2390 = vmatpush.bf16.msra.mxu0 %v2279
  %2391 = vmatpush.bf16.msra.mxu0 %v2275
  %2392 = vmatmul.bf16.gmra.mxu0 %v30
  %v2393 = vpop.f32.mrf.mxu0
  %v2394 = vadd.f32 %v2381, %v2393
  %v2395 = vpop.f32.mrf.mxu0
  %2396 = vdwg.mxu0
  %2397 = vmatpush.bf16.msra.mxu0 %v2272
  %2398 = vmatpush.bf16.msra.mxu0 %v2268
  %2399 = vmatpush.bf16.msra.mxu0 %v2264
  %2400 = vmatpush.bf16.msra.mxu0 %v2260
  %2401 = vmatpush.bf16.msra.mxu0 %v2256
  %2402 = vmatpush.bf16.msra.mxu0 %v2252
  %2403 = vmatpush.bf16.msra.mxu0 %v2248
  %2404 = vmatpush.bf16.msra.mxu0 %v2244
  %2405 = vmatmul.bf16.gmra.mxu0 %v29
  %v2406 = vpop.f32.mrf.mxu0
  %v2407 = vadd.f32 0.0, %v2406
  %v2408 = vpop.f32.mrf.mxu0
  %2409 = vdwg.mxu0
  %2410 = vmatpush.bf16.msra.mxu0 %v2304
  %2411 = vmatpush.bf16.msra.mxu0 %v2300
  %2412 = vmatpush.bf16.msra.mxu0 %v2296
  %2413 = vmatpush.bf16.msra.mxu0 %v2292
  %2414 = vmatpush.bf16.msra.mxu0 %v2288
  %2415 = vmatpush.bf16.msra.mxu0 %v2284
  %2416 = vmatpush.bf16.msra.mxu0 %v2280
  %2417 = vmatpush.bf16.msra.mxu0 %v2276
  %2418 = vmatmul.bf16.gmra.mxu0 %v30
  %v2419 = vpop.f32.mrf.mxu0
  %v2420 = vadd.f32 %v2407, %v2419
  %v2421 = vpop.f32.mrf.mxu0
  %2422 = vdwg.mxu0
  %2423 = vmatpush.bf16.msra.mxu0 %v2273
  %2424 = vmatpush.bf16.msra.mxu0 %v2269
  %2425 = vmatpush.bf16.msra.mxu0 %v2265
  %2426 = vmatpush.bf16.msra.mxu0 %v2261
  %2427 = vmatpush.bf16.msra.mxu0 %v2257
  %2428 = vmatpush.bf16.msra.mxu0 %v2253
  %2429 = vmatpush.bf16.msra.mxu0 %v2249
  %2430 = vmatpush.bf16.msra.mxu0 %v2245
  %2431 = vmatmul.bf16.gmra.mxu0 %v29
  %v2432 = vpop.f32.mrf.mxu0
  %v2433 = vadd.f32 0.0, %v2432
  %v2434 = vpop.f32.mrf.mxu0
  %2435 = vdwg.mxu0
  %2436 = vmatpush.bf16.msra.mxu0 %v2305
  %2437 = vmatpush.bf16.msra.mxu0 %v2301
  %2438 = vmatpush.bf16.msra.mxu0 %v2297
  %2439 = vmatpush.bf16.msra.mxu0 %v2293
  %2440 = vmatpush.bf16.msra.mxu0 %v2289
  %2441 = vmatpush.bf16.msra.mxu0 %v2285
  %2442 = vmatpush.bf16.msra.mxu0 %v2281
  %2443 = vmatpush.bf16.msra.mxu0 %v2277
  %2444 = vmatmul.bf16.gmra.mxu0 %v30
  %v2445 = vpop.f32.mrf.mxu0
  %v2446 = vadd.f32 %v2433, %v2445
  %v2447 = vpop.f32.mrf.mxu0
  %2448 = vdwg.mxu0
  %2449 = vmatpush.bf16.msra.mxu0 %v2274
  %2450 = vmatpush.bf16.msra.mxu0 %v2270
  %2451 = vmatpush.bf16.msra.mxu0 %v2266
  %2452 = vmatpush.bf16.msra.mxu0 %v2262
  %2453 = vmatpush.bf16.msra.mxu0 %v2258
  %2454 = vmatpush.bf16.msra.mxu0 %v2254
  %2455 = vmatpush.bf16.msra.mxu0 %v2250
  %2456 = vmatpush.bf16.msra.mxu0 %v2246
  %2457 = vmatmul.bf16.gmra.mxu0 %v29
  %v2458 = vpop.f32.mrf.mxu0
  %v2459 = vadd.f32 0.0, %v2458
  %v2460 = vpop.f32.mrf.mxu0
  %2461 = vdwg.mxu0
  %2462 = vmatpush.bf16.msra.mxu0 %v2306
  %2463 = vmatpush.bf16.msra.mxu0 %v2302
  %2464 = vmatpush.bf16.msra.mxu0 %v2298
  %2465 = vmatpush.bf16.msra.mxu0 %v2294
  %2466 = vmatpush.bf16.msra.mxu0 %v2290
  %2467 = vmatpush.bf16.msra.mxu0 %v2286
  %2468 = vmatpush.bf16.msra.mxu0 %v2282
  %2469 = vmatpush.bf16.msra.mxu0 %v2278
  %2470 = vmatmul.bf16.gmra.mxu0 %v30
  %v2471 = vpop.f32.mrf.mxu0
  %v2472 = vadd.f32 %v2459, %v2471
  %v2473 = vpop.f32.mrf.mxu0
  %2474 = vdwg.mxu0
  %s2475 = scalar_lea.vmem %s1, 2560
  %v2476 = vld [vmem:[%s2475] sm:$0xff]
  %v2477 = vld [vmem:[%s2475 + $0x8] sm:$0xff]
  %v2478 = vld [vmem:[%s2475 + $0x10] sm:$0xff]
  %v2479 = vld [vmem:[%s2475 + $0x18] sm:$0xff]
  %v2480 = vld [vmem:[%s2475 + $0x20] sm:$0xff]
  %v2481 = vld [vmem:[%s2475 + $0x28] sm:$0xff]
  %v2482 = vld [vmem:[%s2475 + $0x30] sm:$0xff]
  %v2483 = vld [vmem:[%s2475 + $0x38] sm:$0xff]
  %v2484 = vld [vmem:[%s2475 + $0x40] sm:$0xff]
  %v2485 = vld [vmem:[%s2475 + $0x48] sm:$0xff]
  %v2486 = vld [vmem:[%s2475 + $0x50] sm:$0xff]
  %v2487 = vld [vmem:[%s2475 + $0x58] sm:$0xff]
  %v2488 = vld [vmem:[%s2475 + $0x60] sm:$0xff]
  %v2489 = vld [vmem:[%s2475 + $0x68] sm:$0xff]
  %v2490 = vld [vmem:[%s2475 + $0x70] sm:$0xff]
  %v2491 = vld [vmem:[%s2475 + $0x78] sm:$0xff]
  %v2492 = vld [vmem:[%s2475 + $0x80] sm:$0xff]
  %v2493 = vld [vmem:[%s2475 + $0x88] sm:$0xff]
  %v2494 = vld [vmem:[%s2475 + $0x90] sm:$0xff]
  %v2495 = vld [vmem:[%s2475 + $0x98] sm:$0xff]
  %v2496 = vld [vmem:[%s2475 + $0xa0] sm:$0xff]
  %v2497 = vld [vmem:[%s2475 + $0xa8] sm:$0xff]
  %v2498 = vld [vmem:[%s2475 + $0xb0] sm:$0xff]
  %v2499 = vld [vmem:[%s2475 + $0xb8] sm:$0xff]
  %v2500 = vld [vmem:[%s2475 + $0xc0] sm:$0xff]
  %v2501 = vld [vmem:[%s2475 + $0xc8] sm:$0xff]
  %v2502 = vld [vmem:[%s2475 + $0xd0] sm:$0xff]
  %v2503 = vld [vmem:[%s2475 + $0xd8] sm:$0xff]
  %v2504 = vld [vmem:[%s2475 + $0xe0] sm:$0xff]
  %v2505 = vld [vmem:[%s2475 + $0xe8] sm:$0xff]
  %v2506 = vld [vmem:[%s2475 + $0xf0] sm:$0xff]
  %v2507 = vld [vmem:[%s2475 + $0xf8] sm:$0xff]
  %v2508 = vld [vmem:[%s2475 + $0x100] sm:$0xff]
  %v2509 = vld [vmem:[%s2475 + $0x108] sm:$0xff]
  %v2510 = vld [vmem:[%s2475 + $0x110] sm:$0xff]
  %v2511 = vld [vmem:[%s2475 + $0x118] sm:$0xff]
  %v2512 = vld [vmem:[%s2475 + $0x120] sm:$0xff]
  %v2513 = vld [vmem:[%s2475 + $0x128] sm:$0xff]
  %v2514 = vld [vmem:[%s2475 + $0x130] sm:$0xff]
  %v2515 = vld [vmem:[%s2475 + $0x138] sm:$0xff]
  %v2516 = vld [vmem:[%s2475 + $0x140] sm:$0xff]
  %v2517 = vld [vmem:[%s2475 + $0x148] sm:$0xff]
  %v2518 = vld [vmem:[%s2475 + $0x150] sm:$0xff]
  %v2519 = vld [vmem:[%s2475 + $0x158] sm:$0xff]
  %v2520 = vld [vmem:[%s2475 + $0x160] sm:$0xff]
  %v2521 = vld [vmem:[%s2475 + $0x168] sm:$0xff]
  %v2522 = vld [vmem:[%s2475 + $0x170] sm:$0xff]
  %v2523 = vld [vmem:[%s2475 + $0x178] sm:$0xff]
  %v2524 = vld [vmem:[%s2475 + $0x180] sm:$0xff]
  %v2525 = vld [vmem:[%s2475 + $0x188] sm:$0xff]
  %v2526 = vld [vmem:[%s2475 + $0x190] sm:$0xff]
  %v2527 = vld [vmem:[%s2475 + $0x198] sm:$0xff]
  %v2528 = vld [vmem:[%s2475 + $0x1a0] sm:$0xff]
  %v2529 = vld [vmem:[%s2475 + $0x1a8] sm:$0xff]
  %v2530 = vld [vmem:[%s2475 + $0x1b0] sm:$0xff]
  %v2531 = vld [vmem:[%s2475 + $0x1b8] sm:$0xff]
  %v2532 = vld [vmem:[%s2475 + $0x1c0] sm:$0xff]
  %v2533 = vld [vmem:[%s2475 + $0x1c8] sm:$0xff]
  %v2534 = vld [vmem:[%s2475 + $0x1d0] sm:$0xff]
  %v2535 = vld [vmem:[%s2475 + $0x1d8] sm:$0xff]
  %v2536 = vld [vmem:[%s2475 + $0x1e0] sm:$0xff]
  %v2537 = vld [vmem:[%s2475 + $0x1e8] sm:$0xff]
  %v2538 = vld [vmem:[%s2475 + $0x1f0] sm:$0xff]
  %v2539 = vld [vmem:[%s2475 + $0x1f8] sm:$0xff]
  %v2604 = vunpack.c.l.b16 %v2476
  %v2605 = vunpack.c.h.b16 %v2476
  %v2606 = vunpack.c.l.b16 %v2477
  %v2607 = vunpack.c.h.b16 %v2477
  %v2608 = vunpack.c.l.b16 %v2478
  %v2609 = vunpack.c.h.b16 %v2478
  %v2610 = vunpack.c.l.b16 %v2479
  %v2611 = vunpack.c.h.b16 %v2479
  %v2612 = vunpack.c.l.b16 %v2480
  %v2613 = vunpack.c.h.b16 %v2480
  %v2614 = vunpack.c.l.b16 %v2481
  %v2615 = vunpack.c.h.b16 %v2481
  %v2616 = vunpack.c.l.b16 %v2482
  %v2617 = vunpack.c.h.b16 %v2482
  %v2618 = vunpack.c.l.b16 %v2483
  %v2619 = vunpack.c.h.b16 %v2483
  %v2620 = vunpack.c.l.b16 %v2484
  %v2621 = vunpack.c.h.b16 %v2484
  %v2622 = vunpack.c.l.b16 %v2485
  %v2623 = vunpack.c.h.b16 %v2485
  %v2624 = vunpack.c.l.b16 %v2486
  %v2625 = vunpack.c.h.b16 %v2486
  %v2626 = vunpack.c.l.b16 %v2487
  %v2627 = vunpack.c.h.b16 %v2487
  %v2628 = vunpack.c.l.b16 %v2488
  %v2629 = vunpack.c.h.b16 %v2488
  %v2630 = vunpack.c.l.b16 %v2489
  %v2631 = vunpack.c.h.b16 %v2489
  %v2632 = vunpack.c.l.b16 %v2490
  %v2633 = vunpack.c.h.b16 %v2490
  %v2634 = vunpack.c.l.b16 %v2491
  %v2635 = vunpack.c.h.b16 %v2491
  %v2636 = vunpack.c.l.b16 %v2492
  %v2637 = vunpack.c.h.b16 %v2492
  %v2638 = vunpack.c.l.b16 %v2493
  %v2639 = vunpack.c.h.b16 %v2493
  %v2640 = vunpack.c.l.b16 %v2494
  %v2641 = vunpack.c.h.b16 %v2494
  %v2642 = vunpack.c.l.b16 %v2495
  %v2643 = vunpack.c.h.b16 %v2495
  %v2644 = vunpack.c.l.b16 %v2496
  %v2645 = vunpack.c.h.b16 %v2496
  %v2646 = vunpack.c.l.b16 %v2497
  %v2647 = vunpack.c.h.b16 %v2497
  %v2648 = vunpack.c.l.b16 %v2498
  %v2649 = vunpack.c.h.b16 %v2498
  %v2650 = vunpack.c.l.b16 %v2499
  %v2651 = vunpack.c.h.b16 %v2499
  %v2652 = vunpack.c.l.b16 %v2500
  %v2653 = vunpack.c.h.b16 %v2500
  %v2654 = vunpack.c.l.b16 %v2501
  %v2655 = vunpack.c.h.b16 %v2501
  %v2656 = vunpack.c.l.b16 %v2502
  %v2657 = vunpack.c.h.b16 %v2502
  %v2658 = vunpack.c.l.b16 %v2503
  %v2659 = vunpack.c.h.b16 %v2503
  %v2660 = vunpack.c.l.b16 %v2504
  %v2661 = vunpack.c.h.b16 %v2504
  %v2662 = vunpack.c.l.b16 %v2505
  %v2663 = vunpack.c.h.b16 %v2505
  %v2664 = vunpack.c.l.b16 %v2506
  %v2665 = vunpack.c.h.b16 %v2506
  %v2666 = vunpack.c.l.b16 %v2507
  %v2667 = vunpack.c.h.b16 %v2507
  %v2668 = vunpack.c.l.b16 %v2508
  %v2669 = vunpack.c.h.b16 %v2508
  %v2670 = vunpack.c.l.b16 %v2509
  %v2671 = vunpack.c.h.b16 %v2509
  %v2672 = vunpack.c.l.b16 %v2510
  %v2673 = vunpack.c.h.b16 %v2510
  %v2674 = vunpack.c.l.b16 %v2511
  %v2675 = vunpack.c.h.b16 %v2511
  %v2676 = vunpack.c.l.b16 %v2512
  %v2677 = vunpack.c.h.b16 %v2512
  %v2678 = vunpack.c.l.b16 %v2513
  %v2679 = vunpack.c.h.b16 %v2513
  %v2680 = vunpack.c.l.b16 %v2514
  %v2681 = vunpack.c.h.b16 %v2514
  %v2682 = vunpack.c.l.b16 %v2515
  %v2683 = vunpack.c.h.b16 %v2515
  %v2684 = vunpack.c.l.b16 %v2516
  %v2685 = vunpack.c.h.b16 %v2516
  %v2686 = vunpack.c.l.b16 %v2517
  %v2687 = vunpack.c.h.b16 %v2517
  %v2688 = vunpack.c.l.b16 %v2518
  %v2689 = vunpack.c.h.b16 %v2518
  %v2690 = vunpack.c.l.b16 %v2519
  %v2691 = vunpack.c.h.b16 %v2519
  %v2692 = vunpack.c.l.b16 %v2520
  %v2693 = vunpack.c.h.b16 %v2520
  %v2694 = vunpack.c.l.b16 %v2521
  %v2695 = vunpack.c.h.b16 %v2521
  %v2696 = vunpack.c.l.b16 %v2522
  %v2697 = vunpack.c.h.b16 %v2522
  %v2698 = vunpack.c.l.b16 %v2523
  %v2699 = vunpack.c.h.b16 %v2523
  %v2700 = vunpack.c.l.b16 %v2524
  %v2701 = vunpack.c.h.b16 %v2524
  %v2702 = vunpack.c.l.b16 %v2525
  %v2703 = vunpack.c.h.b16 %v2525
  %v2704 = vunpack.c.l.b16 %v2526
  %v2705 = vunpack.c.h.b16 %v2526
  %v2706 = vunpack.c.l.b16 %v2527
  %v2707 = vunpack.c.h.b16 %v2527
  %v2708 = vunpack.c.l.b16 %v2528
  %v2709 = vunpack.c.h.b16 %v2528
  %v2710 = vunpack.c.l.b16 %v2529
  %v2711 = vunpack.c.h.b16 %v2529
  %v2712 = vunpack.c.l.b16 %v2530
  %v2713 = vunpack.c.h.b16 %v2530
  %v2714 = vunpack.c.l.b16 %v2531
  %v2715 = vunpack.c.h.b16 %v2531
  %v2716 = vunpack.c.l.b16 %v2532
  %v2717 = vunpack.c.h.b16 %v2532
  %v2718 = vunpack.c.l.b16 %v2533
  %v2719 = vunpack.c.h.b16 %v2533
  %v2720 = vunpack.c.l.b16 %v2534
  %v2721 = vunpack.c.h.b16 %v2534
  %v2722 = vunpack.c.l.b16 %v2535
  %v2723 = vunpack.c.h.b16 %v2535
  %v2724 = vunpack.c.l.b16 %v2536
  %v2725 = vunpack.c.h.b16 %v2536
  %v2726 = vunpack.c.l.b16 %v2537
  %v2727 = vunpack.c.h.b16 %v2537
  %v2728 = vunpack.c.l.b16 %v2538
  %v2729 = vunpack.c.h.b16 %v2538
  %v2730 = vunpack.c.l.b16 %v2539
  %v2731 = vunpack.c.h.b16 %v2539
  %v2732 = vpack.c.b16 %v2608, %v2604
  %v2733 = vpack.c.b16 %v2609, %v2605
  %v2734 = vpack.c.b16 %v2610, %v2606
  %v2735 = vpack.c.b16 %v2611, %v2607
  %v2736 = vpack.c.b16 %v2616, %v2612
  %v2737 = vpack.c.b16 %v2617, %v2613
  %v2738 = vpack.c.b16 %v2618, %v2614
  %v2739 = vpack.c.b16 %v2619, %v2615
  %v2740 = vpack.c.b16 %v2624, %v2620
  %v2741 = vpack.c.b16 %v2625, %v2621
  %v2742 = vpack.c.b16 %v2626, %v2622
  %v2743 = vpack.c.b16 %v2627, %v2623
  %v2744 = vpack.c.b16 %v2632, %v2628
  %v2745 = vpack.c.b16 %v2633, %v2629
  %v2746 = vpack.c.b16 %v2634, %v2630
  %v2747 = vpack.c.b16 %v2635, %v2631
  %v2748 = vpack.c.b16 %v2640, %v2636
  %v2749 = vpack.c.b16 %v2641, %v2637
  %v2750 = vpack.c.b16 %v2642, %v2638
  %v2751 = vpack.c.b16 %v2643, %v2639
  %v2752 = vpack.c.b16 %v2648, %v2644
  %v2753 = vpack.c.b16 %v2649, %v2645
  %v2754 = vpack.c.b16 %v2650, %v2646
  %v2755 = vpack.c.b16 %v2651, %v2647
  %v2756 = vpack.c.b16 %v2656, %v2652
  %v2757 = vpack.c.b16 %v2657, %v2653
  %v2758 = vpack.c.b16 %v2658, %v2654
  %v2759 = vpack.c.b16 %v2659, %v2655
  %v2760 = vpack.c.b16 %v2664, %v2660
  %v2761 = vpack.c.b16 %v2665, %v2661
  %v2762 = vpack.c.b16 %v2666, %v2662
  %v2763 = vpack.c.b16 %v2667, %v2663
  %v2764 = vpack.c.b16 %v2672, %v2668
  %v2765 = vpack.c.b16 %v2673, %v2669
  %v2766 = vpack.c.b16 %v2674, %v2670
  %v2767 = vpack.c.b16 %v2675, %v2671
  %v2768 = vpack.c.b16 %v2680, %v2676
  %v2769 = vpack.c.b16 %v2681, %v2677
  %v2770 = vpack.c.b16 %v2682, %v2678
  %v2771 = vpack.c.b16 %v2683, %v2679
  %v2772 = vpack.c.b16 %v2688, %v2684
  %v2773 = vpack.c.b16 %v2689, %v2685
  %v2774 = vpack.c.b16 %v2690, %v2686
  %v2775 = vpack.c.b16 %v2691, %v2687
  %v2776 = vpack.c.b16 %v2696, %v2692
  %v2777 = vpack.c.b16 %v2697, %v2693
  %v2778 = vpack.c.b16 %v2698, %v2694
  %v2779 = vpack.c.b16 %v2699, %v2695
  %v2780 = vpack.c.b16 %v2704, %v2700
  %v2781 = vpack.c.b16 %v2705, %v2701
  %v2782 = vpack.c.b16 %v2706, %v2702
  %v2783 = vpack.c.b16 %v2707, %v2703
  %v2784 = vpack.c.b16 %v2712, %v2708
  %v2785 = vpack.c.b16 %v2713, %v2709
  %v2786 = vpack.c.b16 %v2714, %v2710
  %v2787 = vpack.c.b16 %v2715, %v2711
  %v2788 = vpack.c.b16 %v2720, %v2716
  %v2789 = vpack.c.b16 %v2721, %v2717
  %v2790 = vpack.c.b16 %v2722, %v2718
  %v2791 = vpack.c.b16 %v2723, %v2719
  %v2792 = vpack.c.b16 %v2728, %v2724
  %v2793 = vpack.c.b16 %v2729, %v2725
  %v2794 = vpack.c.b16 %v2730, %v2726
  %v2795 = vpack.c.b16 %v2731, %v2727
  %2860 = vmatpush.bf16.msra.mxu0 %v2760
  %2861 = vmatpush.bf16.msra.mxu0 %v2756
  %2862 = vmatpush.bf16.msra.mxu0 %v2752
  %2863 = vmatpush.bf16.msra.mxu0 %v2748
  %2864 = vmatpush.bf16.msra.mxu0 %v2744
  %2865 = vmatpush.bf16.msra.mxu0 %v2740
  %2866 = vmatpush.bf16.msra.mxu0 %v2736
  %2867 = vmatpush.bf16.msra.mxu0 %v2732
  %2868 = vmatmul.bf16.gmra.mxu0 %v29
  %v2869 = vpop.f32.mrf.mxu0
  %v2870 = vadd.f32 0.0, %v2869
  %v2871 = vpop.f32.mrf.mxu0
  %2872 = vdwg.mxu0
  %2873 = vmatpush.bf16.msra.mxu0 %v2792
  %2874 = vmatpush.bf16.msra.mxu0 %v2788
  %2875 = vmatpush.bf16.msra.mxu0 %v2784
  %2876 = vmatpush.bf16.msra.mxu0 %v2780
  %2877 = vmatpush.bf16.msra.mxu0 %v2776
  %2878 = vmatpush.bf16.msra.mxu0 %v2772
  %2879 = vmatpush.bf16.msra.mxu0 %v2768
  %2880 = vmatpush.bf16.msra.mxu0 %v2764
  %2881 = vmatmul.bf16.gmra.mxu0 %v30
  %v2882 = vpop.f32.mrf.mxu0
  %v2883 = vadd.f32 %v2870, %v2882
  %v2884 = vpop.f32.mrf.mxu0
  %2885 = vdwg.mxu0
  %2886 = vmatpush.bf16.msra.mxu0 %v2761
  %2887 = vmatpush.bf16.msra.mxu0 %v2757
  %2888 = vmatpush.bf16.msra.mxu0 %v2753
  %2889 = vmatpush.bf16.msra.mxu0 %v2749
  %2890 = vmatpush.bf16.msra.mxu0 %v2745
  %2891 = vmatpush.bf16.msra.mxu0 %v2741
  %2892 = vmatpush.bf16.msra.mxu0 %v2737
  %2893 = vmatpush.bf16.msra.mxu0 %v2733
  %2894 = vmatmul.bf16.gmra.mxu0 %v29
  %v2895 = vpop.f32.mrf.mxu0
  %v2896 = vadd.f32 0.0, %v2895
  %v2897 = vpop.f32.mrf.mxu0
  %2898 = vdwg.mxu0
  %2899 = vmatpush.bf16.msra.mxu0 %v2793
  %2900 = vmatpush.bf16.msra.mxu0 %v2789
  %2901 = vmatpush.bf16.msra.mxu0 %v2785
  %2902 = vmatpush.bf16.msra.mxu0 %v2781
  %2903 = vmatpush.bf16.msra.mxu0 %v2777
  %2904 = vmatpush.bf16.msra.mxu0 %v2773
  %2905 = vmatpush.bf16.msra.mxu0 %v2769
  %2906 = vmatpush.bf16.msra.mxu0 %v2765
  %2907 = vmatmul.bf16.gmra.mxu0 %v30
  %v2908 = vpop.f32.mrf.mxu0
  %v2909 = vadd.f32 %v2896, %v2908
  %v2910 = vpop.f32.mrf.mxu0
  %2911 = vdwg.mxu0
  %2912 = vmatpush.bf16.msra.mxu0 %v2762
  %2913 = vmatpush.bf16.msra.mxu0 %v2758
  %2914 = vmatpush.bf16.msra.mxu0 %v2754
  %2915 = vmatpush.bf16.msra.mxu0 %v2750
  %2916 = vmatpush.bf16.msra.mxu0 %v2746
  %2917 = vmatpush.bf16.msra.mxu0 %v2742
  %2918 = vmatpush.bf16.msra.mxu0 %v2738
  %2919 = vmatpush.bf16.msra.mxu0 %v2734
  %2920 = vmatmul.bf16.gmra.mxu0 %v29
  %v2921 = vpop.f32.mrf.mxu0
  %v2922 = vadd.f32 0.0, %v2921
  %v2923 = vpop.f32.mrf.mxu0
  %2924 = vdwg.mxu0
  %2925 = vmatpush.bf16.msra.mxu0 %v2794
  %2926 = vmatpush.bf16.msra.mxu0 %v2790
  %2927 = vmatpush.bf16.msra.mxu0 %v2786
  %2928 = vmatpush.bf16.msra.mxu0 %v2782
  %2929 = vmatpush.bf16.msra.mxu0 %v2778
  %2930 = vmatpush.bf16.msra.mxu0 %v2774
  %2931 = vmatpush.bf16.msra.mxu0 %v2770
  %2932 = vmatpush.bf16.msra.mxu0 %v2766
  %2933 = vmatmul.bf16.gmra.mxu0 %v30
  %v2934 = vpop.f32.mrf.mxu0
  %v2935 = vadd.f32 %v2922, %v2934
  %v2936 = vpop.f32.mrf.mxu0
  %2937 = vdwg.mxu0
  %2938 = vmatpush.bf16.msra.mxu0 %v2763
  %2939 = vmatpush.bf16.msra.mxu0 %v2759
  %2940 = vmatpush.bf16.msra.mxu0 %v2755
  %2941 = vmatpush.bf16.msra.mxu0 %v2751
  %2942 = vmatpush.bf16.msra.mxu0 %v2747
  %2943 = vmatpush.bf16.msra.mxu0 %v2743
  %2944 = vmatpush.bf16.msra.mxu0 %v2739
  %2945 = vmatpush.bf16.msra.mxu0 %v2735
  %2946 = vmatmul.bf16.gmra.mxu0 %v29
  %v2947 = vpop.f32.mrf.mxu0
  %v2948 = vadd.f32 0.0, %v2947
  %v2949 = vpop.f32.mrf.mxu0
  %2950 = vdwg.mxu0
  %2951 = vmatpush.bf16.msra.mxu0 %v2795
  %2952 = vmatpush.bf16.msra.mxu0 %v2791
  %2953 = vmatpush.bf16.msra.mxu0 %v2787
  %2954 = vmatpush.bf16.msra.mxu0 %v2783
  %2955 = vmatpush.bf16.msra.mxu0 %v2779
  %2956 = vmatpush.bf16.msra.mxu0 %v2775
  %2957 = vmatpush.bf16.msra.mxu0 %v2771
  %2958 = vmatpush.bf16.msra.mxu0 %v2767
  %2959 = vmatmul.bf16.gmra.mxu0 %v30
  %v2960 = vpop.f32.mrf.mxu0
  %v2961 = vadd.f32 %v2948, %v2960
  %v2962 = vpop.f32.mrf.mxu0
  %2963 = vdwg.mxu0
  %vm2964 = vcmp.ge.s32.totalorder %v27, 1
  %v2965 = vsel %vm2964, %v927, %v438
  %v2966 = vsel %vm2964, %v953, %v464
  %v2967 = vsel %vm2964, %v979, %v490
  %v2968 = vsel %vm2964, %v1005, %v516
  %vm2969 = vcmp.ge.s32.totalorder %v27, 3
  %v2970 = vsel %vm2969, %v1905, %v1416
  %v2971 = vsel %vm2969, %v1931, %v1442
  %v2972 = vsel %vm2969, %v1957, %v1468
  %v2973 = vsel %vm2969, %v1983, %v1494
  %vm2974 = vcmp.ge.s32.totalorder %v27, 5
  %v2975 = vsel %vm2974, %v2883, %v2394
  %v2976 = vsel %vm2974, %v2909, %v2420
  %v2977 = vsel %vm2974, %v2935, %v2446
  %v2978 = vsel %vm2974, %v2961, %v2472
  %vm2979 = vcmp.ge.s32.totalorder %v27, 4
  %vm2980 = vcmp.ge.s32.totalorder %v27, 2
  %v2981 = vsel %vm2980, %v2970, %v2965
  %v2982 = vsel %vm2980, %v2971, %v2966
  %v2983 = vsel %vm2980, %v2972, %v2967
  %v2984 = vsel %vm2980, %v2973, %v2968
  %v2985 = vsel %vm2979, %v2975, %v2981
  %v2986 = vsel %vm2979, %v2976, %v2982
  %v2987 = vsel %vm2979, %v2977, %v2983
  %v2988 = vsel %vm2979, %v2978, %v2984
  %v2989 = vld [vmem:[%s2] sm:$0xff]
  %v2990 = vld [vmem:[%s2 + $0x8] sm:$0xff]
  %v2991 = vld [vmem:[%s2 + $0x10] sm:$0xff]
  %v2992 = vld [vmem:[%s2 + $0x18] sm:$0xff]
  %v2993 = vadd.f32 %v2985, %v2989
  %v2994 = vadd.f32 %v2986, %v2990
  %v2995 = vadd.f32 %v2987, %v2991
  %v2996 = vadd.f32 %v2988, %v2992
  %v2997 = vxor.u32 %v2993, 2147483648
  %v2998 = vxor.u32 %v2994, 2147483648
  %v2999 = vxor.u32 %v2995, 2147483648
  %v3000 = vmul.f32 %v2997, 1.442695
  %v3001 = vpow.pop %v3000
  %v3002 = vmul.f32 %v2998, 1.442695
  %v3003 = vpow.pop %v3002
  %v3004 = vmul.f32 %v2999, 1.442695
  %v3005 = vpow.pop %v3004
  %v3006 = vadd.f32 %v3001, 1.0
  %v3007 = vadd.f32 %v3003, 1.0
  %v3008 = vadd.f32 %v3005, 1.0
  %v3009 = vrcp.pop %v3006
  %v3010 = vmul.f32 %v3006, %v3009
  %v3011 = vsub.f32 1.0, %v3010
  %v3012 = vmul.f32 %v3009, %v3011
  %v3013 = vadd.f32 %v3009, %v3012
  %vm3014 = vweird.f32 %v3006
  %vm3015 = vweird.f32 %v3009
  %vm3016 = vmor %vm3014, %vm3015
  %v3017 = vsel %vm3016, %v3009, %v3013
  %v3018 = vand.u32 2147483647, %v3006
  %vm3019 = vcmp.eq.f32.partialorder %v3018, 8.507059e+37
  %v3020 = vand.u32 %v3006, 2147483648
  %v3021 = vor.u32 1.1754944e-38, %v3020
  %v3022 = vsel %vm3019, %v3021, %v3017
  %v3023 = vmul.f32 1.0, %v3022
  %v3024 = vrcp.pop %v3007
  %v3025 = vmul.f32 %v3007, %v3024
  %v3026 = vsub.f32 1.0, %v3025
  %v3027 = vmul.f32 %v3024, %v3026
  %v3028 = vadd.f32 %v3024, %v3027
  %vm3029 = vweird.f32 %v3007
  %vm3030 = vweird.f32 %v3024
  %vm3031 = vmor %vm3029, %vm3030
  %v3032 = vsel %vm3031, %v3024, %v3028
  %v3033 = vand.u32 2147483647, %v3007
  %vm3034 = vcmp.eq.f32.partialorder %v3033, 8.507059e+37
  %v3035 = vand.u32 %v3007, 2147483648
  %v3036 = vor.u32 1.1754944e-38, %v3035
  %v3037 = vsel %vm3034, %v3036, %v3032
  %v3038 = vmul.f32 1.0, %v3037
  %v3039 = vrcp.pop %v3008
  %v3040 = vmul.f32 %v3008, %v3039
  %v3041 = vsub.f32 1.0, %v3040
  %v3042 = vmul.f32 %v3039, %v3041
  %v3043 = vadd.f32 %v3039, %v3042
  %vm3044 = vweird.f32 %v3008
  %vm3045 = vweird.f32 %v3039
  %vm3046 = vmor %vm3044, %vm3045
  %v3047 = vsel %vm3046, %v3039, %v3043
  %v3048 = vand.u32 2147483647, %v3008
  %vm3049 = vcmp.eq.f32.partialorder %v3048, 8.507059e+37
  %v3050 = vand.u32 %v3008, 2147483648
  %v3051 = vor.u32 1.1754944e-38, %v3050
  %v3052 = vsel %vm3049, %v3051, %v3047
  %v3053 = vmul.f32 1.0, %v3052
  %v3054 = vtanh.pop %v2996
  %v3055 = vmul.f32 %v3038, 0.0
  %v3056 = vmul.f32 %v3023, %v3054
  %v3057 = vadd.f32 %v3055, %v3056
  %v3058 = vtanh.pop %v3057
  %v3059 = vmul.f32 %v3053, %v3058
  %vm3060 = vcmp.eq.s32.totalorder %v27, 0
  %v3061 = vperm.slane %v3059, 0
  %v3062 = vsel %vm3060, %v3061, 0.0
  %vm3063 = vcmp.eq.s32.totalorder %v27, 7
  %v3064 = vperm.slane %v3059, 1
  %v3065 = vsel %vm3063, %v3064, 0.0
  %v3066 = vperm.slane %v3059, 2
  %v3067 = vsel %vm3060, %v3066, 0.0
  %v3068 = vperm.slane %v3059, 3
  %v3069 = vsel %vm3063, %v3068, 0.0
  %v3070 = vperm.slane %v3059, 4
  %v3071 = vsel %vm3060, %v3070, 0.0
  %v3072 = vperm.slane %v3059, 5
  %v3073 = vsel %vm3063, %v3072, 0.0
  %s3074 = scalar_lea.vmem %s0, 8
  %v3075 = vld [vmem:[%s3074] sm:$0xff]
  %v3076 = vpack.c.bf16 %v3059, %v3059
  %v3077 = vpack.c.bf16 %v3075, %v3075
  %3078 = vmatpush.bf16.msra.mxu0 %v315
  %3079 = vmatpush.bf16.msra.mxu0 %v311
  %3080 = vmatpush.bf16.msra.mxu0 %v307
  %3081 = vmatpush.bf16.msra.mxu0 %v303
  %3082 = vmatpush.bf16.msra.mxu0 %v299
  %3083 = vmatpush.bf16.msra.mxu0 %v295
  %3084 = vmatpush.bf16.msra.mxu0 %v291
  %3085 = vmatpush.bf16.msra.mxu0 %v287
  %3086 = vmatmul.bf16.gmra.mxu0 %v3076
  %v3087 = vpop.f32.mrf.mxu0
  %v3088 = vadd.f32 0.0, %v3087
  %v3089 = vpop.f32.mrf.mxu0
  %3090 = vdwg.mxu0
  %3091 = vmatpush.bf16.msra.mxu0 %v347
  %3092 = vmatpush.bf16.msra.mxu0 %v343
  %3093 = vmatpush.bf16.msra.mxu0 %v339
  %3094 = vmatpush.bf16.msra.mxu0 %v335
  %3095 = vmatpush.bf16.msra.mxu0 %v331
  %3096 = vmatpush.bf16.msra.mxu0 %v327
  %3097 = vmatpush.bf16.msra.mxu0 %v323
  %3098 = vmatpush.bf16.msra.mxu0 %v319
  %3099 = vmatmul.bf16.gmra.mxu0 %v3077
  %v3100 = vpop.f32.mrf.mxu0
  %v3101 = vadd.f32 %v3088, %v3100
  %v3102 = vpop.f32.mrf.mxu0
  %3103 = vdwg.mxu0
  %3104 = vmatpush.bf16.msra.mxu0 %v316
  %3105 = vmatpush.bf16.msra.mxu0 %v312
  %3106 = vmatpush.bf16.msra.mxu0 %v308
  %3107 = vmatpush.bf16.msra.mxu0 %v304
  %3108 = vmatpush.bf16.msra.mxu0 %v300
  %3109 = vmatpush.bf16.msra.mxu0 %v296
  %3110 = vmatpush.bf16.msra.mxu0 %v292
  %3111 = vmatpush.bf16.msra.mxu0 %v288
  %3112 = vmatmul.bf16.gmra.mxu0 %v3076
  %v3113 = vpop.f32.mrf.mxu0
  %v3114 = vadd.f32 0.0, %v3113
  %v3115 = vpop.f32.mrf.mxu0
  %3116 = vdwg.mxu0
  %3117 = vmatpush.bf16.msra.mxu0 %v348
  %3118 = vmatpush.bf16.msra.mxu0 %v344
  %3119 = vmatpush.bf16.msra.mxu0 %v340
  %3120 = vmatpush.bf16.msra.mxu0 %v336
  %3121 = vmatpush.bf16.msra.mxu0 %v332
  %3122 = vmatpush.bf16.msra.mxu0 %v328
  %3123 = vmatpush.bf16.msra.mxu0 %v324
  %3124 = vmatpush.bf16.msra.mxu0 %v320
  %3125 = vmatmul.bf16.gmra.mxu0 %v3077
  %v3126 = vpop.f32.mrf.mxu0
  %v3127 = vadd.f32 %v3114, %v3126
  %v3128 = vpop.f32.mrf.mxu0
  %3129 = vdwg.mxu0
  %3130 = vmatpush.bf16.msra.mxu0 %v317
  %3131 = vmatpush.bf16.msra.mxu0 %v313
  %3132 = vmatpush.bf16.msra.mxu0 %v309
  %3133 = vmatpush.bf16.msra.mxu0 %v305
  %3134 = vmatpush.bf16.msra.mxu0 %v301
  %3135 = vmatpush.bf16.msra.mxu0 %v297
  %3136 = vmatpush.bf16.msra.mxu0 %v293
  %3137 = vmatpush.bf16.msra.mxu0 %v289
  %3138 = vmatmul.bf16.gmra.mxu0 %v3076
  %v3139 = vpop.f32.mrf.mxu0
  %v3140 = vadd.f32 0.0, %v3139
  %v3141 = vpop.f32.mrf.mxu0
  %3142 = vdwg.mxu0
  %3143 = vmatpush.bf16.msra.mxu0 %v349
  %3144 = vmatpush.bf16.msra.mxu0 %v345
  %3145 = vmatpush.bf16.msra.mxu0 %v341
  %3146 = vmatpush.bf16.msra.mxu0 %v337
  %3147 = vmatpush.bf16.msra.mxu0 %v333
  %3148 = vmatpush.bf16.msra.mxu0 %v329
  %3149 = vmatpush.bf16.msra.mxu0 %v325
  %3150 = vmatpush.bf16.msra.mxu0 %v321
  %3151 = vmatmul.bf16.gmra.mxu0 %v3077
  %v3152 = vpop.f32.mrf.mxu0
  %v3153 = vadd.f32 %v3140, %v3152
  %v3154 = vpop.f32.mrf.mxu0
  %3155 = vdwg.mxu0
  %3156 = vmatpush.bf16.msra.mxu0 %v318
  %3157 = vmatpush.bf16.msra.mxu0 %v314
  %3158 = vmatpush.bf16.msra.mxu0 %v310
  %3159 = vmatpush.bf16.msra.mxu0 %v306
  %3160 = vmatpush.bf16.msra.mxu0 %v302
  %3161 = vmatpush.bf16.msra.mxu0 %v298
  %3162 = vmatpush.bf16.msra.mxu0 %v294
  %3163 = vmatpush.bf16.msra.mxu0 %v290
  %3164 = vmatmul.bf16.gmra.mxu0 %v3076
  %v3165 = vpop.f32.mrf.mxu0
  %v3166 = vadd.f32 0.0, %v3165
  %v3167 = vpop.f32.mrf.mxu0
  %3168 = vdwg.mxu0
  %3169 = vmatpush.bf16.msra.mxu0 %v350
  %3170 = vmatpush.bf16.msra.mxu0 %v346
  %3171 = vmatpush.bf16.msra.mxu0 %v342
  %3172 = vmatpush.bf16.msra.mxu0 %v338
  %3173 = vmatpush.bf16.msra.mxu0 %v334
  %3174 = vmatpush.bf16.msra.mxu0 %v330
  %3175 = vmatpush.bf16.msra.mxu0 %v326
  %3176 = vmatpush.bf16.msra.mxu0 %v322
  %3177 = vmatmul.bf16.gmra.mxu0 %v3077
  %v3178 = vpop.f32.mrf.mxu0
  %v3179 = vadd.f32 %v3166, %v3178
  %v3180 = vpop.f32.mrf.mxu0
  %3181 = vdwg.mxu0
  %3182 = vmatpush.bf16.msra.mxu0 %v804
  %3183 = vmatpush.bf16.msra.mxu0 %v800
  %3184 = vmatpush.bf16.msra.mxu0 %v796
  %3185 = vmatpush.bf16.msra.mxu0 %v792
  %3186 = vmatpush.bf16.msra.mxu0 %v788
  %3187 = vmatpush.bf16.msra.mxu0 %v784
  %3188 = vmatpush.bf16.msra.mxu0 %v780
  %3189 = vmatpush.bf16.msra.mxu0 %v776
  %3190 = vmatmul.bf16.gmra.mxu0 %v3076
  %v3191 = vpop.f32.mrf.mxu0
  %v3192 = vadd.f32 0.0, %v3191
  %v3193 = vpop.f32.mrf.mxu0
  %3194 = vdwg.mxu0
  %3195 = vmatpush.bf16.msra.mxu0 %v836
  %3196 = vmatpush.bf16.msra.mxu0 %v832
  %3197 = vmatpush.bf16.msra.mxu0 %v828
  %3198 = vmatpush.bf16.msra.mxu0 %v824
  %3199 = vmatpush.bf16.msra.mxu0 %v820
  %3200 = vmatpush.bf16.msra.mxu0 %v816
  %3201 = vmatpush.bf16.msra.mxu0 %v812
  %3202 = vmatpush.bf16.msra.mxu0 %v808
  %3203 = vmatmul.bf16.gmra.mxu0 %v3077
  %v3204 = vpop.f32.mrf.mxu0
  %v3205 = vadd.f32 %v3192, %v3204
  %v3206 = vpop.f32.mrf.mxu0
  %3207 = vdwg.mxu0
  %3208 = vmatpush.bf16.msra.mxu0 %v805
  %3209 = vmatpush.bf16.msra.mxu0 %v801
  %3210 = vmatpush.bf16.msra.mxu0 %v797
  %3211 = vmatpush.bf16.msra.mxu0 %v793
  %3212 = vmatpush.bf16.msra.mxu0 %v789
  %3213 = vmatpush.bf16.msra.mxu0 %v785
  %3214 = vmatpush.bf16.msra.mxu0 %v781
  %3215 = vmatpush.bf16.msra.mxu0 %v777
  %3216 = vmatmul.bf16.gmra.mxu0 %v3076
  %v3217 = vpop.f32.mrf.mxu0
  %v3218 = vadd.f32 0.0, %v3217
  %v3219 = vpop.f32.mrf.mxu0
  %3220 = vdwg.mxu0
  %3221 = vmatpush.bf16.msra.mxu0 %v837
  %3222 = vmatpush.bf16.msra.mxu0 %v833
  %3223 = vmatpush.bf16.msra.mxu0 %v829
  %3224 = vmatpush.bf16.msra.mxu0 %v825
  %3225 = vmatpush.bf16.msra.mxu0 %v821
  %3226 = vmatpush.bf16.msra.mxu0 %v817
  %3227 = vmatpush.bf16.msra.mxu0 %v813
  %3228 = vmatpush.bf16.msra.mxu0 %v809
  %3229 = vmatmul.bf16.gmra.mxu0 %v3077
  %v3230 = vpop.f32.mrf.mxu0
  %v3231 = vadd.f32 %v3218, %v3230
  %v3232 = vpop.f32.mrf.mxu0
  %3233 = vdwg.mxu0
  %3234 = vmatpush.bf16.msra.mxu0 %v806
  %3235 = vmatpush.bf16.msra.mxu0 %v802
  %3236 = vmatpush.bf16.msra.mxu0 %v798
  %3237 = vmatpush.bf16.msra.mxu0 %v794
  %3238 = vmatpush.bf16.msra.mxu0 %v790
  %3239 = vmatpush.bf16.msra.mxu0 %v786
  %3240 = vmatpush.bf16.msra.mxu0 %v782
  %3241 = vmatpush.bf16.msra.mxu0 %v778
  %3242 = vmatmul.bf16.gmra.mxu0 %v3076
  %v3243 = vpop.f32.mrf.mxu0
  %v3244 = vadd.f32 0.0, %v3243
  %v3245 = vpop.f32.mrf.mxu0
  %3246 = vdwg.mxu0
  %3247 = vmatpush.bf16.msra.mxu0 %v838
  %3248 = vmatpush.bf16.msra.mxu0 %v834
  %3249 = vmatpush.bf16.msra.mxu0 %v830
  %3250 = vmatpush.bf16.msra.mxu0 %v826
  %3251 = vmatpush.bf16.msra.mxu0 %v822
  %3252 = vmatpush.bf16.msra.mxu0 %v818
  %3253 = vmatpush.bf16.msra.mxu0 %v814
  %3254 = vmatpush.bf16.msra.mxu0 %v810
  %3255 = vmatmul.bf16.gmra.mxu0 %v3077
  %v3256 = vpop.f32.mrf.mxu0
  %v3257 = vadd.f32 %v3244, %v3256
  %v3258 = vpop.f32.mrf.mxu0
  %3259 = vdwg.mxu0
  %3260 = vmatpush.bf16.msra.mxu0 %v807
  %3261 = vmatpush.bf16.msra.mxu0 %v803
  %3262 = vmatpush.bf16.msra.mxu0 %v799
  %3263 = vmatpush.bf16.msra.mxu0 %v795
  %3264 = vmatpush.bf16.msra.mxu0 %v791
  %3265 = vmatpush.bf16.msra.mxu0 %v787
  %3266 = vmatpush.bf16.msra.mxu0 %v783
  %3267 = vmatpush.bf16.msra.mxu0 %v779
  %3268 = vmatmul.bf16.gmra.mxu0 %v3076
  %v3269 = vpop.f32.mrf.mxu0
  %v3270 = vadd.f32 0.0, %v3269
  %v3271 = vpop.f32.mrf.mxu0
  %3272 = vdwg.mxu0
  %3273 = vmatpush.bf16.msra.mxu0 %v839
  %3274 = vmatpush.bf16.msra.mxu0 %v835
  %3275 = vmatpush.bf16.msra.mxu0 %v831
  %3276 = vmatpush.bf16.msra.mxu0 %v827
  %3277 = vmatpush.bf16.msra.mxu0 %v823
  %3278 = vmatpush.bf16.msra.mxu0 %v819
  %3279 = vmatpush.bf16.msra.mxu0 %v815
  %3280 = vmatpush.bf16.msra.mxu0 %v811
  %3281 = vmatmul.bf16.gmra.mxu0 %v3077
  %v3282 = vpop.f32.mrf.mxu0
  %v3283 = vadd.f32 %v3270, %v3282
  %v3284 = vpop.f32.mrf.mxu0
  %3285 = vdwg.mxu0
  %3286 = vmatpush.bf16.msra.mxu0 %v1293
  %3287 = vmatpush.bf16.msra.mxu0 %v1289
  %3288 = vmatpush.bf16.msra.mxu0 %v1285
  %3289 = vmatpush.bf16.msra.mxu0 %v1281
  %3290 = vmatpush.bf16.msra.mxu0 %v1277
  %3291 = vmatpush.bf16.msra.mxu0 %v1273
  %3292 = vmatpush.bf16.msra.mxu0 %v1269
  %3293 = vmatpush.bf16.msra.mxu0 %v1265
  %3294 = vmatmul.bf16.gmra.mxu0 %v3076
  %v3295 = vpop.f32.mrf.mxu0
  %v3296 = vadd.f32 0.0, %v3295
  %v3297 = vpop.f32.mrf.mxu0
  %3298 = vdwg.mxu0
  %3299 = vmatpush.bf16.msra.mxu0 %v1325
  %3300 = vmatpush.bf16.msra.mxu0 %v1321
  %3301 = vmatpush.bf16.msra.mxu0 %v1317
  %3302 = vmatpush.bf16.msra.mxu0 %v1313
  %3303 = vmatpush.bf16.msra.mxu0 %v1309
  %3304 = vmatpush.bf16.msra.mxu0 %v1305
  %3305 = vmatpush.bf16.msra.mxu0 %v1301
  %3306 = vmatpush.bf16.msra.mxu0 %v1297
  %3307 = vmatmul.bf16.gmra.mxu0 %v3077
  %v3308 = vpop.f32.mrf.mxu0
  %v3309 = vadd.f32 %v3296, %v3308
  %v3310 = vpop.f32.mrf.mxu0
  %3311 = vdwg.mxu0
  %3312 = vmatpush.bf16.msra.mxu0 %v1294
  %3313 = vmatpush.bf16.msra.mxu0 %v1290
  %3314 = vmatpush.bf16.msra.mxu0 %v1286
  %3315 = vmatpush.bf16.msra.mxu0 %v1282
  %3316 = vmatpush.bf16.msra.mxu0 %v1278
  %3317 = vmatpush.bf16.msra.mxu0 %v1274
  %3318 = vmatpush.bf16.msra.mxu0 %v1270
  %3319 = vmatpush.bf16.msra.mxu0 %v1266
  %3320 = vmatmul.bf16.gmra.mxu0 %v3076
  %v3321 = vpop.f32.mrf.mxu0
  %v3322 = vadd.f32 0.0, %v3321
  %v3323 = vpop.f32.mrf.mxu0
  %3324 = vdwg.mxu0
  %3325 = vmatpush.bf16.msra.mxu0 %v1326
  %3326 = vmatpush.bf16.msra.mxu0 %v1322
  %3327 = vmatpush.bf16.msra.mxu0 %v1318
  %3328 = vmatpush.bf16.msra.mxu0 %v1314
  %3329 = vmatpush.bf16.msra.mxu0 %v1310
  %3330 = vmatpush.bf16.msra.mxu0 %v1306
  %3331 = vmatpush.bf16.msra.mxu0 %v1302
  %3332 = vmatpush.bf16.msra.mxu0 %v1298
  %3333 = vmatmul.bf16.gmra.mxu0 %v3077
  %v3334 = vpop.f32.mrf.mxu0
  %v3335 = vadd.f32 %v3322, %v3334
  %v3336 = vpop.f32.mrf.mxu0
  %3337 = vdwg.mxu0
  %3338 = vmatpush.bf16.msra.mxu0 %v1295
  %3339 = vmatpush.bf16.msra.mxu0 %v1291
  %3340 = vmatpush.bf16.msra.mxu0 %v1287
  %3341 = vmatpush.bf16.msra.mxu0 %v1283
  %3342 = vmatpush.bf16.msra.mxu0 %v1279
  %3343 = vmatpush.bf16.msra.mxu0 %v1275
  %3344 = vmatpush.bf16.msra.mxu0 %v1271
  %3345 = vmatpush.bf16.msra.mxu0 %v1267
  %3346 = vmatmul.bf16.gmra.mxu0 %v3076
  %v3347 = vpop.f32.mrf.mxu0
  %v3348 = vadd.f32 0.0, %v3347
  %v3349 = vpop.f32.mrf.mxu0
  %3350 = vdwg.mxu0
  %3351 = vmatpush.bf16.msra.mxu0 %v1327
  %3352 = vmatpush.bf16.msra.mxu0 %v1323
  %3353 = vmatpush.bf16.msra.mxu0 %v1319
  %3354 = vmatpush.bf16.msra.mxu0 %v1315
  %3355 = vmatpush.bf16.msra.mxu0 %v1311
  %3356 = vmatpush.bf16.msra.mxu0 %v1307
  %3357 = vmatpush.bf16.msra.mxu0 %v1303
  %3358 = vmatpush.bf16.msra.mxu0 %v1299
  %3359 = vmatmul.bf16.gmra.mxu0 %v3077
  %v3360 = vpop.f32.mrf.mxu0
  %v3361 = vadd.f32 %v3348, %v3360
  %v3362 = vpop.f32.mrf.mxu0
  %3363 = vdwg.mxu0
  %3364 = vmatpush.bf16.msra.mxu0 %v1296
  %3365 = vmatpush.bf16.msra.mxu0 %v1292
  %3366 = vmatpush.bf16.msra.mxu0 %v1288
  %3367 = vmatpush.bf16.msra.mxu0 %v1284
  %3368 = vmatpush.bf16.msra.mxu0 %v1280
  %3369 = vmatpush.bf16.msra.mxu0 %v1276
  %3370 = vmatpush.bf16.msra.mxu0 %v1272
  %3371 = vmatpush.bf16.msra.mxu0 %v1268
  %3372 = vmatmul.bf16.gmra.mxu0 %v3076
  %v3373 = vpop.f32.mrf.mxu0
  %v3374 = vadd.f32 0.0, %v3373
  %v3375 = vpop.f32.mrf.mxu0
  %3376 = vdwg.mxu0
  %3377 = vmatpush.bf16.msra.mxu0 %v1328
  %3378 = vmatpush.bf16.msra.mxu0 %v1324
  %3379 = vmatpush.bf16.msra.mxu0 %v1320
  %3380 = vmatpush.bf16.msra.mxu0 %v1316
  %3381 = vmatpush.bf16.msra.mxu0 %v1312
  %3382 = vmatpush.bf16.msra.mxu0 %v1308
  %3383 = vmatpush.bf16.msra.mxu0 %v1304
  %3384 = vmatpush.bf16.msra.mxu0 %v1300
  %3385 = vmatmul.bf16.gmra.mxu0 %v3077
  %v3386 = vpop.f32.mrf.mxu0
  %v3387 = vadd.f32 %v3374, %v3386
  %v3388 = vpop.f32.mrf.mxu0
  %3389 = vdwg.mxu0
  %3390 = vmatpush.bf16.msra.mxu0 %v1782
  %3391 = vmatpush.bf16.msra.mxu0 %v1778
  %3392 = vmatpush.bf16.msra.mxu0 %v1774
  %3393 = vmatpush.bf16.msra.mxu0 %v1770
  %3394 = vmatpush.bf16.msra.mxu0 %v1766
  %3395 = vmatpush.bf16.msra.mxu0 %v1762
  %3396 = vmatpush.bf16.msra.mxu0 %v1758
  %3397 = vmatpush.bf16.msra.mxu0 %v1754
  %3398 = vmatmul.bf16.gmra.mxu0 %v3076
  %v3399 = vpop.f32.mrf.mxu0
  %v3400 = vadd.f32 0.0, %v3399
  %v3401 = vpop.f32.mrf.mxu0
  %3402 = vdwg.mxu0
  %3403 = vmatpush.bf16.msra.mxu0 %v1814
  %3404 = vmatpush.bf16.msra.mxu0 %v1810
  %3405 = vmatpush.bf16.msra.mxu0 %v1806
  %3406 = vmatpush.bf16.msra.mxu0 %v1802
  %3407 = vmatpush.bf16.msra.mxu0 %v1798
  %3408 = vmatpush.bf16.msra.mxu0 %v1794
  %3409 = vmatpush.bf16.msra.mxu0 %v1790
  %3410 = vmatpush.bf16.msra.mxu0 %v1786
  %3411 = vmatmul.bf16.gmra.mxu0 %v3077
  %v3412 = vpop.f32.mrf.mxu0
  %v3413 = vadd.f32 %v3400, %v3412
  %v3414 = vpop.f32.mrf.mxu0
  %3415 = vdwg.mxu0
  %3416 = vmatpush.bf16.msra.mxu0 %v1783
  %3417 = vmatpush.bf16.msra.mxu0 %v1779
  %3418 = vmatpush.bf16.msra.mxu0 %v1775
  %3419 = vmatpush.bf16.msra.mxu0 %v1771
  %3420 = vmatpush.bf16.msra.mxu0 %v1767
  %3421 = vmatpush.bf16.msra.mxu0 %v1763
  %3422 = vmatpush.bf16.msra.mxu0 %v1759
  %3423 = vmatpush.bf16.msra.mxu0 %v1755
  %3424 = vmatmul.bf16.gmra.mxu0 %v3076
  %v3425 = vpop.f32.mrf.mxu0
  %v3426 = vadd.f32 0.0, %v3425
  %v3427 = vpop.f32.mrf.mxu0
  %3428 = vdwg.mxu0
  %3429 = vmatpush.bf16.msra.mxu0 %v1815
  %3430 = vmatpush.bf16.msra.mxu0 %v1811
  %3431 = vmatpush.bf16.msra.mxu0 %v1807
  %3432 = vmatpush.bf16.msra.mxu0 %v1803
  %3433 = vmatpush.bf16.msra.mxu0 %v1799
  %3434 = vmatpush.bf16.msra.mxu0 %v1795
  %3435 = vmatpush.bf16.msra.mxu0 %v1791
  %3436 = vmatpush.bf16.msra.mxu0 %v1787
  %3437 = vmatmul.bf16.gmra.mxu0 %v3077
  %v3438 = vpop.f32.mrf.mxu0
  %v3439 = vadd.f32 %v3426, %v3438
  %v3440 = vpop.f32.mrf.mxu0
  %3441 = vdwg.mxu0
  %3442 = vmatpush.bf16.msra.mxu0 %v1784
  %3443 = vmatpush.bf16.msra.mxu0 %v1780
  %3444 = vmatpush.bf16.msra.mxu0 %v1776
  %3445 = vmatpush.bf16.msra.mxu0 %v1772
  %3446 = vmatpush.bf16.msra.mxu0 %v1768
  %3447 = vmatpush.bf16.msra.mxu0 %v1764
  %3448 = vmatpush.bf16.msra.mxu0 %v1760
  %3449 = vmatpush.bf16.msra.mxu0 %v1756
  %3450 = vmatmul.bf16.gmra.mxu0 %v3076
  %v3451 = vpop.f32.mrf.mxu0
  %v3452 = vadd.f32 0.0, %v3451
  %v3453 = vpop.f32.mrf.mxu0
  %3454 = vdwg.mxu0
  %3455 = vmatpush.bf16.msra.mxu0 %v1816
  %3456 = vmatpush.bf16.msra.mxu0 %v1812
  %3457 = vmatpush.bf16.msra.mxu0 %v1808
  %3458 = vmatpush.bf16.msra.mxu0 %v1804
  %3459 = vmatpush.bf16.msra.mxu0 %v1800
  %3460 = vmatpush.bf16.msra.mxu0 %v1796
  %3461 = vmatpush.bf16.msra.mxu0 %v1792
  %3462 = vmatpush.bf16.msra.mxu0 %v1788
  %3463 = vmatmul.bf16.gmra.mxu0 %v3077
  %v3464 = vpop.f32.mrf.mxu0
  %v3465 = vadd.f32 %v3452, %v3464
  %v3466 = vpop.f32.mrf.mxu0
  %3467 = vdwg.mxu0
  %3468 = vmatpush.bf16.msra.mxu0 %v1785
  %3469 = vmatpush.bf16.msra.mxu0 %v1781
  %3470 = vmatpush.bf16.msra.mxu0 %v1777
  %3471 = vmatpush.bf16.msra.mxu0 %v1773
  %3472 = vmatpush.bf16.msra.mxu0 %v1769
  %3473 = vmatpush.bf16.msra.mxu0 %v1765
  %3474 = vmatpush.bf16.msra.mxu0 %v1761
  %3475 = vmatpush.bf16.msra.mxu0 %v1757
  %3476 = vmatmul.bf16.gmra.mxu0 %v3076
  %v3477 = vpop.f32.mrf.mxu0
  %v3478 = vadd.f32 0.0, %v3477
  %v3479 = vpop.f32.mrf.mxu0
  %3480 = vdwg.mxu0
  %3481 = vmatpush.bf16.msra.mxu0 %v1817
  %3482 = vmatpush.bf16.msra.mxu0 %v1813
  %3483 = vmatpush.bf16.msra.mxu0 %v1809
  %3484 = vmatpush.bf16.msra.mxu0 %v1805
  %3485 = vmatpush.bf16.msra.mxu0 %v1801
  %3486 = vmatpush.bf16.msra.mxu0 %v1797
  %3487 = vmatpush.bf16.msra.mxu0 %v1793
  %3488 = vmatpush.bf16.msra.mxu0 %v1789
  %3489 = vmatmul.bf16.gmra.mxu0 %v3077
  %v3490 = vpop.f32.mrf.mxu0
  %v3491 = vadd.f32 %v3478, %v3490
  %v3492 = vpop.f32.mrf.mxu0
  %3493 = vdwg.mxu0
  %3494 = vmatpush.bf16.msra.mxu0 %v2271
  %3495 = vmatpush.bf16.msra.mxu0 %v2267
  %3496 = vmatpush.bf16.msra.mxu0 %v2263
  %3497 = vmatpush.bf16.msra.mxu0 %v2259
  %3498 = vmatpush.bf16.msra.mxu0 %v2255
  %3499 = vmatpush.bf16.msra.mxu0 %v2251
  %3500 = vmatpush.bf16.msra.mxu0 %v2247
  %3501 = vmatpush.bf16.msra.mxu0 %v2243
  %3502 = vmatmul.bf16.gmra.mxu0 %v3076
  %v3503 = vpop.f32.mrf.mxu0
  %v3504 = vadd.f32 0.0, %v3503
  %v3505 = vpop.f32.mrf.mxu0
  %3506 = vdwg.mxu0
  %3507 = vmatpush.bf16.msra.mxu0 %v2303
  %3508 = vmatpush.bf16.msra.mxu0 %v2299
  %3509 = vmatpush.bf16.msra.mxu0 %v2295
  %3510 = vmatpush.bf16.msra.mxu0 %v2291
  %3511 = vmatpush.bf16.msra.mxu0 %v2287
  %3512 = vmatpush.bf16.msra.mxu0 %v2283
  %3513 = vmatpush.bf16.msra.mxu0 %v2279
  %3514 = vmatpush.bf16.msra.mxu0 %v2275
  %3515 = vmatmul.bf16.gmra.mxu0 %v3077
  %v3516 = vpop.f32.mrf.mxu0
  %v3517 = vadd.f32 %v3504, %v3516
  %v3518 = vpop.f32.mrf.mxu0
  %3519 = vdwg.mxu0
  %3520 = vmatpush.bf16.msra.mxu0 %v2272
  %3521 = vmatpush.bf16.msra.mxu0 %v2268
  %3522 = vmatpush.bf16.msra.mxu0 %v2264
  %3523 = vmatpush.bf16.msra.mxu0 %v2260
  %3524 = vmatpush.bf16.msra.mxu0 %v2256
  %3525 = vmatpush.bf16.msra.mxu0 %v2252
  %3526 = vmatpush.bf16.msra.mxu0 %v2248
  %3527 = vmatpush.bf16.msra.mxu0 %v2244
  %3528 = vmatmul.bf16.gmra.mxu0 %v3076
  %v3529 = vpop.f32.mrf.mxu0
  %v3530 = vadd.f32 0.0, %v3529
  %v3531 = vpop.f32.mrf.mxu0
  %3532 = vdwg.mxu0
  %3533 = vmatpush.bf16.msra.mxu0 %v2304
  %3534 = vmatpush.bf16.msra.mxu0 %v2300
  %3535 = vmatpush.bf16.msra.mxu0 %v2296
  %3536 = vmatpush.bf16.msra.mxu0 %v2292
  %3537 = vmatpush.bf16.msra.mxu0 %v2288
  %3538 = vmatpush.bf16.msra.mxu0 %v2284
  %3539 = vmatpush.bf16.msra.mxu0 %v2280
  %3540 = vmatpush.bf16.msra.mxu0 %v2276
  %3541 = vmatmul.bf16.gmra.mxu0 %v3077
  %v3542 = vpop.f32.mrf.mxu0
  %v3543 = vadd.f32 %v3530, %v3542
  %v3544 = vpop.f32.mrf.mxu0
  %3545 = vdwg.mxu0
  %3546 = vmatpush.bf16.msra.mxu0 %v2273
  %3547 = vmatpush.bf16.msra.mxu0 %v2269
  %3548 = vmatpush.bf16.msra.mxu0 %v2265
  %3549 = vmatpush.bf16.msra.mxu0 %v2261
  %3550 = vmatpush.bf16.msra.mxu0 %v2257
  %3551 = vmatpush.bf16.msra.mxu0 %v2253
  %3552 = vmatpush.bf16.msra.mxu0 %v2249
  %3553 = vmatpush.bf16.msra.mxu0 %v2245
  %3554 = vmatmul.bf16.gmra.mxu0 %v3076
  %v3555 = vpop.f32.mrf.mxu0
  %v3556 = vadd.f32 0.0, %v3555
  %v3557 = vpop.f32.mrf.mxu0
  %3558 = vdwg.mxu0
  %3559 = vmatpush.bf16.msra.mxu0 %v2305
  %3560 = vmatpush.bf16.msra.mxu0 %v2301
  %3561 = vmatpush.bf16.msra.mxu0 %v2297
  %3562 = vmatpush.bf16.msra.mxu0 %v2293
  %3563 = vmatpush.bf16.msra.mxu0 %v2289
  %3564 = vmatpush.bf16.msra.mxu0 %v2285
  %3565 = vmatpush.bf16.msra.mxu0 %v2281
  %3566 = vmatpush.bf16.msra.mxu0 %v2277
  %3567 = vmatmul.bf16.gmra.mxu0 %v3077
  %v3568 = vpop.f32.mrf.mxu0
  %v3569 = vadd.f32 %v3556, %v3568
  %v3570 = vpop.f32.mrf.mxu0
  %3571 = vdwg.mxu0
  %3572 = vmatpush.bf16.msra.mxu0 %v2274
  %3573 = vmatpush.bf16.msra.mxu0 %v2270
  %3574 = vmatpush.bf16.msra.mxu0 %v2266
  %3575 = vmatpush.bf16.msra.mxu0 %v2262
  %3576 = vmatpush.bf16.msra.mxu0 %v2258
  %3577 = vmatpush.bf16.msra.mxu0 %v2254
  %3578 = vmatpush.bf16.msra.mxu0 %v2250
  %3579 = vmatpush.bf16.msra.mxu0 %v2246
  %3580 = vmatmul.bf16.gmra.mxu0 %v3076
  %v3581 = vpop.f32.mrf.mxu0
  %v3582 = vadd.f32 0.0, %v3581
  %v3583 = vpop.f32.mrf.mxu0
  %3584 = vdwg.mxu0
  %3585 = vmatpush.bf16.msra.mxu0 %v2306
  %3586 = vmatpush.bf16.msra.mxu0 %v2302
  %3587 = vmatpush.bf16.msra.mxu0 %v2298
  %3588 = vmatpush.bf16.msra.mxu0 %v2294
  %3589 = vmatpush.bf16.msra.mxu0 %v2290
  %3590 = vmatpush.bf16.msra.mxu0 %v2286
  %3591 = vmatpush.bf16.msra.mxu0 %v2282
  %3592 = vmatpush.bf16.msra.mxu0 %v2278
  %3593 = vmatmul.bf16.gmra.mxu0 %v3077
  %v3594 = vpop.f32.mrf.mxu0
  %v3595 = vadd.f32 %v3582, %v3594
  %v3596 = vpop.f32.mrf.mxu0
  %3597 = vdwg.mxu0
  %3598 = vmatpush.bf16.msra.mxu0 %v2760
  %3599 = vmatpush.bf16.msra.mxu0 %v2756
  %3600 = vmatpush.bf16.msra.mxu0 %v2752
  %3601 = vmatpush.bf16.msra.mxu0 %v2748
  %3602 = vmatpush.bf16.msra.mxu0 %v2744
  %3603 = vmatpush.bf16.msra.mxu0 %v2740
  %3604 = vmatpush.bf16.msra.mxu0 %v2736
  %3605 = vmatpush.bf16.msra.mxu0 %v2732
  %3606 = vmatmul.bf16.gmra.mxu0 %v3076
  %v3607 = vpop.f32.mrf.mxu0
  %v3608 = vadd.f32 0.0, %v3607
  %v3609 = vpop.f32.mrf.mxu0
  %3610 = vdwg.mxu0
  %3611 = vmatpush.bf16.msra.mxu0 %v2792
  %3612 = vmatpush.bf16.msra.mxu0 %v2788
  %3613 = vmatpush.bf16.msra.mxu0 %v2784
  %3614 = vmatpush.bf16.msra.mxu0 %v2780
  %3615 = vmatpush.bf16.msra.mxu0 %v2776
  %3616 = vmatpush.bf16.msra.mxu0 %v2772
  %3617 = vmatpush.bf16.msra.mxu0 %v2768
  %3618 = vmatpush.bf16.msra.mxu0 %v2764
  %3619 = vmatmul.bf16.gmra.mxu0 %v3077
  %v3620 = vpop.f32.mrf.mxu0
  %v3621 = vadd.f32 %v3608, %v3620
  %v3622 = vpop.f32.mrf.mxu0
  %3623 = vdwg.mxu0
  %3624 = vmatpush.bf16.msra.mxu0 %v2761
  %3625 = vmatpush.bf16.msra.mxu0 %v2757
  %3626 = vmatpush.bf16.msra.mxu0 %v2753
  %3627 = vmatpush.bf16.msra.mxu0 %v2749
  %3628 = vmatpush.bf16.msra.mxu0 %v2745
  %3629 = vmatpush.bf16.msra.mxu0 %v2741
  %3630 = vmatpush.bf16.msra.mxu0 %v2737
  %3631 = vmatpush.bf16.msra.mxu0 %v2733
  %3632 = vmatmul.bf16.gmra.mxu0 %v3076
  %v3633 = vpop.f32.mrf.mxu0
  %v3634 = vadd.f32 0.0, %v3633
  %v3635 = vpop.f32.mrf.mxu0
  %3636 = vdwg.mxu0
  %3637 = vmatpush.bf16.msra.mxu0 %v2793
  %3638 = vmatpush.bf16.msra.mxu0 %v2789
  %3639 = vmatpush.bf16.msra.mxu0 %v2785
  %3640 = vmatpush.bf16.msra.mxu0 %v2781
  %3641 = vmatpush.bf16.msra.mxu0 %v2777
  %3642 = vmatpush.bf16.msra.mxu0 %v2773
  %3643 = vmatpush.bf16.msra.mxu0 %v2769
  %3644 = vmatpush.bf16.msra.mxu0 %v2765
  %3645 = vmatmul.bf16.gmra.mxu0 %v3077
  %v3646 = vpop.f32.mrf.mxu0
  %v3647 = vadd.f32 %v3634, %v3646
  %v3648 = vpop.f32.mrf.mxu0
  %3649 = vdwg.mxu0
  %3650 = vmatpush.bf16.msra.mxu0 %v2762
  %3651 = vmatpush.bf16.msra.mxu0 %v2758
  %3652 = vmatpush.bf16.msra.mxu0 %v2754
  %3653 = vmatpush.bf16.msra.mxu0 %v2750
  %3654 = vmatpush.bf16.msra.mxu0 %v2746
  %3655 = vmatpush.bf16.msra.mxu0 %v2742
  %3656 = vmatpush.bf16.msra.mxu0 %v2738
  %3657 = vmatpush.bf16.msra.mxu0 %v2734
  %3658 = vmatmul.bf16.gmra.mxu0 %v3076
  %v3659 = vpop.f32.mrf.mxu0
  %v3660 = vadd.f32 0.0, %v3659
  %v3661 = vpop.f32.mrf.mxu0
  %3662 = vdwg.mxu0
  %3663 = vmatpush.bf16.msra.mxu0 %v2794
  %3664 = vmatpush.bf16.msra.mxu0 %v2790
  %3665 = vmatpush.bf16.msra.mxu0 %v2786
  %3666 = vmatpush.bf16.msra.mxu0 %v2782
  %3667 = vmatpush.bf16.msra.mxu0 %v2778
  %3668 = vmatpush.bf16.msra.mxu0 %v2774
  %3669 = vmatpush.bf16.msra.mxu0 %v2770
  %3670 = vmatpush.bf16.msra.mxu0 %v2766
  %3671 = vmatmul.bf16.gmra.mxu0 %v3077
  %v3672 = vpop.f32.mrf.mxu0
  %v3673 = vadd.f32 %v3660, %v3672
  %v3674 = vpop.f32.mrf.mxu0
  %3675 = vdwg.mxu0
  %3676 = vmatpush.bf16.msra.mxu0 %v2763
  %3677 = vmatpush.bf16.msra.mxu0 %v2759
  %3678 = vmatpush.bf16.msra.mxu0 %v2755
  %3679 = vmatpush.bf16.msra.mxu0 %v2751
  %3680 = vmatpush.bf16.msra.mxu0 %v2747
  %3681 = vmatpush.bf16.msra.mxu0 %v2743
  %3682 = vmatpush.bf16.msra.mxu0 %v2739
  %3683 = vmatpush.bf16.msra.mxu0 %v2735
  %3684 = vmatmul.bf16.gmra.mxu0 %v3076
  %v3685 = vpop.f32.mrf.mxu0
  %v3686 = vadd.f32 0.0, %v3685
  %v3687 = vpop.f32.mrf.mxu0
  %3688 = vdwg.mxu0
  %3689 = vmatpush.bf16.msra.mxu0 %v2795
  %3690 = vmatpush.bf16.msra.mxu0 %v2791
  %3691 = vmatpush.bf16.msra.mxu0 %v2787
  %3692 = vmatpush.bf16.msra.mxu0 %v2783
  %3693 = vmatpush.bf16.msra.mxu0 %v2779
  %3694 = vmatpush.bf16.msra.mxu0 %v2775
  %3695 = vmatpush.bf16.msra.mxu0 %v2771
  %3696 = vmatpush.bf16.msra.mxu0 %v2767
  %3697 = vmatmul.bf16.gmra.mxu0 %v3077
  %v3698 = vpop.f32.mrf.mxu0
  %v3699 = vadd.f32 %v3686, %v3698
  %v3700 = vpop.f32.mrf.mxu0
  %3701 = vdwg.mxu0
  %v3702 = vsel %vm2964, %v3205, %v3101
  %v3703 = vsel %vm2964, %v3231, %v3127
  %v3704 = vsel %vm2964, %v3257, %v3153
  %v3705 = vsel %vm2964, %v3283, %v3179
  %v3706 = vsel %vm2969, %v3413, %v3309
  %v3707 = vsel %vm2969, %v3439, %v3335
  %v3708 = vsel %vm2969, %v3465, %v3361
  %v3709 = vsel %vm2969, %v3491, %v3387
  %v3710 = vsel %vm2974, %v3621, %v3517
  %v3711 = vsel %vm2974, %v3647, %v3543
  %v3712 = vsel %vm2974, %v3673, %v3569
  %v3713 = vsel %vm2974, %v3699, %v3595
  %v3714 = vsel %vm2980, %v3706, %v3702
  %v3715 = vsel %vm2980, %v3707, %v3703
  %v3716 = vsel %vm2980, %v3708, %v3704
  %v3717 = vsel %vm2980, %v3709, %v3705
  %v3718 = vsel %vm2979, %v3710, %v3714
  %v3719 = vsel %vm2979, %v3711, %v3715
  %v3720 = vsel %vm2979, %v3712, %v3716
  %v3721 = vsel %vm2979, %v3713, %v3717
  %v3722 = vadd.f32 %v3718, %v2989
  %v3723 = vadd.f32 %v3719, %v2990
  %v3724 = vadd.f32 %v3720, %v2991
  %v3725 = vadd.f32 %v3721, %v2992
  %v3726 = vxor.u32 %v3722, 2147483648
  %v3727 = vxor.u32 %v3723, 2147483648
  %v3728 = vxor.u32 %v3724, 2147483648
  %v3729 = vmul.f32 %v3726, 1.442695
  %v3730 = vpow.pop %v3729
  %v3731 = vmul.f32 %v3727, 1.442695
  %v3732 = vpow.pop %v3731
  %v3733 = vmul.f32 %v3728, 1.442695
  %v3734 = vpow.pop %v3733
  %v3735 = vadd.f32 %v3730, 1.0
  %v3736 = vadd.f32 %v3732, 1.0
  %v3737 = vadd.f32 %v3734, 1.0
  %v3738 = vrcp.pop %v3735
  %v3739 = vmul.f32 %v3735, %v3738
  %v3740 = vsub.f32 1.0, %v3739
  %v3741 = vmul.f32 %v3738, %v3740
  %v3742 = vadd.f32 %v3738, %v3741
  %vm3743 = vweird.f32 %v3735
  %vm3744 = vweird.f32 %v3738
  %vm3745 = vmor %vm3743, %vm3744
  %v3746 = vsel %vm3745, %v3738, %v3742
  %v3747 = vand.u32 2147483647, %v3735
  %vm3748 = vcmp.eq.f32.partialorder %v3747, 8.507059e+37
  %v3749 = vand.u32 %v3735, 2147483648
  %v3750 = vor.u32 1.1754944e-38, %v3749
  %v3751 = vsel %vm3748, %v3750, %v3746
  %v3752 = vmul.f32 1.0, %v3751
  %v3753 = vrcp.pop %v3736
  %v3754 = vmul.f32 %v3736, %v3753
  %v3755 = vsub.f32 1.0, %v3754
  %v3756 = vmul.f32 %v3753, %v3755
  %v3757 = vadd.f32 %v3753, %v3756
  %vm3758 = vweird.f32 %v3736
  %vm3759 = vweird.f32 %v3753
  %vm3760 = vmor %vm3758, %vm3759
  %v3761 = vsel %vm3760, %v3753, %v3757
  %v3762 = vand.u32 2147483647, %v3736
  %vm3763 = vcmp.eq.f32.partialorder %v3762, 8.507059e+37
  %v3764 = vand.u32 %v3736, 2147483648
  %v3765 = vor.u32 1.1754944e-38, %v3764
  %v3766 = vsel %vm3763, %v3765, %v3761
  %v3767 = vmul.f32 1.0, %v3766
  %v3768 = vrcp.pop %v3737
  %v3769 = vmul.f32 %v3737, %v3768
  %v3770 = vsub.f32 1.0, %v3769
  %v3771 = vmul.f32 %v3768, %v3770
  %v3772 = vadd.f32 %v3768, %v3771
  %vm3773 = vweird.f32 %v3737
  %vm3774 = vweird.f32 %v3768
  %vm3775 = vmor %vm3773, %vm3774
  %v3776 = vsel %vm3775, %v3768, %v3772
  %v3777 = vand.u32 2147483647, %v3737
  %vm3778 = vcmp.eq.f32.partialorder %v3777, 8.507059e+37
  %v3779 = vand.u32 %v3737, 2147483648
  %v3780 = vor.u32 1.1754944e-38, %v3779
  %v3781 = vsel %vm3778, %v3780, %v3776
  %v3782 = vmul.f32 1.0, %v3781
  %v3783 = vtanh.pop %v3725
  %v3784 = vmul.f32 %v3767, %v3057
  %v3785 = vmul.f32 %v3752, %v3783
  %v3786 = vadd.f32 %v3784, %v3785
  %v3787 = vtanh.pop %v3786
  %v3788 = vmul.f32 %v3782, %v3787
  %vm3789 = vcmp.eq.s32.totalorder %v27, 1
  %v3790 = vperm.slane %v3788, 0
  %v3791 = vsel %vm3789, %v3790, %v3062
  %vm3792 = vcmp.eq.s32.totalorder %v27, 6
  %v3793 = vperm.slane %v3788, 1
  %v3794 = vsel %vm3792, %v3793, %v3065
  %v3795 = vperm.slane %v3788, 2
  %v3796 = vsel %vm3789, %v3795, %v3067
  %v3797 = vperm.slane %v3788, 3
  %v3798 = vsel %vm3792, %v3797, %v3069
  %v3799 = vperm.slane %v3788, 4
  %v3800 = vsel %vm3789, %v3799, %v3071
  %v3801 = vperm.slane %v3788, 5
  %v3802 = vsel %vm3792, %v3801, %v3073
  %s3803 = scalar_lea.vmem %s0, 16
  %v3804 = vld [vmem:[%s3803] sm:$0xff]
  %v3805 = vpack.c.bf16 %v3788, %v3788
  %v3806 = vpack.c.bf16 %v3804, %v3804
  %3807 = vmatpush.bf16.msra.mxu0 %v315
  %3808 = vmatpush.bf16.msra.mxu0 %v311
  %3809 = vmatpush.bf16.msra.mxu0 %v307
  %3810 = vmatpush.bf16.msra.mxu0 %v303
  %3811 = vmatpush.bf16.msra.mxu0 %v299
  %3812 = vmatpush.bf16.msra.mxu0 %v295
  %3813 = vmatpush.bf16.msra.mxu0 %v291
  %3814 = vmatpush.bf16.msra.mxu0 %v287
  %3815 = vmatmul.bf16.gmra.mxu0 %v3805
  %v3816 = vpop.f32.mrf.mxu0
  %v3817 = vadd.f32 0.0, %v3816
  %v3818 = vpop.f32.mrf.mxu0
  %3819 = vdwg.mxu0
  %3820 = vmatpush.bf16.msra.mxu0 %v347
  %3821 = vmatpush.bf16.msra.mxu0 %v343
  %3822 = vmatpush.bf16.msra.mxu0 %v339
  %3823 = vmatpush.bf16.msra.mxu0 %v335
  %3824 = vmatpush.bf16.msra.mxu0 %v331
  %3825 = vmatpush.bf16.msra.mxu0 %v327
  %3826 = vmatpush.bf16.msra.mxu0 %v323
  %3827 = vmatpush.bf16.msra.mxu0 %v319
  %3828 = vmatmul.bf16.gmra.mxu0 %v3806
  %v3829 = vpop.f32.mrf.mxu0
  %v3830 = vadd.f32 %v3817, %v3829
  %v3831 = vpop.f32.mrf.mxu0
  %3832 = vdwg.mxu0
  %3833 = vmatpush.bf16.msra.mxu0 %v316
  %3834 = vmatpush.bf16.msra.mxu0 %v312
  %3835 = vmatpush.bf16.msra.mxu0 %v308
  %3836 = vmatpush.bf16.msra.mxu0 %v304
  %3837 = vmatpush.bf16.msra.mxu0 %v300
  %3838 = vmatpush.bf16.msra.mxu0 %v296
  %3839 = vmatpush.bf16.msra.mxu0 %v292
  %3840 = vmatpush.bf16.msra.mxu0 %v288
  %3841 = vmatmul.bf16.gmra.mxu0 %v3805
  %v3842 = vpop.f32.mrf.mxu0
  %v3843 = vadd.f32 0.0, %v3842
  %v3844 = vpop.f32.mrf.mxu0
  %3845 = vdwg.mxu0
  %3846 = vmatpush.bf16.msra.mxu0 %v348
  %3847 = vmatpush.bf16.msra.mxu0 %v344
  %3848 = vmatpush.bf16.msra.mxu0 %v340
  %3849 = vmatpush.bf16.msra.mxu0 %v336
  %3850 = vmatpush.bf16.msra.mxu0 %v332
  %3851 = vmatpush.bf16.msra.mxu0 %v328
  %3852 = vmatpush.bf16.msra.mxu0 %v324
  %3853 = vmatpush.bf16.msra.mxu0 %v320
  %3854 = vmatmul.bf16.gmra.mxu0 %v3806
  %v3855 = vpop.f32.mrf.mxu0
  %v3856 = vadd.f32 %v3843, %v3855
  %v3857 = vpop.f32.mrf.mxu0
  %3858 = vdwg.mxu0
  %3859 = vmatpush.bf16.msra.mxu0 %v317
  %3860 = vmatpush.bf16.msra.mxu0 %v313
  %3861 = vmatpush.bf16.msra.mxu0 %v309
  %3862 = vmatpush.bf16.msra.mxu0 %v305
  %3863 = vmatpush.bf16.msra.mxu0 %v301
  %3864 = vmatpush.bf16.msra.mxu0 %v297
  %3865 = vmatpush.bf16.msra.mxu0 %v293
  %3866 = vmatpush.bf16.msra.mxu0 %v289
  %3867 = vmatmul.bf16.gmra.mxu0 %v3805
  %v3868 = vpop.f32.mrf.mxu0
  %v3869 = vadd.f32 0.0, %v3868
  %v3870 = vpop.f32.mrf.mxu0
  %3871 = vdwg.mxu0
  %3872 = vmatpush.bf16.msra.mxu0 %v349
  %3873 = vmatpush.bf16.msra.mxu0 %v345
  %3874 = vmatpush.bf16.msra.mxu0 %v341
  %3875 = vmatpush.bf16.msra.mxu0 %v337
  %3876 = vmatpush.bf16.msra.mxu0 %v333
  %3877 = vmatpush.bf16.msra.mxu0 %v329
  %3878 = vmatpush.bf16.msra.mxu0 %v325
  %3879 = vmatpush.bf16.msra.mxu0 %v321
  %3880 = vmatmul.bf16.gmra.mxu0 %v3806
  %v3881 = vpop.f32.mrf.mxu0
  %v3882 = vadd.f32 %v3869, %v3881
  %v3883 = vpop.f32.mrf.mxu0
  %3884 = vdwg.mxu0
  %3885 = vmatpush.bf16.msra.mxu0 %v318
  %3886 = vmatpush.bf16.msra.mxu0 %v314
  %3887 = vmatpush.bf16.msra.mxu0 %v310
  %3888 = vmatpush.bf16.msra.mxu0 %v306
  %3889 = vmatpush.bf16.msra.mxu0 %v302
  %3890 = vmatpush.bf16.msra.mxu0 %v298
  %3891 = vmatpush.bf16.msra.mxu0 %v294
  %3892 = vmatpush.bf16.msra.mxu0 %v290
  %3893 = vmatmul.bf16.gmra.mxu0 %v3805
  %v3894 = vpop.f32.mrf.mxu0
  %v3895 = vadd.f32 0.0, %v3894
  %v3896 = vpop.f32.mrf.mxu0
  %3897 = vdwg.mxu0
  %3898 = vmatpush.bf16.msra.mxu0 %v350
  %3899 = vmatpush.bf16.msra.mxu0 %v346
  %3900 = vmatpush.bf16.msra.mxu0 %v342
  %3901 = vmatpush.bf16.msra.mxu0 %v338
  %3902 = vmatpush.bf16.msra.mxu0 %v334
  %3903 = vmatpush.bf16.msra.mxu0 %v330
  %3904 = vmatpush.bf16.msra.mxu0 %v326
  %3905 = vmatpush.bf16.msra.mxu0 %v322
  %3906 = vmatmul.bf16.gmra.mxu0 %v3806
  %v3907 = vpop.f32.mrf.mxu0
  %v3908 = vadd.f32 %v3895, %v3907
  %v3909 = vpop.f32.mrf.mxu0
  %3910 = vdwg.mxu0
  %3911 = vmatpush.bf16.msra.mxu0 %v804
  %3912 = vmatpush.bf16.msra.mxu0 %v800
  %3913 = vmatpush.bf16.msra.mxu0 %v796
  %3914 = vmatpush.bf16.msra.mxu0 %v792
  %3915 = vmatpush.bf16.msra.mxu0 %v788
  %3916 = vmatpush.bf16.msra.mxu0 %v784
  %3917 = vmatpush.bf16.msra.mxu0 %v780
  %3918 = vmatpush.bf16.msra.mxu0 %v776
  %3919 = vmatmul.bf16.gmra.mxu0 %v3805
  %v3920 = vpop.f32.mrf.mxu0
  %v3921 = vadd.f32 0.0, %v3920
  %v3922 = vpop.f32.mrf.mxu0
  %3923 = vdwg.mxu0
  %3924 = vmatpush.bf16.msra.mxu0 %v836
  %3925 = vmatpush.bf16.msra.mxu0 %v832
  %3926 = vmatpush.bf16.msra.mxu0 %v828
  %3927 = vmatpush.bf16.msra.mxu0 %v824
  %3928 = vmatpush.bf16.msra.mxu0 %v820
  %3929 = vmatpush.bf16.msra.mxu0 %v816
  %3930 = vmatpush.bf16.msra.mxu0 %v812
  %3931 = vmatpush.bf16.msra.mxu0 %v808
  %3932 = vmatmul.bf16.gmra.mxu0 %v3806
  %v3933 = vpop.f32.mrf.mxu0
  %v3934 = vadd.f32 %v3921, %v3933
  %v3935 = vpop.f32.mrf.mxu0
  %3936 = vdwg.mxu0
  %3937 = vmatpush.bf16.msra.mxu0 %v805
  %3938 = vmatpush.bf16.msra.mxu0 %v801
  %3939 = vmatpush.bf16.msra.mxu0 %v797
  %3940 = vmatpush.bf16.msra.mxu0 %v793
  %3941 = vmatpush.bf16.msra.mxu0 %v789
  %3942 = vmatpush.bf16.msra.mxu0 %v785
  %3943 = vmatpush.bf16.msra.mxu0 %v781
  %3944 = vmatpush.bf16.msra.mxu0 %v777
  %3945 = vmatmul.bf16.gmra.mxu0 %v3805
  %v3946 = vpop.f32.mrf.mxu0
  %v3947 = vadd.f32 0.0, %v3946
  %v3948 = vpop.f32.mrf.mxu0
  %3949 = vdwg.mxu0
  %3950 = vmatpush.bf16.msra.mxu0 %v837
  %3951 = vmatpush.bf16.msra.mxu0 %v833
  %3952 = vmatpush.bf16.msra.mxu0 %v829
  %3953 = vmatpush.bf16.msra.mxu0 %v825
  %3954 = vmatpush.bf16.msra.mxu0 %v821
  %3955 = vmatpush.bf16.msra.mxu0 %v817
  %3956 = vmatpush.bf16.msra.mxu0 %v813
  %3957 = vmatpush.bf16.msra.mxu0 %v809
  %3958 = vmatmul.bf16.gmra.mxu0 %v3806
  %v3959 = vpop.f32.mrf.mxu0
  %v3960 = vadd.f32 %v3947, %v3959
  %v3961 = vpop.f32.mrf.mxu0
  %3962 = vdwg.mxu0
  %3963 = vmatpush.bf16.msra.mxu0 %v806
  %3964 = vmatpush.bf16.msra.mxu0 %v802
  %3965 = vmatpush.bf16.msra.mxu0 %v798
  %3966 = vmatpush.bf16.msra.mxu0 %v794
  %3967 = vmatpush.bf16.msra.mxu0 %v790
  %3968 = vmatpush.bf16.msra.mxu0 %v786
  %3969 = vmatpush.bf16.msra.mxu0 %v782
  %3970 = vmatpush.bf16.msra.mxu0 %v778
  %3971 = vmatmul.bf16.gmra.mxu0 %v3805
  %v3972 = vpop.f32.mrf.mxu0
  %v3973 = vadd.f32 0.0, %v3972
  %v3974 = vpop.f32.mrf.mxu0
  %3975 = vdwg.mxu0
  %3976 = vmatpush.bf16.msra.mxu0 %v838
  %3977 = vmatpush.bf16.msra.mxu0 %v834
  %3978 = vmatpush.bf16.msra.mxu0 %v830
  %3979 = vmatpush.bf16.msra.mxu0 %v826
  %3980 = vmatpush.bf16.msra.mxu0 %v822
  %3981 = vmatpush.bf16.msra.mxu0 %v818
  %3982 = vmatpush.bf16.msra.mxu0 %v814
  %3983 = vmatpush.bf16.msra.mxu0 %v810
  %3984 = vmatmul.bf16.gmra.mxu0 %v3806
  %v3985 = vpop.f32.mrf.mxu0
  %v3986 = vadd.f32 %v3973, %v3985
  %v3987 = vpop.f32.mrf.mxu0
  %3988 = vdwg.mxu0
  %3989 = vmatpush.bf16.msra.mxu0 %v807
  %3990 = vmatpush.bf16.msra.mxu0 %v803
  %3991 = vmatpush.bf16.msra.mxu0 %v799
  %3992 = vmatpush.bf16.msra.mxu0 %v795
  %3993 = vmatpush.bf16.msra.mxu0 %v791
  %3994 = vmatpush.bf16.msra.mxu0 %v787
  %3995 = vmatpush.bf16.msra.mxu0 %v783
  %3996 = vmatpush.bf16.msra.mxu0 %v779
  %3997 = vmatmul.bf16.gmra.mxu0 %v3805
  %v3998 = vpop.f32.mrf.mxu0
  %v3999 = vadd.f32 0.0, %v3998
  %v4000 = vpop.f32.mrf.mxu0
  %4001 = vdwg.mxu0
  %4002 = vmatpush.bf16.msra.mxu0 %v839
  %4003 = vmatpush.bf16.msra.mxu0 %v835
  %4004 = vmatpush.bf16.msra.mxu0 %v831
  %4005 = vmatpush.bf16.msra.mxu0 %v827
  %4006 = vmatpush.bf16.msra.mxu0 %v823
  %4007 = vmatpush.bf16.msra.mxu0 %v819
  %4008 = vmatpush.bf16.msra.mxu0 %v815
  %4009 = vmatpush.bf16.msra.mxu0 %v811
  %4010 = vmatmul.bf16.gmra.mxu0 %v3806
  %v4011 = vpop.f32.mrf.mxu0
  %v4012 = vadd.f32 %v3999, %v4011
  %v4013 = vpop.f32.mrf.mxu0
  %4014 = vdwg.mxu0
  %4015 = vmatpush.bf16.msra.mxu0 %v1293
  %4016 = vmatpush.bf16.msra.mxu0 %v1289
  %4017 = vmatpush.bf16.msra.mxu0 %v1285
  %4018 = vmatpush.bf16.msra.mxu0 %v1281
  %4019 = vmatpush.bf16.msra.mxu0 %v1277
  %4020 = vmatpush.bf16.msra.mxu0 %v1273
  %4021 = vmatpush.bf16.msra.mxu0 %v1269
  %4022 = vmatpush.bf16.msra.mxu0 %v1265
  %4023 = vmatmul.bf16.gmra.mxu0 %v3805
  %v4024 = vpop.f32.mrf.mxu0
  %v4025 = vadd.f32 0.0, %v4024
  %v4026 = vpop.f32.mrf.mxu0
  %4027 = vdwg.mxu0
  %4028 = vmatpush.bf16.msra.mxu0 %v1325
  %4029 = vmatpush.bf16.msra.mxu0 %v1321
  %4030 = vmatpush.bf16.msra.mxu0 %v1317
  %4031 = vmatpush.bf16.msra.mxu0 %v1313
  %4032 = vmatpush.bf16.msra.mxu0 %v1309
  %4033 = vmatpush.bf16.msra.mxu0 %v1305
  %4034 = vmatpush.bf16.msra.mxu0 %v1301
  %4035 = vmatpush.bf16.msra.mxu0 %v1297
  %4036 = vmatmul.bf16.gmra.mxu0 %v3806
  %v4037 = vpop.f32.mrf.mxu0
  %v4038 = vadd.f32 %v4025, %v4037
  %v4039 = vpop.f32.mrf.mxu0
  %4040 = vdwg.mxu0
  %4041 = vmatpush.bf16.msra.mxu0 %v1294
  %4042 = vmatpush.bf16.msra.mxu0 %v1290
  %4043 = vmatpush.bf16.msra.mxu0 %v1286
  %4044 = vmatpush.bf16.msra.mxu0 %v1282
  %4045 = vmatpush.bf16.msra.mxu0 %v1278
  %4046 = vmatpush.bf16.msra.mxu0 %v1274
  %4047 = vmatpush.bf16.msra.mxu0 %v1270
  %4048 = vmatpush.bf16.msra.mxu0 %v1266
  %4049 = vmatmul.bf16.gmra.mxu0 %v3805
  %v4050 = vpop.f32.mrf.mxu0
  %v4051 = vadd.f32 0.0, %v4050
  %v4052 = vpop.f32.mrf.mxu0
  %4053 = vdwg.mxu0
  %4054 = vmatpush.bf16.msra.mxu0 %v1326
  %4055 = vmatpush.bf16.msra.mxu0 %v1322
  %4056 = vmatpush.bf16.msra.mxu0 %v1318
  %4057 = vmatpush.bf16.msra.mxu0 %v1314
  %4058 = vmatpush.bf16.msra.mxu0 %v1310
  %4059 = vmatpush.bf16.msra.mxu0 %v1306
  %4060 = vmatpush.bf16.msra.mxu0 %v1302
  %4061 = vmatpush.bf16.msra.mxu0 %v1298
  %4062 = vmatmul.bf16.gmra.mxu0 %v3806
  %v4063 = vpop.f32.mrf.mxu0
  %v4064 = vadd.f32 %v4051, %v4063
  %v4065 = vpop.f32.mrf.mxu0
  %4066 = vdwg.mxu0
  %4067 = vmatpush.bf16.msra.mxu0 %v1295
  %4068 = vmatpush.bf16.msra.mxu0 %v1291
  %4069 = vmatpush.bf16.msra.mxu0 %v1287
  %4070 = vmatpush.bf16.msra.mxu0 %v1283
  %4071 = vmatpush.bf16.msra.mxu0 %v1279
  %4072 = vmatpush.bf16.msra.mxu0 %v1275
  %4073 = vmatpush.bf16.msra.mxu0 %v1271
  %4074 = vmatpush.bf16.msra.mxu0 %v1267
  %4075 = vmatmul.bf16.gmra.mxu0 %v3805
  %v4076 = vpop.f32.mrf.mxu0
  %v4077 = vadd.f32 0.0, %v4076
  %v4078 = vpop.f32.mrf.mxu0
  %4079 = vdwg.mxu0
  %4080 = vmatpush.bf16.msra.mxu0 %v1327
  %4081 = vmatpush.bf16.msra.mxu0 %v1323
  %4082 = vmatpush.bf16.msra.mxu0 %v1319
  %4083 = vmatpush.bf16.msra.mxu0 %v1315
  %4084 = vmatpush.bf16.msra.mxu0 %v1311
  %4085 = vmatpush.bf16.msra.mxu0 %v1307
  %4086 = vmatpush.bf16.msra.mxu0 %v1303
  %4087 = vmatpush.bf16.msra.mxu0 %v1299
  %4088 = vmatmul.bf16.gmra.mxu0 %v3806
  %v4089 = vpop.f32.mrf.mxu0
  %v4090 = vadd.f32 %v4077, %v4089
  %v4091 = vpop.f32.mrf.mxu0
  %4092 = vdwg.mxu0
  %4093 = vmatpush.bf16.msra.mxu0 %v1296
  %4094 = vmatpush.bf16.msra.mxu0 %v1292
  %4095 = vmatpush.bf16.msra.mxu0 %v1288
  %4096 = vmatpush.bf16.msra.mxu0 %v1284
  %4097 = vmatpush.bf16.msra.mxu0 %v1280
  %4098 = vmatpush.bf16.msra.mxu0 %v1276
  %4099 = vmatpush.bf16.msra.mxu0 %v1272
  %4100 = vmatpush.bf16.msra.mxu0 %v1268
  %4101 = vmatmul.bf16.gmra.mxu0 %v3805
  %v4102 = vpop.f32.mrf.mxu0
  %v4103 = vadd.f32 0.0, %v4102
  %v4104 = vpop.f32.mrf.mxu0
  %4105 = vdwg.mxu0
  %4106 = vmatpush.bf16.msra.mxu0 %v1328
  %4107 = vmatpush.bf16.msra.mxu0 %v1324
  %4108 = vmatpush.bf16.msra.mxu0 %v1320
  %4109 = vmatpush.bf16.msra.mxu0 %v1316
  %4110 = vmatpush.bf16.msra.mxu0 %v1312
  %4111 = vmatpush.bf16.msra.mxu0 %v1308
  %4112 = vmatpush.bf16.msra.mxu0 %v1304
  %4113 = vmatpush.bf16.msra.mxu0 %v1300
  %4114 = vmatmul.bf16.gmra.mxu0 %v3806
  %v4115 = vpop.f32.mrf.mxu0
  %v4116 = vadd.f32 %v4103, %v4115
  %v4117 = vpop.f32.mrf.mxu0
  %4118 = vdwg.mxu0
  %4119 = vmatpush.bf16.msra.mxu0 %v1782
  %4120 = vmatpush.bf16.msra.mxu0 %v1778
  %4121 = vmatpush.bf16.msra.mxu0 %v1774
  %4122 = vmatpush.bf16.msra.mxu0 %v1770
  %4123 = vmatpush.bf16.msra.mxu0 %v1766
  %4124 = vmatpush.bf16.msra.mxu0 %v1762
  %4125 = vmatpush.bf16.msra.mxu0 %v1758
  %4126 = vmatpush.bf16.msra.mxu0 %v1754
  %4127 = vmatmul.bf16.gmra.mxu0 %v3805
  %v4128 = vpop.f32.mrf.mxu0
  %v4129 = vadd.f32 0.0, %v4128
  %v4130 = vpop.f32.mrf.mxu0
  %4131 = vdwg.mxu0
  %4132 = vmatpush.bf16.msra.mxu0 %v1814
  %4133 = vmatpush.bf16.msra.mxu0 %v1810
  %4134 = vmatpush.bf16.msra.mxu0 %v1806
  %4135 = vmatpush.bf16.msra.mxu0 %v1802
  %4136 = vmatpush.bf16.msra.mxu0 %v1798
  %4137 = vmatpush.bf16.msra.mxu0 %v1794
  %4138 = vmatpush.bf16.msra.mxu0 %v1790
  %4139 = vmatpush.bf16.msra.mxu0 %v1786
  %4140 = vmatmul.bf16.gmra.mxu0 %v3806
  %v4141 = vpop.f32.mrf.mxu0
  %v4142 = vadd.f32 %v4129, %v4141
  %v4143 = vpop.f32.mrf.mxu0
  %4144 = vdwg.mxu0
  %4145 = vmatpush.bf16.msra.mxu0 %v1783
  %4146 = vmatpush.bf16.msra.mxu0 %v1779
  %4147 = vmatpush.bf16.msra.mxu0 %v1775
  %4148 = vmatpush.bf16.msra.mxu0 %v1771
  %4149 = vmatpush.bf16.msra.mxu0 %v1767
  %4150 = vmatpush.bf16.msra.mxu0 %v1763
  %4151 = vmatpush.bf16.msra.mxu0 %v1759
  %4152 = vmatpush.bf16.msra.mxu0 %v1755
  %4153 = vmatmul.bf16.gmra.mxu0 %v3805
  %v4154 = vpop.f32.mrf.mxu0
  %v4155 = vadd.f32 0.0, %v4154
  %v4156 = vpop.f32.mrf.mxu0
  %4157 = vdwg.mxu0
  %4158 = vmatpush.bf16.msra.mxu0 %v1815
  %4159 = vmatpush.bf16.msra.mxu0 %v1811
  %4160 = vmatpush.bf16.msra.mxu0 %v1807
  %4161 = vmatpush.bf16.msra.mxu0 %v1803
  %4162 = vmatpush.bf16.msra.mxu0 %v1799
  %4163 = vmatpush.bf16.msra.mxu0 %v1795
  %4164 = vmatpush.bf16.msra.mxu0 %v1791
  %4165 = vmatpush.bf16.msra.mxu0 %v1787
  %4166 = vmatmul.bf16.gmra.mxu0 %v3806
  %v4167 = vpop.f32.mrf.mxu0
  %v4168 = vadd.f32 %v4155, %v4167
  %v4169 = vpop.f32.mrf.mxu0
  %4170 = vdwg.mxu0
  %4171 = vmatpush.bf16.msra.mxu0 %v1784
  %4172 = vmatpush.bf16.msra.mxu0 %v1780
  %4173 = vmatpush.bf16.msra.mxu0 %v1776
  %4174 = vmatpush.bf16.msra.mxu0 %v1772
  %4175 = vmatpush.bf16.msra.mxu0 %v1768
  %4176 = vmatpush.bf16.msra.mxu0 %v1764
  %4177 = vmatpush.bf16.msra.mxu0 %v1760
  %4178 = vmatpush.bf16.msra.mxu0 %v1756
  %4179 = vmatmul.bf16.gmra.mxu0 %v3805
  %v4180 = vpop.f32.mrf.mxu0
  %v4181 = vadd.f32 0.0, %v4180
  %v4182 = vpop.f32.mrf.mxu0
  %4183 = vdwg.mxu0
  %4184 = vmatpush.bf16.msra.mxu0 %v1816
  %4185 = vmatpush.bf16.msra.mxu0 %v1812
  %4186 = vmatpush.bf16.msra.mxu0 %v1808
  %4187 = vmatpush.bf16.msra.mxu0 %v1804
  %4188 = vmatpush.bf16.msra.mxu0 %v1800
  %4189 = vmatpush.bf16.msra.mxu0 %v1796
  %4190 = vmatpush.bf16.msra.mxu0 %v1792
  %4191 = vmatpush.bf16.msra.mxu0 %v1788
  %4192 = vmatmul.bf16.gmra.mxu0 %v3806
  %v4193 = vpop.f32.mrf.mxu0
  %v4194 = vadd.f32 %v4181, %v4193
  %v4195 = vpop.f32.mrf.mxu0
  %4196 = vdwg.mxu0
  %4197 = vmatpush.bf16.msra.mxu0 %v1785
  %4198 = vmatpush.bf16.msra.mxu0 %v1781
  %4199 = vmatpush.bf16.msra.mxu0 %v1777
  %4200 = vmatpush.bf16.msra.mxu0 %v1773
  %4201 = vmatpush.bf16.msra.mxu0 %v1769
  %4202 = vmatpush.bf16.msra.mxu0 %v1765
  %4203 = vmatpush.bf16.msra.mxu0 %v1761
  %4204 = vmatpush.bf16.msra.mxu0 %v1757
  %4205 = vmatmul.bf16.gmra.mxu0 %v3805
  %v4206 = vpop.f32.mrf.mxu0
  %v4207 = vadd.f32 0.0, %v4206
  %v4208 = vpop.f32.mrf.mxu0
  %4209 = vdwg.mxu0
  %4210 = vmatpush.bf16.msra.mxu0 %v1817
  %4211 = vmatpush.bf16.msra.mxu0 %v1813
  %4212 = vmatpush.bf16.msra.mxu0 %v1809
  %4213 = vmatpush.bf16.msra.mxu0 %v1805
  %4214 = vmatpush.bf16.msra.mxu0 %v1801
  %4215 = vmatpush.bf16.msra.mxu0 %v1797
  %4216 = vmatpush.bf16.msra.mxu0 %v1793
  %4217 = vmatpush.bf16.msra.mxu0 %v1789
  %4218 = vmatmul.bf16.gmra.mxu0 %v3806
  %v4219 = vpop.f32.mrf.mxu0
  %v4220 = vadd.f32 %v4207, %v4219
  %v4221 = vpop.f32.mrf.mxu0
  %4222 = vdwg.mxu0
  %4223 = vmatpush.bf16.msra.mxu0 %v2271
  %4224 = vmatpush.bf16.msra.mxu0 %v2267
  %4225 = vmatpush.bf16.msra.mxu0 %v2263
  %4226 = vmatpush.bf16.msra.mxu0 %v2259
  %4227 = vmatpush.bf16.msra.mxu0 %v2255
  %4228 = vmatpush.bf16.msra.mxu0 %v2251
  %4229 = vmatpush.bf16.msra.mxu0 %v2247
  %4230 = vmatpush.bf16.msra.mxu0 %v2243
  %4231 = vmatmul.bf16.gmra.mxu0 %v3805
  %v4232 = vpop.f32.mrf.mxu0
  %v4233 = vadd.f32 0.0, %v4232
  %v4234 = vpop.f32.mrf.mxu0
  %4235 = vdwg.mxu0
  %4236 = vmatpush.bf16.msra.mxu0 %v2303
  %4237 = vmatpush.bf16.msra.mxu0 %v2299
  %4238 = vmatpush.bf16.msra.mxu0 %v2295
  %4239 = vmatpush.bf16.msra.mxu0 %v2291
  %4240 = vmatpush.bf16.msra.mxu0 %v2287
  %4241 = vmatpush.bf16.msra.mxu0 %v2283
  %4242 = vmatpush.bf16.msra.mxu0 %v2279
  %4243 = vmatpush.bf16.msra.mxu0 %v2275
  %4244 = vmatmul.bf16.gmra.mxu0 %v3806
  %v4245 = vpop.f32.mrf.mxu0
  %v4246 = vadd.f32 %v4233, %v4245
  %v4247 = vpop.f32.mrf.mxu0
  %4248 = vdwg.mxu0
  %4249 = vmatpush.bf16.msra.mxu0 %v2272
  %4250 = vmatpush.bf16.msra.mxu0 %v2268
  %4251 = vmatpush.bf16.msra.mxu0 %v2264
  %4252 = vmatpush.bf16.msra.mxu0 %v2260
  %4253 = vmatpush.bf16.msra.mxu0 %v2256
  %4254 = vmatpush.bf16.msra.mxu0 %v2252
  %4255 = vmatpush.bf16.msra.mxu0 %v2248
  %4256 = vmatpush.bf16.msra.mxu0 %v2244
  %4257 = vmatmul.bf16.gmra.mxu0 %v3805
  %v4258 = vpop.f32.mrf.mxu0
  %v4259 = vadd.f32 0.0, %v4258
  %v4260 = vpop.f32.mrf.mxu0
  %4261 = vdwg.mxu0
  %4262 = vmatpush.bf16.msra.mxu0 %v2304
  %4263 = vmatpush.bf16.msra.mxu0 %v2300
  %4264 = vmatpush.bf16.msra.mxu0 %v2296
  %4265 = vmatpush.bf16.msra.mxu0 %v2292
  %4266 = vmatpush.bf16.msra.mxu0 %v2288
  %4267 = vmatpush.bf16.msra.mxu0 %v2284
  %4268 = vmatpush.bf16.msra.mxu0 %v2280
  %4269 = vmatpush.bf16.msra.mxu0 %v2276
  %4270 = vmatmul.bf16.gmra.mxu0 %v3806
  %v4271 = vpop.f32.mrf.mxu0
  %v4272 = vadd.f32 %v4259, %v4271
  %v4273 = vpop.f32.mrf.mxu0
  %4274 = vdwg.mxu0
  %4275 = vmatpush.bf16.msra.mxu0 %v2273
  %4276 = vmatpush.bf16.msra.mxu0 %v2269
  %4277 = vmatpush.bf16.msra.mxu0 %v2265
  %4278 = vmatpush.bf16.msra.mxu0 %v2261
  %4279 = vmatpush.bf16.msra.mxu0 %v2257
  %4280 = vmatpush.bf16.msra.mxu0 %v2253
  %4281 = vmatpush.bf16.msra.mxu0 %v2249
  %4282 = vmatpush.bf16.msra.mxu0 %v2245
  %4283 = vmatmul.bf16.gmra.mxu0 %v3805
  %v4284 = vpop.f32.mrf.mxu0
  %v4285 = vadd.f32 0.0, %v4284
  %v4286 = vpop.f32.mrf.mxu0
  %4287 = vdwg.mxu0
  %4288 = vmatpush.bf16.msra.mxu0 %v2305
  %4289 = vmatpush.bf16.msra.mxu0 %v2301
  %4290 = vmatpush.bf16.msra.mxu0 %v2297
  %4291 = vmatpush.bf16.msra.mxu0 %v2293
  %4292 = vmatpush.bf16.msra.mxu0 %v2289
  %4293 = vmatpush.bf16.msra.mxu0 %v2285
  %4294 = vmatpush.bf16.msra.mxu0 %v2281
  %4295 = vmatpush.bf16.msra.mxu0 %v2277
  %4296 = vmatmul.bf16.gmra.mxu0 %v3806
  %v4297 = vpop.f32.mrf.mxu0
  %v4298 = vadd.f32 %v4285, %v4297
  %v4299 = vpop.f32.mrf.mxu0
  %4300 = vdwg.mxu0
  %4301 = vmatpush.bf16.msra.mxu0 %v2274
  %4302 = vmatpush.bf16.msra.mxu0 %v2270
  %4303 = vmatpush.bf16.msra.mxu0 %v2266
  %4304 = vmatpush.bf16.msra.mxu0 %v2262
  %4305 = vmatpush.bf16.msra.mxu0 %v2258
  %4306 = vmatpush.bf16.msra.mxu0 %v2254
  %4307 = vmatpush.bf16.msra.mxu0 %v2250
  %4308 = vmatpush.bf16.msra.mxu0 %v2246
  %4309 = vmatmul.bf16.gmra.mxu0 %v3805
  %v4310 = vpop.f32.mrf.mxu0
  %v4311 = vadd.f32 0.0, %v4310
  %v4312 = vpop.f32.mrf.mxu0
  %4313 = vdwg.mxu0
  %4314 = vmatpush.bf16.msra.mxu0 %v2306
  %4315 = vmatpush.bf16.msra.mxu0 %v2302
  %4316 = vmatpush.bf16.msra.mxu0 %v2298
  %4317 = vmatpush.bf16.msra.mxu0 %v2294
  %4318 = vmatpush.bf16.msra.mxu0 %v2290
  %4319 = vmatpush.bf16.msra.mxu0 %v2286
  %4320 = vmatpush.bf16.msra.mxu0 %v2282
  %4321 = vmatpush.bf16.msra.mxu0 %v2278
  %4322 = vmatmul.bf16.gmra.mxu0 %v3806
  %v4323 = vpop.f32.mrf.mxu0
  %v4324 = vadd.f32 %v4311, %v4323
  %v4325 = vpop.f32.mrf.mxu0
  %4326 = vdwg.mxu0
  %4327 = vmatpush.bf16.msra.mxu0 %v2760
  %4328 = vmatpush.bf16.msra.mxu0 %v2756
  %4329 = vmatpush.bf16.msra.mxu0 %v2752
  %4330 = vmatpush.bf16.msra.mxu0 %v2748
  %4331 = vmatpush.bf16.msra.mxu0 %v2744
  %4332 = vmatpush.bf16.msra.mxu0 %v2740
  %4333 = vmatpush.bf16.msra.mxu0 %v2736
  %4334 = vmatpush.bf16.msra.mxu0 %v2732
  %4335 = vmatmul.bf16.gmra.mxu0 %v3805
  %v4336 = vpop.f32.mrf.mxu0
  %v4337 = vadd.f32 0.0, %v4336
  %v4338 = vpop.f32.mrf.mxu0
  %4339 = vdwg.mxu0
  %4340 = vmatpush.bf16.msra.mxu0 %v2792
  %4341 = vmatpush.bf16.msra.mxu0 %v2788
  %4342 = vmatpush.bf16.msra.mxu0 %v2784
  %4343 = vmatpush.bf16.msra.mxu0 %v2780
  %4344 = vmatpush.bf16.msra.mxu0 %v2776
  %4345 = vmatpush.bf16.msra.mxu0 %v2772
  %4346 = vmatpush.bf16.msra.mxu0 %v2768
  %4347 = vmatpush.bf16.msra.mxu0 %v2764
  %4348 = vmatmul.bf16.gmra.mxu0 %v3806
  %v4349 = vpop.f32.mrf.mxu0
  %v4350 = vadd.f32 %v4337, %v4349
  %v4351 = vpop.f32.mrf.mxu0
  %4352 = vdwg.mxu0
  %4353 = vmatpush.bf16.msra.mxu0 %v2761
  %4354 = vmatpush.bf16.msra.mxu0 %v2757
  %4355 = vmatpush.bf16.msra.mxu0 %v2753
  %4356 = vmatpush.bf16.msra.mxu0 %v2749
  %4357 = vmatpush.bf16.msra.mxu0 %v2745
  %4358 = vmatpush.bf16.msra.mxu0 %v2741
  %4359 = vmatpush.bf16.msra.mxu0 %v2737
  %4360 = vmatpush.bf16.msra.mxu0 %v2733
  %4361 = vmatmul.bf16.gmra.mxu0 %v3805
  %v4362 = vpop.f32.mrf.mxu0
  %v4363 = vadd.f32 0.0, %v4362
  %v4364 = vpop.f32.mrf.mxu0
  %4365 = vdwg.mxu0
  %4366 = vmatpush.bf16.msra.mxu0 %v2793
  %4367 = vmatpush.bf16.msra.mxu0 %v2789
  %4368 = vmatpush.bf16.msra.mxu0 %v2785
  %4369 = vmatpush.bf16.msra.mxu0 %v2781
  %4370 = vmatpush.bf16.msra.mxu0 %v2777
  %4371 = vmatpush.bf16.msra.mxu0 %v2773
  %4372 = vmatpush.bf16.msra.mxu0 %v2769
  %4373 = vmatpush.bf16.msra.mxu0 %v2765
  %4374 = vmatmul.bf16.gmra.mxu0 %v3806
  %v4375 = vpop.f32.mrf.mxu0
  %v4376 = vadd.f32 %v4363, %v4375
  %v4377 = vpop.f32.mrf.mxu0
  %4378 = vdwg.mxu0
  %4379 = vmatpush.bf16.msra.mxu0 %v2762
  %4380 = vmatpush.bf16.msra.mxu0 %v2758
  %4381 = vmatpush.bf16.msra.mxu0 %v2754
  %4382 = vmatpush.bf16.msra.mxu0 %v2750
  %4383 = vmatpush.bf16.msra.mxu0 %v2746
  %4384 = vmatpush.bf16.msra.mxu0 %v2742
  %4385 = vmatpush.bf16.msra.mxu0 %v2738
  %4386 = vmatpush.bf16.msra.mxu0 %v2734
  %4387 = vmatmul.bf16.gmra.mxu0 %v3805
  %v4388 = vpop.f32.mrf.mxu0
  %v4389 = vadd.f32 0.0, %v4388
  %v4390 = vpop.f32.mrf.mxu0
  %4391 = vdwg.mxu0
  %4392 = vmatpush.bf16.msra.mxu0 %v2794
  %4393 = vmatpush.bf16.msra.mxu0 %v2790
  %4394 = vmatpush.bf16.msra.mxu0 %v2786
  %4395 = vmatpush.bf16.msra.mxu0 %v2782
  %4396 = vmatpush.bf16.msra.mxu0 %v2778
  %4397 = vmatpush.bf16.msra.mxu0 %v2774
  %4398 = vmatpush.bf16.msra.mxu0 %v2770
  %4399 = vmatpush.bf16.msra.mxu0 %v2766
  %4400 = vmatmul.bf16.gmra.mxu0 %v3806
  %v4401 = vpop.f32.mrf.mxu0
  %v4402 = vadd.f32 %v4389, %v4401
  %v4403 = vpop.f32.mrf.mxu0
  %4404 = vdwg.mxu0
  %4405 = vmatpush.bf16.msra.mxu0 %v2763
  %4406 = vmatpush.bf16.msra.mxu0 %v2759
  %4407 = vmatpush.bf16.msra.mxu0 %v2755
  %4408 = vmatpush.bf16.msra.mxu0 %v2751
  %4409 = vmatpush.bf16.msra.mxu0 %v2747
  %4410 = vmatpush.bf16.msra.mxu0 %v2743
  %4411 = vmatpush.bf16.msra.mxu0 %v2739
  %4412 = vmatpush.bf16.msra.mxu0 %v2735
  %4413 = vmatmul.bf16.gmra.mxu0 %v3805
  %v4414 = vpop.f32.mrf.mxu0
  %v4415 = vadd.f32 0.0, %v4414
  %v4416 = vpop.f32.mrf.mxu0
  %4417 = vdwg.mxu0
  %4418 = vmatpush.bf16.msra.mxu0 %v2795
  %4419 = vmatpush.bf16.msra.mxu0 %v2791
  %4420 = vmatpush.bf16.msra.mxu0 %v2787
  %4421 = vmatpush.bf16.msra.mxu0 %v2783
  %4422 = vmatpush.bf16.msra.mxu0 %v2779
  %4423 = vmatpush.bf16.msra.mxu0 %v2775
  %4424 = vmatpush.bf16.msra.mxu0 %v2771
  %4425 = vmatpush.bf16.msra.mxu0 %v2767
  %4426 = vmatmul.bf16.gmra.mxu0 %v3806
  %v4427 = vpop.f32.mrf.mxu0
  %v4428 = vadd.f32 %v4415, %v4427
  %v4429 = vpop.f32.mrf.mxu0
  %4430 = vdwg.mxu0
  %v4431 = vsel %vm2964, %v3934, %v3830
  %v4432 = vsel %vm2964, %v3960, %v3856
  %v4433 = vsel %vm2964, %v3986, %v3882
  %v4434 = vsel %vm2964, %v4012, %v3908
  %v4435 = vsel %vm2969, %v4142, %v4038
  %v4436 = vsel %vm2969, %v4168, %v4064
  %v4437 = vsel %vm2969, %v4194, %v4090
  %v4438 = vsel %vm2969, %v4220, %v4116
  %v4439 = vsel %vm2974, %v4350, %v4246
  %v4440 = vsel %vm2974, %v4376, %v4272
  %v4441 = vsel %vm2974, %v4402, %v4298
  %v4442 = vsel %vm2974, %v4428, %v4324
  %v4443 = vsel %vm2980, %v4435, %v4431
  %v4444 = vsel %vm2980, %v4436, %v4432
  %v4445 = vsel %vm2980, %v4437, %v4433
  %v4446 = vsel %vm2980, %v4438, %v4434
  %v4447 = vsel %vm2979, %v4439, %v4443
  %v4448 = vsel %vm2979, %v4440, %v4444
  %v4449 = vsel %vm2979, %v4441, %v4445
  %v4450 = vsel %vm2979, %v4442, %v4446
  %v4451 = vadd.f32 %v4447, %v2989
  %v4452 = vadd.f32 %v4448, %v2990
  %v4453 = vadd.f32 %v4449, %v2991
  %v4454 = vadd.f32 %v4450, %v2992
  %v4455 = vxor.u32 %v4451, 2147483648
  %v4456 = vxor.u32 %v4452, 2147483648
  %v4457 = vxor.u32 %v4453, 2147483648
  %v4458 = vmul.f32 %v4455, 1.442695
  %v4459 = vpow.pop %v4458
  %v4460 = vmul.f32 %v4456, 1.442695
  %v4461 = vpow.pop %v4460
  %v4462 = vmul.f32 %v4457, 1.442695
  %v4463 = vpow.pop %v4462
  %v4464 = vadd.f32 %v4459, 1.0
  %v4465 = vadd.f32 %v4461, 1.0
  %v4466 = vadd.f32 %v4463, 1.0
  %v4467 = vrcp.pop %v4464
  %v4468 = vmul.f32 %v4464, %v4467
  %v4469 = vsub.f32 1.0, %v4468
  %v4470 = vmul.f32 %v4467, %v4469
  %v4471 = vadd.f32 %v4467, %v4470
  %vm4472 = vweird.f32 %v4464
  %vm4473 = vweird.f32 %v4467
  %vm4474 = vmor %vm4472, %vm4473
  %v4475 = vsel %vm4474, %v4467, %v4471
  %v4476 = vand.u32 2147483647, %v4464
  %vm4477 = vcmp.eq.f32.partialorder %v4476, 8.507059e+37
  %v4478 = vand.u32 %v4464, 2147483648
  %v4479 = vor.u32 1.1754944e-38, %v4478
  %v4480 = vsel %vm4477, %v4479, %v4475
  %v4481 = vmul.f32 1.0, %v4480
  %v4482 = vrcp.pop %v4465
  %v4483 = vmul.f32 %v4465, %v4482
  %v4484 = vsub.f32 1.0, %v4483
  %v4485 = vmul.f32 %v4482, %v4484
  %v4486 = vadd.f32 %v4482, %v4485
  %vm4487 = vweird.f32 %v4465
  %vm4488 = vweird.f32 %v4482
  %vm4489 = vmor %vm4487, %vm4488
  %v4490 = vsel %vm4489, %v4482, %v4486
  %v4491 = vand.u32 2147483647, %v4465
  %vm4492 = vcmp.eq.f32.partialorder %v4491, 8.507059e+37
  %v4493 = vand.u32 %v4465, 2147483648
  %v4494 = vor.u32 1.1754944e-38, %v4493
  %v4495 = vsel %vm4492, %v4494, %v4490
  %v4496 = vmul.f32 1.0, %v4495
  %v4497 = vrcp.pop %v4466
  %v4498 = vmul.f32 %v4466, %v4497
  %v4499 = vsub.f32 1.0, %v4498
  %v4500 = vmul.f32 %v4497, %v4499
  %v4501 = vadd.f32 %v4497, %v4500
  %vm4502 = vweird.f32 %v4466
  %vm4503 = vweird.f32 %v4497
  %vm4504 = vmor %vm4502, %vm4503
  %v4505 = vsel %vm4504, %v4497, %v4501
  %v4506 = vand.u32 2147483647, %v4466
  %vm4507 = vcmp.eq.f32.partialorder %v4506, 8.507059e+37
  %v4508 = vand.u32 %v4466, 2147483648
  %v4509 = vor.u32 1.1754944e-38, %v4508
  %v4510 = vsel %vm4507, %v4509, %v4505
  %v4511 = vmul.f32 1.0, %v4510
  %v4512 = vtanh.pop %v4454
  %v4513 = vmul.f32 %v4496, %v3786
  %v4514 = vmul.f32 %v4481, %v4512
  %v4515 = vadd.f32 %v4513, %v4514
  %v4516 = vtanh.pop %v4515
  %v4517 = vmul.f32 %v4511, %v4516
  %vm4518 = vcmp.eq.s32.totalorder %v27, 2
  %v4519 = vperm.slane %v4517, 0
  %v4520 = vsel %vm4518, %v4519, %v3791
  %vm4521 = vcmp.eq.s32.totalorder %v27, 5
  %v4522 = vperm.slane %v4517, 1
  %v4523 = vsel %vm4521, %v4522, %v3794
  %v4524 = vperm.slane %v4517, 2
  %v4525 = vsel %vm4518, %v4524, %v3796
  %v4526 = vperm.slane %v4517, 3
  %v4527 = vsel %vm4521, %v4526, %v3798
  %v4528 = vperm.slane %v4517, 4
  %v4529 = vsel %vm4518, %v4528, %v3800
  %v4530 = vperm.slane %v4517, 5
  %v4531 = vsel %vm4521, %v4530, %v3802
  %s4532 = scalar_lea.vmem %s0, 24
  %v4533 = vld [vmem:[%s4532] sm:$0xff]
  %v4534 = vpack.c.bf16 %v4517, %v4517
  %v4535 = vpack.c.bf16 %v4533, %v4533
  %4536 = vmatpush.bf16.msra.mxu0 %v315
  %4537 = vmatpush.bf16.msra.mxu0 %v311
  %4538 = vmatpush.bf16.msra.mxu0 %v307
  %4539 = vmatpush.bf16.msra.mxu0 %v303
  %4540 = vmatpush.bf16.msra.mxu0 %v299
  %4541 = vmatpush.bf16.msra.mxu0 %v295
  %4542 = vmatpush.bf16.msra.mxu0 %v291
  %4543 = vmatpush.bf16.msra.mxu0 %v287
  %4544 = vmatmul.bf16.gmra.mxu0 %v4534
  %v4545 = vpop.f32.mrf.mxu0
  %v4546 = vadd.f32 0.0, %v4545
  %v4547 = vpop.f32.mrf.mxu0
  %4548 = vdwg.mxu0
  %4549 = vmatpush.bf16.msra.mxu0 %v347
  %4550 = vmatpush.bf16.msra.mxu0 %v343
  %4551 = vmatpush.bf16.msra.mxu0 %v339
  %4552 = vmatpush.bf16.msra.mxu0 %v335
  %4553 = vmatpush.bf16.msra.mxu0 %v331
  %4554 = vmatpush.bf16.msra.mxu0 %v327
  %4555 = vmatpush.bf16.msra.mxu0 %v323
  %4556 = vmatpush.bf16.msra.mxu0 %v319
  %4557 = vmatmul.bf16.gmra.mxu0 %v4535
  %v4558 = vpop.f32.mrf.mxu0
  %v4559 = vadd.f32 %v4546, %v4558
  %v4560 = vpop.f32.mrf.mxu0
  %4561 = vdwg.mxu0
  %4562 = vmatpush.bf16.msra.mxu0 %v316
  %4563 = vmatpush.bf16.msra.mxu0 %v312
  %4564 = vmatpush.bf16.msra.mxu0 %v308
  %4565 = vmatpush.bf16.msra.mxu0 %v304
  %4566 = vmatpush.bf16.msra.mxu0 %v300
  %4567 = vmatpush.bf16.msra.mxu0 %v296
  %4568 = vmatpush.bf16.msra.mxu0 %v292
  %4569 = vmatpush.bf16.msra.mxu0 %v288
  %4570 = vmatmul.bf16.gmra.mxu0 %v4534
  %v4571 = vpop.f32.mrf.mxu0
  %v4572 = vadd.f32 0.0, %v4571
  %v4573 = vpop.f32.mrf.mxu0
  %4574 = vdwg.mxu0
  %4575 = vmatpush.bf16.msra.mxu0 %v348
  %4576 = vmatpush.bf16.msra.mxu0 %v344
  %4577 = vmatpush.bf16.msra.mxu0 %v340
  %4578 = vmatpush.bf16.msra.mxu0 %v336
  %4579 = vmatpush.bf16.msra.mxu0 %v332
  %4580 = vmatpush.bf16.msra.mxu0 %v328
  %4581 = vmatpush.bf16.msra.mxu0 %v324
  %4582 = vmatpush.bf16.msra.mxu0 %v320
  %4583 = vmatmul.bf16.gmra.mxu0 %v4535
  %v4584 = vpop.f32.mrf.mxu0
  %v4585 = vadd.f32 %v4572, %v4584
  %v4586 = vpop.f32.mrf.mxu0
  %4587 = vdwg.mxu0
  %4588 = vmatpush.bf16.msra.mxu0 %v317
  %4589 = vmatpush.bf16.msra.mxu0 %v313
  %4590 = vmatpush.bf16.msra.mxu0 %v309
  %4591 = vmatpush.bf16.msra.mxu0 %v305
  %4592 = vmatpush.bf16.msra.mxu0 %v301
  %4593 = vmatpush.bf16.msra.mxu0 %v297
  %4594 = vmatpush.bf16.msra.mxu0 %v293
  %4595 = vmatpush.bf16.msra.mxu0 %v289
  %4596 = vmatmul.bf16.gmra.mxu0 %v4534
  %v4597 = vpop.f32.mrf.mxu0
  %v4598 = vadd.f32 0.0, %v4597
  %v4599 = vpop.f32.mrf.mxu0
  %4600 = vdwg.mxu0
  %4601 = vmatpush.bf16.msra.mxu0 %v349
  %4602 = vmatpush.bf16.msra.mxu0 %v345
  %4603 = vmatpush.bf16.msra.mxu0 %v341
  %4604 = vmatpush.bf16.msra.mxu0 %v337
  %4605 = vmatpush.bf16.msra.mxu0 %v333
  %4606 = vmatpush.bf16.msra.mxu0 %v329
  %4607 = vmatpush.bf16.msra.mxu0 %v325
  %4608 = vmatpush.bf16.msra.mxu0 %v321
  %4609 = vmatmul.bf16.gmra.mxu0 %v4535
  %v4610 = vpop.f32.mrf.mxu0
  %v4611 = vadd.f32 %v4598, %v4610
  %v4612 = vpop.f32.mrf.mxu0
  %4613 = vdwg.mxu0
  %4614 = vmatpush.bf16.msra.mxu0 %v318
  %4615 = vmatpush.bf16.msra.mxu0 %v314
  %4616 = vmatpush.bf16.msra.mxu0 %v310
  %4617 = vmatpush.bf16.msra.mxu0 %v306
  %4618 = vmatpush.bf16.msra.mxu0 %v302
  %4619 = vmatpush.bf16.msra.mxu0 %v298
  %4620 = vmatpush.bf16.msra.mxu0 %v294
  %4621 = vmatpush.bf16.msra.mxu0 %v290
  %4622 = vmatmul.bf16.gmra.mxu0 %v4534
  %v4623 = vpop.f32.mrf.mxu0
  %v4624 = vadd.f32 0.0, %v4623
  %v4625 = vpop.f32.mrf.mxu0
  %4626 = vdwg.mxu0
  %4627 = vmatpush.bf16.msra.mxu0 %v350
  %4628 = vmatpush.bf16.msra.mxu0 %v346
  %4629 = vmatpush.bf16.msra.mxu0 %v342
  %4630 = vmatpush.bf16.msra.mxu0 %v338
  %4631 = vmatpush.bf16.msra.mxu0 %v334
  %4632 = vmatpush.bf16.msra.mxu0 %v330
  %4633 = vmatpush.bf16.msra.mxu0 %v326
  %4634 = vmatpush.bf16.msra.mxu0 %v322
  %4635 = vmatmul.bf16.gmra.mxu0 %v4535
  %v4636 = vpop.f32.mrf.mxu0
  %v4637 = vadd.f32 %v4624, %v4636
  %v4638 = vpop.f32.mrf.mxu0
  %4639 = vdwg.mxu0
  %4640 = vmatpush.bf16.msra.mxu0 %v804
  %4641 = vmatpush.bf16.msra.mxu0 %v800
  %4642 = vmatpush.bf16.msra.mxu0 %v796
  %4643 = vmatpush.bf16.msra.mxu0 %v792
  %4644 = vmatpush.bf16.msra.mxu0 %v788
  %4645 = vmatpush.bf16.msra.mxu0 %v784
  %4646 = vmatpush.bf16.msra.mxu0 %v780
  %4647 = vmatpush.bf16.msra.mxu0 %v776
  %4648 = vmatmul.bf16.gmra.mxu0 %v4534
  %v4649 = vpop.f32.mrf.mxu0
  %v4650 = vadd.f32 0.0, %v4649
  %v4651 = vpop.f32.mrf.mxu0
  %4652 = vdwg.mxu0
  %4653 = vmatpush.bf16.msra.mxu0 %v836
  %4654 = vmatpush.bf16.msra.mxu0 %v832
  %4655 = vmatpush.bf16.msra.mxu0 %v828
  %4656 = vmatpush.bf16.msra.mxu0 %v824
  %4657 = vmatpush.bf16.msra.mxu0 %v820
  %4658 = vmatpush.bf16.msra.mxu0 %v816
  %4659 = vmatpush.bf16.msra.mxu0 %v812
  %4660 = vmatpush.bf16.msra.mxu0 %v808
  %4661 = vmatmul.bf16.gmra.mxu0 %v4535
  %v4662 = vpop.f32.mrf.mxu0
  %v4663 = vadd.f32 %v4650, %v4662
  %v4664 = vpop.f32.mrf.mxu0
  %4665 = vdwg.mxu0
  %4666 = vmatpush.bf16.msra.mxu0 %v805
  %4667 = vmatpush.bf16.msra.mxu0 %v801
  %4668 = vmatpush.bf16.msra.mxu0 %v797
  %4669 = vmatpush.bf16.msra.mxu0 %v793
  %4670 = vmatpush.bf16.msra.mxu0 %v789
  %4671 = vmatpush.bf16.msra.mxu0 %v785
  %4672 = vmatpush.bf16.msra.mxu0 %v781
  %4673 = vmatpush.bf16.msra.mxu0 %v777
  %4674 = vmatmul.bf16.gmra.mxu0 %v4534
  %v4675 = vpop.f32.mrf.mxu0
  %v4676 = vadd.f32 0.0, %v4675
  %v4677 = vpop.f32.mrf.mxu0
  %4678 = vdwg.mxu0
  %4679 = vmatpush.bf16.msra.mxu0 %v837
  %4680 = vmatpush.bf16.msra.mxu0 %v833
  %4681 = vmatpush.bf16.msra.mxu0 %v829
  %4682 = vmatpush.bf16.msra.mxu0 %v825
  %4683 = vmatpush.bf16.msra.mxu0 %v821
  %4684 = vmatpush.bf16.msra.mxu0 %v817
  %4685 = vmatpush.bf16.msra.mxu0 %v813
  %4686 = vmatpush.bf16.msra.mxu0 %v809
  %4687 = vmatmul.bf16.gmra.mxu0 %v4535
  %v4688 = vpop.f32.mrf.mxu0
  %v4689 = vadd.f32 %v4676, %v4688
  %v4690 = vpop.f32.mrf.mxu0
  %4691 = vdwg.mxu0
  %4692 = vmatpush.bf16.msra.mxu0 %v806
  %4693 = vmatpush.bf16.msra.mxu0 %v802
  %4694 = vmatpush.bf16.msra.mxu0 %v798
  %4695 = vmatpush.bf16.msra.mxu0 %v794
  %4696 = vmatpush.bf16.msra.mxu0 %v790
  %4697 = vmatpush.bf16.msra.mxu0 %v786
  %4698 = vmatpush.bf16.msra.mxu0 %v782
  %4699 = vmatpush.bf16.msra.mxu0 %v778
  %4700 = vmatmul.bf16.gmra.mxu0 %v4534
  %v4701 = vpop.f32.mrf.mxu0
  %v4702 = vadd.f32 0.0, %v4701
  %v4703 = vpop.f32.mrf.mxu0
  %4704 = vdwg.mxu0
  %4705 = vmatpush.bf16.msra.mxu0 %v838
  %4706 = vmatpush.bf16.msra.mxu0 %v834
  %4707 = vmatpush.bf16.msra.mxu0 %v830
  %4708 = vmatpush.bf16.msra.mxu0 %v826
  %4709 = vmatpush.bf16.msra.mxu0 %v822
  %4710 = vmatpush.bf16.msra.mxu0 %v818
  %4711 = vmatpush.bf16.msra.mxu0 %v814
  %4712 = vmatpush.bf16.msra.mxu0 %v810
  %4713 = vmatmul.bf16.gmra.mxu0 %v4535
  %v4714 = vpop.f32.mrf.mxu0
  %v4715 = vadd.f32 %v4702, %v4714
  %v4716 = vpop.f32.mrf.mxu0
  %4717 = vdwg.mxu0
  %4718 = vmatpush.bf16.msra.mxu0 %v807
  %4719 = vmatpush.bf16.msra.mxu0 %v803
  %4720 = vmatpush.bf16.msra.mxu0 %v799
  %4721 = vmatpush.bf16.msra.mxu0 %v795
  %4722 = vmatpush.bf16.msra.mxu0 %v791
  %4723 = vmatpush.bf16.msra.mxu0 %v787
  %4724 = vmatpush.bf16.msra.mxu0 %v783
  %4725 = vmatpush.bf16.msra.mxu0 %v779
  %4726 = vmatmul.bf16.gmra.mxu0 %v4534
  %v4727 = vpop.f32.mrf.mxu0
  %v4728 = vadd.f32 0.0, %v4727
  %v4729 = vpop.f32.mrf.mxu0
  %4730 = vdwg.mxu0
  %4731 = vmatpush.bf16.msra.mxu0 %v839
  %4732 = vmatpush.bf16.msra.mxu0 %v835
  %4733 = vmatpush.bf16.msra.mxu0 %v831
  %4734 = vmatpush.bf16.msra.mxu0 %v827
  %4735 = vmatpush.bf16.msra.mxu0 %v823
  %4736 = vmatpush.bf16.msra.mxu0 %v819
  %4737 = vmatpush.bf16.msra.mxu0 %v815
  %4738 = vmatpush.bf16.msra.mxu0 %v811
  %4739 = vmatmul.bf16.gmra.mxu0 %v4535
  %v4740 = vpop.f32.mrf.mxu0
  %v4741 = vadd.f32 %v4728, %v4740
  %v4742 = vpop.f32.mrf.mxu0
  %4743 = vdwg.mxu0
  %4744 = vmatpush.bf16.msra.mxu0 %v1293
  %4745 = vmatpush.bf16.msra.mxu0 %v1289
  %4746 = vmatpush.bf16.msra.mxu0 %v1285
  %4747 = vmatpush.bf16.msra.mxu0 %v1281
  %4748 = vmatpush.bf16.msra.mxu0 %v1277
  %4749 = vmatpush.bf16.msra.mxu0 %v1273
  %4750 = vmatpush.bf16.msra.mxu0 %v1269
  %4751 = vmatpush.bf16.msra.mxu0 %v1265
  %4752 = vmatmul.bf16.gmra.mxu0 %v4534
  %v4753 = vpop.f32.mrf.mxu0
  %v4754 = vadd.f32 0.0, %v4753
  %v4755 = vpop.f32.mrf.mxu0
  %4756 = vdwg.mxu0
  %4757 = vmatpush.bf16.msra.mxu0 %v1325
  %4758 = vmatpush.bf16.msra.mxu0 %v1321
  %4759 = vmatpush.bf16.msra.mxu0 %v1317
  %4760 = vmatpush.bf16.msra.mxu0 %v1313
  %4761 = vmatpush.bf16.msra.mxu0 %v1309
  %4762 = vmatpush.bf16.msra.mxu0 %v1305
  %4763 = vmatpush.bf16.msra.mxu0 %v1301
  %4764 = vmatpush.bf16.msra.mxu0 %v1297
  %4765 = vmatmul.bf16.gmra.mxu0 %v4535
  %v4766 = vpop.f32.mrf.mxu0
  %v4767 = vadd.f32 %v4754, %v4766
  %v4768 = vpop.f32.mrf.mxu0
  %4769 = vdwg.mxu0
  %4770 = vmatpush.bf16.msra.mxu0 %v1294
  %4771 = vmatpush.bf16.msra.mxu0 %v1290
  %4772 = vmatpush.bf16.msra.mxu0 %v1286
  %4773 = vmatpush.bf16.msra.mxu0 %v1282
  %4774 = vmatpush.bf16.msra.mxu0 %v1278
  %4775 = vmatpush.bf16.msra.mxu0 %v1274
  %4776 = vmatpush.bf16.msra.mxu0 %v1270
  %4777 = vmatpush.bf16.msra.mxu0 %v1266
  %4778 = vmatmul.bf16.gmra.mxu0 %v4534
  %v4779 = vpop.f32.mrf.mxu0
  %v4780 = vadd.f32 0.0, %v4779
  %v4781 = vpop.f32.mrf.mxu0
  %4782 = vdwg.mxu0
  %4783 = vmatpush.bf16.msra.mxu0 %v1326
  %4784 = vmatpush.bf16.msra.mxu0 %v1322
  %4785 = vmatpush.bf16.msra.mxu0 %v1318
  %4786 = vmatpush.bf16.msra.mxu0 %v1314
  %4787 = vmatpush.bf16.msra.mxu0 %v1310
  %4788 = vmatpush.bf16.msra.mxu0 %v1306
  %4789 = vmatpush.bf16.msra.mxu0 %v1302
  %4790 = vmatpush.bf16.msra.mxu0 %v1298
  %4791 = vmatmul.bf16.gmra.mxu0 %v4535
  %v4792 = vpop.f32.mrf.mxu0
  %v4793 = vadd.f32 %v4780, %v4792
  %v4794 = vpop.f32.mrf.mxu0
  %4795 = vdwg.mxu0
  %4796 = vmatpush.bf16.msra.mxu0 %v1295
  %4797 = vmatpush.bf16.msra.mxu0 %v1291
  %4798 = vmatpush.bf16.msra.mxu0 %v1287
  %4799 = vmatpush.bf16.msra.mxu0 %v1283
  %4800 = vmatpush.bf16.msra.mxu0 %v1279
  %4801 = vmatpush.bf16.msra.mxu0 %v1275
  %4802 = vmatpush.bf16.msra.mxu0 %v1271
  %4803 = vmatpush.bf16.msra.mxu0 %v1267
  %4804 = vmatmul.bf16.gmra.mxu0 %v4534
  %v4805 = vpop.f32.mrf.mxu0
  %v4806 = vadd.f32 0.0, %v4805
  %v4807 = vpop.f32.mrf.mxu0
  %4808 = vdwg.mxu0
  %4809 = vmatpush.bf16.msra.mxu0 %v1327
  %4810 = vmatpush.bf16.msra.mxu0 %v1323
  %4811 = vmatpush.bf16.msra.mxu0 %v1319
  %4812 = vmatpush.bf16.msra.mxu0 %v1315
  %4813 = vmatpush.bf16.msra.mxu0 %v1311
  %4814 = vmatpush.bf16.msra.mxu0 %v1307
  %4815 = vmatpush.bf16.msra.mxu0 %v1303
  %4816 = vmatpush.bf16.msra.mxu0 %v1299
  %4817 = vmatmul.bf16.gmra.mxu0 %v4535
  %v4818 = vpop.f32.mrf.mxu0
  %v4819 = vadd.f32 %v4806, %v4818
  %v4820 = vpop.f32.mrf.mxu0
  %4821 = vdwg.mxu0
  %4822 = vmatpush.bf16.msra.mxu0 %v1296
  %4823 = vmatpush.bf16.msra.mxu0 %v1292
  %4824 = vmatpush.bf16.msra.mxu0 %v1288
  %4825 = vmatpush.bf16.msra.mxu0 %v1284
  %4826 = vmatpush.bf16.msra.mxu0 %v1280
  %4827 = vmatpush.bf16.msra.mxu0 %v1276
  %4828 = vmatpush.bf16.msra.mxu0 %v1272
  %4829 = vmatpush.bf16.msra.mxu0 %v1268
  %4830 = vmatmul.bf16.gmra.mxu0 %v4534
  %v4831 = vpop.f32.mrf.mxu0
  %v4832 = vadd.f32 0.0, %v4831
  %v4833 = vpop.f32.mrf.mxu0
  %4834 = vdwg.mxu0
  %4835 = vmatpush.bf16.msra.mxu0 %v1328
  %4836 = vmatpush.bf16.msra.mxu0 %v1324
  %4837 = vmatpush.bf16.msra.mxu0 %v1320
  %4838 = vmatpush.bf16.msra.mxu0 %v1316
  %4839 = vmatpush.bf16.msra.mxu0 %v1312
  %4840 = vmatpush.bf16.msra.mxu0 %v1308
  %4841 = vmatpush.bf16.msra.mxu0 %v1304
  %4842 = vmatpush.bf16.msra.mxu0 %v1300
  %4843 = vmatmul.bf16.gmra.mxu0 %v4535
  %v4844 = vpop.f32.mrf.mxu0
  %v4845 = vadd.f32 %v4832, %v4844
  %v4846 = vpop.f32.mrf.mxu0
  %4847 = vdwg.mxu0
  %4848 = vmatpush.bf16.msra.mxu0 %v1782
  %4849 = vmatpush.bf16.msra.mxu0 %v1778
  %4850 = vmatpush.bf16.msra.mxu0 %v1774
  %4851 = vmatpush.bf16.msra.mxu0 %v1770
  %4852 = vmatpush.bf16.msra.mxu0 %v1766
  %4853 = vmatpush.bf16.msra.mxu0 %v1762
  %4854 = vmatpush.bf16.msra.mxu0 %v1758
  %4855 = vmatpush.bf16.msra.mxu0 %v1754
  %4856 = vmatmul.bf16.gmra.mxu0 %v4534
  %v4857 = vpop.f32.mrf.mxu0
  %v4858 = vadd.f32 0.0, %v4857
  %v4859 = vpop.f32.mrf.mxu0
  %4860 = vdwg.mxu0
  %4861 = vmatpush.bf16.msra.mxu0 %v1814
  %4862 = vmatpush.bf16.msra.mxu0 %v1810
  %4863 = vmatpush.bf16.msra.mxu0 %v1806
  %4864 = vmatpush.bf16.msra.mxu0 %v1802
  %4865 = vmatpush.bf16.msra.mxu0 %v1798
  %4866 = vmatpush.bf16.msra.mxu0 %v1794
  %4867 = vmatpush.bf16.msra.mxu0 %v1790
  %4868 = vmatpush.bf16.msra.mxu0 %v1786
  %4869 = vmatmul.bf16.gmra.mxu0 %v4535
  %v4870 = vpop.f32.mrf.mxu0
  %v4871 = vadd.f32 %v4858, %v4870
  %v4872 = vpop.f32.mrf.mxu0
  %4873 = vdwg.mxu0
  %4874 = vmatpush.bf16.msra.mxu0 %v1783
  %4875 = vmatpush.bf16.msra.mxu0 %v1779
  %4876 = vmatpush.bf16.msra.mxu0 %v1775
  %4877 = vmatpush.bf16.msra.mxu0 %v1771
  %4878 = vmatpush.bf16.msra.mxu0 %v1767
  %4879 = vmatpush.bf16.msra.mxu0 %v1763
  %4880 = vmatpush.bf16.msra.mxu0 %v1759
  %4881 = vmatpush.bf16.msra.mxu0 %v1755
  %4882 = vmatmul.bf16.gmra.mxu0 %v4534
  %v4883 = vpop.f32.mrf.mxu0
  %v4884 = vadd.f32 0.0, %v4883
  %v4885 = vpop.f32.mrf.mxu0
  %4886 = vdwg.mxu0
  %4887 = vmatpush.bf16.msra.mxu0 %v1815
  %4888 = vmatpush.bf16.msra.mxu0 %v1811
  %4889 = vmatpush.bf16.msra.mxu0 %v1807
  %4890 = vmatpush.bf16.msra.mxu0 %v1803
  %4891 = vmatpush.bf16.msra.mxu0 %v1799
  %4892 = vmatpush.bf16.msra.mxu0 %v1795
  %4893 = vmatpush.bf16.msra.mxu0 %v1791
  %4894 = vmatpush.bf16.msra.mxu0 %v1787
  %4895 = vmatmul.bf16.gmra.mxu0 %v4535
  %v4896 = vpop.f32.mrf.mxu0
  %v4897 = vadd.f32 %v4884, %v4896
  %v4898 = vpop.f32.mrf.mxu0
  %4899 = vdwg.mxu0
  %4900 = vmatpush.bf16.msra.mxu0 %v1784
  %4901 = vmatpush.bf16.msra.mxu0 %v1780
  %4902 = vmatpush.bf16.msra.mxu0 %v1776
  %4903 = vmatpush.bf16.msra.mxu0 %v1772
  %4904 = vmatpush.bf16.msra.mxu0 %v1768
  %4905 = vmatpush.bf16.msra.mxu0 %v1764
  %4906 = vmatpush.bf16.msra.mxu0 %v1760
  %4907 = vmatpush.bf16.msra.mxu0 %v1756
  %4908 = vmatmul.bf16.gmra.mxu0 %v4534
  %v4909 = vpop.f32.mrf.mxu0
  %v4910 = vadd.f32 0.0, %v4909
  %v4911 = vpop.f32.mrf.mxu0
  %4912 = vdwg.mxu0
  %4913 = vmatpush.bf16.msra.mxu0 %v1816
  %4914 = vmatpush.bf16.msra.mxu0 %v1812
  %4915 = vmatpush.bf16.msra.mxu0 %v1808
  %4916 = vmatpush.bf16.msra.mxu0 %v1804
  %4917 = vmatpush.bf16.msra.mxu0 %v1800
  %4918 = vmatpush.bf16.msra.mxu0 %v1796
  %4919 = vmatpush.bf16.msra.mxu0 %v1792
  %4920 = vmatpush.bf16.msra.mxu0 %v1788
  %4921 = vmatmul.bf16.gmra.mxu0 %v4535
  %v4922 = vpop.f32.mrf.mxu0
  %v4923 = vadd.f32 %v4910, %v4922
  %v4924 = vpop.f32.mrf.mxu0
  %4925 = vdwg.mxu0
  %4926 = vmatpush.bf16.msra.mxu0 %v1785
  %4927 = vmatpush.bf16.msra.mxu0 %v1781
  %4928 = vmatpush.bf16.msra.mxu0 %v1777
  %4929 = vmatpush.bf16.msra.mxu0 %v1773
  %4930 = vmatpush.bf16.msra.mxu0 %v1769
  %4931 = vmatpush.bf16.msra.mxu0 %v1765
  %4932 = vmatpush.bf16.msra.mxu0 %v1761
  %4933 = vmatpush.bf16.msra.mxu0 %v1757
  %4934 = vmatmul.bf16.gmra.mxu0 %v4534
  %v4935 = vpop.f32.mrf.mxu0
  %v4936 = vadd.f32 0.0, %v4935
  %v4937 = vpop.f32.mrf.mxu0
  %4938 = vdwg.mxu0
  %4939 = vmatpush.bf16.msra.mxu0 %v1817
  %4940 = vmatpush.bf16.msra.mxu0 %v1813
  %4941 = vmatpush.bf16.msra.mxu0 %v1809
  %4942 = vmatpush.bf16.msra.mxu0 %v1805
  %4943 = vmatpush.bf16.msra.mxu0 %v1801
  %4944 = vmatpush.bf16.msra.mxu0 %v1797
  %4945 = vmatpush.bf16.msra.mxu0 %v1793
  %4946 = vmatpush.bf16.msra.mxu0 %v1789
  %4947 = vmatmul.bf16.gmra.mxu0 %v4535
  %v4948 = vpop.f32.mrf.mxu0
  %v4949 = vadd.f32 %v4936, %v4948
  %v4950 = vpop.f32.mrf.mxu0
  %4951 = vdwg.mxu0
  %4952 = vmatpush.bf16.msra.mxu0 %v2271
  %4953 = vmatpush.bf16.msra.mxu0 %v2267
  %4954 = vmatpush.bf16.msra.mxu0 %v2263
  %4955 = vmatpush.bf16.msra.mxu0 %v2259
  %4956 = vmatpush.bf16.msra.mxu0 %v2255
  %4957 = vmatpush.bf16.msra.mxu0 %v2251
  %4958 = vmatpush.bf16.msra.mxu0 %v2247
  %4959 = vmatpush.bf16.msra.mxu0 %v2243
  %4960 = vmatmul.bf16.gmra.mxu0 %v4534
  %v4961 = vpop.f32.mrf.mxu0
  %v4962 = vadd.f32 0.0, %v4961
  %v4963 = vpop.f32.mrf.mxu0
  %4964 = vdwg.mxu0
  %4965 = vmatpush.bf16.msra.mxu0 %v2303
  %4966 = vmatpush.bf16.msra.mxu0 %v2299
  %4967 = vmatpush.bf16.msra.mxu0 %v2295
  %4968 = vmatpush.bf16.msra.mxu0 %v2291
  %4969 = vmatpush.bf16.msra.mxu0 %v2287
  %4970 = vmatpush.bf16.msra.mxu0 %v2283
  %4971 = vmatpush.bf16.msra.mxu0 %v2279
  %4972 = vmatpush.bf16.msra.mxu0 %v2275
  %4973 = vmatmul.bf16.gmra.mxu0 %v4535
  %v4974 = vpop.f32.mrf.mxu0
  %v4975 = vadd.f32 %v4962, %v4974
  %v4976 = vpop.f32.mrf.mxu0
  %4977 = vdwg.mxu0
  %4978 = vmatpush.bf16.msra.mxu0 %v2272
  %4979 = vmatpush.bf16.msra.mxu0 %v2268
  %4980 = vmatpush.bf16.msra.mxu0 %v2264
  %4981 = vmatpush.bf16.msra.mxu0 %v2260
  %4982 = vmatpush.bf16.msra.mxu0 %v2256
  %4983 = vmatpush.bf16.msra.mxu0 %v2252
  %4984 = vmatpush.bf16.msra.mxu0 %v2248
  %4985 = vmatpush.bf16.msra.mxu0 %v2244
  %4986 = vmatmul.bf16.gmra.mxu0 %v4534
  %v4987 = vpop.f32.mrf.mxu0
  %v4988 = vadd.f32 0.0, %v4987
  %v4989 = vpop.f32.mrf.mxu0
  %4990 = vdwg.mxu0
  %4991 = vmatpush.bf16.msra.mxu0 %v2304
  %4992 = vmatpush.bf16.msra.mxu0 %v2300
  %4993 = vmatpush.bf16.msra.mxu0 %v2296
  %4994 = vmatpush.bf16.msra.mxu0 %v2292
  %4995 = vmatpush.bf16.msra.mxu0 %v2288
  %4996 = vmatpush.bf16.msra.mxu0 %v2284
  %4997 = vmatpush.bf16.msra.mxu0 %v2280
  %4998 = vmatpush.bf16.msra.mxu0 %v2276
  %4999 = vmatmul.bf16.gmra.mxu0 %v4535
  %v5000 = vpop.f32.mrf.mxu0
  %v5001 = vadd.f32 %v4988, %v5000
  %v5002 = vpop.f32.mrf.mxu0
  %5003 = vdwg.mxu0
  %5004 = vmatpush.bf16.msra.mxu0 %v2273
  %5005 = vmatpush.bf16.msra.mxu0 %v2269
  %5006 = vmatpush.bf16.msra.mxu0 %v2265
  %5007 = vmatpush.bf16.msra.mxu0 %v2261
  %5008 = vmatpush.bf16.msra.mxu0 %v2257
  %5009 = vmatpush.bf16.msra.mxu0 %v2253
  %5010 = vmatpush.bf16.msra.mxu0 %v2249
  %5011 = vmatpush.bf16.msra.mxu0 %v2245
  %5012 = vmatmul.bf16.gmra.mxu0 %v4534
  %v5013 = vpop.f32.mrf.mxu0
  %v5014 = vadd.f32 0.0, %v5013
  %v5015 = vpop.f32.mrf.mxu0
  %5016 = vdwg.mxu0
  %5017 = vmatpush.bf16.msra.mxu0 %v2305
  %5018 = vmatpush.bf16.msra.mxu0 %v2301
  %5019 = vmatpush.bf16.msra.mxu0 %v2297
  %5020 = vmatpush.bf16.msra.mxu0 %v2293
  %5021 = vmatpush.bf16.msra.mxu0 %v2289
  %5022 = vmatpush.bf16.msra.mxu0 %v2285
  %5023 = vmatpush.bf16.msra.mxu0 %v2281
  %5024 = vmatpush.bf16.msra.mxu0 %v2277
  %5025 = vmatmul.bf16.gmra.mxu0 %v4535
  %v5026 = vpop.f32.mrf.mxu0
  %v5027 = vadd.f32 %v5014, %v5026
  %v5028 = vpop.f32.mrf.mxu0
  %5029 = vdwg.mxu0
  %5030 = vmatpush.bf16.msra.mxu0 %v2274
  %5031 = vmatpush.bf16.msra.mxu0 %v2270
  %5032 = vmatpush.bf16.msra.mxu0 %v2266
  %5033 = vmatpush.bf16.msra.mxu0 %v2262
  %5034 = vmatpush.bf16.msra.mxu0 %v2258
  %5035 = vmatpush.bf16.msra.mxu0 %v2254
  %5036 = vmatpush.bf16.msra.mxu0 %v2250
  %5037 = vmatpush.bf16.msra.mxu0 %v2246
  %5038 = vmatmul.bf16.gmra.mxu0 %v4534
  %v5039 = vpop.f32.mrf.mxu0
  %v5040 = vadd.f32 0.0, %v5039
  %v5041 = vpop.f32.mrf.mxu0
  %5042 = vdwg.mxu0
  %5043 = vmatpush.bf16.msra.mxu0 %v2306
  %5044 = vmatpush.bf16.msra.mxu0 %v2302
  %5045 = vmatpush.bf16.msra.mxu0 %v2298
  %5046 = vmatpush.bf16.msra.mxu0 %v2294
  %5047 = vmatpush.bf16.msra.mxu0 %v2290
  %5048 = vmatpush.bf16.msra.mxu0 %v2286
  %5049 = vmatpush.bf16.msra.mxu0 %v2282
  %5050 = vmatpush.bf16.msra.mxu0 %v2278
  %5051 = vmatmul.bf16.gmra.mxu0 %v4535
  %v5052 = vpop.f32.mrf.mxu0
  %v5053 = vadd.f32 %v5040, %v5052
  %v5054 = vpop.f32.mrf.mxu0
  %5055 = vdwg.mxu0
  %5056 = vmatpush.bf16.msra.mxu0 %v2760
  %5057 = vmatpush.bf16.msra.mxu0 %v2756
  %5058 = vmatpush.bf16.msra.mxu0 %v2752
  %5059 = vmatpush.bf16.msra.mxu0 %v2748
  %5060 = vmatpush.bf16.msra.mxu0 %v2744
  %5061 = vmatpush.bf16.msra.mxu0 %v2740
  %5062 = vmatpush.bf16.msra.mxu0 %v2736
  %5063 = vmatpush.bf16.msra.mxu0 %v2732
  %5064 = vmatmul.bf16.gmra.mxu0 %v4534
  %v5065 = vpop.f32.mrf.mxu0
  %v5066 = vadd.f32 0.0, %v5065
  %v5067 = vpop.f32.mrf.mxu0
  %5068 = vdwg.mxu0
  %5069 = vmatpush.bf16.msra.mxu0 %v2792
  %5070 = vmatpush.bf16.msra.mxu0 %v2788
  %5071 = vmatpush.bf16.msra.mxu0 %v2784
  %5072 = vmatpush.bf16.msra.mxu0 %v2780
  %5073 = vmatpush.bf16.msra.mxu0 %v2776
  %5074 = vmatpush.bf16.msra.mxu0 %v2772
  %5075 = vmatpush.bf16.msra.mxu0 %v2768
  %5076 = vmatpush.bf16.msra.mxu0 %v2764
  %5077 = vmatmul.bf16.gmra.mxu0 %v4535
  %v5078 = vpop.f32.mrf.mxu0
  %v5079 = vadd.f32 %v5066, %v5078
  %v5080 = vpop.f32.mrf.mxu0
  %5081 = vdwg.mxu0
  %5082 = vmatpush.bf16.msra.mxu0 %v2761
  %5083 = vmatpush.bf16.msra.mxu0 %v2757
  %5084 = vmatpush.bf16.msra.mxu0 %v2753
  %5085 = vmatpush.bf16.msra.mxu0 %v2749
  %5086 = vmatpush.bf16.msra.mxu0 %v2745
  %5087 = vmatpush.bf16.msra.mxu0 %v2741
  %5088 = vmatpush.bf16.msra.mxu0 %v2737
  %5089 = vmatpush.bf16.msra.mxu0 %v2733
  %5090 = vmatmul.bf16.gmra.mxu0 %v4534
  %v5091 = vpop.f32.mrf.mxu0
  %v5092 = vadd.f32 0.0, %v5091
  %v5093 = vpop.f32.mrf.mxu0
  %5094 = vdwg.mxu0
  %5095 = vmatpush.bf16.msra.mxu0 %v2793
  %5096 = vmatpush.bf16.msra.mxu0 %v2789
  %5097 = vmatpush.bf16.msra.mxu0 %v2785
  %5098 = vmatpush.bf16.msra.mxu0 %v2781
  %5099 = vmatpush.bf16.msra.mxu0 %v2777
  %5100 = vmatpush.bf16.msra.mxu0 %v2773
  %5101 = vmatpush.bf16.msra.mxu0 %v2769
  %5102 = vmatpush.bf16.msra.mxu0 %v2765
  %5103 = vmatmul.bf16.gmra.mxu0 %v4535
  %v5104 = vpop.f32.mrf.mxu0
  %v5105 = vadd.f32 %v5092, %v5104
  %v5106 = vpop.f32.mrf.mxu0
  %5107 = vdwg.mxu0
  %5108 = vmatpush.bf16.msra.mxu0 %v2762
  %5109 = vmatpush.bf16.msra.mxu0 %v2758
  %5110 = vmatpush.bf16.msra.mxu0 %v2754
  %5111 = vmatpush.bf16.msra.mxu0 %v2750
  %5112 = vmatpush.bf16.msra.mxu0 %v2746
  %5113 = vmatpush.bf16.msra.mxu0 %v2742
  %5114 = vmatpush.bf16.msra.mxu0 %v2738
  %5115 = vmatpush.bf16.msra.mxu0 %v2734
  %5116 = vmatmul.bf16.gmra.mxu0 %v4534
  %v5117 = vpop.f32.mrf.mxu0
  %v5118 = vadd.f32 0.0, %v5117
  %v5119 = vpop.f32.mrf.mxu0
  %5120 = vdwg.mxu0
  %5121 = vmatpush.bf16.msra.mxu0 %v2794
  %5122 = vmatpush.bf16.msra.mxu0 %v2790
  %5123 = vmatpush.bf16.msra.mxu0 %v2786
  %5124 = vmatpush.bf16.msra.mxu0 %v2782
  %5125 = vmatpush.bf16.msra.mxu0 %v2778
  %5126 = vmatpush.bf16.msra.mxu0 %v2774
  %5127 = vmatpush.bf16.msra.mxu0 %v2770
  %5128 = vmatpush.bf16.msra.mxu0 %v2766
  %5129 = vmatmul.bf16.gmra.mxu0 %v4535
  %v5130 = vpop.f32.mrf.mxu0
  %v5131 = vadd.f32 %v5118, %v5130
  %v5132 = vpop.f32.mrf.mxu0
  %5133 = vdwg.mxu0
  %5134 = vmatpush.bf16.msra.mxu0 %v2763
  %5135 = vmatpush.bf16.msra.mxu0 %v2759
  %5136 = vmatpush.bf16.msra.mxu0 %v2755
  %5137 = vmatpush.bf16.msra.mxu0 %v2751
  %5138 = vmatpush.bf16.msra.mxu0 %v2747
  %5139 = vmatpush.bf16.msra.mxu0 %v2743
  %5140 = vmatpush.bf16.msra.mxu0 %v2739
  %5141 = vmatpush.bf16.msra.mxu0 %v2735
  %5142 = vmatmul.bf16.gmra.mxu0 %v4534
  %v5143 = vpop.f32.mrf.mxu0
  %v5144 = vadd.f32 0.0, %v5143
  %v5145 = vpop.f32.mrf.mxu0
  %5146 = vdwg.mxu0
  %5147 = vmatpush.bf16.msra.mxu0 %v2795
  %5148 = vmatpush.bf16.msra.mxu0 %v2791
  %5149 = vmatpush.bf16.msra.mxu0 %v2787
  %5150 = vmatpush.bf16.msra.mxu0 %v2783
  %5151 = vmatpush.bf16.msra.mxu0 %v2779
  %5152 = vmatpush.bf16.msra.mxu0 %v2775
  %5153 = vmatpush.bf16.msra.mxu0 %v2771
  %5154 = vmatpush.bf16.msra.mxu0 %v2767
  %5155 = vmatmul.bf16.gmra.mxu0 %v4535
  %v5156 = vpop.f32.mrf.mxu0
  %v5157 = vadd.f32 %v5144, %v5156
  %v5158 = vpop.f32.mrf.mxu0
  %5159 = vdwg.mxu0
  %v5160 = vsel %vm2964, %v4663, %v4559
  %v5161 = vsel %vm2964, %v4689, %v4585
  %v5162 = vsel %vm2964, %v4715, %v4611
  %v5163 = vsel %vm2964, %v4741, %v4637
  %v5164 = vsel %vm2969, %v4871, %v4767
  %v5165 = vsel %vm2969, %v4897, %v4793
  %v5166 = vsel %vm2969, %v4923, %v4819
  %v5167 = vsel %vm2969, %v4949, %v4845
  %v5168 = vsel %vm2974, %v5079, %v4975
  %v5169 = vsel %vm2974, %v5105, %v5001
  %v5170 = vsel %vm2974, %v5131, %v5027
  %v5171 = vsel %vm2974, %v5157, %v5053
  %v5172 = vsel %vm2980, %v5164, %v5160
  %v5173 = vsel %vm2980, %v5165, %v5161
  %v5174 = vsel %vm2980, %v5166, %v5162
  %v5175 = vsel %vm2980, %v5167, %v5163
  %v5176 = vsel %vm2979, %v5168, %v5172
  %v5177 = vsel %vm2979, %v5169, %v5173
  %v5178 = vsel %vm2979, %v5170, %v5174
  %v5179 = vsel %vm2979, %v5171, %v5175
  %v5180 = vadd.f32 %v5176, %v2989
  %v5181 = vadd.f32 %v5177, %v2990
  %v5182 = vadd.f32 %v5178, %v2991
  %v5183 = vadd.f32 %v5179, %v2992
  %v5184 = vxor.u32 %v5180, 2147483648
  %v5185 = vxor.u32 %v5181, 2147483648
  %v5186 = vxor.u32 %v5182, 2147483648
  %v5187 = vmul.f32 %v5184, 1.442695
  %v5188 = vpow.pop %v5187
  %v5189 = vmul.f32 %v5185, 1.442695
  %v5190 = vpow.pop %v5189
  %v5191 = vmul.f32 %v5186, 1.442695
  %v5192 = vpow.pop %v5191
  %v5193 = vadd.f32 %v5188, 1.0
  %v5194 = vadd.f32 %v5190, 1.0
  %v5195 = vadd.f32 %v5192, 1.0
  %v5196 = vrcp.pop %v5193
  %v5197 = vmul.f32 %v5193, %v5196
  %v5198 = vsub.f32 1.0, %v5197
  %v5199 = vmul.f32 %v5196, %v5198
  %v5200 = vadd.f32 %v5196, %v5199
  %vm5201 = vweird.f32 %v5193
  %vm5202 = vweird.f32 %v5196
  %vm5203 = vmor %vm5201, %vm5202
  %v5204 = vsel %vm5203, %v5196, %v5200
  %v5205 = vand.u32 2147483647, %v5193
  %vm5206 = vcmp.eq.f32.partialorder %v5205, 8.507059e+37
  %v5207 = vand.u32 %v5193, 2147483648
  %v5208 = vor.u32 1.1754944e-38, %v5207
  %v5209 = vsel %vm5206, %v5208, %v5204
  %v5210 = vmul.f32 1.0, %v5209
  %v5211 = vrcp.pop %v5194
  %v5212 = vmul.f32 %v5194, %v5211
  %v5213 = vsub.f32 1.0, %v5212
  %v5214 = vmul.f32 %v5211, %v5213
  %v5215 = vadd.f32 %v5211, %v5214
  %vm5216 = vweird.f32 %v5194
  %vm5217 = vweird.f32 %v5211
  %vm5218 = vmor %vm5216, %vm5217
  %v5219 = vsel %vm5218, %v5211, %v5215
  %v5220 = vand.u32 2147483647, %v5194
  %vm5221 = vcmp.eq.f32.partialorder %v5220, 8.507059e+37
  %v5222 = vand.u32 %v5194, 2147483648
  %v5223 = vor.u32 1.1754944e-38, %v5222
  %v5224 = vsel %vm5221, %v5223, %v5219
  %v5225 = vmul.f32 1.0, %v5224
  %v5226 = vrcp.pop %v5195
  %v5227 = vmul.f32 %v5195, %v5226
  %v5228 = vsub.f32 1.0, %v5227
  %v5229 = vmul.f32 %v5226, %v5228
  %v5230 = vadd.f32 %v5226, %v5229
  %vm5231 = vweird.f32 %v5195
  %vm5232 = vweird.f32 %v5226
  %vm5233 = vmor %vm5231, %vm5232
  %v5234 = vsel %vm5233, %v5226, %v5230
  %v5235 = vand.u32 2147483647, %v5195
  %vm5236 = vcmp.eq.f32.partialorder %v5235, 8.507059e+37
  %v5237 = vand.u32 %v5195, 2147483648
  %v5238 = vor.u32 1.1754944e-38, %v5237
  %v5239 = vsel %vm5236, %v5238, %v5234
  %v5240 = vmul.f32 1.0, %v5239
  %v5241 = vtanh.pop %v5183
  %v5242 = vmul.f32 %v5225, %v4515
  %v5243 = vmul.f32 %v5210, %v5241
  %v5244 = vadd.f32 %v5242, %v5243
  %v5245 = vtanh.pop %v5244
  %v5246 = vmul.f32 %v5240, %v5245
  %vm5247 = vcmp.eq.s32.totalorder %v27, 3
  %v5248 = vperm.slane %v5246, 0
  %v5249 = vsel %vm5247, %v5248, %v4520
  %vm5250 = vcmp.eq.s32.totalorder %v27, 4
  %v5251 = vperm.slane %v5246, 1
  %v5252 = vsel %vm5250, %v5251, %v4523
  %v5253 = vperm.slane %v5246, 2
  %v5254 = vsel %vm5247, %v5253, %v4525
  %v5255 = vperm.slane %v5246, 3
  %v5256 = vsel %vm5250, %v5255, %v4527
  %v5257 = vperm.slane %v5246, 4
  %v5258 = vsel %vm5247, %v5257, %v4529
  %v5259 = vperm.slane %v5246, 5
  %v5260 = vsel %vm5250, %v5259, %v4531
  %s5261 = scalar_lea.vmem %s0, 32
  %v5262 = vld [vmem:[%s5261] sm:$0xff]
  %v5263 = vpack.c.bf16 %v5246, %v5246
  %v5264 = vpack.c.bf16 %v5262, %v5262
  %5265 = vmatpush.bf16.msra.mxu0 %v315
  %5266 = vmatpush.bf16.msra.mxu0 %v311
  %5267 = vmatpush.bf16.msra.mxu0 %v307
  %5268 = vmatpush.bf16.msra.mxu0 %v303
  %5269 = vmatpush.bf16.msra.mxu0 %v299
  %5270 = vmatpush.bf16.msra.mxu0 %v295
  %5271 = vmatpush.bf16.msra.mxu0 %v291
  %5272 = vmatpush.bf16.msra.mxu0 %v287
  %5273 = vmatmul.bf16.gmra.mxu0 %v5263
  %v5274 = vpop.f32.mrf.mxu0
  %v5275 = vadd.f32 0.0, %v5274
  %v5276 = vpop.f32.mrf.mxu0
  %5277 = vdwg.mxu0
  %5278 = vmatpush.bf16.msra.mxu0 %v347
  %5279 = vmatpush.bf16.msra.mxu0 %v343
  %5280 = vmatpush.bf16.msra.mxu0 %v339
  %5281 = vmatpush.bf16.msra.mxu0 %v335
  %5282 = vmatpush.bf16.msra.mxu0 %v331
  %5283 = vmatpush.bf16.msra.mxu0 %v327
  %5284 = vmatpush.bf16.msra.mxu0 %v323
  %5285 = vmatpush.bf16.msra.mxu0 %v319
  %5286 = vmatmul.bf16.gmra.mxu0 %v5264
  %v5287 = vpop.f32.mrf.mxu0
  %v5288 = vadd.f32 %v5275, %v5287
  %v5289 = vpop.f32.mrf.mxu0
  %5290 = vdwg.mxu0
  %5291 = vmatpush.bf16.msra.mxu0 %v316
  %5292 = vmatpush.bf16.msra.mxu0 %v312
  %5293 = vmatpush.bf16.msra.mxu0 %v308
  %5294 = vmatpush.bf16.msra.mxu0 %v304
  %5295 = vmatpush.bf16.msra.mxu0 %v300
  %5296 = vmatpush.bf16.msra.mxu0 %v296
  %5297 = vmatpush.bf16.msra.mxu0 %v292
  %5298 = vmatpush.bf16.msra.mxu0 %v288
  %5299 = vmatmul.bf16.gmra.mxu0 %v5263
  %v5300 = vpop.f32.mrf.mxu0
  %v5301 = vadd.f32 0.0, %v5300
  %v5302 = vpop.f32.mrf.mxu0
  %5303 = vdwg.mxu0
  %5304 = vmatpush.bf16.msra.mxu0 %v348
  %5305 = vmatpush.bf16.msra.mxu0 %v344
  %5306 = vmatpush.bf16.msra.mxu0 %v340
  %5307 = vmatpush.bf16.msra.mxu0 %v336
  %5308 = vmatpush.bf16.msra.mxu0 %v332
  %5309 = vmatpush.bf16.msra.mxu0 %v328
  %5310 = vmatpush.bf16.msra.mxu0 %v324
  %5311 = vmatpush.bf16.msra.mxu0 %v320
  %5312 = vmatmul.bf16.gmra.mxu0 %v5264
  %v5313 = vpop.f32.mrf.mxu0
  %v5314 = vadd.f32 %v5301, %v5313
  %v5315 = vpop.f32.mrf.mxu0
  %5316 = vdwg.mxu0
  %5317 = vmatpush.bf16.msra.mxu0 %v317
  %5318 = vmatpush.bf16.msra.mxu0 %v313
  %5319 = vmatpush.bf16.msra.mxu0 %v309
  %5320 = vmatpush.bf16.msra.mxu0 %v305
  %5321 = vmatpush.bf16.msra.mxu0 %v301
  %5322 = vmatpush.bf16.msra.mxu0 %v297
  %5323 = vmatpush.bf16.msra.mxu0 %v293
  %5324 = vmatpush.bf16.msra.mxu0 %v289
  %5325 = vmatmul.bf16.gmra.mxu0 %v5263
  %v5326 = vpop.f32.mrf.mxu0
  %v5327 = vadd.f32 0.0, %v5326
  %v5328 = vpop.f32.mrf.mxu0
  %5329 = vdwg.mxu0
  %5330 = vmatpush.bf16.msra.mxu0 %v349
  %5331 = vmatpush.bf16.msra.mxu0 %v345
  %5332 = vmatpush.bf16.msra.mxu0 %v341
  %5333 = vmatpush.bf16.msra.mxu0 %v337
  %5334 = vmatpush.bf16.msra.mxu0 %v333
  %5335 = vmatpush.bf16.msra.mxu0 %v329
  %5336 = vmatpush.bf16.msra.mxu0 %v325
  %5337 = vmatpush.bf16.msra.mxu0 %v321
  %5338 = vmatmul.bf16.gmra.mxu0 %v5264
  %v5339 = vpop.f32.mrf.mxu0
  %v5340 = vadd.f32 %v5327, %v5339
  %v5341 = vpop.f32.mrf.mxu0
  %5342 = vdwg.mxu0
  %5343 = vmatpush.bf16.msra.mxu0 %v318
  %5344 = vmatpush.bf16.msra.mxu0 %v314
  %5345 = vmatpush.bf16.msra.mxu0 %v310
  %5346 = vmatpush.bf16.msra.mxu0 %v306
  %5347 = vmatpush.bf16.msra.mxu0 %v302
  %5348 = vmatpush.bf16.msra.mxu0 %v298
  %5349 = vmatpush.bf16.msra.mxu0 %v294
  %5350 = vmatpush.bf16.msra.mxu0 %v290
  %5351 = vmatmul.bf16.gmra.mxu0 %v5263
  %v5352 = vpop.f32.mrf.mxu0
  %v5353 = vadd.f32 0.0, %v5352
  %v5354 = vpop.f32.mrf.mxu0
  %5355 = vdwg.mxu0
  %5356 = vmatpush.bf16.msra.mxu0 %v350
  %5357 = vmatpush.bf16.msra.mxu0 %v346
  %5358 = vmatpush.bf16.msra.mxu0 %v342
  %5359 = vmatpush.bf16.msra.mxu0 %v338
  %5360 = vmatpush.bf16.msra.mxu0 %v334
  %5361 = vmatpush.bf16.msra.mxu0 %v330
  %5362 = vmatpush.bf16.msra.mxu0 %v326
  %5363 = vmatpush.bf16.msra.mxu0 %v322
  %5364 = vmatmul.bf16.gmra.mxu0 %v5264
  %v5365 = vpop.f32.mrf.mxu0
  %v5366 = vadd.f32 %v5353, %v5365
  %v5367 = vpop.f32.mrf.mxu0
  %5368 = vdwg.mxu0
  %5369 = vmatpush.bf16.msra.mxu0 %v804
  %5370 = vmatpush.bf16.msra.mxu0 %v800
  %5371 = vmatpush.bf16.msra.mxu0 %v796
  %5372 = vmatpush.bf16.msra.mxu0 %v792
  %5373 = vmatpush.bf16.msra.mxu0 %v788
  %5374 = vmatpush.bf16.msra.mxu0 %v784
  %5375 = vmatpush.bf16.msra.mxu0 %v780
  %5376 = vmatpush.bf16.msra.mxu0 %v776
  %5377 = vmatmul.bf16.gmra.mxu0 %v5263
  %v5378 = vpop.f32.mrf.mxu0
  %v5379 = vadd.f32 0.0, %v5378
  %v5380 = vpop.f32.mrf.mxu0
  %5381 = vdwg.mxu0
  %5382 = vmatpush.bf16.msra.mxu0 %v836
  %5383 = vmatpush.bf16.msra.mxu0 %v832
  %5384 = vmatpush.bf16.msra.mxu0 %v828
  %5385 = vmatpush.bf16.msra.mxu0 %v824
  %5386 = vmatpush.bf16.msra.mxu0 %v820
  %5387 = vmatpush.bf16.msra.mxu0 %v816
  %5388 = vmatpush.bf16.msra.mxu0 %v812
  %5389 = vmatpush.bf16.msra.mxu0 %v808
  %5390 = vmatmul.bf16.gmra.mxu0 %v5264
  %v5391 = vpop.f32.mrf.mxu0
  %v5392 = vadd.f32 %v5379, %v5391
  %v5393 = vpop.f32.mrf.mxu0
  %5394 = vdwg.mxu0
  %5395 = vmatpush.bf16.msra.mxu0 %v805
  %5396 = vmatpush.bf16.msra.mxu0 %v801
  %5397 = vmatpush.bf16.msra.mxu0 %v797
  %5398 = vmatpush.bf16.msra.mxu0 %v793
  %5399 = vmatpush.bf16.msra.mxu0 %v789
  %5400 = vmatpush.bf16.msra.mxu0 %v785
  %5401 = vmatpush.bf16.msra.mxu0 %v781
  %5402 = vmatpush.bf16.msra.mxu0 %v777
  %5403 = vmatmul.bf16.gmra.mxu0 %v5263
  %v5404 = vpop.f32.mrf.mxu0
  %v5405 = vadd.f32 0.0, %v5404
  %v5406 = vpop.f32.mrf.mxu0
  %5407 = vdwg.mxu0
  %5408 = vmatpush.bf16.msra.mxu0 %v837
  %5409 = vmatpush.bf16.msra.mxu0 %v833
  %5410 = vmatpush.bf16.msra.mxu0 %v829
  %5411 = vmatpush.bf16.msra.mxu0 %v825
  %5412 = vmatpush.bf16.msra.mxu0 %v821
  %5413 = vmatpush.bf16.msra.mxu0 %v817
  %5414 = vmatpush.bf16.msra.mxu0 %v813
  %5415 = vmatpush.bf16.msra.mxu0 %v809
  %5416 = vmatmul.bf16.gmra.mxu0 %v5264
  %v5417 = vpop.f32.mrf.mxu0
  %v5418 = vadd.f32 %v5405, %v5417
  %v5419 = vpop.f32.mrf.mxu0
  %5420 = vdwg.mxu0
  %5421 = vmatpush.bf16.msra.mxu0 %v806
  %5422 = vmatpush.bf16.msra.mxu0 %v802
  %5423 = vmatpush.bf16.msra.mxu0 %v798
  %5424 = vmatpush.bf16.msra.mxu0 %v794
  %5425 = vmatpush.bf16.msra.mxu0 %v790
  %5426 = vmatpush.bf16.msra.mxu0 %v786
  %5427 = vmatpush.bf16.msra.mxu0 %v782
  %5428 = vmatpush.bf16.msra.mxu0 %v778
  %5429 = vmatmul.bf16.gmra.mxu0 %v5263
  %v5430 = vpop.f32.mrf.mxu0
  %v5431 = vadd.f32 0.0, %v5430
  %v5432 = vpop.f32.mrf.mxu0
  %5433 = vdwg.mxu0
  %5434 = vmatpush.bf16.msra.mxu0 %v838
  %5435 = vmatpush.bf16.msra.mxu0 %v834
  %5436 = vmatpush.bf16.msra.mxu0 %v830
  %5437 = vmatpush.bf16.msra.mxu0 %v826
  %5438 = vmatpush.bf16.msra.mxu0 %v822
  %5439 = vmatpush.bf16.msra.mxu0 %v818
  %5440 = vmatpush.bf16.msra.mxu0 %v814
  %5441 = vmatpush.bf16.msra.mxu0 %v810
  %5442 = vmatmul.bf16.gmra.mxu0 %v5264
  %v5443 = vpop.f32.mrf.mxu0
  %v5444 = vadd.f32 %v5431, %v5443
  %v5445 = vpop.f32.mrf.mxu0
  %5446 = vdwg.mxu0
  %5447 = vmatpush.bf16.msra.mxu0 %v807
  %5448 = vmatpush.bf16.msra.mxu0 %v803
  %5449 = vmatpush.bf16.msra.mxu0 %v799
  %5450 = vmatpush.bf16.msra.mxu0 %v795
  %5451 = vmatpush.bf16.msra.mxu0 %v791
  %5452 = vmatpush.bf16.msra.mxu0 %v787
  %5453 = vmatpush.bf16.msra.mxu0 %v783
  %5454 = vmatpush.bf16.msra.mxu0 %v779
  %5455 = vmatmul.bf16.gmra.mxu0 %v5263
  %v5456 = vpop.f32.mrf.mxu0
  %v5457 = vadd.f32 0.0, %v5456
  %v5458 = vpop.f32.mrf.mxu0
  %5459 = vdwg.mxu0
  %5460 = vmatpush.bf16.msra.mxu0 %v839
  %5461 = vmatpush.bf16.msra.mxu0 %v835
  %5462 = vmatpush.bf16.msra.mxu0 %v831
  %5463 = vmatpush.bf16.msra.mxu0 %v827
  %5464 = vmatpush.bf16.msra.mxu0 %v823
  %5465 = vmatpush.bf16.msra.mxu0 %v819
  %5466 = vmatpush.bf16.msra.mxu0 %v815
  %5467 = vmatpush.bf16.msra.mxu0 %v811
  %5468 = vmatmul.bf16.gmra.mxu0 %v5264
  %v5469 = vpop.f32.mrf.mxu0
  %v5470 = vadd.f32 %v5457, %v5469
  %v5471 = vpop.f32.mrf.mxu0
  %5472 = vdwg.mxu0
  %5473 = vmatpush.bf16.msra.mxu0 %v1293
  %5474 = vmatpush.bf16.msra.mxu0 %v1289
  %5475 = vmatpush.bf16.msra.mxu0 %v1285
  %5476 = vmatpush.bf16.msra.mxu0 %v1281
  %5477 = vmatpush.bf16.msra.mxu0 %v1277
  %5478 = vmatpush.bf16.msra.mxu0 %v1273
  %5479 = vmatpush.bf16.msra.mxu0 %v1269
  %5480 = vmatpush.bf16.msra.mxu0 %v1265
  %5481 = vmatmul.bf16.gmra.mxu0 %v5263
  %v5482 = vpop.f32.mrf.mxu0
  %v5483 = vadd.f32 0.0, %v5482
  %v5484 = vpop.f32.mrf.mxu0
  %5485 = vdwg.mxu0
  %5486 = vmatpush.bf16.msra.mxu0 %v1325
  %5487 = vmatpush.bf16.msra.mxu0 %v1321
  %5488 = vmatpush.bf16.msra.mxu0 %v1317
  %5489 = vmatpush.bf16.msra.mxu0 %v1313
  %5490 = vmatpush.bf16.msra.mxu0 %v1309
  %5491 = vmatpush.bf16.msra.mxu0 %v1305
  %5492 = vmatpush.bf16.msra.mxu0 %v1301
  %5493 = vmatpush.bf16.msra.mxu0 %v1297
  %5494 = vmatmul.bf16.gmra.mxu0 %v5264
  %v5495 = vpop.f32.mrf.mxu0
  %v5496 = vadd.f32 %v5483, %v5495
  %v5497 = vpop.f32.mrf.mxu0
  %5498 = vdwg.mxu0
  %5499 = vmatpush.bf16.msra.mxu0 %v1294
  %5500 = vmatpush.bf16.msra.mxu0 %v1290
  %5501 = vmatpush.bf16.msra.mxu0 %v1286
  %5502 = vmatpush.bf16.msra.mxu0 %v1282
  %5503 = vmatpush.bf16.msra.mxu0 %v1278
  %5504 = vmatpush.bf16.msra.mxu0 %v1274
  %5505 = vmatpush.bf16.msra.mxu0 %v1270
  %5506 = vmatpush.bf16.msra.mxu0 %v1266
  %5507 = vmatmul.bf16.gmra.mxu0 %v5263
  %v5508 = vpop.f32.mrf.mxu0
  %v5509 = vadd.f32 0.0, %v5508
  %v5510 = vpop.f32.mrf.mxu0
  %5511 = vdwg.mxu0
  %5512 = vmatpush.bf16.msra.mxu0 %v1326
  %5513 = vmatpush.bf16.msra.mxu0 %v1322
  %5514 = vmatpush.bf16.msra.mxu0 %v1318
  %5515 = vmatpush.bf16.msra.mxu0 %v1314
  %5516 = vmatpush.bf16.msra.mxu0 %v1310
  %5517 = vmatpush.bf16.msra.mxu0 %v1306
  %5518 = vmatpush.bf16.msra.mxu0 %v1302
  %5519 = vmatpush.bf16.msra.mxu0 %v1298
  %5520 = vmatmul.bf16.gmra.mxu0 %v5264
  %v5521 = vpop.f32.mrf.mxu0
  %v5522 = vadd.f32 %v5509, %v5521
  %v5523 = vpop.f32.mrf.mxu0
  %5524 = vdwg.mxu0
  %5525 = vmatpush.bf16.msra.mxu0 %v1295
  %5526 = vmatpush.bf16.msra.mxu0 %v1291
  %5527 = vmatpush.bf16.msra.mxu0 %v1287
  %5528 = vmatpush.bf16.msra.mxu0 %v1283
  %5529 = vmatpush.bf16.msra.mxu0 %v1279
  %5530 = vmatpush.bf16.msra.mxu0 %v1275
  %5531 = vmatpush.bf16.msra.mxu0 %v1271
  %5532 = vmatpush.bf16.msra.mxu0 %v1267
  %5533 = vmatmul.bf16.gmra.mxu0 %v5263
  %v5534 = vpop.f32.mrf.mxu0
  %v5535 = vadd.f32 0.0, %v5534
  %v5536 = vpop.f32.mrf.mxu0
  %5537 = vdwg.mxu0
  %5538 = vmatpush.bf16.msra.mxu0 %v1327
  %5539 = vmatpush.bf16.msra.mxu0 %v1323
  %5540 = vmatpush.bf16.msra.mxu0 %v1319
  %5541 = vmatpush.bf16.msra.mxu0 %v1315
  %5542 = vmatpush.bf16.msra.mxu0 %v1311
  %5543 = vmatpush.bf16.msra.mxu0 %v1307
  %5544 = vmatpush.bf16.msra.mxu0 %v1303
  %5545 = vmatpush.bf16.msra.mxu0 %v1299
  %5546 = vmatmul.bf16.gmra.mxu0 %v5264
  %v5547 = vpop.f32.mrf.mxu0
  %v5548 = vadd.f32 %v5535, %v5547
  %v5549 = vpop.f32.mrf.mxu0
  %5550 = vdwg.mxu0
  %5551 = vmatpush.bf16.msra.mxu0 %v1296
  %5552 = vmatpush.bf16.msra.mxu0 %v1292
  %5553 = vmatpush.bf16.msra.mxu0 %v1288
  %5554 = vmatpush.bf16.msra.mxu0 %v1284
  %5555 = vmatpush.bf16.msra.mxu0 %v1280
  %5556 = vmatpush.bf16.msra.mxu0 %v1276
  %5557 = vmatpush.bf16.msra.mxu0 %v1272
  %5558 = vmatpush.bf16.msra.mxu0 %v1268
  %5559 = vmatmul.bf16.gmra.mxu0 %v5263
  %v5560 = vpop.f32.mrf.mxu0
  %v5561 = vadd.f32 0.0, %v5560
  %v5562 = vpop.f32.mrf.mxu0
  %5563 = vdwg.mxu0
  %5564 = vmatpush.bf16.msra.mxu0 %v1328
  %5565 = vmatpush.bf16.msra.mxu0 %v1324
  %5566 = vmatpush.bf16.msra.mxu0 %v1320
  %5567 = vmatpush.bf16.msra.mxu0 %v1316
  %5568 = vmatpush.bf16.msra.mxu0 %v1312
  %5569 = vmatpush.bf16.msra.mxu0 %v1308
  %5570 = vmatpush.bf16.msra.mxu0 %v1304
  %5571 = vmatpush.bf16.msra.mxu0 %v1300
  %5572 = vmatmul.bf16.gmra.mxu0 %v5264
  %v5573 = vpop.f32.mrf.mxu0
  %v5574 = vadd.f32 %v5561, %v5573
  %v5575 = vpop.f32.mrf.mxu0
  %5576 = vdwg.mxu0
  %5577 = vmatpush.bf16.msra.mxu0 %v1782
  %5578 = vmatpush.bf16.msra.mxu0 %v1778
  %5579 = vmatpush.bf16.msra.mxu0 %v1774
  %5580 = vmatpush.bf16.msra.mxu0 %v1770
  %5581 = vmatpush.bf16.msra.mxu0 %v1766
  %5582 = vmatpush.bf16.msra.mxu0 %v1762
  %5583 = vmatpush.bf16.msra.mxu0 %v1758
  %5584 = vmatpush.bf16.msra.mxu0 %v1754
  %5585 = vmatmul.bf16.gmra.mxu0 %v5263
  %v5586 = vpop.f32.mrf.mxu0
  %v5587 = vadd.f32 0.0, %v5586
  %v5588 = vpop.f32.mrf.mxu0
  %5589 = vdwg.mxu0
  %5590 = vmatpush.bf16.msra.mxu0 %v1814
  %5591 = vmatpush.bf16.msra.mxu0 %v1810
  %5592 = vmatpush.bf16.msra.mxu0 %v1806
  %5593 = vmatpush.bf16.msra.mxu0 %v1802
  %5594 = vmatpush.bf16.msra.mxu0 %v1798
  %5595 = vmatpush.bf16.msra.mxu0 %v1794
  %5596 = vmatpush.bf16.msra.mxu0 %v1790
  %5597 = vmatpush.bf16.msra.mxu0 %v1786
  %5598 = vmatmul.bf16.gmra.mxu0 %v5264
  %v5599 = vpop.f32.mrf.mxu0
  %v5600 = vadd.f32 %v5587, %v5599
  %v5601 = vpop.f32.mrf.mxu0
  %5602 = vdwg.mxu0
  %5603 = vmatpush.bf16.msra.mxu0 %v1783
  %5604 = vmatpush.bf16.msra.mxu0 %v1779
  %5605 = vmatpush.bf16.msra.mxu0 %v1775
  %5606 = vmatpush.bf16.msra.mxu0 %v1771
  %5607 = vmatpush.bf16.msra.mxu0 %v1767
  %5608 = vmatpush.bf16.msra.mxu0 %v1763
  %5609 = vmatpush.bf16.msra.mxu0 %v1759
  %5610 = vmatpush.bf16.msra.mxu0 %v1755
  %5611 = vmatmul.bf16.gmra.mxu0 %v5263
  %v5612 = vpop.f32.mrf.mxu0
  %v5613 = vadd.f32 0.0, %v5612
  %v5614 = vpop.f32.mrf.mxu0
  %5615 = vdwg.mxu0
  %5616 = vmatpush.bf16.msra.mxu0 %v1815
  %5617 = vmatpush.bf16.msra.mxu0 %v1811
  %5618 = vmatpush.bf16.msra.mxu0 %v1807
  %5619 = vmatpush.bf16.msra.mxu0 %v1803
  %5620 = vmatpush.bf16.msra.mxu0 %v1799
  %5621 = vmatpush.bf16.msra.mxu0 %v1795
  %5622 = vmatpush.bf16.msra.mxu0 %v1791
  %5623 = vmatpush.bf16.msra.mxu0 %v1787
  %5624 = vmatmul.bf16.gmra.mxu0 %v5264
  %v5625 = vpop.f32.mrf.mxu0
  %v5626 = vadd.f32 %v5613, %v5625
  %v5627 = vpop.f32.mrf.mxu0
  %5628 = vdwg.mxu0
  %5629 = vmatpush.bf16.msra.mxu0 %v1784
  %5630 = vmatpush.bf16.msra.mxu0 %v1780
  %5631 = vmatpush.bf16.msra.mxu0 %v1776
  %5632 = vmatpush.bf16.msra.mxu0 %v1772
  %5633 = vmatpush.bf16.msra.mxu0 %v1768
  %5634 = vmatpush.bf16.msra.mxu0 %v1764
  %5635 = vmatpush.bf16.msra.mxu0 %v1760
  %5636 = vmatpush.bf16.msra.mxu0 %v1756
  %5637 = vmatmul.bf16.gmra.mxu0 %v5263
  %v5638 = vpop.f32.mrf.mxu0
  %v5639 = vadd.f32 0.0, %v5638
  %v5640 = vpop.f32.mrf.mxu0
  %5641 = vdwg.mxu0
  %5642 = vmatpush.bf16.msra.mxu0 %v1816
  %5643 = vmatpush.bf16.msra.mxu0 %v1812
  %5644 = vmatpush.bf16.msra.mxu0 %v1808
  %5645 = vmatpush.bf16.msra.mxu0 %v1804
  %5646 = vmatpush.bf16.msra.mxu0 %v1800
  %5647 = vmatpush.bf16.msra.mxu0 %v1796
  %5648 = vmatpush.bf16.msra.mxu0 %v1792
  %5649 = vmatpush.bf16.msra.mxu0 %v1788
  %5650 = vmatmul.bf16.gmra.mxu0 %v5264
  %v5651 = vpop.f32.mrf.mxu0
  %v5652 = vadd.f32 %v5639, %v5651
  %v5653 = vpop.f32.mrf.mxu0
  %5654 = vdwg.mxu0
  %5655 = vmatpush.bf16.msra.mxu0 %v1785
  %5656 = vmatpush.bf16.msra.mxu0 %v1781
  %5657 = vmatpush.bf16.msra.mxu0 %v1777
  %5658 = vmatpush.bf16.msra.mxu0 %v1773
  %5659 = vmatpush.bf16.msra.mxu0 %v1769
  %5660 = vmatpush.bf16.msra.mxu0 %v1765
  %5661 = vmatpush.bf16.msra.mxu0 %v1761
  %5662 = vmatpush.bf16.msra.mxu0 %v1757
  %5663 = vmatmul.bf16.gmra.mxu0 %v5263
  %v5664 = vpop.f32.mrf.mxu0
  %v5665 = vadd.f32 0.0, %v5664
  %v5666 = vpop.f32.mrf.mxu0
  %5667 = vdwg.mxu0
  %5668 = vmatpush.bf16.msra.mxu0 %v1817
  %5669 = vmatpush.bf16.msra.mxu0 %v1813
  %5670 = vmatpush.bf16.msra.mxu0 %v1809
  %5671 = vmatpush.bf16.msra.mxu0 %v1805
  %5672 = vmatpush.bf16.msra.mxu0 %v1801
  %5673 = vmatpush.bf16.msra.mxu0 %v1797
  %5674 = vmatpush.bf16.msra.mxu0 %v1793
  %5675 = vmatpush.bf16.msra.mxu0 %v1789
  %5676 = vmatmul.bf16.gmra.mxu0 %v5264
  %v5677 = vpop.f32.mrf.mxu0
  %v5678 = vadd.f32 %v5665, %v5677
  %v5679 = vpop.f32.mrf.mxu0
  %5680 = vdwg.mxu0
  %5681 = vmatpush.bf16.msra.mxu0 %v2271
  %5682 = vmatpush.bf16.msra.mxu0 %v2267
  %5683 = vmatpush.bf16.msra.mxu0 %v2263
  %5684 = vmatpush.bf16.msra.mxu0 %v2259
  %5685 = vmatpush.bf16.msra.mxu0 %v2255
  %5686 = vmatpush.bf16.msra.mxu0 %v2251
  %5687 = vmatpush.bf16.msra.mxu0 %v2247
  %5688 = vmatpush.bf16.msra.mxu0 %v2243
  %5689 = vmatmul.bf16.gmra.mxu0 %v5263
  %v5690 = vpop.f32.mrf.mxu0
  %v5691 = vadd.f32 0.0, %v5690
  %v5692 = vpop.f32.mrf.mxu0
  %5693 = vdwg.mxu0
  %5694 = vmatpush.bf16.msra.mxu0 %v2303
  %5695 = vmatpush.bf16.msra.mxu0 %v2299
  %5696 = vmatpush.bf16.msra.mxu0 %v2295
  %5697 = vmatpush.bf16.msra.mxu0 %v2291
  %5698 = vmatpush.bf16.msra.mxu0 %v2287
  %5699 = vmatpush.bf16.msra.mxu0 %v2283
  %5700 = vmatpush.bf16.msra.mxu0 %v2279
  %5701 = vmatpush.bf16.msra.mxu0 %v2275
  %5702 = vmatmul.bf16.gmra.mxu0 %v5264
  %v5703 = vpop.f32.mrf.mxu0
  %v5704 = vadd.f32 %v5691, %v5703
  %v5705 = vpop.f32.mrf.mxu0
  %5706 = vdwg.mxu0
  %5707 = vmatpush.bf16.msra.mxu0 %v2272
  %5708 = vmatpush.bf16.msra.mxu0 %v2268
  %5709 = vmatpush.bf16.msra.mxu0 %v2264
  %5710 = vmatpush.bf16.msra.mxu0 %v2260
  %5711 = vmatpush.bf16.msra.mxu0 %v2256
  %5712 = vmatpush.bf16.msra.mxu0 %v2252
  %5713 = vmatpush.bf16.msra.mxu0 %v2248
  %5714 = vmatpush.bf16.msra.mxu0 %v2244
  %5715 = vmatmul.bf16.gmra.mxu0 %v5263
  %v5716 = vpop.f32.mrf.mxu0
  %v5717 = vadd.f32 0.0, %v5716
  %v5718 = vpop.f32.mrf.mxu0
  %5719 = vdwg.mxu0
  %5720 = vmatpush.bf16.msra.mxu0 %v2304
  %5721 = vmatpush.bf16.msra.mxu0 %v2300
  %5722 = vmatpush.bf16.msra.mxu0 %v2296
  %5723 = vmatpush.bf16.msra.mxu0 %v2292
  %5724 = vmatpush.bf16.msra.mxu0 %v2288
  %5725 = vmatpush.bf16.msra.mxu0 %v2284
  %5726 = vmatpush.bf16.msra.mxu0 %v2280
  %5727 = vmatpush.bf16.msra.mxu0 %v2276
  %5728 = vmatmul.bf16.gmra.mxu0 %v5264
  %v5729 = vpop.f32.mrf.mxu0
  %v5730 = vadd.f32 %v5717, %v5729
  %v5731 = vpop.f32.mrf.mxu0
  %5732 = vdwg.mxu0
  %5733 = vmatpush.bf16.msra.mxu0 %v2273
  %5734 = vmatpush.bf16.msra.mxu0 %v2269
  %5735 = vmatpush.bf16.msra.mxu0 %v2265
  %5736 = vmatpush.bf16.msra.mxu0 %v2261
  %5737 = vmatpush.bf16.msra.mxu0 %v2257
  %5738 = vmatpush.bf16.msra.mxu0 %v2253
  %5739 = vmatpush.bf16.msra.mxu0 %v2249
  %5740 = vmatpush.bf16.msra.mxu0 %v2245
  %5741 = vmatmul.bf16.gmra.mxu0 %v5263
  %v5742 = vpop.f32.mrf.mxu0
  %v5743 = vadd.f32 0.0, %v5742
  %v5744 = vpop.f32.mrf.mxu0
  %5745 = vdwg.mxu0
  %5746 = vmatpush.bf16.msra.mxu0 %v2305
  %5747 = vmatpush.bf16.msra.mxu0 %v2301
  %5748 = vmatpush.bf16.msra.mxu0 %v2297
  %5749 = vmatpush.bf16.msra.mxu0 %v2293
  %5750 = vmatpush.bf16.msra.mxu0 %v2289
  %5751 = vmatpush.bf16.msra.mxu0 %v2285
  %5752 = vmatpush.bf16.msra.mxu0 %v2281
  %5753 = vmatpush.bf16.msra.mxu0 %v2277
  %5754 = vmatmul.bf16.gmra.mxu0 %v5264
  %v5755 = vpop.f32.mrf.mxu0
  %v5756 = vadd.f32 %v5743, %v5755
  %v5757 = vpop.f32.mrf.mxu0
  %5758 = vdwg.mxu0
  %5759 = vmatpush.bf16.msra.mxu0 %v2274
  %5760 = vmatpush.bf16.msra.mxu0 %v2270
  %5761 = vmatpush.bf16.msra.mxu0 %v2266
  %5762 = vmatpush.bf16.msra.mxu0 %v2262
  %5763 = vmatpush.bf16.msra.mxu0 %v2258
  %5764 = vmatpush.bf16.msra.mxu0 %v2254
  %5765 = vmatpush.bf16.msra.mxu0 %v2250
  %5766 = vmatpush.bf16.msra.mxu0 %v2246
  %5767 = vmatmul.bf16.gmra.mxu0 %v5263
  %v5768 = vpop.f32.mrf.mxu0
  %v5769 = vadd.f32 0.0, %v5768
  %v5770 = vpop.f32.mrf.mxu0
  %5771 = vdwg.mxu0
  %5772 = vmatpush.bf16.msra.mxu0 %v2306
  %5773 = vmatpush.bf16.msra.mxu0 %v2302
  %5774 = vmatpush.bf16.msra.mxu0 %v2298
  %5775 = vmatpush.bf16.msra.mxu0 %v2294
  %5776 = vmatpush.bf16.msra.mxu0 %v2290
  %5777 = vmatpush.bf16.msra.mxu0 %v2286
  %5778 = vmatpush.bf16.msra.mxu0 %v2282
  %5779 = vmatpush.bf16.msra.mxu0 %v2278
  %5780 = vmatmul.bf16.gmra.mxu0 %v5264
  %v5781 = vpop.f32.mrf.mxu0
  %v5782 = vadd.f32 %v5769, %v5781
  %v5783 = vpop.f32.mrf.mxu0
  %5784 = vdwg.mxu0
  %5785 = vmatpush.bf16.msra.mxu0 %v2760
  %5786 = vmatpush.bf16.msra.mxu0 %v2756
  %5787 = vmatpush.bf16.msra.mxu0 %v2752
  %5788 = vmatpush.bf16.msra.mxu0 %v2748
  %5789 = vmatpush.bf16.msra.mxu0 %v2744
  %5790 = vmatpush.bf16.msra.mxu0 %v2740
  %5791 = vmatpush.bf16.msra.mxu0 %v2736
  %5792 = vmatpush.bf16.msra.mxu0 %v2732
  %5793 = vmatmul.bf16.gmra.mxu0 %v5263
  %v5794 = vpop.f32.mrf.mxu0
  %v5795 = vadd.f32 0.0, %v5794
  %v5796 = vpop.f32.mrf.mxu0
  %5797 = vdwg.mxu0
  %5798 = vmatpush.bf16.msra.mxu0 %v2792
  %5799 = vmatpush.bf16.msra.mxu0 %v2788
  %5800 = vmatpush.bf16.msra.mxu0 %v2784
  %5801 = vmatpush.bf16.msra.mxu0 %v2780
  %5802 = vmatpush.bf16.msra.mxu0 %v2776
  %5803 = vmatpush.bf16.msra.mxu0 %v2772
  %5804 = vmatpush.bf16.msra.mxu0 %v2768
  %5805 = vmatpush.bf16.msra.mxu0 %v2764
  %5806 = vmatmul.bf16.gmra.mxu0 %v5264
  %v5807 = vpop.f32.mrf.mxu0
  %v5808 = vadd.f32 %v5795, %v5807
  %v5809 = vpop.f32.mrf.mxu0
  %5810 = vdwg.mxu0
  %5811 = vmatpush.bf16.msra.mxu0 %v2761
  %5812 = vmatpush.bf16.msra.mxu0 %v2757
  %5813 = vmatpush.bf16.msra.mxu0 %v2753
  %5814 = vmatpush.bf16.msra.mxu0 %v2749
  %5815 = vmatpush.bf16.msra.mxu0 %v2745
  %5816 = vmatpush.bf16.msra.mxu0 %v2741
  %5817 = vmatpush.bf16.msra.mxu0 %v2737
  %5818 = vmatpush.bf16.msra.mxu0 %v2733
  %5819 = vmatmul.bf16.gmra.mxu0 %v5263
  %v5820 = vpop.f32.mrf.mxu0
  %v5821 = vadd.f32 0.0, %v5820
  %v5822 = vpop.f32.mrf.mxu0
  %5823 = vdwg.mxu0
  %5824 = vmatpush.bf16.msra.mxu0 %v2793
  %5825 = vmatpush.bf16.msra.mxu0 %v2789
  %5826 = vmatpush.bf16.msra.mxu0 %v2785
  %5827 = vmatpush.bf16.msra.mxu0 %v2781
  %5828 = vmatpush.bf16.msra.mxu0 %v2777
  %5829 = vmatpush.bf16.msra.mxu0 %v2773
  %5830 = vmatpush.bf16.msra.mxu0 %v2769
  %5831 = vmatpush.bf16.msra.mxu0 %v2765
  %5832 = vmatmul.bf16.gmra.mxu0 %v5264
  %v5833 = vpop.f32.mrf.mxu0
  %v5834 = vadd.f32 %v5821, %v5833
  %v5835 = vpop.f32.mrf.mxu0
  %5836 = vdwg.mxu0
  %5837 = vmatpush.bf16.msra.mxu0 %v2762
  %5838 = vmatpush.bf16.msra.mxu0 %v2758
  %5839 = vmatpush.bf16.msra.mxu0 %v2754
  %5840 = vmatpush.bf16.msra.mxu0 %v2750
  %5841 = vmatpush.bf16.msra.mxu0 %v2746
  %5842 = vmatpush.bf16.msra.mxu0 %v2742
  %5843 = vmatpush.bf16.msra.mxu0 %v2738
  %5844 = vmatpush.bf16.msra.mxu0 %v2734
  %5845 = vmatmul.bf16.gmra.mxu0 %v5263
  %v5846 = vpop.f32.mrf.mxu0
  %v5847 = vadd.f32 0.0, %v5846
  %v5848 = vpop.f32.mrf.mxu0
  %5849 = vdwg.mxu0
  %5850 = vmatpush.bf16.msra.mxu0 %v2794
  %5851 = vmatpush.bf16.msra.mxu0 %v2790
  %5852 = vmatpush.bf16.msra.mxu0 %v2786
  %5853 = vmatpush.bf16.msra.mxu0 %v2782
  %5854 = vmatpush.bf16.msra.mxu0 %v2778
  %5855 = vmatpush.bf16.msra.mxu0 %v2774
  %5856 = vmatpush.bf16.msra.mxu0 %v2770
  %5857 = vmatpush.bf16.msra.mxu0 %v2766
  %5858 = vmatmul.bf16.gmra.mxu0 %v5264
  %v5859 = vpop.f32.mrf.mxu0
  %v5860 = vadd.f32 %v5847, %v5859
  %v5861 = vpop.f32.mrf.mxu0
  %5862 = vdwg.mxu0
  %5863 = vmatpush.bf16.msra.mxu0 %v2763
  %5864 = vmatpush.bf16.msra.mxu0 %v2759
  %5865 = vmatpush.bf16.msra.mxu0 %v2755
  %5866 = vmatpush.bf16.msra.mxu0 %v2751
  %5867 = vmatpush.bf16.msra.mxu0 %v2747
  %5868 = vmatpush.bf16.msra.mxu0 %v2743
  %5869 = vmatpush.bf16.msra.mxu0 %v2739
  %5870 = vmatpush.bf16.msra.mxu0 %v2735
  %5871 = vmatmul.bf16.gmra.mxu0 %v5263
  %v5872 = vpop.f32.mrf.mxu0
  %v5873 = vadd.f32 0.0, %v5872
  %v5874 = vpop.f32.mrf.mxu0
  %5875 = vdwg.mxu0
  %5876 = vmatpush.bf16.msra.mxu0 %v2795
  %5877 = vmatpush.bf16.msra.mxu0 %v2791
  %5878 = vmatpush.bf16.msra.mxu0 %v2787
  %5879 = vmatpush.bf16.msra.mxu0 %v2783
  %5880 = vmatpush.bf16.msra.mxu0 %v2779
  %5881 = vmatpush.bf16.msra.mxu0 %v2775
  %5882 = vmatpush.bf16.msra.mxu0 %v2771
  %5883 = vmatpush.bf16.msra.mxu0 %v2767
  %5884 = vmatmul.bf16.gmra.mxu0 %v5264
  %v5885 = vpop.f32.mrf.mxu0
  %v5886 = vadd.f32 %v5873, %v5885
  %v5887 = vpop.f32.mrf.mxu0
  %5888 = vdwg.mxu0
  %v5889 = vsel %vm2964, %v5392, %v5288
  %v5890 = vsel %vm2964, %v5418, %v5314
  %v5891 = vsel %vm2964, %v5444, %v5340
  %v5892 = vsel %vm2964, %v5470, %v5366
  %v5893 = vsel %vm2969, %v5600, %v5496
  %v5894 = vsel %vm2969, %v5626, %v5522
  %v5895 = vsel %vm2969, %v5652, %v5548
  %v5896 = vsel %vm2969, %v5678, %v5574
  %v5897 = vsel %vm2974, %v5808, %v5704
  %v5898 = vsel %vm2974, %v5834, %v5730
  %v5899 = vsel %vm2974, %v5860, %v5756
  %v5900 = vsel %vm2974, %v5886, %v5782
  %v5901 = vsel %vm2980, %v5893, %v5889
  %v5902 = vsel %vm2980, %v5894, %v5890
  %v5903 = vsel %vm2980, %v5895, %v5891
  %v5904 = vsel %vm2980, %v5896, %v5892
  %v5905 = vsel %vm2979, %v5897, %v5901
  %v5906 = vsel %vm2979, %v5898, %v5902
  %v5907 = vsel %vm2979, %v5899, %v5903
  %v5908 = vsel %vm2979, %v5900, %v5904
  %v5909 = vadd.f32 %v5905, %v2989
  %v5910 = vadd.f32 %v5906, %v2990
  %v5911 = vadd.f32 %v5907, %v2991
  %v5912 = vadd.f32 %v5908, %v2992
  %v5913 = vxor.u32 %v5909, 2147483648
  %v5914 = vxor.u32 %v5910, 2147483648
  %v5915 = vxor.u32 %v5911, 2147483648
  %v5916 = vmul.f32 %v5913, 1.442695
  %v5917 = vpow.pop %v5916
  %v5918 = vmul.f32 %v5914, 1.442695
  %v5919 = vpow.pop %v5918
  %v5920 = vmul.f32 %v5915, 1.442695
  %v5921 = vpow.pop %v5920
  %v5922 = vadd.f32 %v5917, 1.0
  %v5923 = vadd.f32 %v5919, 1.0
  %v5924 = vadd.f32 %v5921, 1.0
  %v5925 = vrcp.pop %v5922
  %v5926 = vmul.f32 %v5922, %v5925
  %v5927 = vsub.f32 1.0, %v5926
  %v5928 = vmul.f32 %v5925, %v5927
  %v5929 = vadd.f32 %v5925, %v5928
  %vm5930 = vweird.f32 %v5922
  %vm5931 = vweird.f32 %v5925
  %vm5932 = vmor %vm5930, %vm5931
  %v5933 = vsel %vm5932, %v5925, %v5929
  %v5934 = vand.u32 2147483647, %v5922
  %vm5935 = vcmp.eq.f32.partialorder %v5934, 8.507059e+37
  %v5936 = vand.u32 %v5922, 2147483648
  %v5937 = vor.u32 1.1754944e-38, %v5936
  %v5938 = vsel %vm5935, %v5937, %v5933
  %v5939 = vmul.f32 1.0, %v5938
  %v5940 = vrcp.pop %v5923
  %v5941 = vmul.f32 %v5923, %v5940
  %v5942 = vsub.f32 1.0, %v5941
  %v5943 = vmul.f32 %v5940, %v5942
  %v5944 = vadd.f32 %v5940, %v5943
  %vm5945 = vweird.f32 %v5923
  %vm5946 = vweird.f32 %v5940
  %vm5947 = vmor %vm5945, %vm5946
  %v5948 = vsel %vm5947, %v5940, %v5944
  %v5949 = vand.u32 2147483647, %v5923
  %vm5950 = vcmp.eq.f32.partialorder %v5949, 8.507059e+37
  %v5951 = vand.u32 %v5923, 2147483648
  %v5952 = vor.u32 1.1754944e-38, %v5951
  %v5953 = vsel %vm5950, %v5952, %v5948
  %v5954 = vmul.f32 1.0, %v5953
  %v5955 = vrcp.pop %v5924
  %v5956 = vmul.f32 %v5924, %v5955
  %v5957 = vsub.f32 1.0, %v5956
  %v5958 = vmul.f32 %v5955, %v5957
  %v5959 = vadd.f32 %v5955, %v5958
  %vm5960 = vweird.f32 %v5924
  %vm5961 = vweird.f32 %v5955
  %vm5962 = vmor %vm5960, %vm5961
  %v5963 = vsel %vm5962, %v5955, %v5959
  %v5964 = vand.u32 2147483647, %v5924
  %vm5965 = vcmp.eq.f32.partialorder %v5964, 8.507059e+37
  %v5966 = vand.u32 %v5924, 2147483648
  %v5967 = vor.u32 1.1754944e-38, %v5966
  %v5968 = vsel %vm5965, %v5967, %v5963
  %v5969 = vmul.f32 1.0, %v5968
  %v5970 = vtanh.pop %v5912
  %v5971 = vmul.f32 %v5954, %v5244
  %v5972 = vmul.f32 %v5939, %v5970
  %v5973 = vadd.f32 %v5971, %v5972
  %v5974 = vtanh.pop %v5973
  %v5975 = vmul.f32 %v5969, %v5974
  %v5976 = vperm.slane %v5975, 0
  %v5977 = vsel %vm5250, %v5976, %v5249
  %v5978 = vperm.slane %v5975, 1
  %v5979 = vsel %vm5247, %v5978, %v5252
  %v5980 = vperm.slane %v5975, 2
  %v5981 = vsel %vm5250, %v5980, %v5254
  %v5982 = vperm.slane %v5975, 3
  %v5983 = vsel %vm5247, %v5982, %v5256
  %v5984 = vperm.slane %v5975, 4
  %v5985 = vsel %vm5250, %v5984, %v5258
  %v5986 = vperm.slane %v5975, 5
  %v5987 = vsel %vm5247, %v5986, %v5260
  %s5988 = scalar_lea.vmem %s0, 40
  %v5989 = vld [vmem:[%s5988] sm:$0xff]
  %v5990 = vpack.c.bf16 %v5975, %v5975
  %v5991 = vpack.c.bf16 %v5989, %v5989
  %5992 = vmatpush.bf16.msra.mxu0 %v315
  %5993 = vmatpush.bf16.msra.mxu0 %v311
  %5994 = vmatpush.bf16.msra.mxu0 %v307
  %5995 = vmatpush.bf16.msra.mxu0 %v303
  %5996 = vmatpush.bf16.msra.mxu0 %v299
  %5997 = vmatpush.bf16.msra.mxu0 %v295
  %5998 = vmatpush.bf16.msra.mxu0 %v291
  %5999 = vmatpush.bf16.msra.mxu0 %v287
  %6000 = vmatmul.bf16.gmra.mxu0 %v5990
  %v6001 = vpop.f32.mrf.mxu0
  %v6002 = vadd.f32 0.0, %v6001
  %v6003 = vpop.f32.mrf.mxu0
  %6004 = vdwg.mxu0
  %6005 = vmatpush.bf16.msra.mxu0 %v347
  %6006 = vmatpush.bf16.msra.mxu0 %v343
  %6007 = vmatpush.bf16.msra.mxu0 %v339
  %6008 = vmatpush.bf16.msra.mxu0 %v335
  %6009 = vmatpush.bf16.msra.mxu0 %v331
  %6010 = vmatpush.bf16.msra.mxu0 %v327
  %6011 = vmatpush.bf16.msra.mxu0 %v323
  %6012 = vmatpush.bf16.msra.mxu0 %v319
  %6013 = vmatmul.bf16.gmra.mxu0 %v5991
  %v6014 = vpop.f32.mrf.mxu0
  %v6015 = vadd.f32 %v6002, %v6014
  %v6016 = vpop.f32.mrf.mxu0
  %6017 = vdwg.mxu0
  %6018 = vmatpush.bf16.msra.mxu0 %v316
  %6019 = vmatpush.bf16.msra.mxu0 %v312
  %6020 = vmatpush.bf16.msra.mxu0 %v308
  %6021 = vmatpush.bf16.msra.mxu0 %v304
  %6022 = vmatpush.bf16.msra.mxu0 %v300
  %6023 = vmatpush.bf16.msra.mxu0 %v296
  %6024 = vmatpush.bf16.msra.mxu0 %v292
  %6025 = vmatpush.bf16.msra.mxu0 %v288
  %6026 = vmatmul.bf16.gmra.mxu0 %v5990
  %v6027 = vpop.f32.mrf.mxu0
  %v6028 = vadd.f32 0.0, %v6027
  %v6029 = vpop.f32.mrf.mxu0
  %6030 = vdwg.mxu0
  %6031 = vmatpush.bf16.msra.mxu0 %v348
  %6032 = vmatpush.bf16.msra.mxu0 %v344
  %6033 = vmatpush.bf16.msra.mxu0 %v340
  %6034 = vmatpush.bf16.msra.mxu0 %v336
  %6035 = vmatpush.bf16.msra.mxu0 %v332
  %6036 = vmatpush.bf16.msra.mxu0 %v328
  %6037 = vmatpush.bf16.msra.mxu0 %v324
  %6038 = vmatpush.bf16.msra.mxu0 %v320
  %6039 = vmatmul.bf16.gmra.mxu0 %v5991
  %v6040 = vpop.f32.mrf.mxu0
  %v6041 = vadd.f32 %v6028, %v6040
  %v6042 = vpop.f32.mrf.mxu0
  %6043 = vdwg.mxu0
  %6044 = vmatpush.bf16.msra.mxu0 %v317
  %6045 = vmatpush.bf16.msra.mxu0 %v313
  %6046 = vmatpush.bf16.msra.mxu0 %v309
  %6047 = vmatpush.bf16.msra.mxu0 %v305
  %6048 = vmatpush.bf16.msra.mxu0 %v301
  %6049 = vmatpush.bf16.msra.mxu0 %v297
  %6050 = vmatpush.bf16.msra.mxu0 %v293
  %6051 = vmatpush.bf16.msra.mxu0 %v289
  %6052 = vmatmul.bf16.gmra.mxu0 %v5990
  %v6053 = vpop.f32.mrf.mxu0
  %v6054 = vadd.f32 0.0, %v6053
  %v6055 = vpop.f32.mrf.mxu0
  %6056 = vdwg.mxu0
  %6057 = vmatpush.bf16.msra.mxu0 %v349
  %6058 = vmatpush.bf16.msra.mxu0 %v345
  %6059 = vmatpush.bf16.msra.mxu0 %v341
  %6060 = vmatpush.bf16.msra.mxu0 %v337
  %6061 = vmatpush.bf16.msra.mxu0 %v333
  %6062 = vmatpush.bf16.msra.mxu0 %v329
  %6063 = vmatpush.bf16.msra.mxu0 %v325
  %6064 = vmatpush.bf16.msra.mxu0 %v321
  %6065 = vmatmul.bf16.gmra.mxu0 %v5991
  %v6066 = vpop.f32.mrf.mxu0
  %v6067 = vadd.f32 %v6054, %v6066
  %v6068 = vpop.f32.mrf.mxu0
  %6069 = vdwg.mxu0
  %6070 = vmatpush.bf16.msra.mxu0 %v318
  %6071 = vmatpush.bf16.msra.mxu0 %v314
  %6072 = vmatpush.bf16.msra.mxu0 %v310
  %6073 = vmatpush.bf16.msra.mxu0 %v306
  %6074 = vmatpush.bf16.msra.mxu0 %v302
  %6075 = vmatpush.bf16.msra.mxu0 %v298
  %6076 = vmatpush.bf16.msra.mxu0 %v294
  %6077 = vmatpush.bf16.msra.mxu0 %v290
  %6078 = vmatmul.bf16.gmra.mxu0 %v5990
  %v6079 = vpop.f32.mrf.mxu0
  %v6080 = vadd.f32 0.0, %v6079
  %v6081 = vpop.f32.mrf.mxu0
  %6082 = vdwg.mxu0
  %6083 = vmatpush.bf16.msra.mxu0 %v350
  %6084 = vmatpush.bf16.msra.mxu0 %v346
  %6085 = vmatpush.bf16.msra.mxu0 %v342
  %6086 = vmatpush.bf16.msra.mxu0 %v338
  %6087 = vmatpush.bf16.msra.mxu0 %v334
  %6088 = vmatpush.bf16.msra.mxu0 %v330
  %6089 = vmatpush.bf16.msra.mxu0 %v326
  %6090 = vmatpush.bf16.msra.mxu0 %v322
  %6091 = vmatmul.bf16.gmra.mxu0 %v5991
  %v6092 = vpop.f32.mrf.mxu0
  %v6093 = vadd.f32 %v6080, %v6092
  %v6094 = vpop.f32.mrf.mxu0
  %6095 = vdwg.mxu0
  %6096 = vmatpush.bf16.msra.mxu0 %v804
  %6097 = vmatpush.bf16.msra.mxu0 %v800
  %6098 = vmatpush.bf16.msra.mxu0 %v796
  %6099 = vmatpush.bf16.msra.mxu0 %v792
  %6100 = vmatpush.bf16.msra.mxu0 %v788
  %6101 = vmatpush.bf16.msra.mxu0 %v784
  %6102 = vmatpush.bf16.msra.mxu0 %v780
  %6103 = vmatpush.bf16.msra.mxu0 %v776
  %6104 = vmatmul.bf16.gmra.mxu0 %v5990
  %v6105 = vpop.f32.mrf.mxu0
  %v6106 = vadd.f32 0.0, %v6105
  %v6107 = vpop.f32.mrf.mxu0
  %6108 = vdwg.mxu0
  %6109 = vmatpush.bf16.msra.mxu0 %v836
  %6110 = vmatpush.bf16.msra.mxu0 %v832
  %6111 = vmatpush.bf16.msra.mxu0 %v828
  %6112 = vmatpush.bf16.msra.mxu0 %v824
  %6113 = vmatpush.bf16.msra.mxu0 %v820
  %6114 = vmatpush.bf16.msra.mxu0 %v816
  %6115 = vmatpush.bf16.msra.mxu0 %v812
  %6116 = vmatpush.bf16.msra.mxu0 %v808
  %6117 = vmatmul.bf16.gmra.mxu0 %v5991
  %v6118 = vpop.f32.mrf.mxu0
  %v6119 = vadd.f32 %v6106, %v6118
  %v6120 = vpop.f32.mrf.mxu0
  %6121 = vdwg.mxu0
  %6122 = vmatpush.bf16.msra.mxu0 %v805
  %6123 = vmatpush.bf16.msra.mxu0 %v801
  %6124 = vmatpush.bf16.msra.mxu0 %v797
  %6125 = vmatpush.bf16.msra.mxu0 %v793
  %6126 = vmatpush.bf16.msra.mxu0 %v789
  %6127 = vmatpush.bf16.msra.mxu0 %v785
  %6128 = vmatpush.bf16.msra.mxu0 %v781
  %6129 = vmatpush.bf16.msra.mxu0 %v777
  %6130 = vmatmul.bf16.gmra.mxu0 %v5990
  %v6131 = vpop.f32.mrf.mxu0
  %v6132 = vadd.f32 0.0, %v6131
  %v6133 = vpop.f32.mrf.mxu0
  %6134 = vdwg.mxu0
  %6135 = vmatpush.bf16.msra.mxu0 %v837
  %6136 = vmatpush.bf16.msra.mxu0 %v833
  %6137 = vmatpush.bf16.msra.mxu0 %v829
  %6138 = vmatpush.bf16.msra.mxu0 %v825
  %6139 = vmatpush.bf16.msra.mxu0 %v821
  %6140 = vmatpush.bf16.msra.mxu0 %v817
  %6141 = vmatpush.bf16.msra.mxu0 %v813
  %6142 = vmatpush.bf16.msra.mxu0 %v809
  %6143 = vmatmul.bf16.gmra.mxu0 %v5991
  %v6144 = vpop.f32.mrf.mxu0
  %v6145 = vadd.f32 %v6132, %v6144
  %v6146 = vpop.f32.mrf.mxu0
  %6147 = vdwg.mxu0
  %6148 = vmatpush.bf16.msra.mxu0 %v806
  %6149 = vmatpush.bf16.msra.mxu0 %v802
  %6150 = vmatpush.bf16.msra.mxu0 %v798
  %6151 = vmatpush.bf16.msra.mxu0 %v794
  %6152 = vmatpush.bf16.msra.mxu0 %v790
  %6153 = vmatpush.bf16.msra.mxu0 %v786
  %6154 = vmatpush.bf16.msra.mxu0 %v782
  %6155 = vmatpush.bf16.msra.mxu0 %v778
  %6156 = vmatmul.bf16.gmra.mxu0 %v5990
  %v6157 = vpop.f32.mrf.mxu0
  %v6158 = vadd.f32 0.0, %v6157
  %v6159 = vpop.f32.mrf.mxu0
  %6160 = vdwg.mxu0
  %6161 = vmatpush.bf16.msra.mxu0 %v838
  %6162 = vmatpush.bf16.msra.mxu0 %v834
  %6163 = vmatpush.bf16.msra.mxu0 %v830
  %6164 = vmatpush.bf16.msra.mxu0 %v826
  %6165 = vmatpush.bf16.msra.mxu0 %v822
  %6166 = vmatpush.bf16.msra.mxu0 %v818
  %6167 = vmatpush.bf16.msra.mxu0 %v814
  %6168 = vmatpush.bf16.msra.mxu0 %v810
  %6169 = vmatmul.bf16.gmra.mxu0 %v5991
  %v6170 = vpop.f32.mrf.mxu0
  %v6171 = vadd.f32 %v6158, %v6170
  %v6172 = vpop.f32.mrf.mxu0
  %6173 = vdwg.mxu0
  %6174 = vmatpush.bf16.msra.mxu0 %v807
  %6175 = vmatpush.bf16.msra.mxu0 %v803
  %6176 = vmatpush.bf16.msra.mxu0 %v799
  %6177 = vmatpush.bf16.msra.mxu0 %v795
  %6178 = vmatpush.bf16.msra.mxu0 %v791
  %6179 = vmatpush.bf16.msra.mxu0 %v787
  %6180 = vmatpush.bf16.msra.mxu0 %v783
  %6181 = vmatpush.bf16.msra.mxu0 %v779
  %6182 = vmatmul.bf16.gmra.mxu0 %v5990
  %v6183 = vpop.f32.mrf.mxu0
  %v6184 = vadd.f32 0.0, %v6183
  %v6185 = vpop.f32.mrf.mxu0
  %6186 = vdwg.mxu0
  %6187 = vmatpush.bf16.msra.mxu0 %v839
  %6188 = vmatpush.bf16.msra.mxu0 %v835
  %6189 = vmatpush.bf16.msra.mxu0 %v831
  %6190 = vmatpush.bf16.msra.mxu0 %v827
  %6191 = vmatpush.bf16.msra.mxu0 %v823
  %6192 = vmatpush.bf16.msra.mxu0 %v819
  %6193 = vmatpush.bf16.msra.mxu0 %v815
  %6194 = vmatpush.bf16.msra.mxu0 %v811
  %6195 = vmatmul.bf16.gmra.mxu0 %v5991
  %v6196 = vpop.f32.mrf.mxu0
  %v6197 = vadd.f32 %v6184, %v6196
  %v6198 = vpop.f32.mrf.mxu0
  %6199 = vdwg.mxu0
  %6200 = vmatpush.bf16.msra.mxu0 %v1293
  %6201 = vmatpush.bf16.msra.mxu0 %v1289
  %6202 = vmatpush.bf16.msra.mxu0 %v1285
  %6203 = vmatpush.bf16.msra.mxu0 %v1281
  %6204 = vmatpush.bf16.msra.mxu0 %v1277
  %6205 = vmatpush.bf16.msra.mxu0 %v1273
  %6206 = vmatpush.bf16.msra.mxu0 %v1269
  %6207 = vmatpush.bf16.msra.mxu0 %v1265
  %6208 = vmatmul.bf16.gmra.mxu0 %v5990
  %v6209 = vpop.f32.mrf.mxu0
  %v6210 = vadd.f32 0.0, %v6209
  %v6211 = vpop.f32.mrf.mxu0
  %6212 = vdwg.mxu0
  %6213 = vmatpush.bf16.msra.mxu0 %v1325
  %6214 = vmatpush.bf16.msra.mxu0 %v1321
  %6215 = vmatpush.bf16.msra.mxu0 %v1317
  %6216 = vmatpush.bf16.msra.mxu0 %v1313
  %6217 = vmatpush.bf16.msra.mxu0 %v1309
  %6218 = vmatpush.bf16.msra.mxu0 %v1305
  %6219 = vmatpush.bf16.msra.mxu0 %v1301
  %6220 = vmatpush.bf16.msra.mxu0 %v1297
  %6221 = vmatmul.bf16.gmra.mxu0 %v5991
  %v6222 = vpop.f32.mrf.mxu0
  %v6223 = vadd.f32 %v6210, %v6222
  %v6224 = vpop.f32.mrf.mxu0
  %6225 = vdwg.mxu0
  %6226 = vmatpush.bf16.msra.mxu0 %v1294
  %6227 = vmatpush.bf16.msra.mxu0 %v1290
  %6228 = vmatpush.bf16.msra.mxu0 %v1286
  %6229 = vmatpush.bf16.msra.mxu0 %v1282
  %6230 = vmatpush.bf16.msra.mxu0 %v1278
  %6231 = vmatpush.bf16.msra.mxu0 %v1274
  %6232 = vmatpush.bf16.msra.mxu0 %v1270
  %6233 = vmatpush.bf16.msra.mxu0 %v1266
  %6234 = vmatmul.bf16.gmra.mxu0 %v5990
  %v6235 = vpop.f32.mrf.mxu0
  %v6236 = vadd.f32 0.0, %v6235
  %v6237 = vpop.f32.mrf.mxu0
  %6238 = vdwg.mxu0
  %6239 = vmatpush.bf16.msra.mxu0 %v1326
  %6240 = vmatpush.bf16.msra.mxu0 %v1322
  %6241 = vmatpush.bf16.msra.mxu0 %v1318
  %6242 = vmatpush.bf16.msra.mxu0 %v1314
  %6243 = vmatpush.bf16.msra.mxu0 %v1310
  %6244 = vmatpush.bf16.msra.mxu0 %v1306
  %6245 = vmatpush.bf16.msra.mxu0 %v1302
  %6246 = vmatpush.bf16.msra.mxu0 %v1298
  %6247 = vmatmul.bf16.gmra.mxu0 %v5991
  %v6248 = vpop.f32.mrf.mxu0
  %v6249 = vadd.f32 %v6236, %v6248
  %v6250 = vpop.f32.mrf.mxu0
  %6251 = vdwg.mxu0
  %6252 = vmatpush.bf16.msra.mxu0 %v1295
  %6253 = vmatpush.bf16.msra.mxu0 %v1291
  %6254 = vmatpush.bf16.msra.mxu0 %v1287
  %6255 = vmatpush.bf16.msra.mxu0 %v1283
  %6256 = vmatpush.bf16.msra.mxu0 %v1279
  %6257 = vmatpush.bf16.msra.mxu0 %v1275
  %6258 = vmatpush.bf16.msra.mxu0 %v1271
  %6259 = vmatpush.bf16.msra.mxu0 %v1267
  %6260 = vmatmul.bf16.gmra.mxu0 %v5990
  %v6261 = vpop.f32.mrf.mxu0
  %v6262 = vadd.f32 0.0, %v6261
  %v6263 = vpop.f32.mrf.mxu0
  %6264 = vdwg.mxu0
  %6265 = vmatpush.bf16.msra.mxu0 %v1327
  %6266 = vmatpush.bf16.msra.mxu0 %v1323
  %6267 = vmatpush.bf16.msra.mxu0 %v1319
  %6268 = vmatpush.bf16.msra.mxu0 %v1315
  %6269 = vmatpush.bf16.msra.mxu0 %v1311
  %6270 = vmatpush.bf16.msra.mxu0 %v1307
  %6271 = vmatpush.bf16.msra.mxu0 %v1303
  %6272 = vmatpush.bf16.msra.mxu0 %v1299
  %6273 = vmatmul.bf16.gmra.mxu0 %v5991
  %v6274 = vpop.f32.mrf.mxu0
  %v6275 = vadd.f32 %v6262, %v6274
  %v6276 = vpop.f32.mrf.mxu0
  %6277 = vdwg.mxu0
  %6278 = vmatpush.bf16.msra.mxu0 %v1296
  %6279 = vmatpush.bf16.msra.mxu0 %v1292
  %6280 = vmatpush.bf16.msra.mxu0 %v1288
  %6281 = vmatpush.bf16.msra.mxu0 %v1284
  %6282 = vmatpush.bf16.msra.mxu0 %v1280
  %6283 = vmatpush.bf16.msra.mxu0 %v1276
  %6284 = vmatpush.bf16.msra.mxu0 %v1272
  %6285 = vmatpush.bf16.msra.mxu0 %v1268
  %6286 = vmatmul.bf16.gmra.mxu0 %v5990
  %v6287 = vpop.f32.mrf.mxu0
  %v6288 = vadd.f32 0.0, %v6287
  %v6289 = vpop.f32.mrf.mxu0
  %6290 = vdwg.mxu0
  %6291 = vmatpush.bf16.msra.mxu0 %v1328
  %6292 = vmatpush.bf16.msra.mxu0 %v1324
  %6293 = vmatpush.bf16.msra.mxu0 %v1320
  %6294 = vmatpush.bf16.msra.mxu0 %v1316
  %6295 = vmatpush.bf16.msra.mxu0 %v1312
  %6296 = vmatpush.bf16.msra.mxu0 %v1308
  %6297 = vmatpush.bf16.msra.mxu0 %v1304
  %6298 = vmatpush.bf16.msra.mxu0 %v1300
  %6299 = vmatmul.bf16.gmra.mxu0 %v5991
  %v6300 = vpop.f32.mrf.mxu0
  %v6301 = vadd.f32 %v6288, %v6300
  %v6302 = vpop.f32.mrf.mxu0
  %6303 = vdwg.mxu0
  %6304 = vmatpush.bf16.msra.mxu0 %v1782
  %6305 = vmatpush.bf16.msra.mxu0 %v1778
  %6306 = vmatpush.bf16.msra.mxu0 %v1774
  %6307 = vmatpush.bf16.msra.mxu0 %v1770
  %6308 = vmatpush.bf16.msra.mxu0 %v1766
  %6309 = vmatpush.bf16.msra.mxu0 %v1762
  %6310 = vmatpush.bf16.msra.mxu0 %v1758
  %6311 = vmatpush.bf16.msra.mxu0 %v1754
  %6312 = vmatmul.bf16.gmra.mxu0 %v5990
  %v6313 = vpop.f32.mrf.mxu0
  %v6314 = vadd.f32 0.0, %v6313
  %v6315 = vpop.f32.mrf.mxu0
  %6316 = vdwg.mxu0
  %6317 = vmatpush.bf16.msra.mxu0 %v1814
  %6318 = vmatpush.bf16.msra.mxu0 %v1810
  %6319 = vmatpush.bf16.msra.mxu0 %v1806
  %6320 = vmatpush.bf16.msra.mxu0 %v1802
  %6321 = vmatpush.bf16.msra.mxu0 %v1798
  %6322 = vmatpush.bf16.msra.mxu0 %v1794
  %6323 = vmatpush.bf16.msra.mxu0 %v1790
  %6324 = vmatpush.bf16.msra.mxu0 %v1786
  %6325 = vmatmul.bf16.gmra.mxu0 %v5991
  %v6326 = vpop.f32.mrf.mxu0
  %v6327 = vadd.f32 %v6314, %v6326
  %v6328 = vpop.f32.mrf.mxu0
  %6329 = vdwg.mxu0
  %6330 = vmatpush.bf16.msra.mxu0 %v1783
  %6331 = vmatpush.bf16.msra.mxu0 %v1779
  %6332 = vmatpush.bf16.msra.mxu0 %v1775
  %6333 = vmatpush.bf16.msra.mxu0 %v1771
  %6334 = vmatpush.bf16.msra.mxu0 %v1767
  %6335 = vmatpush.bf16.msra.mxu0 %v1763
  %6336 = vmatpush.bf16.msra.mxu0 %v1759
  %6337 = vmatpush.bf16.msra.mxu0 %v1755
  %6338 = vmatmul.bf16.gmra.mxu0 %v5990
  %v6339 = vpop.f32.mrf.mxu0
  %v6340 = vadd.f32 0.0, %v6339
  %v6341 = vpop.f32.mrf.mxu0
  %6342 = vdwg.mxu0
  %6343 = vmatpush.bf16.msra.mxu0 %v1815
  %6344 = vmatpush.bf16.msra.mxu0 %v1811
  %6345 = vmatpush.bf16.msra.mxu0 %v1807
  %6346 = vmatpush.bf16.msra.mxu0 %v1803
  %6347 = vmatpush.bf16.msra.mxu0 %v1799
  %6348 = vmatpush.bf16.msra.mxu0 %v1795
  %6349 = vmatpush.bf16.msra.mxu0 %v1791
  %6350 = vmatpush.bf16.msra.mxu0 %v1787
  %6351 = vmatmul.bf16.gmra.mxu0 %v5991
  %v6352 = vpop.f32.mrf.mxu0
  %v6353 = vadd.f32 %v6340, %v6352
  %v6354 = vpop.f32.mrf.mxu0
  %6355 = vdwg.mxu0
  %6356 = vmatpush.bf16.msra.mxu0 %v1784
  %6357 = vmatpush.bf16.msra.mxu0 %v1780
  %6358 = vmatpush.bf16.msra.mxu0 %v1776
  %6359 = vmatpush.bf16.msra.mxu0 %v1772
  %6360 = vmatpush.bf16.msra.mxu0 %v1768
  %6361 = vmatpush.bf16.msra.mxu0 %v1764
  %6362 = vmatpush.bf16.msra.mxu0 %v1760
  %6363 = vmatpush.bf16.msra.mxu0 %v1756
  %6364 = vmatmul.bf16.gmra.mxu0 %v5990
  %v6365 = vpop.f32.mrf.mxu0
  %v6366 = vadd.f32 0.0, %v6365
  %v6367 = vpop.f32.mrf.mxu0
  %6368 = vdwg.mxu0
  %6369 = vmatpush.bf16.msra.mxu0 %v1816
  %6370 = vmatpush.bf16.msra.mxu0 %v1812
  %6371 = vmatpush.bf16.msra.mxu0 %v1808
  %6372 = vmatpush.bf16.msra.mxu0 %v1804
  %6373 = vmatpush.bf16.msra.mxu0 %v1800
  %6374 = vmatpush.bf16.msra.mxu0 %v1796
  %6375 = vmatpush.bf16.msra.mxu0 %v1792
  %6376 = vmatpush.bf16.msra.mxu0 %v1788
  %6377 = vmatmul.bf16.gmra.mxu0 %v5991
  %v6378 = vpop.f32.mrf.mxu0
  %v6379 = vadd.f32 %v6366, %v6378
  %v6380 = vpop.f32.mrf.mxu0
  %6381 = vdwg.mxu0
  %6382 = vmatpush.bf16.msra.mxu0 %v1785
  %6383 = vmatpush.bf16.msra.mxu0 %v1781
  %6384 = vmatpush.bf16.msra.mxu0 %v1777
  %6385 = vmatpush.bf16.msra.mxu0 %v1773
  %6386 = vmatpush.bf16.msra.mxu0 %v1769
  %6387 = vmatpush.bf16.msra.mxu0 %v1765
  %6388 = vmatpush.bf16.msra.mxu0 %v1761
  %6389 = vmatpush.bf16.msra.mxu0 %v1757
  %6390 = vmatmul.bf16.gmra.mxu0 %v5990
  %v6391 = vpop.f32.mrf.mxu0
  %v6392 = vadd.f32 0.0, %v6391
  %v6393 = vpop.f32.mrf.mxu0
  %6394 = vdwg.mxu0
  %6395 = vmatpush.bf16.msra.mxu0 %v1817
  %6396 = vmatpush.bf16.msra.mxu0 %v1813
  %6397 = vmatpush.bf16.msra.mxu0 %v1809
  %6398 = vmatpush.bf16.msra.mxu0 %v1805
  %6399 = vmatpush.bf16.msra.mxu0 %v1801
  %6400 = vmatpush.bf16.msra.mxu0 %v1797
  %6401 = vmatpush.bf16.msra.mxu0 %v1793
  %6402 = vmatpush.bf16.msra.mxu0 %v1789
  %6403 = vmatmul.bf16.gmra.mxu0 %v5991
  %v6404 = vpop.f32.mrf.mxu0
  %v6405 = vadd.f32 %v6392, %v6404
  %v6406 = vpop.f32.mrf.mxu0
  %6407 = vdwg.mxu0
  %6408 = vmatpush.bf16.msra.mxu0 %v2271
  %6409 = vmatpush.bf16.msra.mxu0 %v2267
  %6410 = vmatpush.bf16.msra.mxu0 %v2263
  %6411 = vmatpush.bf16.msra.mxu0 %v2259
  %6412 = vmatpush.bf16.msra.mxu0 %v2255
  %6413 = vmatpush.bf16.msra.mxu0 %v2251
  %6414 = vmatpush.bf16.msra.mxu0 %v2247
  %6415 = vmatpush.bf16.msra.mxu0 %v2243
  %6416 = vmatmul.bf16.gmra.mxu0 %v5990
  %v6417 = vpop.f32.mrf.mxu0
  %v6418 = vadd.f32 0.0, %v6417
  %v6419 = vpop.f32.mrf.mxu0
  %6420 = vdwg.mxu0
  %6421 = vmatpush.bf16.msra.mxu0 %v2303
  %6422 = vmatpush.bf16.msra.mxu0 %v2299
  %6423 = vmatpush.bf16.msra.mxu0 %v2295
  %6424 = vmatpush.bf16.msra.mxu0 %v2291
  %6425 = vmatpush.bf16.msra.mxu0 %v2287
  %6426 = vmatpush.bf16.msra.mxu0 %v2283
  %6427 = vmatpush.bf16.msra.mxu0 %v2279
  %6428 = vmatpush.bf16.msra.mxu0 %v2275
  %6429 = vmatmul.bf16.gmra.mxu0 %v5991
  %v6430 = vpop.f32.mrf.mxu0
  %v6431 = vadd.f32 %v6418, %v6430
  %v6432 = vpop.f32.mrf.mxu0
  %6433 = vdwg.mxu0
  %6434 = vmatpush.bf16.msra.mxu0 %v2272
  %6435 = vmatpush.bf16.msra.mxu0 %v2268
  %6436 = vmatpush.bf16.msra.mxu0 %v2264
  %6437 = vmatpush.bf16.msra.mxu0 %v2260
  %6438 = vmatpush.bf16.msra.mxu0 %v2256
  %6439 = vmatpush.bf16.msra.mxu0 %v2252
  %6440 = vmatpush.bf16.msra.mxu0 %v2248
  %6441 = vmatpush.bf16.msra.mxu0 %v2244
  %6442 = vmatmul.bf16.gmra.mxu0 %v5990
  %v6443 = vpop.f32.mrf.mxu0
  %v6444 = vadd.f32 0.0, %v6443
  %v6445 = vpop.f32.mrf.mxu0
  %6446 = vdwg.mxu0
  %6447 = vmatpush.bf16.msra.mxu0 %v2304
  %6448 = vmatpush.bf16.msra.mxu0 %v2300
  %6449 = vmatpush.bf16.msra.mxu0 %v2296
  %6450 = vmatpush.bf16.msra.mxu0 %v2292
  %6451 = vmatpush.bf16.msra.mxu0 %v2288
  %6452 = vmatpush.bf16.msra.mxu0 %v2284
  %6453 = vmatpush.bf16.msra.mxu0 %v2280
  %6454 = vmatpush.bf16.msra.mxu0 %v2276
  %6455 = vmatmul.bf16.gmra.mxu0 %v5991
  %v6456 = vpop.f32.mrf.mxu0
  %v6457 = vadd.f32 %v6444, %v6456
  %v6458 = vpop.f32.mrf.mxu0
  %6459 = vdwg.mxu0
  %6460 = vmatpush.bf16.msra.mxu0 %v2273
  %6461 = vmatpush.bf16.msra.mxu0 %v2269
  %6462 = vmatpush.bf16.msra.mxu0 %v2265
  %6463 = vmatpush.bf16.msra.mxu0 %v2261
  %6464 = vmatpush.bf16.msra.mxu0 %v2257
  %6465 = vmatpush.bf16.msra.mxu0 %v2253
  %6466 = vmatpush.bf16.msra.mxu0 %v2249
  %6467 = vmatpush.bf16.msra.mxu0 %v2245
  %6468 = vmatmul.bf16.gmra.mxu0 %v5990
  %v6469 = vpop.f32.mrf.mxu0
  %v6470 = vadd.f32 0.0, %v6469
  %v6471 = vpop.f32.mrf.mxu0
  %6472 = vdwg.mxu0
  %6473 = vmatpush.bf16.msra.mxu0 %v2305
  %6474 = vmatpush.bf16.msra.mxu0 %v2301
  %6475 = vmatpush.bf16.msra.mxu0 %v2297
  %6476 = vmatpush.bf16.msra.mxu0 %v2293
  %6477 = vmatpush.bf16.msra.mxu0 %v2289
  %6478 = vmatpush.bf16.msra.mxu0 %v2285
  %6479 = vmatpush.bf16.msra.mxu0 %v2281
  %6480 = vmatpush.bf16.msra.mxu0 %v2277
  %6481 = vmatmul.bf16.gmra.mxu0 %v5991
  %v6482 = vpop.f32.mrf.mxu0
  %v6483 = vadd.f32 %v6470, %v6482
  %v6484 = vpop.f32.mrf.mxu0
  %6485 = vdwg.mxu0
  %6486 = vmatpush.bf16.msra.mxu0 %v2274
  %6487 = vmatpush.bf16.msra.mxu0 %v2270
  %6488 = vmatpush.bf16.msra.mxu0 %v2266
  %6489 = vmatpush.bf16.msra.mxu0 %v2262
  %6490 = vmatpush.bf16.msra.mxu0 %v2258
  %6491 = vmatpush.bf16.msra.mxu0 %v2254
  %6492 = vmatpush.bf16.msra.mxu0 %v2250
  %6493 = vmatpush.bf16.msra.mxu0 %v2246
  %6494 = vmatmul.bf16.gmra.mxu0 %v5990
  %v6495 = vpop.f32.mrf.mxu0
  %v6496 = vadd.f32 0.0, %v6495
  %v6497 = vpop.f32.mrf.mxu0
  %6498 = vdwg.mxu0
  %6499 = vmatpush.bf16.msra.mxu0 %v2306
  %6500 = vmatpush.bf16.msra.mxu0 %v2302
  %6501 = vmatpush.bf16.msra.mxu0 %v2298
  %6502 = vmatpush.bf16.msra.mxu0 %v2294
  %6503 = vmatpush.bf16.msra.mxu0 %v2290
  %6504 = vmatpush.bf16.msra.mxu0 %v2286
  %6505 = vmatpush.bf16.msra.mxu0 %v2282
  %6506 = vmatpush.bf16.msra.mxu0 %v2278
  %6507 = vmatmul.bf16.gmra.mxu0 %v5991
  %v6508 = vpop.f32.mrf.mxu0
  %v6509 = vadd.f32 %v6496, %v6508
  %v6510 = vpop.f32.mrf.mxu0
  %6511 = vdwg.mxu0
  %6512 = vmatpush.bf16.msra.mxu0 %v2760
  %6513 = vmatpush.bf16.msra.mxu0 %v2756
  %6514 = vmatpush.bf16.msra.mxu0 %v2752
  %6515 = vmatpush.bf16.msra.mxu0 %v2748
  %6516 = vmatpush.bf16.msra.mxu0 %v2744
  %6517 = vmatpush.bf16.msra.mxu0 %v2740
  %6518 = vmatpush.bf16.msra.mxu0 %v2736
  %6519 = vmatpush.bf16.msra.mxu0 %v2732
  %6520 = vmatmul.bf16.gmra.mxu0 %v5990
  %v6521 = vpop.f32.mrf.mxu0
  %v6522 = vadd.f32 0.0, %v6521
  %v6523 = vpop.f32.mrf.mxu0
  %6524 = vdwg.mxu0
  %6525 = vmatpush.bf16.msra.mxu0 %v2792
  %6526 = vmatpush.bf16.msra.mxu0 %v2788
  %6527 = vmatpush.bf16.msra.mxu0 %v2784
  %6528 = vmatpush.bf16.msra.mxu0 %v2780
  %6529 = vmatpush.bf16.msra.mxu0 %v2776
  %6530 = vmatpush.bf16.msra.mxu0 %v2772
  %6531 = vmatpush.bf16.msra.mxu0 %v2768
  %6532 = vmatpush.bf16.msra.mxu0 %v2764
  %6533 = vmatmul.bf16.gmra.mxu0 %v5991
  %v6534 = vpop.f32.mrf.mxu0
  %v6535 = vadd.f32 %v6522, %v6534
  %v6536 = vpop.f32.mrf.mxu0
  %6537 = vdwg.mxu0
  %6538 = vmatpush.bf16.msra.mxu0 %v2761
  %6539 = vmatpush.bf16.msra.mxu0 %v2757
  %6540 = vmatpush.bf16.msra.mxu0 %v2753
  %6541 = vmatpush.bf16.msra.mxu0 %v2749
  %6542 = vmatpush.bf16.msra.mxu0 %v2745
  %6543 = vmatpush.bf16.msra.mxu0 %v2741
  %6544 = vmatpush.bf16.msra.mxu0 %v2737
  %6545 = vmatpush.bf16.msra.mxu0 %v2733
  %6546 = vmatmul.bf16.gmra.mxu0 %v5990
  %v6547 = vpop.f32.mrf.mxu0
  %v6548 = vadd.f32 0.0, %v6547
  %v6549 = vpop.f32.mrf.mxu0
  %6550 = vdwg.mxu0
  %6551 = vmatpush.bf16.msra.mxu0 %v2793
  %6552 = vmatpush.bf16.msra.mxu0 %v2789
  %6553 = vmatpush.bf16.msra.mxu0 %v2785
  %6554 = vmatpush.bf16.msra.mxu0 %v2781
  %6555 = vmatpush.bf16.msra.mxu0 %v2777
  %6556 = vmatpush.bf16.msra.mxu0 %v2773
  %6557 = vmatpush.bf16.msra.mxu0 %v2769
  %6558 = vmatpush.bf16.msra.mxu0 %v2765
  %6559 = vmatmul.bf16.gmra.mxu0 %v5991
  %v6560 = vpop.f32.mrf.mxu0
  %v6561 = vadd.f32 %v6548, %v6560
  %v6562 = vpop.f32.mrf.mxu0
  %6563 = vdwg.mxu0
  %6564 = vmatpush.bf16.msra.mxu0 %v2762
  %6565 = vmatpush.bf16.msra.mxu0 %v2758
  %6566 = vmatpush.bf16.msra.mxu0 %v2754
  %6567 = vmatpush.bf16.msra.mxu0 %v2750
  %6568 = vmatpush.bf16.msra.mxu0 %v2746
  %6569 = vmatpush.bf16.msra.mxu0 %v2742
  %6570 = vmatpush.bf16.msra.mxu0 %v2738
  %6571 = vmatpush.bf16.msra.mxu0 %v2734
  %6572 = vmatmul.bf16.gmra.mxu0 %v5990
  %v6573 = vpop.f32.mrf.mxu0
  %v6574 = vadd.f32 0.0, %v6573
  %v6575 = vpop.f32.mrf.mxu0
  %6576 = vdwg.mxu0
  %6577 = vmatpush.bf16.msra.mxu0 %v2794
  %6578 = vmatpush.bf16.msra.mxu0 %v2790
  %6579 = vmatpush.bf16.msra.mxu0 %v2786
  %6580 = vmatpush.bf16.msra.mxu0 %v2782
  %6581 = vmatpush.bf16.msra.mxu0 %v2778
  %6582 = vmatpush.bf16.msra.mxu0 %v2774
  %6583 = vmatpush.bf16.msra.mxu0 %v2770
  %6584 = vmatpush.bf16.msra.mxu0 %v2766
  %6585 = vmatmul.bf16.gmra.mxu0 %v5991
  %v6586 = vpop.f32.mrf.mxu0
  %v6587 = vadd.f32 %v6574, %v6586
  %v6588 = vpop.f32.mrf.mxu0
  %6589 = vdwg.mxu0
  %6590 = vmatpush.bf16.msra.mxu0 %v2763
  %6591 = vmatpush.bf16.msra.mxu0 %v2759
  %6592 = vmatpush.bf16.msra.mxu0 %v2755
  %6593 = vmatpush.bf16.msra.mxu0 %v2751
  %6594 = vmatpush.bf16.msra.mxu0 %v2747
  %6595 = vmatpush.bf16.msra.mxu0 %v2743
  %6596 = vmatpush.bf16.msra.mxu0 %v2739
  %6597 = vmatpush.bf16.msra.mxu0 %v2735
  %6598 = vmatmul.bf16.gmra.mxu0 %v5990
  %v6599 = vpop.f32.mrf.mxu0
  %v6600 = vadd.f32 0.0, %v6599
  %v6601 = vpop.f32.mrf.mxu0
  %6602 = vdwg.mxu0
  %6603 = vmatpush.bf16.msra.mxu0 %v2795
  %6604 = vmatpush.bf16.msra.mxu0 %v2791
  %6605 = vmatpush.bf16.msra.mxu0 %v2787
  %6606 = vmatpush.bf16.msra.mxu0 %v2783
  %6607 = vmatpush.bf16.msra.mxu0 %v2779
  %6608 = vmatpush.bf16.msra.mxu0 %v2775
  %6609 = vmatpush.bf16.msra.mxu0 %v2771
  %6610 = vmatpush.bf16.msra.mxu0 %v2767
  %6611 = vmatmul.bf16.gmra.mxu0 %v5991
  %v6612 = vpop.f32.mrf.mxu0
  %v6613 = vadd.f32 %v6600, %v6612
  %v6614 = vpop.f32.mrf.mxu0
  %6615 = vdwg.mxu0
  %v6616 = vsel %vm2964, %v6119, %v6015
  %v6617 = vsel %vm2964, %v6145, %v6041
  %v6618 = vsel %vm2964, %v6171, %v6067
  %v6619 = vsel %vm2964, %v6197, %v6093
  %v6620 = vsel %vm2969, %v6327, %v6223
  %v6621 = vsel %vm2969, %v6353, %v6249
  %v6622 = vsel %vm2969, %v6379, %v6275
  %v6623 = vsel %vm2969, %v6405, %v6301
  %v6624 = vsel %vm2974, %v6535, %v6431
  %v6625 = vsel %vm2974, %v6561, %v6457
  %v6626 = vsel %vm2974, %v6587, %v6483
  %v6627 = vsel %vm2974, %v6613, %v6509
  %v6628 = vsel %vm2980, %v6620, %v6616
  %v6629 = vsel %vm2980, %v6621, %v6617
  %v6630 = vsel %vm2980, %v6622, %v6618
  %v6631 = vsel %vm2980, %v6623, %v6619
  %v6632 = vsel %vm2979, %v6624, %v6628
  %v6633 = vsel %vm2979, %v6625, %v6629
  %v6634 = vsel %vm2979, %v6626, %v6630
  %v6635 = vsel %vm2979, %v6627, %v6631
  %v6636 = vadd.f32 %v6632, %v2989
  %v6637 = vadd.f32 %v6633, %v2990
  %v6638 = vadd.f32 %v6634, %v2991
  %v6639 = vadd.f32 %v6635, %v2992
  %v6640 = vxor.u32 %v6636, 2147483648
  %v6641 = vxor.u32 %v6637, 2147483648
  %v6642 = vxor.u32 %v6638, 2147483648
  %v6643 = vmul.f32 %v6640, 1.442695
  %v6644 = vpow.pop %v6643
  %v6645 = vmul.f32 %v6641, 1.442695
  %v6646 = vpow.pop %v6645
  %v6647 = vmul.f32 %v6642, 1.442695
  %v6648 = vpow.pop %v6647
  %v6649 = vadd.f32 %v6644, 1.0
  %v6650 = vadd.f32 %v6646, 1.0
  %v6651 = vadd.f32 %v6648, 1.0
  %v6652 = vrcp.pop %v6649
  %v6653 = vmul.f32 %v6649, %v6652
  %v6654 = vsub.f32 1.0, %v6653
  %v6655 = vmul.f32 %v6652, %v6654
  %v6656 = vadd.f32 %v6652, %v6655
  %vm6657 = vweird.f32 %v6649
  %vm6658 = vweird.f32 %v6652
  %vm6659 = vmor %vm6657, %vm6658
  %v6660 = vsel %vm6659, %v6652, %v6656
  %v6661 = vand.u32 2147483647, %v6649
  %vm6662 = vcmp.eq.f32.partialorder %v6661, 8.507059e+37
  %v6663 = vand.u32 %v6649, 2147483648
  %v6664 = vor.u32 1.1754944e-38, %v6663
  %v6665 = vsel %vm6662, %v6664, %v6660
  %v6666 = vmul.f32 1.0, %v6665
  %v6667 = vrcp.pop %v6650
  %v6668 = vmul.f32 %v6650, %v6667
  %v6669 = vsub.f32 1.0, %v6668
  %v6670 = vmul.f32 %v6667, %v6669
  %v6671 = vadd.f32 %v6667, %v6670
  %vm6672 = vweird.f32 %v6650
  %vm6673 = vweird.f32 %v6667
  %vm6674 = vmor %vm6672, %vm6673
  %v6675 = vsel %vm6674, %v6667, %v6671
  %v6676 = vand.u32 2147483647, %v6650
  %vm6677 = vcmp.eq.f32.partialorder %v6676, 8.507059e+37
  %v6678 = vand.u32 %v6650, 2147483648
  %v6679 = vor.u32 1.1754944e-38, %v6678
  %v6680 = vsel %vm6677, %v6679, %v6675
  %v6681 = vmul.f32 1.0, %v6680
  %v6682 = vrcp.pop %v6651
  %v6683 = vmul.f32 %v6651, %v6682
  %v6684 = vsub.f32 1.0, %v6683
  %v6685 = vmul.f32 %v6682, %v6684
  %v6686 = vadd.f32 %v6682, %v6685
  %vm6687 = vweird.f32 %v6651
  %vm6688 = vweird.f32 %v6682
  %vm6689 = vmor %vm6687, %vm6688
  %v6690 = vsel %vm6689, %v6682, %v6686
  %v6691 = vand.u32 2147483647, %v6651
  %vm6692 = vcmp.eq.f32.partialorder %v6691, 8.507059e+37
  %v6693 = vand.u32 %v6651, 2147483648
  %v6694 = vor.u32 1.1754944e-38, %v6693
  %v6695 = vsel %vm6692, %v6694, %v6690
  %v6696 = vmul.f32 1.0, %v6695
  %v6697 = vtanh.pop %v6639
  %v6698 = vmul.f32 %v6681, %v5973
  %v6699 = vmul.f32 %v6666, %v6697
  %v6700 = vadd.f32 %v6698, %v6699
  %v6701 = vtanh.pop %v6700
  %v6702 = vmul.f32 %v6696, %v6701
  %v6703 = vperm.slane %v6702, 0
  %v6704 = vsel %vm4521, %v6703, %v5977
  %v6705 = vperm.slane %v6702, 1
  %v6706 = vsel %vm4518, %v6705, %v5979
  %v6707 = vperm.slane %v6702, 2
  %v6708 = vsel %vm4521, %v6707, %v5981
  %v6709 = vperm.slane %v6702, 3
  %v6710 = vsel %vm4518, %v6709, %v5983
  %v6711 = vperm.slane %v6702, 4
  %v6712 = vsel %vm4521, %v6711, %v5985
  %v6713 = vperm.slane %v6702, 5
  %v6714 = vsel %vm4518, %v6713, %v5987
  %s6715 = scalar_lea.vmem %s0, 48
  %v6716 = vld [vmem:[%s6715] sm:$0xff]
  %v6717 = vpack.c.bf16 %v6702, %v6702
  %v6718 = vpack.c.bf16 %v6716, %v6716
  %6719 = vmatpush.bf16.msra.mxu0 %v315
  %6720 = vmatpush.bf16.msra.mxu0 %v311
  %6721 = vmatpush.bf16.msra.mxu0 %v307
  %6722 = vmatpush.bf16.msra.mxu0 %v303
  %6723 = vmatpush.bf16.msra.mxu0 %v299
  %6724 = vmatpush.bf16.msra.mxu0 %v295
  %6725 = vmatpush.bf16.msra.mxu0 %v291
  %6726 = vmatpush.bf16.msra.mxu0 %v287
  %6727 = vmatmul.bf16.gmra.mxu0 %v6717
  %v6728 = vpop.f32.mrf.mxu0
  %v6729 = vadd.f32 0.0, %v6728
  %v6730 = vpop.f32.mrf.mxu0
  %6731 = vdwg.mxu0
  %6732 = vmatpush.bf16.msra.mxu0 %v347
  %6733 = vmatpush.bf16.msra.mxu0 %v343
  %6734 = vmatpush.bf16.msra.mxu0 %v339
  %6735 = vmatpush.bf16.msra.mxu0 %v335
  %6736 = vmatpush.bf16.msra.mxu0 %v331
  %6737 = vmatpush.bf16.msra.mxu0 %v327
  %6738 = vmatpush.bf16.msra.mxu0 %v323
  %6739 = vmatpush.bf16.msra.mxu0 %v319
  %6740 = vmatmul.bf16.gmra.mxu0 %v6718
  %v6741 = vpop.f32.mrf.mxu0
  %v6742 = vadd.f32 %v6729, %v6741
  %v6743 = vpop.f32.mrf.mxu0
  %6744 = vdwg.mxu0
  %6745 = vmatpush.bf16.msra.mxu0 %v316
  %6746 = vmatpush.bf16.msra.mxu0 %v312
  %6747 = vmatpush.bf16.msra.mxu0 %v308
  %6748 = vmatpush.bf16.msra.mxu0 %v304
  %6749 = vmatpush.bf16.msra.mxu0 %v300
  %6750 = vmatpush.bf16.msra.mxu0 %v296
  %6751 = vmatpush.bf16.msra.mxu0 %v292
  %6752 = vmatpush.bf16.msra.mxu0 %v288
  %6753 = vmatmul.bf16.gmra.mxu0 %v6717
  %v6754 = vpop.f32.mrf.mxu0
  %v6755 = vadd.f32 0.0, %v6754
  %v6756 = vpop.f32.mrf.mxu0
  %6757 = vdwg.mxu0
  %6758 = vmatpush.bf16.msra.mxu0 %v348
  %6759 = vmatpush.bf16.msra.mxu0 %v344
  %6760 = vmatpush.bf16.msra.mxu0 %v340
  %6761 = vmatpush.bf16.msra.mxu0 %v336
  %6762 = vmatpush.bf16.msra.mxu0 %v332
  %6763 = vmatpush.bf16.msra.mxu0 %v328
  %6764 = vmatpush.bf16.msra.mxu0 %v324
  %6765 = vmatpush.bf16.msra.mxu0 %v320
  %6766 = vmatmul.bf16.gmra.mxu0 %v6718
  %v6767 = vpop.f32.mrf.mxu0
  %v6768 = vadd.f32 %v6755, %v6767
  %v6769 = vpop.f32.mrf.mxu0
  %6770 = vdwg.mxu0
  %6771 = vmatpush.bf16.msra.mxu0 %v317
  %6772 = vmatpush.bf16.msra.mxu0 %v313
  %6773 = vmatpush.bf16.msra.mxu0 %v309
  %6774 = vmatpush.bf16.msra.mxu0 %v305
  %6775 = vmatpush.bf16.msra.mxu0 %v301
  %6776 = vmatpush.bf16.msra.mxu0 %v297
  %6777 = vmatpush.bf16.msra.mxu0 %v293
  %6778 = vmatpush.bf16.msra.mxu0 %v289
  %6779 = vmatmul.bf16.gmra.mxu0 %v6717
  %v6780 = vpop.f32.mrf.mxu0
  %v6781 = vadd.f32 0.0, %v6780
  %v6782 = vpop.f32.mrf.mxu0
  %6783 = vdwg.mxu0
  %6784 = vmatpush.bf16.msra.mxu0 %v349
  %6785 = vmatpush.bf16.msra.mxu0 %v345
  %6786 = vmatpush.bf16.msra.mxu0 %v341
  %6787 = vmatpush.bf16.msra.mxu0 %v337
  %6788 = vmatpush.bf16.msra.mxu0 %v333
  %6789 = vmatpush.bf16.msra.mxu0 %v329
  %6790 = vmatpush.bf16.msra.mxu0 %v325
  %6791 = vmatpush.bf16.msra.mxu0 %v321
  %6792 = vmatmul.bf16.gmra.mxu0 %v6718
  %v6793 = vpop.f32.mrf.mxu0
  %v6794 = vadd.f32 %v6781, %v6793
  %v6795 = vpop.f32.mrf.mxu0
  %6796 = vdwg.mxu0
  %6797 = vmatpush.bf16.msra.mxu0 %v318
  %6798 = vmatpush.bf16.msra.mxu0 %v314
  %6799 = vmatpush.bf16.msra.mxu0 %v310
  %6800 = vmatpush.bf16.msra.mxu0 %v306
  %6801 = vmatpush.bf16.msra.mxu0 %v302
  %6802 = vmatpush.bf16.msra.mxu0 %v298
  %6803 = vmatpush.bf16.msra.mxu0 %v294
  %6804 = vmatpush.bf16.msra.mxu0 %v290
  %6805 = vmatmul.bf16.gmra.mxu0 %v6717
  %v6806 = vpop.f32.mrf.mxu0
  %v6807 = vadd.f32 0.0, %v6806
  %v6808 = vpop.f32.mrf.mxu0
  %6809 = vdwg.mxu0
  %6810 = vmatpush.bf16.msra.mxu0 %v350
  %6811 = vmatpush.bf16.msra.mxu0 %v346
  %6812 = vmatpush.bf16.msra.mxu0 %v342
  %6813 = vmatpush.bf16.msra.mxu0 %v338
  %6814 = vmatpush.bf16.msra.mxu0 %v334
  %6815 = vmatpush.bf16.msra.mxu0 %v330
  %6816 = vmatpush.bf16.msra.mxu0 %v326
  %6817 = vmatpush.bf16.msra.mxu0 %v322
  %6818 = vmatmul.bf16.gmra.mxu0 %v6718
  %v6819 = vpop.f32.mrf.mxu0
  %v6820 = vadd.f32 %v6807, %v6819
  %v6821 = vpop.f32.mrf.mxu0
  %6822 = vdwg.mxu0
  %6823 = vmatpush.bf16.msra.mxu0 %v804
  %6824 = vmatpush.bf16.msra.mxu0 %v800
  %6825 = vmatpush.bf16.msra.mxu0 %v796
  %6826 = vmatpush.bf16.msra.mxu0 %v792
  %6827 = vmatpush.bf16.msra.mxu0 %v788
  %6828 = vmatpush.bf16.msra.mxu0 %v784
  %6829 = vmatpush.bf16.msra.mxu0 %v780
  %6830 = vmatpush.bf16.msra.mxu0 %v776
  %6831 = vmatmul.bf16.gmra.mxu0 %v6717
  %v6832 = vpop.f32.mrf.mxu0
  %v6833 = vadd.f32 0.0, %v6832
  %v6834 = vpop.f32.mrf.mxu0
  %6835 = vdwg.mxu0
  %6836 = vmatpush.bf16.msra.mxu0 %v836
  %6837 = vmatpush.bf16.msra.mxu0 %v832
  %6838 = vmatpush.bf16.msra.mxu0 %v828
  %6839 = vmatpush.bf16.msra.mxu0 %v824
  %6840 = vmatpush.bf16.msra.mxu0 %v820
  %6841 = vmatpush.bf16.msra.mxu0 %v816
  %6842 = vmatpush.bf16.msra.mxu0 %v812
  %6843 = vmatpush.bf16.msra.mxu0 %v808
  %6844 = vmatmul.bf16.gmra.mxu0 %v6718
  %v6845 = vpop.f32.mrf.mxu0
  %v6846 = vadd.f32 %v6833, %v6845
  %v6847 = vpop.f32.mrf.mxu0
  %6848 = vdwg.mxu0
  %6849 = vmatpush.bf16.msra.mxu0 %v805
  %6850 = vmatpush.bf16.msra.mxu0 %v801
  %6851 = vmatpush.bf16.msra.mxu0 %v797
  %6852 = vmatpush.bf16.msra.mxu0 %v793
  %6853 = vmatpush.bf16.msra.mxu0 %v789
  %6854 = vmatpush.bf16.msra.mxu0 %v785
  %6855 = vmatpush.bf16.msra.mxu0 %v781
  %6856 = vmatpush.bf16.msra.mxu0 %v777
  %6857 = vmatmul.bf16.gmra.mxu0 %v6717
  %v6858 = vpop.f32.mrf.mxu0
  %v6859 = vadd.f32 0.0, %v6858
  %v6860 = vpop.f32.mrf.mxu0
  %6861 = vdwg.mxu0
  %6862 = vmatpush.bf16.msra.mxu0 %v837
  %6863 = vmatpush.bf16.msra.mxu0 %v833
  %6864 = vmatpush.bf16.msra.mxu0 %v829
  %6865 = vmatpush.bf16.msra.mxu0 %v825
  %6866 = vmatpush.bf16.msra.mxu0 %v821
  %6867 = vmatpush.bf16.msra.mxu0 %v817
  %6868 = vmatpush.bf16.msra.mxu0 %v813
  %6869 = vmatpush.bf16.msra.mxu0 %v809
  %6870 = vmatmul.bf16.gmra.mxu0 %v6718
  %v6871 = vpop.f32.mrf.mxu0
  %v6872 = vadd.f32 %v6859, %v6871
  %v6873 = vpop.f32.mrf.mxu0
  %6874 = vdwg.mxu0
  %6875 = vmatpush.bf16.msra.mxu0 %v806
  %6876 = vmatpush.bf16.msra.mxu0 %v802
  %6877 = vmatpush.bf16.msra.mxu0 %v798
  %6878 = vmatpush.bf16.msra.mxu0 %v794
  %6879 = vmatpush.bf16.msra.mxu0 %v790
  %6880 = vmatpush.bf16.msra.mxu0 %v786
  %6881 = vmatpush.bf16.msra.mxu0 %v782
  %6882 = vmatpush.bf16.msra.mxu0 %v778
  %6883 = vmatmul.bf16.gmra.mxu0 %v6717
  %v6884 = vpop.f32.mrf.mxu0
  %v6885 = vadd.f32 0.0, %v6884
  %v6886 = vpop.f32.mrf.mxu0
  %6887 = vdwg.mxu0
  %6888 = vmatpush.bf16.msra.mxu0 %v838
  %6889 = vmatpush.bf16.msra.mxu0 %v834
  %6890 = vmatpush.bf16.msra.mxu0 %v830
  %6891 = vmatpush.bf16.msra.mxu0 %v826
  %6892 = vmatpush.bf16.msra.mxu0 %v822
  %6893 = vmatpush.bf16.msra.mxu0 %v818
  %6894 = vmatpush.bf16.msra.mxu0 %v814
  %6895 = vmatpush.bf16.msra.mxu0 %v810
  %6896 = vmatmul.bf16.gmra.mxu0 %v6718
  %v6897 = vpop.f32.mrf.mxu0
  %v6898 = vadd.f32 %v6885, %v6897
  %v6899 = vpop.f32.mrf.mxu0
  %6900 = vdwg.mxu0
  %6901 = vmatpush.bf16.msra.mxu0 %v807
  %6902 = vmatpush.bf16.msra.mxu0 %v803
  %6903 = vmatpush.bf16.msra.mxu0 %v799
  %6904 = vmatpush.bf16.msra.mxu0 %v795
  %6905 = vmatpush.bf16.msra.mxu0 %v791
  %6906 = vmatpush.bf16.msra.mxu0 %v787
  %6907 = vmatpush.bf16.msra.mxu0 %v783
  %6908 = vmatpush.bf16.msra.mxu0 %v779
  %6909 = vmatmul.bf16.gmra.mxu0 %v6717
  %v6910 = vpop.f32.mrf.mxu0
  %v6911 = vadd.f32 0.0, %v6910
  %v6912 = vpop.f32.mrf.mxu0
  %6913 = vdwg.mxu0
  %6914 = vmatpush.bf16.msra.mxu0 %v839
  %6915 = vmatpush.bf16.msra.mxu0 %v835
  %6916 = vmatpush.bf16.msra.mxu0 %v831
  %6917 = vmatpush.bf16.msra.mxu0 %v827
  %6918 = vmatpush.bf16.msra.mxu0 %v823
  %6919 = vmatpush.bf16.msra.mxu0 %v819
  %6920 = vmatpush.bf16.msra.mxu0 %v815
  %6921 = vmatpush.bf16.msra.mxu0 %v811
  %6922 = vmatmul.bf16.gmra.mxu0 %v6718
  %v6923 = vpop.f32.mrf.mxu0
  %v6924 = vadd.f32 %v6911, %v6923
  %v6925 = vpop.f32.mrf.mxu0
  %6926 = vdwg.mxu0
  %6927 = vmatpush.bf16.msra.mxu0 %v1293
  %6928 = vmatpush.bf16.msra.mxu0 %v1289
  %6929 = vmatpush.bf16.msra.mxu0 %v1285
  %6930 = vmatpush.bf16.msra.mxu0 %v1281
  %6931 = vmatpush.bf16.msra.mxu0 %v1277
  %6932 = vmatpush.bf16.msra.mxu0 %v1273
  %6933 = vmatpush.bf16.msra.mxu0 %v1269
  %6934 = vmatpush.bf16.msra.mxu0 %v1265
  %6935 = vmatmul.bf16.gmra.mxu0 %v6717
  %v6936 = vpop.f32.mrf.mxu0
  %v6937 = vadd.f32 0.0, %v6936
  %v6938 = vpop.f32.mrf.mxu0
  %6939 = vdwg.mxu0
  %6940 = vmatpush.bf16.msra.mxu0 %v1325
  %6941 = vmatpush.bf16.msra.mxu0 %v1321
  %6942 = vmatpush.bf16.msra.mxu0 %v1317
  %6943 = vmatpush.bf16.msra.mxu0 %v1313
  %6944 = vmatpush.bf16.msra.mxu0 %v1309
  %6945 = vmatpush.bf16.msra.mxu0 %v1305
  %6946 = vmatpush.bf16.msra.mxu0 %v1301
  %6947 = vmatpush.bf16.msra.mxu0 %v1297
  %6948 = vmatmul.bf16.gmra.mxu0 %v6718
  %v6949 = vpop.f32.mrf.mxu0
  %v6950 = vadd.f32 %v6937, %v6949
  %v6951 = vpop.f32.mrf.mxu0
  %6952 = vdwg.mxu0
  %6953 = vmatpush.bf16.msra.mxu0 %v1294
  %6954 = vmatpush.bf16.msra.mxu0 %v1290
  %6955 = vmatpush.bf16.msra.mxu0 %v1286
  %6956 = vmatpush.bf16.msra.mxu0 %v1282
  %6957 = vmatpush.bf16.msra.mxu0 %v1278
  %6958 = vmatpush.bf16.msra.mxu0 %v1274
  %6959 = vmatpush.bf16.msra.mxu0 %v1270
  %6960 = vmatpush.bf16.msra.mxu0 %v1266
  %6961 = vmatmul.bf16.gmra.mxu0 %v6717
  %v6962 = vpop.f32.mrf.mxu0
  %v6963 = vadd.f32 0.0, %v6962
  %v6964 = vpop.f32.mrf.mxu0
  %6965 = vdwg.mxu0
  %6966 = vmatpush.bf16.msra.mxu0 %v1326
  %6967 = vmatpush.bf16.msra.mxu0 %v1322
  %6968 = vmatpush.bf16.msra.mxu0 %v1318
  %6969 = vmatpush.bf16.msra.mxu0 %v1314
  %6970 = vmatpush.bf16.msra.mxu0 %v1310
  %6971 = vmatpush.bf16.msra.mxu0 %v1306
  %6972 = vmatpush.bf16.msra.mxu0 %v1302
  %6973 = vmatpush.bf16.msra.mxu0 %v1298
  %6974 = vmatmul.bf16.gmra.mxu0 %v6718
  %v6975 = vpop.f32.mrf.mxu0
  %v6976 = vadd.f32 %v6963, %v6975
  %v6977 = vpop.f32.mrf.mxu0
  %6978 = vdwg.mxu0
  %6979 = vmatpush.bf16.msra.mxu0 %v1295
  %6980 = vmatpush.bf16.msra.mxu0 %v1291
  %6981 = vmatpush.bf16.msra.mxu0 %v1287
  %6982 = vmatpush.bf16.msra.mxu0 %v1283
  %6983 = vmatpush.bf16.msra.mxu0 %v1279
  %6984 = vmatpush.bf16.msra.mxu0 %v1275
  %6985 = vmatpush.bf16.msra.mxu0 %v1271
  %6986 = vmatpush.bf16.msra.mxu0 %v1267
  %6987 = vmatmul.bf16.gmra.mxu0 %v6717
  %v6988 = vpop.f32.mrf.mxu0
  %v6989 = vadd.f32 0.0, %v6988
  %v6990 = vpop.f32.mrf.mxu0
  %6991 = vdwg.mxu0
  %6992 = vmatpush.bf16.msra.mxu0 %v1327
  %6993 = vmatpush.bf16.msra.mxu0 %v1323
  %6994 = vmatpush.bf16.msra.mxu0 %v1319
  %6995 = vmatpush.bf16.msra.mxu0 %v1315
  %6996 = vmatpush.bf16.msra.mxu0 %v1311
  %6997 = vmatpush.bf16.msra.mxu0 %v1307
  %6998 = vmatpush.bf16.msra.mxu0 %v1303
  %6999 = vmatpush.bf16.msra.mxu0 %v1299
  %7000 = vmatmul.bf16.gmra.mxu0 %v6718
  %v7001 = vpop.f32.mrf.mxu0
  %v7002 = vadd.f32 %v6989, %v7001
  %v7003 = vpop.f32.mrf.mxu0
  %7004 = vdwg.mxu0
  %7005 = vmatpush.bf16.msra.mxu0 %v1296
  %7006 = vmatpush.bf16.msra.mxu0 %v1292
  %7007 = vmatpush.bf16.msra.mxu0 %v1288
  %7008 = vmatpush.bf16.msra.mxu0 %v1284
  %7009 = vmatpush.bf16.msra.mxu0 %v1280
  %7010 = vmatpush.bf16.msra.mxu0 %v1276
  %7011 = vmatpush.bf16.msra.mxu0 %v1272
  %7012 = vmatpush.bf16.msra.mxu0 %v1268
  %7013 = vmatmul.bf16.gmra.mxu0 %v6717
  %v7014 = vpop.f32.mrf.mxu0
  %v7015 = vadd.f32 0.0, %v7014
  %v7016 = vpop.f32.mrf.mxu0
  %7017 = vdwg.mxu0
  %7018 = vmatpush.bf16.msra.mxu0 %v1328
  %7019 = vmatpush.bf16.msra.mxu0 %v1324
  %7020 = vmatpush.bf16.msra.mxu0 %v1320
  %7021 = vmatpush.bf16.msra.mxu0 %v1316
  %7022 = vmatpush.bf16.msra.mxu0 %v1312
  %7023 = vmatpush.bf16.msra.mxu0 %v1308
  %7024 = vmatpush.bf16.msra.mxu0 %v1304
  %7025 = vmatpush.bf16.msra.mxu0 %v1300
  %7026 = vmatmul.bf16.gmra.mxu0 %v6718
  %v7027 = vpop.f32.mrf.mxu0
  %v7028 = vadd.f32 %v7015, %v7027
  %v7029 = vpop.f32.mrf.mxu0
  %7030 = vdwg.mxu0
  %7031 = vmatpush.bf16.msra.mxu0 %v1782
  %7032 = vmatpush.bf16.msra.mxu0 %v1778
  %7033 = vmatpush.bf16.msra.mxu0 %v1774
  %7034 = vmatpush.bf16.msra.mxu0 %v1770
  %7035 = vmatpush.bf16.msra.mxu0 %v1766
  %7036 = vmatpush.bf16.msra.mxu0 %v1762
  %7037 = vmatpush.bf16.msra.mxu0 %v1758
  %7038 = vmatpush.bf16.msra.mxu0 %v1754
  %7039 = vmatmul.bf16.gmra.mxu0 %v6717
  %v7040 = vpop.f32.mrf.mxu0
  %v7041 = vadd.f32 0.0, %v7040
  %v7042 = vpop.f32.mrf.mxu0
  %7043 = vdwg.mxu0
  %7044 = vmatpush.bf16.msra.mxu0 %v1814
  %7045 = vmatpush.bf16.msra.mxu0 %v1810
  %7046 = vmatpush.bf16.msra.mxu0 %v1806
  %7047 = vmatpush.bf16.msra.mxu0 %v1802
  %7048 = vmatpush.bf16.msra.mxu0 %v1798
  %7049 = vmatpush.bf16.msra.mxu0 %v1794
  %7050 = vmatpush.bf16.msra.mxu0 %v1790
  %7051 = vmatpush.bf16.msra.mxu0 %v1786
  %7052 = vmatmul.bf16.gmra.mxu0 %v6718
  %v7053 = vpop.f32.mrf.mxu0
  %v7054 = vadd.f32 %v7041, %v7053
  %v7055 = vpop.f32.mrf.mxu0
  %7056 = vdwg.mxu0
  %7057 = vmatpush.bf16.msra.mxu0 %v1783
  %7058 = vmatpush.bf16.msra.mxu0 %v1779
  %7059 = vmatpush.bf16.msra.mxu0 %v1775
  %7060 = vmatpush.bf16.msra.mxu0 %v1771
  %7061 = vmatpush.bf16.msra.mxu0 %v1767
  %7062 = vmatpush.bf16.msra.mxu0 %v1763
  %7063 = vmatpush.bf16.msra.mxu0 %v1759
  %7064 = vmatpush.bf16.msra.mxu0 %v1755
  %7065 = vmatmul.bf16.gmra.mxu0 %v6717
  %v7066 = vpop.f32.mrf.mxu0
  %v7067 = vadd.f32 0.0, %v7066
  %v7068 = vpop.f32.mrf.mxu0
  %7069 = vdwg.mxu0
  %7070 = vmatpush.bf16.msra.mxu0 %v1815
  %7071 = vmatpush.bf16.msra.mxu0 %v1811
  %7072 = vmatpush.bf16.msra.mxu0 %v1807
  %7073 = vmatpush.bf16.msra.mxu0 %v1803
  %7074 = vmatpush.bf16.msra.mxu0 %v1799
  %7075 = vmatpush.bf16.msra.mxu0 %v1795
  %7076 = vmatpush.bf16.msra.mxu0 %v1791
  %7077 = vmatpush.bf16.msra.mxu0 %v1787
  %7078 = vmatmul.bf16.gmra.mxu0 %v6718
  %v7079 = vpop.f32.mrf.mxu0
  %v7080 = vadd.f32 %v7067, %v7079
  %v7081 = vpop.f32.mrf.mxu0
  %7082 = vdwg.mxu0
  %7083 = vmatpush.bf16.msra.mxu0 %v1784
  %7084 = vmatpush.bf16.msra.mxu0 %v1780
  %7085 = vmatpush.bf16.msra.mxu0 %v1776
  %7086 = vmatpush.bf16.msra.mxu0 %v1772
  %7087 = vmatpush.bf16.msra.mxu0 %v1768
  %7088 = vmatpush.bf16.msra.mxu0 %v1764
  %7089 = vmatpush.bf16.msra.mxu0 %v1760
  %7090 = vmatpush.bf16.msra.mxu0 %v1756
  %7091 = vmatmul.bf16.gmra.mxu0 %v6717
  %v7092 = vpop.f32.mrf.mxu0
  %v7093 = vadd.f32 0.0, %v7092
  %v7094 = vpop.f32.mrf.mxu0
  %7095 = vdwg.mxu0
  %7096 = vmatpush.bf16.msra.mxu0 %v1816
  %7097 = vmatpush.bf16.msra.mxu0 %v1812
  %7098 = vmatpush.bf16.msra.mxu0 %v1808
  %7099 = vmatpush.bf16.msra.mxu0 %v1804
  %7100 = vmatpush.bf16.msra.mxu0 %v1800
  %7101 = vmatpush.bf16.msra.mxu0 %v1796
  %7102 = vmatpush.bf16.msra.mxu0 %v1792
  %7103 = vmatpush.bf16.msra.mxu0 %v1788
  %7104 = vmatmul.bf16.gmra.mxu0 %v6718
  %v7105 = vpop.f32.mrf.mxu0
  %v7106 = vadd.f32 %v7093, %v7105
  %v7107 = vpop.f32.mrf.mxu0
  %7108 = vdwg.mxu0
  %7109 = vmatpush.bf16.msra.mxu0 %v1785
  %7110 = vmatpush.bf16.msra.mxu0 %v1781
  %7111 = vmatpush.bf16.msra.mxu0 %v1777
  %7112 = vmatpush.bf16.msra.mxu0 %v1773
  %7113 = vmatpush.bf16.msra.mxu0 %v1769
  %7114 = vmatpush.bf16.msra.mxu0 %v1765
  %7115 = vmatpush.bf16.msra.mxu0 %v1761
  %7116 = vmatpush.bf16.msra.mxu0 %v1757
  %7117 = vmatmul.bf16.gmra.mxu0 %v6717
  %v7118 = vpop.f32.mrf.mxu0
  %v7119 = vadd.f32 0.0, %v7118
  %v7120 = vpop.f32.mrf.mxu0
  %7121 = vdwg.mxu0
  %7122 = vmatpush.bf16.msra.mxu0 %v1817
  %7123 = vmatpush.bf16.msra.mxu0 %v1813
  %7124 = vmatpush.bf16.msra.mxu0 %v1809
  %7125 = vmatpush.bf16.msra.mxu0 %v1805
  %7126 = vmatpush.bf16.msra.mxu0 %v1801
  %7127 = vmatpush.bf16.msra.mxu0 %v1797
  %7128 = vmatpush.bf16.msra.mxu0 %v1793
  %7129 = vmatpush.bf16.msra.mxu0 %v1789
  %7130 = vmatmul.bf16.gmra.mxu0 %v6718
  %v7131 = vpop.f32.mrf.mxu0
  %v7132 = vadd.f32 %v7119, %v7131
  %v7133 = vpop.f32.mrf.mxu0
  %7134 = vdwg.mxu0
  %7135 = vmatpush.bf16.msra.mxu0 %v2271
  %7136 = vmatpush.bf16.msra.mxu0 %v2267
  %7137 = vmatpush.bf16.msra.mxu0 %v2263
  %7138 = vmatpush.bf16.msra.mxu0 %v2259
  %7139 = vmatpush.bf16.msra.mxu0 %v2255
  %7140 = vmatpush.bf16.msra.mxu0 %v2251
  %7141 = vmatpush.bf16.msra.mxu0 %v2247
  %7142 = vmatpush.bf16.msra.mxu0 %v2243
  %7143 = vmatmul.bf16.gmra.mxu0 %v6717
  %v7144 = vpop.f32.mrf.mxu0
  %v7145 = vadd.f32 0.0, %v7144
  %v7146 = vpop.f32.mrf.mxu0
  %7147 = vdwg.mxu0
  %7148 = vmatpush.bf16.msra.mxu0 %v2303
  %7149 = vmatpush.bf16.msra.mxu0 %v2299
  %7150 = vmatpush.bf16.msra.mxu0 %v2295
  %7151 = vmatpush.bf16.msra.mxu0 %v2291
  %7152 = vmatpush.bf16.msra.mxu0 %v2287
  %7153 = vmatpush.bf16.msra.mxu0 %v2283
  %7154 = vmatpush.bf16.msra.mxu0 %v2279
  %7155 = vmatpush.bf16.msra.mxu0 %v2275
  %7156 = vmatmul.bf16.gmra.mxu0 %v6718
  %v7157 = vpop.f32.mrf.mxu0
  %v7158 = vadd.f32 %v7145, %v7157
  %v7159 = vpop.f32.mrf.mxu0
  %7160 = vdwg.mxu0
  %7161 = vmatpush.bf16.msra.mxu0 %v2272
  %7162 = vmatpush.bf16.msra.mxu0 %v2268
  %7163 = vmatpush.bf16.msra.mxu0 %v2264
  %7164 = vmatpush.bf16.msra.mxu0 %v2260
  %7165 = vmatpush.bf16.msra.mxu0 %v2256
  %7166 = vmatpush.bf16.msra.mxu0 %v2252
  %7167 = vmatpush.bf16.msra.mxu0 %v2248
  %7168 = vmatpush.bf16.msra.mxu0 %v2244
  %7169 = vmatmul.bf16.gmra.mxu0 %v6717
  %v7170 = vpop.f32.mrf.mxu0
  %v7171 = vadd.f32 0.0, %v7170
  %v7172 = vpop.f32.mrf.mxu0
  %7173 = vdwg.mxu0
  %7174 = vmatpush.bf16.msra.mxu0 %v2304
  %7175 = vmatpush.bf16.msra.mxu0 %v2300
  %7176 = vmatpush.bf16.msra.mxu0 %v2296
  %7177 = vmatpush.bf16.msra.mxu0 %v2292
  %7178 = vmatpush.bf16.msra.mxu0 %v2288
  %7179 = vmatpush.bf16.msra.mxu0 %v2284
  %7180 = vmatpush.bf16.msra.mxu0 %v2280
  %7181 = vmatpush.bf16.msra.mxu0 %v2276
  %7182 = vmatmul.bf16.gmra.mxu0 %v6718
  %v7183 = vpop.f32.mrf.mxu0
  %v7184 = vadd.f32 %v7171, %v7183
  %v7185 = vpop.f32.mrf.mxu0
  %7186 = vdwg.mxu0
  %7187 = vmatpush.bf16.msra.mxu0 %v2273
  %7188 = vmatpush.bf16.msra.mxu0 %v2269
  %7189 = vmatpush.bf16.msra.mxu0 %v2265
  %7190 = vmatpush.bf16.msra.mxu0 %v2261
  %7191 = vmatpush.bf16.msra.mxu0 %v2257
  %7192 = vmatpush.bf16.msra.mxu0 %v2253
  %7193 = vmatpush.bf16.msra.mxu0 %v2249
  %7194 = vmatpush.bf16.msra.mxu0 %v2245
  %7195 = vmatmul.bf16.gmra.mxu0 %v6717
  %v7196 = vpop.f32.mrf.mxu0
  %v7197 = vadd.f32 0.0, %v7196
  %v7198 = vpop.f32.mrf.mxu0
  %7199 = vdwg.mxu0
  %7200 = vmatpush.bf16.msra.mxu0 %v2305
  %7201 = vmatpush.bf16.msra.mxu0 %v2301
  %7202 = vmatpush.bf16.msra.mxu0 %v2297
  %7203 = vmatpush.bf16.msra.mxu0 %v2293
  %7204 = vmatpush.bf16.msra.mxu0 %v2289
  %7205 = vmatpush.bf16.msra.mxu0 %v2285
  %7206 = vmatpush.bf16.msra.mxu0 %v2281
  %7207 = vmatpush.bf16.msra.mxu0 %v2277
  %7208 = vmatmul.bf16.gmra.mxu0 %v6718
  %v7209 = vpop.f32.mrf.mxu0
  %v7210 = vadd.f32 %v7197, %v7209
  %v7211 = vpop.f32.mrf.mxu0
  %7212 = vdwg.mxu0
  %7213 = vmatpush.bf16.msra.mxu0 %v2274
  %7214 = vmatpush.bf16.msra.mxu0 %v2270
  %7215 = vmatpush.bf16.msra.mxu0 %v2266
  %7216 = vmatpush.bf16.msra.mxu0 %v2262
  %7217 = vmatpush.bf16.msra.mxu0 %v2258
  %7218 = vmatpush.bf16.msra.mxu0 %v2254
  %7219 = vmatpush.bf16.msra.mxu0 %v2250
  %7220 = vmatpush.bf16.msra.mxu0 %v2246
  %7221 = vmatmul.bf16.gmra.mxu0 %v6717
  %v7222 = vpop.f32.mrf.mxu0
  %v7223 = vadd.f32 0.0, %v7222
  %v7224 = vpop.f32.mrf.mxu0
  %7225 = vdwg.mxu0
  %7226 = vmatpush.bf16.msra.mxu0 %v2306
  %7227 = vmatpush.bf16.msra.mxu0 %v2302
  %7228 = vmatpush.bf16.msra.mxu0 %v2298
  %7229 = vmatpush.bf16.msra.mxu0 %v2294
  %7230 = vmatpush.bf16.msra.mxu0 %v2290
  %7231 = vmatpush.bf16.msra.mxu0 %v2286
  %7232 = vmatpush.bf16.msra.mxu0 %v2282
  %7233 = vmatpush.bf16.msra.mxu0 %v2278
  %7234 = vmatmul.bf16.gmra.mxu0 %v6718
  %v7235 = vpop.f32.mrf.mxu0
  %v7236 = vadd.f32 %v7223, %v7235
  %v7237 = vpop.f32.mrf.mxu0
  %7238 = vdwg.mxu0
  %7239 = vmatpush.bf16.msra.mxu0 %v2760
  %7240 = vmatpush.bf16.msra.mxu0 %v2756
  %7241 = vmatpush.bf16.msra.mxu0 %v2752
  %7242 = vmatpush.bf16.msra.mxu0 %v2748
  %7243 = vmatpush.bf16.msra.mxu0 %v2744
  %7244 = vmatpush.bf16.msra.mxu0 %v2740
  %7245 = vmatpush.bf16.msra.mxu0 %v2736
  %7246 = vmatpush.bf16.msra.mxu0 %v2732
  %7247 = vmatmul.bf16.gmra.mxu0 %v6717
  %v7248 = vpop.f32.mrf.mxu0
  %v7249 = vadd.f32 0.0, %v7248
  %v7250 = vpop.f32.mrf.mxu0
  %7251 = vdwg.mxu0
  %7252 = vmatpush.bf16.msra.mxu0 %v2792
  %7253 = vmatpush.bf16.msra.mxu0 %v2788
  %7254 = vmatpush.bf16.msra.mxu0 %v2784
  %7255 = vmatpush.bf16.msra.mxu0 %v2780
  %7256 = vmatpush.bf16.msra.mxu0 %v2776
  %7257 = vmatpush.bf16.msra.mxu0 %v2772
  %7258 = vmatpush.bf16.msra.mxu0 %v2768
  %7259 = vmatpush.bf16.msra.mxu0 %v2764
  %7260 = vmatmul.bf16.gmra.mxu0 %v6718
  %v7261 = vpop.f32.mrf.mxu0
  %v7262 = vadd.f32 %v7249, %v7261
  %v7263 = vpop.f32.mrf.mxu0
  %7264 = vdwg.mxu0
  %7265 = vmatpush.bf16.msra.mxu0 %v2761
  %7266 = vmatpush.bf16.msra.mxu0 %v2757
  %7267 = vmatpush.bf16.msra.mxu0 %v2753
  %7268 = vmatpush.bf16.msra.mxu0 %v2749
  %7269 = vmatpush.bf16.msra.mxu0 %v2745
  %7270 = vmatpush.bf16.msra.mxu0 %v2741
  %7271 = vmatpush.bf16.msra.mxu0 %v2737
  %7272 = vmatpush.bf16.msra.mxu0 %v2733
  %7273 = vmatmul.bf16.gmra.mxu0 %v6717
  %v7274 = vpop.f32.mrf.mxu0
  %v7275 = vadd.f32 0.0, %v7274
  %v7276 = vpop.f32.mrf.mxu0
  %7277 = vdwg.mxu0
  %7278 = vmatpush.bf16.msra.mxu0 %v2793
  %7279 = vmatpush.bf16.msra.mxu0 %v2789
  %7280 = vmatpush.bf16.msra.mxu0 %v2785
  %7281 = vmatpush.bf16.msra.mxu0 %v2781
  %7282 = vmatpush.bf16.msra.mxu0 %v2777
  %7283 = vmatpush.bf16.msra.mxu0 %v2773
  %7284 = vmatpush.bf16.msra.mxu0 %v2769
  %7285 = vmatpush.bf16.msra.mxu0 %v2765
  %7286 = vmatmul.bf16.gmra.mxu0 %v6718
  %v7287 = vpop.f32.mrf.mxu0
  %v7288 = vadd.f32 %v7275, %v7287
  %v7289 = vpop.f32.mrf.mxu0
  %7290 = vdwg.mxu0
  %7291 = vmatpush.bf16.msra.mxu0 %v2762
  %7292 = vmatpush.bf16.msra.mxu0 %v2758
  %7293 = vmatpush.bf16.msra.mxu0 %v2754
  %7294 = vmatpush.bf16.msra.mxu0 %v2750
  %7295 = vmatpush.bf16.msra.mxu0 %v2746
  %7296 = vmatpush.bf16.msra.mxu0 %v2742
  %7297 = vmatpush.bf16.msra.mxu0 %v2738
  %7298 = vmatpush.bf16.msra.mxu0 %v2734
  %7299 = vmatmul.bf16.gmra.mxu0 %v6717
  %v7300 = vpop.f32.mrf.mxu0
  %v7301 = vadd.f32 0.0, %v7300
  %v7302 = vpop.f32.mrf.mxu0
  %7303 = vdwg.mxu0
  %7304 = vmatpush.bf16.msra.mxu0 %v2794
  %7305 = vmatpush.bf16.msra.mxu0 %v2790
  %7306 = vmatpush.bf16.msra.mxu0 %v2786
  %7307 = vmatpush.bf16.msra.mxu0 %v2782
  %7308 = vmatpush.bf16.msra.mxu0 %v2778
  %7309 = vmatpush.bf16.msra.mxu0 %v2774
  %7310 = vmatpush.bf16.msra.mxu0 %v2770
  %7311 = vmatpush.bf16.msra.mxu0 %v2766
  %7312 = vmatmul.bf16.gmra.mxu0 %v6718
  %v7313 = vpop.f32.mrf.mxu0
  %v7314 = vadd.f32 %v7301, %v7313
  %v7315 = vpop.f32.mrf.mxu0
  %7316 = vdwg.mxu0
  %7317 = vmatpush.bf16.msra.mxu0 %v2763
  %7318 = vmatpush.bf16.msra.mxu0 %v2759
  %7319 = vmatpush.bf16.msra.mxu0 %v2755
  %7320 = vmatpush.bf16.msra.mxu0 %v2751
  %7321 = vmatpush.bf16.msra.mxu0 %v2747
  %7322 = vmatpush.bf16.msra.mxu0 %v2743
  %7323 = vmatpush.bf16.msra.mxu0 %v2739
  %7324 = vmatpush.bf16.msra.mxu0 %v2735
  %7325 = vmatmul.bf16.gmra.mxu0 %v6717
  %v7326 = vpop.f32.mrf.mxu0
  %v7327 = vadd.f32 0.0, %v7326
  %v7328 = vpop.f32.mrf.mxu0
  %7329 = vdwg.mxu0
  %7330 = vmatpush.bf16.msra.mxu0 %v2795
  %7331 = vmatpush.bf16.msra.mxu0 %v2791
  %7332 = vmatpush.bf16.msra.mxu0 %v2787
  %7333 = vmatpush.bf16.msra.mxu0 %v2783
  %7334 = vmatpush.bf16.msra.mxu0 %v2779
  %7335 = vmatpush.bf16.msra.mxu0 %v2775
  %7336 = vmatpush.bf16.msra.mxu0 %v2771
  %7337 = vmatpush.bf16.msra.mxu0 %v2767
  %7338 = vmatmul.bf16.gmra.mxu0 %v6718
  %v7339 = vpop.f32.mrf.mxu0
  %v7340 = vadd.f32 %v7327, %v7339
  %v7341 = vpop.f32.mrf.mxu0
  %7342 = vdwg.mxu0
  %v7343 = vsel %vm2964, %v6846, %v6742
  %v7344 = vsel %vm2964, %v6872, %v6768
  %v7345 = vsel %vm2964, %v6898, %v6794
  %v7346 = vsel %vm2964, %v6924, %v6820
  %v7347 = vsel %vm2969, %v7054, %v6950
  %v7348 = vsel %vm2969, %v7080, %v6976
  %v7349 = vsel %vm2969, %v7106, %v7002
  %v7350 = vsel %vm2969, %v7132, %v7028
  %v7351 = vsel %vm2974, %v7262, %v7158
  %v7352 = vsel %vm2974, %v7288, %v7184
  %v7353 = vsel %vm2974, %v7314, %v7210
  %v7354 = vsel %vm2974, %v7340, %v7236
  %v7355 = vsel %vm2980, %v7347, %v7343
  %v7356 = vsel %vm2980, %v7348, %v7344
  %v7357 = vsel %vm2980, %v7349, %v7345
  %v7358 = vsel %vm2980, %v7350, %v7346
  %v7359 = vsel %vm2979, %v7351, %v7355
  %v7360 = vsel %vm2979, %v7352, %v7356
  %v7361 = vsel %vm2979, %v7353, %v7357
  %v7362 = vsel %vm2979, %v7354, %v7358
  %v7363 = vadd.f32 %v7359, %v2989
  %v7364 = vadd.f32 %v7360, %v2990
  %v7365 = vadd.f32 %v7361, %v2991
  %v7366 = vadd.f32 %v7362, %v2992
  %v7367 = vxor.u32 %v7363, 2147483648
  %v7368 = vxor.u32 %v7364, 2147483648
  %v7369 = vxor.u32 %v7365, 2147483648
  %v7370 = vmul.f32 %v7367, 1.442695
  %v7371 = vpow.pop %v7370
  %v7372 = vmul.f32 %v7368, 1.442695
  %v7373 = vpow.pop %v7372
  %v7374 = vmul.f32 %v7369, 1.442695
  %v7375 = vpow.pop %v7374
  %v7376 = vadd.f32 %v7371, 1.0
  %v7377 = vadd.f32 %v7373, 1.0
  %v7378 = vadd.f32 %v7375, 1.0
  %v7379 = vrcp.pop %v7376
  %v7380 = vmul.f32 %v7376, %v7379
  %v7381 = vsub.f32 1.0, %v7380
  %v7382 = vmul.f32 %v7379, %v7381
  %v7383 = vadd.f32 %v7379, %v7382
  %vm7384 = vweird.f32 %v7376
  %vm7385 = vweird.f32 %v7379
  %vm7386 = vmor %vm7384, %vm7385
  %v7387 = vsel %vm7386, %v7379, %v7383
  %v7388 = vand.u32 2147483647, %v7376
  %vm7389 = vcmp.eq.f32.partialorder %v7388, 8.507059e+37
  %v7390 = vand.u32 %v7376, 2147483648
  %v7391 = vor.u32 1.1754944e-38, %v7390
  %v7392 = vsel %vm7389, %v7391, %v7387
  %v7393 = vmul.f32 1.0, %v7392
  %v7394 = vrcp.pop %v7377
  %v7395 = vmul.f32 %v7377, %v7394
  %v7396 = vsub.f32 1.0, %v7395
  %v7397 = vmul.f32 %v7394, %v7396
  %v7398 = vadd.f32 %v7394, %v7397
  %vm7399 = vweird.f32 %v7377
  %vm7400 = vweird.f32 %v7394
  %vm7401 = vmor %vm7399, %vm7400
  %v7402 = vsel %vm7401, %v7394, %v7398
  %v7403 = vand.u32 2147483647, %v7377
  %vm7404 = vcmp.eq.f32.partialorder %v7403, 8.507059e+37
  %v7405 = vand.u32 %v7377, 2147483648
  %v7406 = vor.u32 1.1754944e-38, %v7405
  %v7407 = vsel %vm7404, %v7406, %v7402
  %v7408 = vmul.f32 1.0, %v7407
  %v7409 = vrcp.pop %v7378
  %v7410 = vmul.f32 %v7378, %v7409
  %v7411 = vsub.f32 1.0, %v7410
  %v7412 = vmul.f32 %v7409, %v7411
  %v7413 = vadd.f32 %v7409, %v7412
  %vm7414 = vweird.f32 %v7378
  %vm7415 = vweird.f32 %v7409
  %vm7416 = vmor %vm7414, %vm7415
  %v7417 = vsel %vm7416, %v7409, %v7413
  %v7418 = vand.u32 2147483647, %v7378
  %vm7419 = vcmp.eq.f32.partialorder %v7418, 8.507059e+37
  %v7420 = vand.u32 %v7378, 2147483648
  %v7421 = vor.u32 1.1754944e-38, %v7420
  %v7422 = vsel %vm7419, %v7421, %v7417
  %v7423 = vmul.f32 1.0, %v7422
  %v7424 = vtanh.pop %v7366
  %v7425 = vmul.f32 %v7408, %v6700
  %v7426 = vmul.f32 %v7393, %v7424
  %v7427 = vadd.f32 %v7425, %v7426
  %v7428 = vtanh.pop %v7427
  %v7429 = vmul.f32 %v7423, %v7428
  %v7430 = vperm.slane %v7429, 0
  %v7431 = vsel %vm3792, %v7430, %v6704
  %v7432 = vperm.slane %v7429, 1
  %v7433 = vsel %vm3789, %v7432, %v6706
  %v7434 = vperm.slane %v7429, 2
  %v7435 = vsel %vm3792, %v7434, %v6708
  %v7436 = vperm.slane %v7429, 3
  %v7437 = vsel %vm3789, %v7436, %v6710
  %v7438 = vperm.slane %v7429, 4
  %v7439 = vsel %vm3792, %v7438, %v6712
  %v7440 = vperm.slane %v7429, 5
  %v7441 = vsel %vm3789, %v7440, %v6714
  %s7442 = scalar_lea.vmem %s0, 56
  %v7443 = vld [vmem:[%s7442] sm:$0xff]
  %v7444 = vpack.c.bf16 %v7429, %v7429
  %v7445 = vpack.c.bf16 %v7443, %v7443
  %7446 = vmatpush.bf16.msra.mxu0 %v315
  %7447 = vmatpush.bf16.msra.mxu0 %v311
  %7448 = vmatpush.bf16.msra.mxu0 %v307
  %7449 = vmatpush.bf16.msra.mxu0 %v303
  %7450 = vmatpush.bf16.msra.mxu0 %v299
  %7451 = vmatpush.bf16.msra.mxu0 %v295
  %7452 = vmatpush.bf16.msra.mxu0 %v291
  %7453 = vmatpush.bf16.msra.mxu0 %v287
  %7454 = vmatmul.bf16.gmra.mxu0 %v7444
  %v7455 = vpop.f32.mrf.mxu0
  %v7456 = vadd.f32 0.0, %v7455
  %v7457 = vpop.f32.mrf.mxu0
  %7458 = vdwg.mxu0
  %7459 = vmatpush.bf16.msra.mxu0 %v347
  %7460 = vmatpush.bf16.msra.mxu0 %v343
  %7461 = vmatpush.bf16.msra.mxu0 %v339
  %7462 = vmatpush.bf16.msra.mxu0 %v335
  %7463 = vmatpush.bf16.msra.mxu0 %v331
  %7464 = vmatpush.bf16.msra.mxu0 %v327
  %7465 = vmatpush.bf16.msra.mxu0 %v323
  %7466 = vmatpush.bf16.msra.mxu0 %v319
  %7467 = vmatmul.bf16.gmra.mxu0 %v7445
  %v7468 = vpop.f32.mrf.mxu0
  %v7469 = vadd.f32 %v7456, %v7468
  %v7470 = vpop.f32.mrf.mxu0
  %7471 = vdwg.mxu0
  %7472 = vmatpush.bf16.msra.mxu0 %v316
  %7473 = vmatpush.bf16.msra.mxu0 %v312
  %7474 = vmatpush.bf16.msra.mxu0 %v308
  %7475 = vmatpush.bf16.msra.mxu0 %v304
  %7476 = vmatpush.bf16.msra.mxu0 %v300
  %7477 = vmatpush.bf16.msra.mxu0 %v296
  %7478 = vmatpush.bf16.msra.mxu0 %v292
  %7479 = vmatpush.bf16.msra.mxu0 %v288
  %7480 = vmatmul.bf16.gmra.mxu0 %v7444
  %v7481 = vpop.f32.mrf.mxu0
  %v7482 = vadd.f32 0.0, %v7481
  %v7483 = vpop.f32.mrf.mxu0
  %7484 = vdwg.mxu0
  %7485 = vmatpush.bf16.msra.mxu0 %v348
  %7486 = vmatpush.bf16.msra.mxu0 %v344
  %7487 = vmatpush.bf16.msra.mxu0 %v340
  %7488 = vmatpush.bf16.msra.mxu0 %v336
  %7489 = vmatpush.bf16.msra.mxu0 %v332
  %7490 = vmatpush.bf16.msra.mxu0 %v328
  %7491 = vmatpush.bf16.msra.mxu0 %v324
  %7492 = vmatpush.bf16.msra.mxu0 %v320
  %7493 = vmatmul.bf16.gmra.mxu0 %v7445
  %v7494 = vpop.f32.mrf.mxu0
  %v7495 = vadd.f32 %v7482, %v7494
  %v7496 = vpop.f32.mrf.mxu0
  %7497 = vdwg.mxu0
  %7498 = vmatpush.bf16.msra.mxu0 %v317
  %7499 = vmatpush.bf16.msra.mxu0 %v313
  %7500 = vmatpush.bf16.msra.mxu0 %v309
  %7501 = vmatpush.bf16.msra.mxu0 %v305
  %7502 = vmatpush.bf16.msra.mxu0 %v301
  %7503 = vmatpush.bf16.msra.mxu0 %v297
  %7504 = vmatpush.bf16.msra.mxu0 %v293
  %7505 = vmatpush.bf16.msra.mxu0 %v289
  %7506 = vmatmul.bf16.gmra.mxu0 %v7444
  %v7507 = vpop.f32.mrf.mxu0
  %v7508 = vadd.f32 0.0, %v7507
  %v7509 = vpop.f32.mrf.mxu0
  %7510 = vdwg.mxu0
  %7511 = vmatpush.bf16.msra.mxu0 %v349
  %7512 = vmatpush.bf16.msra.mxu0 %v345
  %7513 = vmatpush.bf16.msra.mxu0 %v341
  %7514 = vmatpush.bf16.msra.mxu0 %v337
  %7515 = vmatpush.bf16.msra.mxu0 %v333
  %7516 = vmatpush.bf16.msra.mxu0 %v329
  %7517 = vmatpush.bf16.msra.mxu0 %v325
  %7518 = vmatpush.bf16.msra.mxu0 %v321
  %7519 = vmatmul.bf16.gmra.mxu0 %v7445
  %v7520 = vpop.f32.mrf.mxu0
  %v7521 = vadd.f32 %v7508, %v7520
  %v7522 = vpop.f32.mrf.mxu0
  %7523 = vdwg.mxu0
  %7524 = vmatpush.bf16.msra.mxu0 %v318
  %7525 = vmatpush.bf16.msra.mxu0 %v314
  %7526 = vmatpush.bf16.msra.mxu0 %v310
  %7527 = vmatpush.bf16.msra.mxu0 %v306
  %7528 = vmatpush.bf16.msra.mxu0 %v302
  %7529 = vmatpush.bf16.msra.mxu0 %v298
  %7530 = vmatpush.bf16.msra.mxu0 %v294
  %7531 = vmatpush.bf16.msra.mxu0 %v290
  %7532 = vmatmul.bf16.gmra.mxu0 %v7444
  %v7533 = vpop.f32.mrf.mxu0
  %v7534 = vadd.f32 0.0, %v7533
  %v7535 = vpop.f32.mrf.mxu0
  %7536 = vdwg.mxu0
  %7537 = vmatpush.bf16.msra.mxu0 %v350
  %7538 = vmatpush.bf16.msra.mxu0 %v346
  %7539 = vmatpush.bf16.msra.mxu0 %v342
  %7540 = vmatpush.bf16.msra.mxu0 %v338
  %7541 = vmatpush.bf16.msra.mxu0 %v334
  %7542 = vmatpush.bf16.msra.mxu0 %v330
  %7543 = vmatpush.bf16.msra.mxu0 %v326
  %7544 = vmatpush.bf16.msra.mxu0 %v322
  %7545 = vmatmul.bf16.gmra.mxu0 %v7445
  %v7546 = vpop.f32.mrf.mxu0
  %v7547 = vadd.f32 %v7534, %v7546
  %v7548 = vpop.f32.mrf.mxu0
  %7549 = vdwg.mxu0
  %7550 = vmatpush.bf16.msra.mxu0 %v804
  %7551 = vmatpush.bf16.msra.mxu0 %v800
  %7552 = vmatpush.bf16.msra.mxu0 %v796
  %7553 = vmatpush.bf16.msra.mxu0 %v792
  %7554 = vmatpush.bf16.msra.mxu0 %v788
  %7555 = vmatpush.bf16.msra.mxu0 %v784
  %7556 = vmatpush.bf16.msra.mxu0 %v780
  %7557 = vmatpush.bf16.msra.mxu0 %v776
  %7558 = vmatmul.bf16.gmra.mxu0 %v7444
  %v7559 = vpop.f32.mrf.mxu0
  %v7560 = vadd.f32 0.0, %v7559
  %v7561 = vpop.f32.mrf.mxu0
  %7562 = vdwg.mxu0
  %7563 = vmatpush.bf16.msra.mxu0 %v836
  %7564 = vmatpush.bf16.msra.mxu0 %v832
  %7565 = vmatpush.bf16.msra.mxu0 %v828
  %7566 = vmatpush.bf16.msra.mxu0 %v824
  %7567 = vmatpush.bf16.msra.mxu0 %v820
  %7568 = vmatpush.bf16.msra.mxu0 %v816
  %7569 = vmatpush.bf16.msra.mxu0 %v812
  %7570 = vmatpush.bf16.msra.mxu0 %v808
  %7571 = vmatmul.bf16.gmra.mxu0 %v7445
  %v7572 = vpop.f32.mrf.mxu0
  %v7573 = vadd.f32 %v7560, %v7572
  %v7574 = vpop.f32.mrf.mxu0
  %7575 = vdwg.mxu0
  %7576 = vmatpush.bf16.msra.mxu0 %v805
  %7577 = vmatpush.bf16.msra.mxu0 %v801
  %7578 = vmatpush.bf16.msra.mxu0 %v797
  %7579 = vmatpush.bf16.msra.mxu0 %v793
  %7580 = vmatpush.bf16.msra.mxu0 %v789
  %7581 = vmatpush.bf16.msra.mxu0 %v785
  %7582 = vmatpush.bf16.msra.mxu0 %v781
  %7583 = vmatpush.bf16.msra.mxu0 %v777
  %7584 = vmatmul.bf16.gmra.mxu0 %v7444
  %v7585 = vpop.f32.mrf.mxu0
  %v7586 = vadd.f32 0.0, %v7585
  %v7587 = vpop.f32.mrf.mxu0
  %7588 = vdwg.mxu0
  %7589 = vmatpush.bf16.msra.mxu0 %v837
  %7590 = vmatpush.bf16.msra.mxu0 %v833
  %7591 = vmatpush.bf16.msra.mxu0 %v829
  %7592 = vmatpush.bf16.msra.mxu0 %v825
  %7593 = vmatpush.bf16.msra.mxu0 %v821
  %7594 = vmatpush.bf16.msra.mxu0 %v817
  %7595 = vmatpush.bf16.msra.mxu0 %v813
  %7596 = vmatpush.bf16.msra.mxu0 %v809
  %7597 = vmatmul.bf16.gmra.mxu0 %v7445
  %v7598 = vpop.f32.mrf.mxu0
  %v7599 = vadd.f32 %v7586, %v7598
  %v7600 = vpop.f32.mrf.mxu0
  %7601 = vdwg.mxu0
  %7602 = vmatpush.bf16.msra.mxu0 %v806
  %7603 = vmatpush.bf16.msra.mxu0 %v802
  %7604 = vmatpush.bf16.msra.mxu0 %v798
  %7605 = vmatpush.bf16.msra.mxu0 %v794
  %7606 = vmatpush.bf16.msra.mxu0 %v790
  %7607 = vmatpush.bf16.msra.mxu0 %v786
  %7608 = vmatpush.bf16.msra.mxu0 %v782
  %7609 = vmatpush.bf16.msra.mxu0 %v778
  %7610 = vmatmul.bf16.gmra.mxu0 %v7444
  %v7611 = vpop.f32.mrf.mxu0
  %v7612 = vadd.f32 0.0, %v7611
  %v7613 = vpop.f32.mrf.mxu0
  %7614 = vdwg.mxu0
  %7615 = vmatpush.bf16.msra.mxu0 %v838
  %7616 = vmatpush.bf16.msra.mxu0 %v834
  %7617 = vmatpush.bf16.msra.mxu0 %v830
  %7618 = vmatpush.bf16.msra.mxu0 %v826
  %7619 = vmatpush.bf16.msra.mxu0 %v822
  %7620 = vmatpush.bf16.msra.mxu0 %v818
  %7621 = vmatpush.bf16.msra.mxu0 %v814
  %7622 = vmatpush.bf16.msra.mxu0 %v810
  %7623 = vmatmul.bf16.gmra.mxu0 %v7445
  %v7624 = vpop.f32.mrf.mxu0
  %v7625 = vadd.f32 %v7612, %v7624
  %v7626 = vpop.f32.mrf.mxu0
  %7627 = vdwg.mxu0
  %7628 = vmatpush.bf16.msra.mxu0 %v807
  %7629 = vmatpush.bf16.msra.mxu0 %v803
  %7630 = vmatpush.bf16.msra.mxu0 %v799
  %7631 = vmatpush.bf16.msra.mxu0 %v795
  %7632 = vmatpush.bf16.msra.mxu0 %v791
  %7633 = vmatpush.bf16.msra.mxu0 %v787
  %7634 = vmatpush.bf16.msra.mxu0 %v783
  %7635 = vmatpush.bf16.msra.mxu0 %v779
  %7636 = vmatmul.bf16.gmra.mxu0 %v7444
  %v7637 = vpop.f32.mrf.mxu0
  %v7638 = vadd.f32 0.0, %v7637
  %v7639 = vpop.f32.mrf.mxu0
  %7640 = vdwg.mxu0
  %7641 = vmatpush.bf16.msra.mxu0 %v839
  %7642 = vmatpush.bf16.msra.mxu0 %v835
  %7643 = vmatpush.bf16.msra.mxu0 %v831
  %7644 = vmatpush.bf16.msra.mxu0 %v827
  %7645 = vmatpush.bf16.msra.mxu0 %v823
  %7646 = vmatpush.bf16.msra.mxu0 %v819
  %7647 = vmatpush.bf16.msra.mxu0 %v815
  %7648 = vmatpush.bf16.msra.mxu0 %v811
  %7649 = vmatmul.bf16.gmra.mxu0 %v7445
  %v7650 = vpop.f32.mrf.mxu0
  %v7651 = vadd.f32 %v7638, %v7650
  %v7652 = vpop.f32.mrf.mxu0
  %7653 = vdwg.mxu0
  %7654 = vmatpush.bf16.msra.mxu0 %v1293
  %7655 = vmatpush.bf16.msra.mxu0 %v1289
  %7656 = vmatpush.bf16.msra.mxu0 %v1285
  %7657 = vmatpush.bf16.msra.mxu0 %v1281
  %7658 = vmatpush.bf16.msra.mxu0 %v1277
  %7659 = vmatpush.bf16.msra.mxu0 %v1273
  %7660 = vmatpush.bf16.msra.mxu0 %v1269
  %7661 = vmatpush.bf16.msra.mxu0 %v1265
  %7662 = vmatmul.bf16.gmra.mxu0 %v7444
  %v7663 = vpop.f32.mrf.mxu0
  %v7664 = vadd.f32 0.0, %v7663
  %v7665 = vpop.f32.mrf.mxu0
  %7666 = vdwg.mxu0
  %7667 = vmatpush.bf16.msra.mxu0 %v1325
  %7668 = vmatpush.bf16.msra.mxu0 %v1321
  %7669 = vmatpush.bf16.msra.mxu0 %v1317
  %7670 = vmatpush.bf16.msra.mxu0 %v1313
  %7671 = vmatpush.bf16.msra.mxu0 %v1309
  %7672 = vmatpush.bf16.msra.mxu0 %v1305
  %7673 = vmatpush.bf16.msra.mxu0 %v1301
  %7674 = vmatpush.bf16.msra.mxu0 %v1297
  %7675 = vmatmul.bf16.gmra.mxu0 %v7445
  %v7676 = vpop.f32.mrf.mxu0
  %v7677 = vadd.f32 %v7664, %v7676
  %v7678 = vpop.f32.mrf.mxu0
  %7679 = vdwg.mxu0
  %7680 = vmatpush.bf16.msra.mxu0 %v1294
  %7681 = vmatpush.bf16.msra.mxu0 %v1290
  %7682 = vmatpush.bf16.msra.mxu0 %v1286
  %7683 = vmatpush.bf16.msra.mxu0 %v1282
  %7684 = vmatpush.bf16.msra.mxu0 %v1278
  %7685 = vmatpush.bf16.msra.mxu0 %v1274
  %7686 = vmatpush.bf16.msra.mxu0 %v1270
  %7687 = vmatpush.bf16.msra.mxu0 %v1266
  %7688 = vmatmul.bf16.gmra.mxu0 %v7444
  %v7689 = vpop.f32.mrf.mxu0
  %v7690 = vadd.f32 0.0, %v7689
  %v7691 = vpop.f32.mrf.mxu0
  %7692 = vdwg.mxu0
  %7693 = vmatpush.bf16.msra.mxu0 %v1326
  %7694 = vmatpush.bf16.msra.mxu0 %v1322
  %7695 = vmatpush.bf16.msra.mxu0 %v1318
  %7696 = vmatpush.bf16.msra.mxu0 %v1314
  %7697 = vmatpush.bf16.msra.mxu0 %v1310
  %7698 = vmatpush.bf16.msra.mxu0 %v1306
  %7699 = vmatpush.bf16.msra.mxu0 %v1302
  %7700 = vmatpush.bf16.msra.mxu0 %v1298
  %7701 = vmatmul.bf16.gmra.mxu0 %v7445
  %v7702 = vpop.f32.mrf.mxu0
  %v7703 = vadd.f32 %v7690, %v7702
  %v7704 = vpop.f32.mrf.mxu0
  %7705 = vdwg.mxu0
  %7706 = vmatpush.bf16.msra.mxu0 %v1295
  %7707 = vmatpush.bf16.msra.mxu0 %v1291
  %7708 = vmatpush.bf16.msra.mxu0 %v1287
  %7709 = vmatpush.bf16.msra.mxu0 %v1283
  %7710 = vmatpush.bf16.msra.mxu0 %v1279
  %7711 = vmatpush.bf16.msra.mxu0 %v1275
  %7712 = vmatpush.bf16.msra.mxu0 %v1271
  %7713 = vmatpush.bf16.msra.mxu0 %v1267
  %7714 = vmatmul.bf16.gmra.mxu0 %v7444
  %v7715 = vpop.f32.mrf.mxu0
  %v7716 = vadd.f32 0.0, %v7715
  %v7717 = vpop.f32.mrf.mxu0
  %7718 = vdwg.mxu0
  %7719 = vmatpush.bf16.msra.mxu0 %v1327
  %7720 = vmatpush.bf16.msra.mxu0 %v1323
  %7721 = vmatpush.bf16.msra.mxu0 %v1319
  %7722 = vmatpush.bf16.msra.mxu0 %v1315
  %7723 = vmatpush.bf16.msra.mxu0 %v1311
  %7724 = vmatpush.bf16.msra.mxu0 %v1307
  %7725 = vmatpush.bf16.msra.mxu0 %v1303
  %7726 = vmatpush.bf16.msra.mxu0 %v1299
  %7727 = vmatmul.bf16.gmra.mxu0 %v7445
  %v7728 = vpop.f32.mrf.mxu0
  %v7729 = vadd.f32 %v7716, %v7728
  %v7730 = vpop.f32.mrf.mxu0
  %7731 = vdwg.mxu0
  %7732 = vmatpush.bf16.msra.mxu0 %v1296
  %7733 = vmatpush.bf16.msra.mxu0 %v1292
  %7734 = vmatpush.bf16.msra.mxu0 %v1288
  %7735 = vmatpush.bf16.msra.mxu0 %v1284
  %7736 = vmatpush.bf16.msra.mxu0 %v1280
  %7737 = vmatpush.bf16.msra.mxu0 %v1276
  %7738 = vmatpush.bf16.msra.mxu0 %v1272
  %7739 = vmatpush.bf16.msra.mxu0 %v1268
  %7740 = vmatmul.bf16.gmra.mxu0 %v7444
  %v7741 = vpop.f32.mrf.mxu0
  %v7742 = vadd.f32 0.0, %v7741
  %v7743 = vpop.f32.mrf.mxu0
  %7744 = vdwg.mxu0
  %7745 = vmatpush.bf16.msra.mxu0 %v1328
  %7746 = vmatpush.bf16.msra.mxu0 %v1324
  %7747 = vmatpush.bf16.msra.mxu0 %v1320
  %7748 = vmatpush.bf16.msra.mxu0 %v1316
  %7749 = vmatpush.bf16.msra.mxu0 %v1312
  %7750 = vmatpush.bf16.msra.mxu0 %v1308
  %7751 = vmatpush.bf16.msra.mxu0 %v1304
  %7752 = vmatpush.bf16.msra.mxu0 %v1300
  %7753 = vmatmul.bf16.gmra.mxu0 %v7445
  %v7754 = vpop.f32.mrf.mxu0
  %v7755 = vadd.f32 %v7742, %v7754
  %v7756 = vpop.f32.mrf.mxu0
  %7757 = vdwg.mxu0
  %7758 = vmatpush.bf16.msra.mxu0 %v1782
  %7759 = vmatpush.bf16.msra.mxu0 %v1778
  %7760 = vmatpush.bf16.msra.mxu0 %v1774
  %7761 = vmatpush.bf16.msra.mxu0 %v1770
  %7762 = vmatpush.bf16.msra.mxu0 %v1766
  %7763 = vmatpush.bf16.msra.mxu0 %v1762
  %7764 = vmatpush.bf16.msra.mxu0 %v1758
  %7765 = vmatpush.bf16.msra.mxu0 %v1754
  %7766 = vmatmul.bf16.gmra.mxu0 %v7444
  %v7767 = vpop.f32.mrf.mxu0
  %v7768 = vadd.f32 0.0, %v7767
  %v7769 = vpop.f32.mrf.mxu0
  %7770 = vdwg.mxu0
  %7771 = vmatpush.bf16.msra.mxu0 %v1814
  %7772 = vmatpush.bf16.msra.mxu0 %v1810
  %7773 = vmatpush.bf16.msra.mxu0 %v1806
  %7774 = vmatpush.bf16.msra.mxu0 %v1802
  %7775 = vmatpush.bf16.msra.mxu0 %v1798
  %7776 = vmatpush.bf16.msra.mxu0 %v1794
  %7777 = vmatpush.bf16.msra.mxu0 %v1790
  %7778 = vmatpush.bf16.msra.mxu0 %v1786
  %7779 = vmatmul.bf16.gmra.mxu0 %v7445
  %v7780 = vpop.f32.mrf.mxu0
  %v7781 = vadd.f32 %v7768, %v7780
  %v7782 = vpop.f32.mrf.mxu0
  %7783 = vdwg.mxu0
  %7784 = vmatpush.bf16.msra.mxu0 %v1783
  %7785 = vmatpush.bf16.msra.mxu0 %v1779
  %7786 = vmatpush.bf16.msra.mxu0 %v1775
  %7787 = vmatpush.bf16.msra.mxu0 %v1771
  %7788 = vmatpush.bf16.msra.mxu0 %v1767
  %7789 = vmatpush.bf16.msra.mxu0 %v1763
  %7790 = vmatpush.bf16.msra.mxu0 %v1759
  %7791 = vmatpush.bf16.msra.mxu0 %v1755
  %7792 = vmatmul.bf16.gmra.mxu0 %v7444
  %v7793 = vpop.f32.mrf.mxu0
  %v7794 = vadd.f32 0.0, %v7793
  %v7795 = vpop.f32.mrf.mxu0
  %7796 = vdwg.mxu0
  %7797 = vmatpush.bf16.msra.mxu0 %v1815
  %7798 = vmatpush.bf16.msra.mxu0 %v1811
  %7799 = vmatpush.bf16.msra.mxu0 %v1807
  %7800 = vmatpush.bf16.msra.mxu0 %v1803
  %7801 = vmatpush.bf16.msra.mxu0 %v1799
  %7802 = vmatpush.bf16.msra.mxu0 %v1795
  %7803 = vmatpush.bf16.msra.mxu0 %v1791
  %7804 = vmatpush.bf16.msra.mxu0 %v1787
  %7805 = vmatmul.bf16.gmra.mxu0 %v7445
  %v7806 = vpop.f32.mrf.mxu0
  %v7807 = vadd.f32 %v7794, %v7806
  %v7808 = vpop.f32.mrf.mxu0
  %7809 = vdwg.mxu0
  %7810 = vmatpush.bf16.msra.mxu0 %v1784
  %7811 = vmatpush.bf16.msra.mxu0 %v1780
  %7812 = vmatpush.bf16.msra.mxu0 %v1776
  %7813 = vmatpush.bf16.msra.mxu0 %v1772
  %7814 = vmatpush.bf16.msra.mxu0 %v1768
  %7815 = vmatpush.bf16.msra.mxu0 %v1764
  %7816 = vmatpush.bf16.msra.mxu0 %v1760
  %7817 = vmatpush.bf16.msra.mxu0 %v1756
  %7818 = vmatmul.bf16.gmra.mxu0 %v7444
  %v7819 = vpop.f32.mrf.mxu0
  %v7820 = vadd.f32 0.0, %v7819
  %v7821 = vpop.f32.mrf.mxu0
  %7822 = vdwg.mxu0
  %7823 = vmatpush.bf16.msra.mxu0 %v1816
  %7824 = vmatpush.bf16.msra.mxu0 %v1812
  %7825 = vmatpush.bf16.msra.mxu0 %v1808
  %7826 = vmatpush.bf16.msra.mxu0 %v1804
  %7827 = vmatpush.bf16.msra.mxu0 %v1800
  %7828 = vmatpush.bf16.msra.mxu0 %v1796
  %7829 = vmatpush.bf16.msra.mxu0 %v1792
  %7830 = vmatpush.bf16.msra.mxu0 %v1788
  %7831 = vmatmul.bf16.gmra.mxu0 %v7445
  %v7832 = vpop.f32.mrf.mxu0
  %v7833 = vadd.f32 %v7820, %v7832
  %v7834 = vpop.f32.mrf.mxu0
  %7835 = vdwg.mxu0
  %7836 = vmatpush.bf16.msra.mxu0 %v1785
  %7837 = vmatpush.bf16.msra.mxu0 %v1781
  %7838 = vmatpush.bf16.msra.mxu0 %v1777
  %7839 = vmatpush.bf16.msra.mxu0 %v1773
  %7840 = vmatpush.bf16.msra.mxu0 %v1769
  %7841 = vmatpush.bf16.msra.mxu0 %v1765
  %7842 = vmatpush.bf16.msra.mxu0 %v1761
  %7843 = vmatpush.bf16.msra.mxu0 %v1757
  %7844 = vmatmul.bf16.gmra.mxu0 %v7444
  %v7845 = vpop.f32.mrf.mxu0
  %v7846 = vadd.f32 0.0, %v7845
  %v7847 = vpop.f32.mrf.mxu0
  %7848 = vdwg.mxu0
  %7849 = vmatpush.bf16.msra.mxu0 %v1817
  %7850 = vmatpush.bf16.msra.mxu0 %v1813
  %7851 = vmatpush.bf16.msra.mxu0 %v1809
  %7852 = vmatpush.bf16.msra.mxu0 %v1805
  %7853 = vmatpush.bf16.msra.mxu0 %v1801
  %7854 = vmatpush.bf16.msra.mxu0 %v1797
  %7855 = vmatpush.bf16.msra.mxu0 %v1793
  %7856 = vmatpush.bf16.msra.mxu0 %v1789
  %7857 = vmatmul.bf16.gmra.mxu0 %v7445
  %v7858 = vpop.f32.mrf.mxu0
  %v7859 = vadd.f32 %v7846, %v7858
  %v7860 = vpop.f32.mrf.mxu0
  %7861 = vdwg.mxu0
  %7862 = vmatpush.bf16.msra.mxu0 %v2271
  %7863 = vmatpush.bf16.msra.mxu0 %v2267
  %7864 = vmatpush.bf16.msra.mxu0 %v2263
  %7865 = vmatpush.bf16.msra.mxu0 %v2259
  %7866 = vmatpush.bf16.msra.mxu0 %v2255
  %7867 = vmatpush.bf16.msra.mxu0 %v2251
  %7868 = vmatpush.bf16.msra.mxu0 %v2247
  %7869 = vmatpush.bf16.msra.mxu0 %v2243
  %7870 = vmatmul.bf16.gmra.mxu0 %v7444
  %v7871 = vpop.f32.mrf.mxu0
  %v7872 = vadd.f32 0.0, %v7871
  %v7873 = vpop.f32.mrf.mxu0
  %7874 = vdwg.mxu0
  %7875 = vmatpush.bf16.msra.mxu0 %v2303
  %7876 = vmatpush.bf16.msra.mxu0 %v2299
  %7877 = vmatpush.bf16.msra.mxu0 %v2295
  %7878 = vmatpush.bf16.msra.mxu0 %v2291
  %7879 = vmatpush.bf16.msra.mxu0 %v2287
  %7880 = vmatpush.bf16.msra.mxu0 %v2283
  %7881 = vmatpush.bf16.msra.mxu0 %v2279
  %7882 = vmatpush.bf16.msra.mxu0 %v2275
  %7883 = vmatmul.bf16.gmra.mxu0 %v7445
  %v7884 = vpop.f32.mrf.mxu0
  %v7885 = vadd.f32 %v7872, %v7884
  %v7886 = vpop.f32.mrf.mxu0
  %7887 = vdwg.mxu0
  %7888 = vmatpush.bf16.msra.mxu0 %v2272
  %7889 = vmatpush.bf16.msra.mxu0 %v2268
  %7890 = vmatpush.bf16.msra.mxu0 %v2264
  %7891 = vmatpush.bf16.msra.mxu0 %v2260
  %7892 = vmatpush.bf16.msra.mxu0 %v2256
  %7893 = vmatpush.bf16.msra.mxu0 %v2252
  %7894 = vmatpush.bf16.msra.mxu0 %v2248
  %7895 = vmatpush.bf16.msra.mxu0 %v2244
  %7896 = vmatmul.bf16.gmra.mxu0 %v7444
  %v7897 = vpop.f32.mrf.mxu0
  %v7898 = vadd.f32 0.0, %v7897
  %v7899 = vpop.f32.mrf.mxu0
  %7900 = vdwg.mxu0
  %7901 = vmatpush.bf16.msra.mxu0 %v2304
  %7902 = vmatpush.bf16.msra.mxu0 %v2300
  %7903 = vmatpush.bf16.msra.mxu0 %v2296
  %7904 = vmatpush.bf16.msra.mxu0 %v2292
  %7905 = vmatpush.bf16.msra.mxu0 %v2288
  %7906 = vmatpush.bf16.msra.mxu0 %v2284
  %7907 = vmatpush.bf16.msra.mxu0 %v2280
  %7908 = vmatpush.bf16.msra.mxu0 %v2276
  %7909 = vmatmul.bf16.gmra.mxu0 %v7445
  %v7910 = vpop.f32.mrf.mxu0
  %v7911 = vadd.f32 %v7898, %v7910
  %v7912 = vpop.f32.mrf.mxu0
  %7913 = vdwg.mxu0
  %7914 = vmatpush.bf16.msra.mxu0 %v2273
  %7915 = vmatpush.bf16.msra.mxu0 %v2269
  %7916 = vmatpush.bf16.msra.mxu0 %v2265
  %7917 = vmatpush.bf16.msra.mxu0 %v2261
  %7918 = vmatpush.bf16.msra.mxu0 %v2257
  %7919 = vmatpush.bf16.msra.mxu0 %v2253
  %7920 = vmatpush.bf16.msra.mxu0 %v2249
  %7921 = vmatpush.bf16.msra.mxu0 %v2245
  %7922 = vmatmul.bf16.gmra.mxu0 %v7444
  %v7923 = vpop.f32.mrf.mxu0
  %v7924 = vadd.f32 0.0, %v7923
  %v7925 = vpop.f32.mrf.mxu0
  %7926 = vdwg.mxu0
  %7927 = vmatpush.bf16.msra.mxu0 %v2305
  %7928 = vmatpush.bf16.msra.mxu0 %v2301
  %7929 = vmatpush.bf16.msra.mxu0 %v2297
  %7930 = vmatpush.bf16.msra.mxu0 %v2293
  %7931 = vmatpush.bf16.msra.mxu0 %v2289
  %7932 = vmatpush.bf16.msra.mxu0 %v2285
  %7933 = vmatpush.bf16.msra.mxu0 %v2281
  %7934 = vmatpush.bf16.msra.mxu0 %v2277
  %7935 = vmatmul.bf16.gmra.mxu0 %v7445
  %v7936 = vpop.f32.mrf.mxu0
  %v7937 = vadd.f32 %v7924, %v7936
  %v7938 = vpop.f32.mrf.mxu0
  %7939 = vdwg.mxu0
  %7940 = vmatpush.bf16.msra.mxu0 %v2274
  %7941 = vmatpush.bf16.msra.mxu0 %v2270
  %7942 = vmatpush.bf16.msra.mxu0 %v2266
  %7943 = vmatpush.bf16.msra.mxu0 %v2262
  %7944 = vmatpush.bf16.msra.mxu0 %v2258
  %7945 = vmatpush.bf16.msra.mxu0 %v2254
  %7946 = vmatpush.bf16.msra.mxu0 %v2250
  %7947 = vmatpush.bf16.msra.mxu0 %v2246
  %7948 = vmatmul.bf16.gmra.mxu0 %v7444
  %v7949 = vpop.f32.mrf.mxu0
  %v7950 = vadd.f32 0.0, %v7949
  %v7951 = vpop.f32.mrf.mxu0
  %7952 = vdwg.mxu0
  %7953 = vmatpush.bf16.msra.mxu0 %v2306
  %7954 = vmatpush.bf16.msra.mxu0 %v2302
  %7955 = vmatpush.bf16.msra.mxu0 %v2298
  %7956 = vmatpush.bf16.msra.mxu0 %v2294
  %7957 = vmatpush.bf16.msra.mxu0 %v2290
  %7958 = vmatpush.bf16.msra.mxu0 %v2286
  %7959 = vmatpush.bf16.msra.mxu0 %v2282
  %7960 = vmatpush.bf16.msra.mxu0 %v2278
  %7961 = vmatmul.bf16.gmra.mxu0 %v7445
  %v7962 = vpop.f32.mrf.mxu0
  %v7963 = vadd.f32 %v7950, %v7962
  %v7964 = vpop.f32.mrf.mxu0
  %7965 = vdwg.mxu0
  %7966 = vmatpush.bf16.msra.mxu0 %v2760
  %7967 = vmatpush.bf16.msra.mxu0 %v2756
  %7968 = vmatpush.bf16.msra.mxu0 %v2752
  %7969 = vmatpush.bf16.msra.mxu0 %v2748
  %7970 = vmatpush.bf16.msra.mxu0 %v2744
  %7971 = vmatpush.bf16.msra.mxu0 %v2740
  %7972 = vmatpush.bf16.msra.mxu0 %v2736
  %7973 = vmatpush.bf16.msra.mxu0 %v2732
  %7974 = vmatmul.bf16.gmra.mxu0 %v7444
  %v7975 = vpop.f32.mrf.mxu0
  %v7976 = vadd.f32 0.0, %v7975
  %v7977 = vpop.f32.mrf.mxu0
  %7978 = vdwg.mxu0
  %7979 = vmatpush.bf16.msra.mxu0 %v2792
  %7980 = vmatpush.bf16.msra.mxu0 %v2788
  %7981 = vmatpush.bf16.msra.mxu0 %v2784
  %7982 = vmatpush.bf16.msra.mxu0 %v2780
  %7983 = vmatpush.bf16.msra.mxu0 %v2776
  %7984 = vmatpush.bf16.msra.mxu0 %v2772
  %7985 = vmatpush.bf16.msra.mxu0 %v2768
  %7986 = vmatpush.bf16.msra.mxu0 %v2764
  %7987 = vmatmul.bf16.gmra.mxu0 %v7445
  %v7988 = vpop.f32.mrf.mxu0
  %v7989 = vadd.f32 %v7976, %v7988
  %v7990 = vpop.f32.mrf.mxu0
  %7991 = vdwg.mxu0
  %7992 = vmatpush.bf16.msra.mxu0 %v2761
  %7993 = vmatpush.bf16.msra.mxu0 %v2757
  %7994 = vmatpush.bf16.msra.mxu0 %v2753
  %7995 = vmatpush.bf16.msra.mxu0 %v2749
  %7996 = vmatpush.bf16.msra.mxu0 %v2745
  %7997 = vmatpush.bf16.msra.mxu0 %v2741
  %7998 = vmatpush.bf16.msra.mxu0 %v2737
  %7999 = vmatpush.bf16.msra.mxu0 %v2733
  %8000 = vmatmul.bf16.gmra.mxu0 %v7444
  %v8001 = vpop.f32.mrf.mxu0
  %v8002 = vadd.f32 0.0, %v8001
  %v8003 = vpop.f32.mrf.mxu0
  %8004 = vdwg.mxu0
  %8005 = vmatpush.bf16.msra.mxu0 %v2793
  %8006 = vmatpush.bf16.msra.mxu0 %v2789
  %8007 = vmatpush.bf16.msra.mxu0 %v2785
  %8008 = vmatpush.bf16.msra.mxu0 %v2781
  %8009 = vmatpush.bf16.msra.mxu0 %v2777
  %8010 = vmatpush.bf16.msra.mxu0 %v2773
  %8011 = vmatpush.bf16.msra.mxu0 %v2769
  %8012 = vmatpush.bf16.msra.mxu0 %v2765
  %8013 = vmatmul.bf16.gmra.mxu0 %v7445
  %v8014 = vpop.f32.mrf.mxu0
  %v8015 = vadd.f32 %v8002, %v8014
  %v8016 = vpop.f32.mrf.mxu0
  %8017 = vdwg.mxu0
  %8018 = vmatpush.bf16.msra.mxu0 %v2762
  %8019 = vmatpush.bf16.msra.mxu0 %v2758
  %8020 = vmatpush.bf16.msra.mxu0 %v2754
  %8021 = vmatpush.bf16.msra.mxu0 %v2750
  %8022 = vmatpush.bf16.msra.mxu0 %v2746
  %8023 = vmatpush.bf16.msra.mxu0 %v2742
  %8024 = vmatpush.bf16.msra.mxu0 %v2738
  %8025 = vmatpush.bf16.msra.mxu0 %v2734
  %8026 = vmatmul.bf16.gmra.mxu0 %v7444
  %v8027 = vpop.f32.mrf.mxu0
  %v8028 = vadd.f32 0.0, %v8027
  %v8029 = vpop.f32.mrf.mxu0
  %8030 = vdwg.mxu0
  %8031 = vmatpush.bf16.msra.mxu0 %v2794
  %8032 = vmatpush.bf16.msra.mxu0 %v2790
  %8033 = vmatpush.bf16.msra.mxu0 %v2786
  %8034 = vmatpush.bf16.msra.mxu0 %v2782
  %8035 = vmatpush.bf16.msra.mxu0 %v2778
  %8036 = vmatpush.bf16.msra.mxu0 %v2774
  %8037 = vmatpush.bf16.msra.mxu0 %v2770
  %8038 = vmatpush.bf16.msra.mxu0 %v2766
  %8039 = vmatmul.bf16.gmra.mxu0 %v7445
  %v8040 = vpop.f32.mrf.mxu0
  %v8041 = vadd.f32 %v8028, %v8040
  %v8042 = vpop.f32.mrf.mxu0
  %8043 = vdwg.mxu0
  %8044 = vmatpush.bf16.msra.mxu0 %v2763
  %8045 = vmatpush.bf16.msra.mxu0 %v2759
  %8046 = vmatpush.bf16.msra.mxu0 %v2755
  %8047 = vmatpush.bf16.msra.mxu0 %v2751
  %8048 = vmatpush.bf16.msra.mxu0 %v2747
  %8049 = vmatpush.bf16.msra.mxu0 %v2743
  %8050 = vmatpush.bf16.msra.mxu0 %v2739
  %8051 = vmatpush.bf16.msra.mxu0 %v2735
  %8052 = vmatmul.bf16.gmra.mxu0 %v7444
  %v8053 = vpop.f32.mrf.mxu0
  %v8054 = vadd.f32 0.0, %v8053
  %v8055 = vpop.f32.mrf.mxu0
  %8056 = vdwg.mxu0
  %8057 = vmatpush.bf16.msra.mxu0 %v2795
  %8058 = vmatpush.bf16.msra.mxu0 %v2791
  %8059 = vmatpush.bf16.msra.mxu0 %v2787
  %8060 = vmatpush.bf16.msra.mxu0 %v2783
  %8061 = vmatpush.bf16.msra.mxu0 %v2779
  %8062 = vmatpush.bf16.msra.mxu0 %v2775
  %8063 = vmatpush.bf16.msra.mxu0 %v2771
  %8064 = vmatpush.bf16.msra.mxu0 %v2767
  %8065 = vmatmul.bf16.gmra.mxu0 %v7445
  %v8066 = vpop.f32.mrf.mxu0
  %v8067 = vadd.f32 %v8054, %v8066
  %v8068 = vpop.f32.mrf.mxu0
  %8069 = vdwg.mxu0
  %v8070 = vsel %vm2964, %v7573, %v7469
  %v8071 = vsel %vm2964, %v7599, %v7495
  %v8072 = vsel %vm2964, %v7625, %v7521
  %v8073 = vsel %vm2964, %v7651, %v7547
  %v8074 = vsel %vm2969, %v7781, %v7677
  %v8075 = vsel %vm2969, %v7807, %v7703
  %v8076 = vsel %vm2969, %v7833, %v7729
  %v8077 = vsel %vm2969, %v7859, %v7755
  %v8078 = vsel %vm2974, %v7989, %v7885
  %v8079 = vsel %vm2974, %v8015, %v7911
  %v8080 = vsel %vm2974, %v8041, %v7937
  %v8081 = vsel %vm2974, %v8067, %v7963
  %v8082 = vsel %vm2980, %v8074, %v8070
  %v8083 = vsel %vm2980, %v8075, %v8071
  %v8084 = vsel %vm2980, %v8076, %v8072
  %v8085 = vsel %vm2980, %v8077, %v8073
  %v8086 = vsel %vm2979, %v8078, %v8082
  %v8087 = vsel %vm2979, %v8079, %v8083
  %v8088 = vsel %vm2979, %v8080, %v8084
  %v8089 = vsel %vm2979, %v8081, %v8085
  %v8090 = vadd.f32 %v8086, %v2989
  %v8091 = vadd.f32 %v8087, %v2990
  %v8092 = vadd.f32 %v8088, %v2991
  %v8093 = vadd.f32 %v8089, %v2992
  %v8094 = vxor.u32 %v8090, 2147483648
  %v8095 = vxor.u32 %v8091, 2147483648
  %v8096 = vxor.u32 %v8092, 2147483648
  %v8097 = vmul.f32 %v8094, 1.442695
  %v8098 = vpow.pop %v8097
  %v8099 = vmul.f32 %v8095, 1.442695
  %v8100 = vpow.pop %v8099
  %v8101 = vmul.f32 %v8096, 1.442695
  %v8102 = vpow.pop %v8101
  %v8103 = vadd.f32 %v8098, 1.0
  %v8104 = vadd.f32 %v8100, 1.0
  %v8105 = vadd.f32 %v8102, 1.0
  %v8106 = vrcp.pop %v8103
  %v8107 = vmul.f32 %v8103, %v8106
  %v8108 = vsub.f32 1.0, %v8107
  %v8109 = vmul.f32 %v8106, %v8108
  %v8110 = vadd.f32 %v8106, %v8109
  %vm8111 = vweird.f32 %v8103
  %vm8112 = vweird.f32 %v8106
  %vm8113 = vmor %vm8111, %vm8112
  %v8114 = vsel %vm8113, %v8106, %v8110
  %v8115 = vand.u32 2147483647, %v8103
  %vm8116 = vcmp.eq.f32.partialorder %v8115, 8.507059e+37
  %v8117 = vand.u32 %v8103, 2147483648
  %v8118 = vor.u32 1.1754944e-38, %v8117
  %v8119 = vsel %vm8116, %v8118, %v8114
  %v8120 = vmul.f32 1.0, %v8119
  %v8121 = vrcp.pop %v8104
  %v8122 = vmul.f32 %v8104, %v8121
  %v8123 = vsub.f32 1.0, %v8122
  %v8124 = vmul.f32 %v8121, %v8123
  %v8125 = vadd.f32 %v8121, %v8124
  %vm8126 = vweird.f32 %v8104
  %vm8127 = vweird.f32 %v8121
  %vm8128 = vmor %vm8126, %vm8127
  %v8129 = vsel %vm8128, %v8121, %v8125
  %v8130 = vand.u32 2147483647, %v8104
  %vm8131 = vcmp.eq.f32.partialorder %v8130, 8.507059e+37
  %v8132 = vand.u32 %v8104, 2147483648
  %v8133 = vor.u32 1.1754944e-38, %v8132
  %v8134 = vsel %vm8131, %v8133, %v8129
  %v8135 = vmul.f32 1.0, %v8134
  %v8136 = vrcp.pop %v8105
  %v8137 = vmul.f32 %v8105, %v8136
  %v8138 = vsub.f32 1.0, %v8137
  %v8139 = vmul.f32 %v8136, %v8138
  %v8140 = vadd.f32 %v8136, %v8139
  %vm8141 = vweird.f32 %v8105
  %vm8142 = vweird.f32 %v8136
  %vm8143 = vmor %vm8141, %vm8142
  %v8144 = vsel %vm8143, %v8136, %v8140
  %v8145 = vand.u32 2147483647, %v8105
  %vm8146 = vcmp.eq.f32.partialorder %v8145, 8.507059e+37
  %v8147 = vand.u32 %v8105, 2147483648
  %v8148 = vor.u32 1.1754944e-38, %v8147
  %v8149 = vsel %vm8146, %v8148, %v8144
  %v8150 = vmul.f32 1.0, %v8149
  %v8151 = vtanh.pop %v8093
  %v8152 = vmul.f32 %v8135, %v7427
  %v8153 = vmul.f32 %v8120, %v8151
  %v8154 = vadd.f32 %v8152, %v8153
  %v8155 = vtanh.pop %v8154
  %v8156 = vmul.f32 %v8150, %v8155
  %v8157 = vperm.slane %v8156, 0
  %v8158 = vsel %vm3063, %v8157, %v7431
  %v8159 = vperm.slane %v8156, 1
  %v8160 = vsel %vm3060, %v8159, %v7433
  %v8161 = vperm.slane %v8156, 2
  %v8162 = vsel %vm3063, %v8161, %v7435
  %v8163 = vperm.slane %v8156, 3
  %v8164 = vsel %vm3060, %v8163, %v7437
  %v8165 = vperm.slane %v8156, 4
  %v8166 = vsel %vm3063, %v8165, %v7439
  %v8167 = vperm.slane %v8156, 5
  %v8168 = vsel %vm3060, %v8167, %v7441
  %v8169 = vmul.f32 %v8158, %v8162
  %v8170 = vmul.f32 %v8160, %v8164
  %v8171 = vpack.c.bf16 %v8158, %v8158
  %v8172 = vpack.c.bf16 %v8160, %v8160
  %v8173 = vpack.c.bf16 %v8162, %v8162
  %v8174 = vpack.c.bf16 %v8164, %v8164
  %v8175 = vpack.c.bf16 %v8169, %v8169
  %v8176 = vpack.c.bf16 %v8170, %v8170
  %v8177 = vpack.c.bf16 %v8166, %v8166
  %v8178 = vpack.c.bf16 %v8168, %v8168
  %v8179 = vld [vmem:[%s3] sm:$0xff]
  %v8180 = vld [vmem:[%s3 + $0x8] sm:$0xff]
  %v8181 = vld [vmem:[%s3 + $0x10] sm:$0xff]
  %v8182 = vld [vmem:[%s3 + $0x18] sm:$0xff]
  %v8183 = vld [vmem:[%s3 + $0x20] sm:$0xff]
  %v8184 = vld [vmem:[%s3 + $0x28] sm:$0xff]
  %v8185 = vld [vmem:[%s3 + $0x30] sm:$0xff]
  %v8186 = vld [vmem:[%s3 + $0x38] sm:$0xff]
  %v8187 = vld [vmem:[%s3 + $0x40] sm:$0xff]
  %v8188 = vld [vmem:[%s3 + $0x48] sm:$0xff]
  %v8189 = vld [vmem:[%s3 + $0x50] sm:$0xff]
  %v8190 = vld [vmem:[%s3 + $0x58] sm:$0xff]
  %v8191 = vld [vmem:[%s3 + $0x60] sm:$0xff]
  %v8192 = vld [vmem:[%s3 + $0x68] sm:$0xff]
  %v8193 = vld [vmem:[%s3 + $0x70] sm:$0xff]
  %v8194 = vld [vmem:[%s3 + $0x78] sm:$0xff]
  %v8195 = vld [vmem:[%s3 + $0x80] sm:$0xff]
  %v8196 = vld [vmem:[%s3 + $0x88] sm:$0xff]
  %v8197 = vld [vmem:[%s3 + $0x90] sm:$0xff]
  %v8198 = vld [vmem:[%s3 + $0x98] sm:$0xff]
  %v8199 = vld [vmem:[%s3 + $0xa0] sm:$0xff]
  %v8200 = vld [vmem:[%s3 + $0xa8] sm:$0xff]
  %v8201 = vld [vmem:[%s3 + $0xb0] sm:$0xff]
  %v8202 = vld [vmem:[%s3 + $0xb8] sm:$0xff]
  %v8203 = vld [vmem:[%s3 + $0xc0] sm:$0xff]
  %v8204 = vld [vmem:[%s3 + $0xc8] sm:$0xff]
  %v8205 = vld [vmem:[%s3 + $0xd0] sm:$0xff]
  %v8206 = vld [vmem:[%s3 + $0xd8] sm:$0xff]
  %v8207 = vld [vmem:[%s3 + $0xe0] sm:$0xff]
  %v8208 = vld [vmem:[%s3 + $0xe8] sm:$0xff]
  %v8209 = vld [vmem:[%s3 + $0xf0] sm:$0xff]
  %v8210 = vld [vmem:[%s3 + $0xf8] sm:$0xff]
  %v8211 = vld [vmem:[%s3 + $0x100] sm:$0xff]
  %v8212 = vld [vmem:[%s3 + $0x108] sm:$0xff]
  %v8213 = vld [vmem:[%s3 + $0x110] sm:$0xff]
  %v8214 = vld [vmem:[%s3 + $0x118] sm:$0xff]
  %v8215 = vld [vmem:[%s3 + $0x120] sm:$0xff]
  %v8216 = vld [vmem:[%s3 + $0x128] sm:$0xff]
  %v8217 = vld [vmem:[%s3 + $0x130] sm:$0xff]
  %v8218 = vld [vmem:[%s3 + $0x138] sm:$0xff]
  %v8219 = vld [vmem:[%s3 + $0x140] sm:$0xff]
  %v8220 = vld [vmem:[%s3 + $0x148] sm:$0xff]
  %v8221 = vld [vmem:[%s3 + $0x150] sm:$0xff]
  %v8222 = vld [vmem:[%s3 + $0x158] sm:$0xff]
  %v8223 = vld [vmem:[%s3 + $0x160] sm:$0xff]
  %v8224 = vld [vmem:[%s3 + $0x168] sm:$0xff]
  %v8225 = vld [vmem:[%s3 + $0x170] sm:$0xff]
  %v8226 = vld [vmem:[%s3 + $0x178] sm:$0xff]
  %v8227 = vld [vmem:[%s3 + $0x180] sm:$0xff]
  %v8228 = vld [vmem:[%s3 + $0x188] sm:$0xff]
  %v8229 = vld [vmem:[%s3 + $0x190] sm:$0xff]
  %v8230 = vld [vmem:[%s3 + $0x198] sm:$0xff]
  %v8231 = vld [vmem:[%s3 + $0x1a0] sm:$0xff]
  %v8232 = vld [vmem:[%s3 + $0x1a8] sm:$0xff]
  %v8233 = vld [vmem:[%s3 + $0x1b0] sm:$0xff]
  %v8234 = vld [vmem:[%s3 + $0x1b8] sm:$0xff]
  %v8235 = vld [vmem:[%s3 + $0x1c0] sm:$0xff]
  %v8236 = vld [vmem:[%s3 + $0x1c8] sm:$0xff]
  %v8237 = vld [vmem:[%s3 + $0x1d0] sm:$0xff]
  %v8238 = vld [vmem:[%s3 + $0x1d8] sm:$0xff]
  %v8239 = vld [vmem:[%s3 + $0x1e0] sm:$0xff]
  %v8240 = vld [vmem:[%s3 + $0x1e8] sm:$0xff]
  %v8241 = vld [vmem:[%s3 + $0x1f0] sm:$0xff]
  %v8242 = vld [vmem:[%s3 + $0x1f8] sm:$0xff]
  %v8243 = vld [vmem:[%s3 + $0x200] sm:$0xff]
  %v8244 = vld [vmem:[%s3 + $0x208] sm:$0xff]
  %v8245 = vld [vmem:[%s3 + $0x210] sm:$0xff]
  %v8246 = vld [vmem:[%s3 + $0x218] sm:$0xff]
  %v8247 = vld [vmem:[%s3 + $0x220] sm:$0xff]
  %v8248 = vld [vmem:[%s3 + $0x228] sm:$0xff]
  %v8249 = vld [vmem:[%s3 + $0x230] sm:$0xff]
  %v8250 = vld [vmem:[%s3 + $0x238] sm:$0xff]
  %v8251 = vld [vmem:[%s3 + $0x240] sm:$0xff]
  %v8252 = vld [vmem:[%s3 + $0x248] sm:$0xff]
  %v8253 = vld [vmem:[%s3 + $0x250] sm:$0xff]
  %v8254 = vld [vmem:[%s3 + $0x258] sm:$0xff]
  %v8255 = vld [vmem:[%s3 + $0x260] sm:$0xff]
  %v8256 = vld [vmem:[%s3 + $0x268] sm:$0xff]
  %v8257 = vld [vmem:[%s3 + $0x270] sm:$0xff]
  %v8258 = vld [vmem:[%s3 + $0x278] sm:$0xff]
  %v8259 = vld [vmem:[%s3 + $0x280] sm:$0xff]
  %v8260 = vld [vmem:[%s3 + $0x288] sm:$0xff]
  %v8261 = vld [vmem:[%s3 + $0x290] sm:$0xff]
  %v8262 = vld [vmem:[%s3 + $0x298] sm:$0xff]
  %v8263 = vld [vmem:[%s3 + $0x2a0] sm:$0xff]
  %v8264 = vld [vmem:[%s3 + $0x2a8] sm:$0xff]
  %v8265 = vld [vmem:[%s3 + $0x2b0] sm:$0xff]
  %v8266 = vld [vmem:[%s3 + $0x2b8] sm:$0xff]
  %v8267 = vld [vmem:[%s3 + $0x2c0] sm:$0xff]
  %v8268 = vld [vmem:[%s3 + $0x2c8] sm:$0xff]
  %v8269 = vld [vmem:[%s3 + $0x2d0] sm:$0xff]
  %v8270 = vld [vmem:[%s3 + $0x2d8] sm:$0xff]
  %v8271 = vld [vmem:[%s3 + $0x2e0] sm:$0xff]
  %v8272 = vld [vmem:[%s3 + $0x2e8] sm:$0xff]
  %v8273 = vld [vmem:[%s3 + $0x2f0] sm:$0xff]
  %v8274 = vld [vmem:[%s3 + $0x2f8] sm:$0xff]
  %v8275 = vld [vmem:[%s3 + $0x300] sm:$0xff]
  %v8276 = vld [vmem:[%s3 + $0x308] sm:$0xff]
  %v8277 = vld [vmem:[%s3 + $0x310] sm:$0xff]
  %v8278 = vld [vmem:[%s3 + $0x318] sm:$0xff]
  %v8279 = vld [vmem:[%s3 + $0x320] sm:$0xff]
  %v8280 = vld [vmem:[%s3 + $0x328] sm:$0xff]
  %v8281 = vld [vmem:[%s3 + $0x330] sm:$0xff]
  %v8282 = vld [vmem:[%s3 + $0x338] sm:$0xff]
  %v8283 = vld [vmem:[%s3 + $0x340] sm:$0xff]
  %v8284 = vld [vmem:[%s3 + $0x348] sm:$0xff]
  %v8285 = vld [vmem:[%s3 + $0x350] sm:$0xff]
  %v8286 = vld [vmem:[%s3 + $0x358] sm:$0xff]
  %v8287 = vld [vmem:[%s3 + $0x360] sm:$0xff]
  %v8288 = vld [vmem:[%s3 + $0x368] sm:$0xff]
  %v8289 = vld [vmem:[%s3 + $0x370] sm:$0xff]
  %v8290 = vld [vmem:[%s3 + $0x378] sm:$0xff]
  %v8291 = vld [vmem:[%s3 + $0x380] sm:$0xff]
  %v8292 = vld [vmem:[%s3 + $0x388] sm:$0xff]
  %v8293 = vld [vmem:[%s3 + $0x390] sm:$0xff]
  %v8294 = vld [vmem:[%s3 + $0x398] sm:$0xff]
  %v8295 = vld [vmem:[%s3 + $0x3a0] sm:$0xff]
  %v8296 = vld [vmem:[%s3 + $0x3a8] sm:$0xff]
  %v8297 = vld [vmem:[%s3 + $0x3b0] sm:$0xff]
  %v8298 = vld [vmem:[%s3 + $0x3b8] sm:$0xff]
  %v8299 = vld [vmem:[%s3 + $0x3c0] sm:$0xff]
  %v8300 = vld [vmem:[%s3 + $0x3c8] sm:$0xff]
  %v8301 = vld [vmem:[%s3 + $0x3d0] sm:$0xff]
  %v8302 = vld [vmem:[%s3 + $0x3d8] sm:$0xff]
  %v8303 = vld [vmem:[%s3 + $0x3e0] sm:$0xff]
  %v8304 = vld [vmem:[%s3 + $0x3e8] sm:$0xff]
  %v8305 = vld [vmem:[%s3 + $0x3f0] sm:$0xff]
  %v8306 = vld [vmem:[%s3 + $0x3f8] sm:$0xff]
  %v8307 = vld [vmem:[%s4] sm:$0x3]
  %v8309 = vperm.slane %v8307, 0
  %v8310 = vperm.slane %v8307, 1
  %v8441 = vunpack.c.l.b16 %v8179
  %v8442 = vunpack.c.h.b16 %v8179
  %v8443 = vunpack.c.l.b16 %v8180
  %v8444 = vunpack.c.h.b16 %v8180
  %v8445 = vunpack.c.l.b16 %v8181
  %v8446 = vunpack.c.h.b16 %v8181
  %v8447 = vunpack.c.l.b16 %v8182
  %v8448 = vunpack.c.h.b16 %v8182
  %v8449 = vunpack.c.l.b16 %v8183
  %v8450 = vunpack.c.h.b16 %v8183
  %v8451 = vunpack.c.l.b16 %v8184
  %v8452 = vunpack.c.h.b16 %v8184
  %v8453 = vunpack.c.l.b16 %v8185
  %v8454 = vunpack.c.h.b16 %v8185
  %v8455 = vunpack.c.l.b16 %v8186
  %v8456 = vunpack.c.h.b16 %v8186
  %v8457 = vunpack.c.l.b16 %v8187
  %v8458 = vunpack.c.h.b16 %v8187
  %v8459 = vunpack.c.l.b16 %v8188
  %v8460 = vunpack.c.h.b16 %v8188
  %v8461 = vunpack.c.l.b16 %v8189
  %v8462 = vunpack.c.h.b16 %v8189
  %v8463 = vunpack.c.l.b16 %v8190
  %v8464 = vunpack.c.h.b16 %v8190
  %v8465 = vunpack.c.l.b16 %v8191
  %v8466 = vunpack.c.h.b16 %v8191
  %v8467 = vunpack.c.l.b16 %v8192
  %v8468 = vunpack.c.h.b16 %v8192
  %v8469 = vunpack.c.l.b16 %v8193
  %v8470 = vunpack.c.h.b16 %v8193
  %v8471 = vunpack.c.l.b16 %v8194
  %v8472 = vunpack.c.h.b16 %v8194
  %v8473 = vunpack.c.l.b16 %v8195
  %v8474 = vunpack.c.h.b16 %v8195
  %v8475 = vunpack.c.l.b16 %v8196
  %v8476 = vunpack.c.h.b16 %v8196
  %v8477 = vunpack.c.l.b16 %v8197
  %v8478 = vunpack.c.h.b16 %v8197
  %v8479 = vunpack.c.l.b16 %v8198
  %v8480 = vunpack.c.h.b16 %v8198
  %v8481 = vunpack.c.l.b16 %v8199
  %v8482 = vunpack.c.h.b16 %v8199
  %v8483 = vunpack.c.l.b16 %v8200
  %v8484 = vunpack.c.h.b16 %v8200
  %v8485 = vunpack.c.l.b16 %v8201
  %v8486 = vunpack.c.h.b16 %v8201
  %v8487 = vunpack.c.l.b16 %v8202
  %v8488 = vunpack.c.h.b16 %v8202
  %v8489 = vunpack.c.l.b16 %v8203
  %v8490 = vunpack.c.h.b16 %v8203
  %v8491 = vunpack.c.l.b16 %v8204
  %v8492 = vunpack.c.h.b16 %v8204
  %v8493 = vunpack.c.l.b16 %v8205
  %v8494 = vunpack.c.h.b16 %v8205
  %v8495 = vunpack.c.l.b16 %v8206
  %v8496 = vunpack.c.h.b16 %v8206
  %v8497 = vunpack.c.l.b16 %v8207
  %v8498 = vunpack.c.h.b16 %v8207
  %v8499 = vunpack.c.l.b16 %v8208
  %v8500 = vunpack.c.h.b16 %v8208
  %v8501 = vunpack.c.l.b16 %v8209
  %v8502 = vunpack.c.h.b16 %v8209
  %v8503 = vunpack.c.l.b16 %v8210
  %v8504 = vunpack.c.h.b16 %v8210
  %v8505 = vunpack.c.l.b16 %v8211
  %v8506 = vunpack.c.h.b16 %v8211
  %v8507 = vunpack.c.l.b16 %v8212
  %v8508 = vunpack.c.h.b16 %v8212
  %v8509 = vunpack.c.l.b16 %v8213
  %v8510 = vunpack.c.h.b16 %v8213
  %v8511 = vunpack.c.l.b16 %v8214
  %v8512 = vunpack.c.h.b16 %v8214
  %v8513 = vunpack.c.l.b16 %v8215
  %v8514 = vunpack.c.h.b16 %v8215
  %v8515 = vunpack.c.l.b16 %v8216
  %v8516 = vunpack.c.h.b16 %v8216
  %v8517 = vunpack.c.l.b16 %v8217
  %v8518 = vunpack.c.h.b16 %v8217
  %v8519 = vunpack.c.l.b16 %v8218
  %v8520 = vunpack.c.h.b16 %v8218
  %v8521 = vunpack.c.l.b16 %v8219
  %v8522 = vunpack.c.h.b16 %v8219
  %v8523 = vunpack.c.l.b16 %v8220
  %v8524 = vunpack.c.h.b16 %v8220
  %v8525 = vunpack.c.l.b16 %v8221
  %v8526 = vunpack.c.h.b16 %v8221
  %v8527 = vunpack.c.l.b16 %v8222
  %v8528 = vunpack.c.h.b16 %v8222
  %v8529 = vunpack.c.l.b16 %v8223
  %v8530 = vunpack.c.h.b16 %v8223
  %v8531 = vunpack.c.l.b16 %v8224
  %v8532 = vunpack.c.h.b16 %v8224
  %v8533 = vunpack.c.l.b16 %v8225
  %v8534 = vunpack.c.h.b16 %v8225
  %v8535 = vunpack.c.l.b16 %v8226
  %v8536 = vunpack.c.h.b16 %v8226
  %v8537 = vunpack.c.l.b16 %v8227
  %v8538 = vunpack.c.h.b16 %v8227
  %v8539 = vunpack.c.l.b16 %v8228
  %v8540 = vunpack.c.h.b16 %v8228
  %v8541 = vunpack.c.l.b16 %v8229
  %v8542 = vunpack.c.h.b16 %v8229
  %v8543 = vunpack.c.l.b16 %v8230
  %v8544 = vunpack.c.h.b16 %v8230
  %v8545 = vunpack.c.l.b16 %v8231
  %v8546 = vunpack.c.h.b16 %v8231
  %v8547 = vunpack.c.l.b16 %v8232
  %v8548 = vunpack.c.h.b16 %v8232
  %v8549 = vunpack.c.l.b16 %v8233
  %v8550 = vunpack.c.h.b16 %v8233
  %v8551 = vunpack.c.l.b16 %v8234
  %v8552 = vunpack.c.h.b16 %v8234
  %v8553 = vunpack.c.l.b16 %v8235
  %v8554 = vunpack.c.h.b16 %v8235
  %v8555 = vunpack.c.l.b16 %v8236
  %v8556 = vunpack.c.h.b16 %v8236
  %v8557 = vunpack.c.l.b16 %v8237
  %v8558 = vunpack.c.h.b16 %v8237
  %v8559 = vunpack.c.l.b16 %v8238
  %v8560 = vunpack.c.h.b16 %v8238
  %v8561 = vunpack.c.l.b16 %v8239
  %v8562 = vunpack.c.h.b16 %v8239
  %v8563 = vunpack.c.l.b16 %v8240
  %v8564 = vunpack.c.h.b16 %v8240
  %v8565 = vunpack.c.l.b16 %v8241
  %v8566 = vunpack.c.h.b16 %v8241
  %v8567 = vunpack.c.l.b16 %v8242
  %v8568 = vunpack.c.h.b16 %v8242
  %v8569 = vunpack.c.l.b16 %v8243
  %v8570 = vunpack.c.h.b16 %v8243
  %v8571 = vunpack.c.l.b16 %v8244
  %v8572 = vunpack.c.h.b16 %v8244
  %v8573 = vunpack.c.l.b16 %v8245
  %v8574 = vunpack.c.h.b16 %v8245
  %v8575 = vunpack.c.l.b16 %v8246
  %v8576 = vunpack.c.h.b16 %v8246
  %v8577 = vunpack.c.l.b16 %v8247
  %v8578 = vunpack.c.h.b16 %v8247
  %v8579 = vunpack.c.l.b16 %v8248
  %v8580 = vunpack.c.h.b16 %v8248
  %v8581 = vunpack.c.l.b16 %v8249
  %v8582 = vunpack.c.h.b16 %v8249
  %v8583 = vunpack.c.l.b16 %v8250
  %v8584 = vunpack.c.h.b16 %v8250
  %v8585 = vunpack.c.l.b16 %v8251
  %v8586 = vunpack.c.h.b16 %v8251
  %v8587 = vunpack.c.l.b16 %v8252
  %v8588 = vunpack.c.h.b16 %v8252
  %v8589 = vunpack.c.l.b16 %v8253
  %v8590 = vunpack.c.h.b16 %v8253
  %v8591 = vunpack.c.l.b16 %v8254
  %v8592 = vunpack.c.h.b16 %v8254
  %v8593 = vunpack.c.l.b16 %v8255
  %v8594 = vunpack.c.h.b16 %v8255
  %v8595 = vunpack.c.l.b16 %v8256
  %v8596 = vunpack.c.h.b16 %v8256
  %v8597 = vunpack.c.l.b16 %v8257
  %v8598 = vunpack.c.h.b16 %v8257
  %v8599 = vunpack.c.l.b16 %v8258
  %v8600 = vunpack.c.h.b16 %v8258
  %v8601 = vunpack.c.l.b16 %v8259
  %v8602 = vunpack.c.h.b16 %v8259
  %v8603 = vunpack.c.l.b16 %v8260
  %v8604 = vunpack.c.h.b16 %v8260
  %v8605 = vunpack.c.l.b16 %v8261
  %v8606 = vunpack.c.h.b16 %v8261
  %v8607 = vunpack.c.l.b16 %v8262
  %v8608 = vunpack.c.h.b16 %v8262
  %v8609 = vunpack.c.l.b16 %v8263
  %v8610 = vunpack.c.h.b16 %v8263
  %v8611 = vunpack.c.l.b16 %v8264
  %v8612 = vunpack.c.h.b16 %v8264
  %v8613 = vunpack.c.l.b16 %v8265
  %v8614 = vunpack.c.h.b16 %v8265
  %v8615 = vunpack.c.l.b16 %v8266
  %v8616 = vunpack.c.h.b16 %v8266
  %v8617 = vunpack.c.l.b16 %v8267
  %v8618 = vunpack.c.h.b16 %v8267
  %v8619 = vunpack.c.l.b16 %v8268
  %v8620 = vunpack.c.h.b16 %v8268
  %v8621 = vunpack.c.l.b16 %v8269
  %v8622 = vunpack.c.h.b16 %v8269
  %v8623 = vunpack.c.l.b16 %v8270
  %v8624 = vunpack.c.h.b16 %v8270
  %v8625 = vunpack.c.l.b16 %v8271
  %v8626 = vunpack.c.h.b16 %v8271
  %v8627 = vunpack.c.l.b16 %v8272
  %v8628 = vunpack.c.h.b16 %v8272
  %v8629 = vunpack.c.l.b16 %v8273
  %v8630 = vunpack.c.h.b16 %v8273
  %v8631 = vunpack.c.l.b16 %v8274
  %v8632 = vunpack.c.h.b16 %v8274
  %v8633 = vunpack.c.l.b16 %v8275
  %v8634 = vunpack.c.h.b16 %v8275
  %v8635 = vunpack.c.l.b16 %v8276
  %v8636 = vunpack.c.h.b16 %v8276
  %v8637 = vunpack.c.l.b16 %v8277
  %v8638 = vunpack.c.h.b16 %v8277
  %v8639 = vunpack.c.l.b16 %v8278
  %v8640 = vunpack.c.h.b16 %v8278
  %v8641 = vunpack.c.l.b16 %v8279
  %v8642 = vunpack.c.h.b16 %v8279
  %v8643 = vunpack.c.l.b16 %v8280
  %v8644 = vunpack.c.h.b16 %v8280
  %v8645 = vunpack.c.l.b16 %v8281
  %v8646 = vunpack.c.h.b16 %v8281
  %v8647 = vunpack.c.l.b16 %v8282
  %v8648 = vunpack.c.h.b16 %v8282
  %v8649 = vunpack.c.l.b16 %v8283
  %v8650 = vunpack.c.h.b16 %v8283
  %v8651 = vunpack.c.l.b16 %v8284
  %v8652 = vunpack.c.h.b16 %v8284
  %v8653 = vunpack.c.l.b16 %v8285
  %v8654 = vunpack.c.h.b16 %v8285
  %v8655 = vunpack.c.l.b16 %v8286
  %v8656 = vunpack.c.h.b16 %v8286
  %v8657 = vunpack.c.l.b16 %v8287
  %v8658 = vunpack.c.h.b16 %v8287
  %v8659 = vunpack.c.l.b16 %v8288
  %v8660 = vunpack.c.h.b16 %v8288
  %v8661 = vunpack.c.l.b16 %v8289
  %v8662 = vunpack.c.h.b16 %v8289
  %v8663 = vunpack.c.l.b16 %v8290
  %v8664 = vunpack.c.h.b16 %v8290
  %v8665 = vunpack.c.l.b16 %v8291
  %v8666 = vunpack.c.h.b16 %v8291
  %v8667 = vunpack.c.l.b16 %v8292
  %v8668 = vunpack.c.h.b16 %v8292
  %v8669 = vunpack.c.l.b16 %v8293
  %v8670 = vunpack.c.h.b16 %v8293
  %v8671 = vunpack.c.l.b16 %v8294
  %v8672 = vunpack.c.h.b16 %v8294
  %v8673 = vunpack.c.l.b16 %v8295
  %v8674 = vunpack.c.h.b16 %v8295
  %v8675 = vunpack.c.l.b16 %v8296
  %v8676 = vunpack.c.h.b16 %v8296
  %v8677 = vunpack.c.l.b16 %v8297
  %v8678 = vunpack.c.h.b16 %v8297
  %v8679 = vunpack.c.l.b16 %v8298
  %v8680 = vunpack.c.h.b16 %v8298
  %v8681 = vunpack.c.l.b16 %v8299
  %v8682 = vunpack.c.h.b16 %v8299
  %v8683 = vunpack.c.l.b16 %v8300
  %v8684 = vunpack.c.h.b16 %v8300
  %v8685 = vunpack.c.l.b16 %v8301
  %v8686 = vunpack.c.h.b16 %v8301
  %v8687 = vunpack.c.l.b16 %v8302
  %v8688 = vunpack.c.h.b16 %v8302
  %v8689 = vunpack.c.l.b16 %v8303
  %v8690 = vunpack.c.h.b16 %v8303
  %v8691 = vunpack.c.l.b16 %v8304
  %v8692 = vunpack.c.h.b16 %v8304
  %v8693 = vunpack.c.l.b16 %v8305
  %v8694 = vunpack.c.h.b16 %v8305
  %v8695 = vunpack.c.l.b16 %v8306
  %v8696 = vunpack.c.h.b16 %v8306
  %v8697 = vpack.c.b16 %v8443, %v8441
  %v8698 = vpack.c.b16 %v8444, %v8442
  %v8699 = vpack.c.b16 %v8447, %v8445
  %v8700 = vpack.c.b16 %v8448, %v8446
  %v8701 = vpack.c.b16 %v8451, %v8449
  %v8702 = vpack.c.b16 %v8452, %v8450
  %v8703 = vpack.c.b16 %v8455, %v8453
  %v8704 = vpack.c.b16 %v8456, %v8454
  %v8705 = vpack.c.b16 %v8459, %v8457
  %v8706 = vpack.c.b16 %v8460, %v8458
  %v8707 = vpack.c.b16 %v8463, %v8461
  %v8708 = vpack.c.b16 %v8464, %v8462
  %v8709 = vpack.c.b16 %v8467, %v8465
  %v8710 = vpack.c.b16 %v8468, %v8466
  %v8711 = vpack.c.b16 %v8471, %v8469
  %v8712 = vpack.c.b16 %v8472, %v8470
  %v8713 = vpack.c.b16 %v8475, %v8473
  %v8714 = vpack.c.b16 %v8476, %v8474
  %v8715 = vpack.c.b16 %v8479, %v8477
  %v8716 = vpack.c.b16 %v8480, %v8478
  %v8717 = vpack.c.b16 %v8483, %v8481
  %v8718 = vpack.c.b16 %v8484, %v8482
  %v8719 = vpack.c.b16 %v8487, %v8485
  %v8720 = vpack.c.b16 %v8488, %v8486
  %v8721 = vpack.c.b16 %v8491, %v8489
  %v8722 = vpack.c.b16 %v8492, %v8490
  %v8723 = vpack.c.b16 %v8495, %v8493
  %v8724 = vpack.c.b16 %v8496, %v8494
  %v8725 = vpack.c.b16 %v8499, %v8497
  %v8726 = vpack.c.b16 %v8500, %v8498
  %v8727 = vpack.c.b16 %v8503, %v8501
  %v8728 = vpack.c.b16 %v8504, %v8502
  %v8729 = vpack.c.b16 %v8507, %v8505
  %v8730 = vpack.c.b16 %v8508, %v8506
  %v8731 = vpack.c.b16 %v8511, %v8509
  %v8732 = vpack.c.b16 %v8512, %v8510
  %v8733 = vpack.c.b16 %v8515, %v8513
  %v8734 = vpack.c.b16 %v8516, %v8514
  %v8735 = vpack.c.b16 %v8519, %v8517
  %v8736 = vpack.c.b16 %v8520, %v8518
  %v8737 = vpack.c.b16 %v8523, %v8521
  %v8738 = vpack.c.b16 %v8524, %v8522
  %v8739 = vpack.c.b16 %v8527, %v8525
  %v8740 = vpack.c.b16 %v8528, %v8526
  %v8741 = vpack.c.b16 %v8531, %v8529
  %v8742 = vpack.c.b16 %v8532, %v8530
  %v8743 = vpack.c.b16 %v8535, %v8533
  %v8744 = vpack.c.b16 %v8536, %v8534
  %v8745 = vpack.c.b16 %v8539, %v8537
  %v8746 = vpack.c.b16 %v8540, %v8538
  %v8747 = vpack.c.b16 %v8543, %v8541
  %v8748 = vpack.c.b16 %v8544, %v8542
  %v8749 = vpack.c.b16 %v8547, %v8545
  %v8750 = vpack.c.b16 %v8548, %v8546
  %v8751 = vpack.c.b16 %v8551, %v8549
  %v8752 = vpack.c.b16 %v8552, %v8550
  %v8753 = vpack.c.b16 %v8555, %v8553
  %v8754 = vpack.c.b16 %v8556, %v8554
  %v8755 = vpack.c.b16 %v8559, %v8557
  %v8756 = vpack.c.b16 %v8560, %v8558
  %v8757 = vpack.c.b16 %v8563, %v8561
  %v8758 = vpack.c.b16 %v8564, %v8562
  %v8759 = vpack.c.b16 %v8567, %v8565
  %v8760 = vpack.c.b16 %v8568, %v8566
  %v8761 = vpack.c.b16 %v8571, %v8569
  %v8762 = vpack.c.b16 %v8572, %v8570
  %v8763 = vpack.c.b16 %v8575, %v8573
  %v8764 = vpack.c.b16 %v8576, %v8574
  %v8765 = vpack.c.b16 %v8579, %v8577
  %v8766 = vpack.c.b16 %v8580, %v8578
  %v8767 = vpack.c.b16 %v8583, %v8581
  %v8768 = vpack.c.b16 %v8584, %v8582
  %v8769 = vpack.c.b16 %v8587, %v8585
  %v8770 = vpack.c.b16 %v8588, %v8586
  %v8771 = vpack.c.b16 %v8591, %v8589
  %v8772 = vpack.c.b16 %v8592, %v8590
  %v8773 = vpack.c.b16 %v8595, %v8593
  %v8774 = vpack.c.b16 %v8596, %v8594
  %v8775 = vpack.c.b16 %v8599, %v8597
  %v8776 = vpack.c.b16 %v8600, %v8598
  %v8777 = vpack.c.b16 %v8603, %v8601
  %v8778 = vpack.c.b16 %v8604, %v8602
  %v8779 = vpack.c.b16 %v8607, %v8605
  %v8780 = vpack.c.b16 %v8608, %v8606
  %v8781 = vpack.c.b16 %v8611, %v8609
  %v8782 = vpack.c.b16 %v8612, %v8610
  %v8783 = vpack.c.b16 %v8615, %v8613
  %v8784 = vpack.c.b16 %v8616, %v8614
  %v8785 = vpack.c.b16 %v8619, %v8617
  %v8786 = vpack.c.b16 %v8620, %v8618
  %v8787 = vpack.c.b16 %v8623, %v8621
  %v8788 = vpack.c.b16 %v8624, %v8622
  %v8789 = vpack.c.b16 %v8627, %v8625
  %v8790 = vpack.c.b16 %v8628, %v8626
  %v8791 = vpack.c.b16 %v8631, %v8629
  %v8792 = vpack.c.b16 %v8632, %v8630
  %v8793 = vpack.c.b16 %v8635, %v8633
  %v8794 = vpack.c.b16 %v8636, %v8634
  %v8795 = vpack.c.b16 %v8639, %v8637
  %v8796 = vpack.c.b16 %v8640, %v8638
  %v8797 = vpack.c.b16 %v8643, %v8641
  %v8798 = vpack.c.b16 %v8644, %v8642
  %v8799 = vpack.c.b16 %v8647, %v8645
  %v8800 = vpack.c.b16 %v8648, %v8646
  %v8801 = vpack.c.b16 %v8651, %v8649
  %v8802 = vpack.c.b16 %v8652, %v8650
  %v8803 = vpack.c.b16 %v8655, %v8653
  %v8804 = vpack.c.b16 %v8656, %v8654
  %v8805 = vpack.c.b16 %v8659, %v8657
  %v8806 = vpack.c.b16 %v8660, %v8658
  %v8807 = vpack.c.b16 %v8663, %v8661
  %v8808 = vpack.c.b16 %v8664, %v8662
  %v8809 = vpack.c.b16 %v8667, %v8665
  %v8810 = vpack.c.b16 %v8668, %v8666
  %v8811 = vpack.c.b16 %v8671, %v8669
  %v8812 = vpack.c.b16 %v8672, %v8670
  %v8813 = vpack.c.b16 %v8675, %v8673
  %v8814 = vpack.c.b16 %v8676, %v8674
  %v8815 = vpack.c.b16 %v8679, %v8677
  %v8816 = vpack.c.b16 %v8680, %v8678
  %v8817 = vpack.c.b16 %v8683, %v8681
  %v8818 = vpack.c.b16 %v8684, %v8682
  %v8819 = vpack.c.b16 %v8687, %v8685
  %v8820 = vpack.c.b16 %v8688, %v8686
  %v8821 = vpack.c.b16 %v8691, %v8689
  %v8822 = vpack.c.b16 %v8692, %v8690
  %v8823 = vpack.c.b16 %v8695, %v8693
  %v8824 = vpack.c.b16 %v8696, %v8694
  %8953 = vmatpush.bf16.msra.mxu0 %v8711
  %8954 = vmatpush.bf16.msra.mxu0 %v8709
  %8955 = vmatpush.bf16.msra.mxu0 %v8707
  %8956 = vmatpush.bf16.msra.mxu0 %v8705
  %8957 = vmatpush.bf16.msra.mxu0 %v8703
  %8958 = vmatpush.bf16.msra.mxu0 %v8701
  %8959 = vmatpush.bf16.msra.mxu0 %v8699
  %8960 = vmatpush.bf16.msra.mxu0 %v8697
  %8961 = vmatmul.bf16.gmra.mxu0 %v8171
  %v8962 = vpop.f32.mrf.mxu0
  %v8963 = vadd.f32 %v8309, %v8962
  %v8964 = vpop.f32.mrf.mxu0
  %8965 = vdwg.mxu0
  %8966 = vmatpush.bf16.msra.mxu0 %v8727
  %8967 = vmatpush.bf16.msra.mxu0 %v8725
  %8968 = vmatpush.bf16.msra.mxu0 %v8723
  %8969 = vmatpush.bf16.msra.mxu0 %v8721
  %8970 = vmatpush.bf16.msra.mxu0 %v8719
  %8971 = vmatpush.bf16.msra.mxu0 %v8717
  %8972 = vmatpush.bf16.msra.mxu0 %v8715
  %8973 = vmatpush.bf16.msra.mxu0 %v8713
  %8974 = vmatmul.bf16.gmra.mxu0 %v8172
  %v8975 = vpop.f32.mrf.mxu0
  %v8976 = vadd.f32 %v8963, %v8975
  %v8977 = vpop.f32.mrf.mxu0
  %8978 = vdwg.mxu0
  %8979 = vmatpush.bf16.msra.mxu0 %v8743
  %8980 = vmatpush.bf16.msra.mxu0 %v8741
  %8981 = vmatpush.bf16.msra.mxu0 %v8739
  %8982 = vmatpush.bf16.msra.mxu0 %v8737
  %8983 = vmatpush.bf16.msra.mxu0 %v8735
  %8984 = vmatpush.bf16.msra.mxu0 %v8733
  %8985 = vmatpush.bf16.msra.mxu0 %v8731
  %8986 = vmatpush.bf16.msra.mxu0 %v8729
  %8987 = vmatmul.bf16.gmra.mxu0 %v8173
  %v8988 = vpop.f32.mrf.mxu0
  %v8989 = vadd.f32 %v8976, %v8988
  %v8990 = vpop.f32.mrf.mxu0
  %8991 = vdwg.mxu0
  %8992 = vmatpush.bf16.msra.mxu0 %v8759
  %8993 = vmatpush.bf16.msra.mxu0 %v8757
  %8994 = vmatpush.bf16.msra.mxu0 %v8755
  %8995 = vmatpush.bf16.msra.mxu0 %v8753
  %8996 = vmatpush.bf16.msra.mxu0 %v8751
  %8997 = vmatpush.bf16.msra.mxu0 %v8749
  %8998 = vmatpush.bf16.msra.mxu0 %v8747
  %8999 = vmatpush.bf16.msra.mxu0 %v8745
  %9000 = vmatmul.bf16.gmra.mxu0 %v8174
  %v9001 = vpop.f32.mrf.mxu0
  %v9002 = vadd.f32 %v8989, %v9001
  %v9003 = vpop.f32.mrf.mxu0
  %9004 = vdwg.mxu0
  %9005 = vmatpush.bf16.msra.mxu0 %v8775
  %9006 = vmatpush.bf16.msra.mxu0 %v8773
  %9007 = vmatpush.bf16.msra.mxu0 %v8771
  %9008 = vmatpush.bf16.msra.mxu0 %v8769
  %9009 = vmatpush.bf16.msra.mxu0 %v8767
  %9010 = vmatpush.bf16.msra.mxu0 %v8765
  %9011 = vmatpush.bf16.msra.mxu0 %v8763
  %9012 = vmatpush.bf16.msra.mxu0 %v8761
  %9013 = vmatmul.bf16.gmra.mxu0 %v8175
  %v9014 = vpop.f32.mrf.mxu0
  %v9015 = vadd.f32 %v9002, %v9014
  %v9016 = vpop.f32.mrf.mxu0
  %9017 = vdwg.mxu0
  %9018 = vmatpush.bf16.msra.mxu0 %v8791
  %9019 = vmatpush.bf16.msra.mxu0 %v8789
  %9020 = vmatpush.bf16.msra.mxu0 %v8787
  %9021 = vmatpush.bf16.msra.mxu0 %v8785
  %9022 = vmatpush.bf16.msra.mxu0 %v8783
  %9023 = vmatpush.bf16.msra.mxu0 %v8781
  %9024 = vmatpush.bf16.msra.mxu0 %v8779
  %9025 = vmatpush.bf16.msra.mxu0 %v8777
  %9026 = vmatmul.bf16.gmra.mxu0 %v8176
  %v9027 = vpop.f32.mrf.mxu0
  %v9028 = vadd.f32 %v9015, %v9027
  %v9029 = vpop.f32.mrf.mxu0
  %9030 = vdwg.mxu0
  %9031 = vmatpush.bf16.msra.mxu0 %v8807
  %9032 = vmatpush.bf16.msra.mxu0 %v8805
  %9033 = vmatpush.bf16.msra.mxu0 %v8803
  %9034 = vmatpush.bf16.msra.mxu0 %v8801
  %9035 = vmatpush.bf16.msra.mxu0 %v8799
  %9036 = vmatpush.bf16.msra.mxu0 %v8797
  %9037 = vmatpush.bf16.msra.mxu0 %v8795
  %9038 = vmatpush.bf16.msra.mxu0 %v8793
  %9039 = vmatmul.bf16.gmra.mxu0 %v8177
  %v9040 = vpop.f32.mrf.mxu0
  %v9041 = vadd.f32 %v9028, %v9040
  %v9042 = vpop.f32.mrf.mxu0
  %9043 = vdwg.mxu0
  %9044 = vmatpush.bf16.msra.mxu0 %v8823
  %9045 = vmatpush.bf16.msra.mxu0 %v8821
  %9046 = vmatpush.bf16.msra.mxu0 %v8819
  %9047 = vmatpush.bf16.msra.mxu0 %v8817
  %9048 = vmatpush.bf16.msra.mxu0 %v8815
  %9049 = vmatpush.bf16.msra.mxu0 %v8813
  %9050 = vmatpush.bf16.msra.mxu0 %v8811
  %9051 = vmatpush.bf16.msra.mxu0 %v8809
  %9052 = vmatmul.bf16.gmra.mxu0 %v8178
  %v9053 = vpop.f32.mrf.mxu0
  %v9054 = vadd.f32 %v9041, %v9053
  %v9055 = vpop.f32.mrf.mxu0
  %9056 = vdwg.mxu0
  %9057 = vmatpush.bf16.msra.mxu0 %v8712
  %9058 = vmatpush.bf16.msra.mxu0 %v8710
  %9059 = vmatpush.bf16.msra.mxu0 %v8708
  %9060 = vmatpush.bf16.msra.mxu0 %v8706
  %9061 = vmatpush.bf16.msra.mxu0 %v8704
  %9062 = vmatpush.bf16.msra.mxu0 %v8702
  %9063 = vmatpush.bf16.msra.mxu0 %v8700
  %9064 = vmatpush.bf16.msra.mxu0 %v8698
  %9065 = vmatmul.bf16.gmra.mxu0 %v8171
  %v9066 = vpop.f32.mrf.mxu0
  %v9067 = vadd.f32 %v8310, %v9066
  %v9068 = vpop.f32.mrf.mxu0
  %9069 = vdwg.mxu0
  %9070 = vmatpush.bf16.msra.mxu0 %v8728
  %9071 = vmatpush.bf16.msra.mxu0 %v8726
  %9072 = vmatpush.bf16.msra.mxu0 %v8724
  %9073 = vmatpush.bf16.msra.mxu0 %v8722
  %9074 = vmatpush.bf16.msra.mxu0 %v8720
  %9075 = vmatpush.bf16.msra.mxu0 %v8718
  %9076 = vmatpush.bf16.msra.mxu0 %v8716
  %9077 = vmatpush.bf16.msra.mxu0 %v8714
  %9078 = vmatmul.bf16.gmra.mxu0 %v8172
  %v9079 = vpop.f32.mrf.mxu0
  %v9080 = vadd.f32 %v9067, %v9079
  %v9081 = vpop.f32.mrf.mxu0
  %9082 = vdwg.mxu0
  %9083 = vmatpush.bf16.msra.mxu0 %v8744
  %9084 = vmatpush.bf16.msra.mxu0 %v8742
  %9085 = vmatpush.bf16.msra.mxu0 %v8740
  %9086 = vmatpush.bf16.msra.mxu0 %v8738
  %9087 = vmatpush.bf16.msra.mxu0 %v8736
  %9088 = vmatpush.bf16.msra.mxu0 %v8734
  %9089 = vmatpush.bf16.msra.mxu0 %v8732
  %9090 = vmatpush.bf16.msra.mxu0 %v8730
  %9091 = vmatmul.bf16.gmra.mxu0 %v8173
  %v9092 = vpop.f32.mrf.mxu0
  %v9093 = vadd.f32 %v9080, %v9092
  %v9094 = vpop.f32.mrf.mxu0
  %9095 = vdwg.mxu0
  %9096 = vmatpush.bf16.msra.mxu0 %v8760
  %9097 = vmatpush.bf16.msra.mxu0 %v8758
  %9098 = vmatpush.bf16.msra.mxu0 %v8756
  %9099 = vmatpush.bf16.msra.mxu0 %v8754
  %9100 = vmatpush.bf16.msra.mxu0 %v8752
  %9101 = vmatpush.bf16.msra.mxu0 %v8750
  %9102 = vmatpush.bf16.msra.mxu0 %v8748
  %9103 = vmatpush.bf16.msra.mxu0 %v8746
  %9104 = vmatmul.bf16.gmra.mxu0 %v8174
  %v9105 = vpop.f32.mrf.mxu0
  %v9106 = vadd.f32 %v9093, %v9105
  %v9107 = vpop.f32.mrf.mxu0
  %9108 = vdwg.mxu0
  %9109 = vmatpush.bf16.msra.mxu0 %v8776
  %9110 = vmatpush.bf16.msra.mxu0 %v8774
  %9111 = vmatpush.bf16.msra.mxu0 %v8772
  %9112 = vmatpush.bf16.msra.mxu0 %v8770
  %9113 = vmatpush.bf16.msra.mxu0 %v8768
  %9114 = vmatpush.bf16.msra.mxu0 %v8766
  %9115 = vmatpush.bf16.msra.mxu0 %v8764
  %9116 = vmatpush.bf16.msra.mxu0 %v8762
  %9117 = vmatmul.bf16.gmra.mxu0 %v8175
  %v9118 = vpop.f32.mrf.mxu0
  %v9119 = vadd.f32 %v9106, %v9118
  %v9120 = vpop.f32.mrf.mxu0
  %9121 = vdwg.mxu0
  %9122 = vmatpush.bf16.msra.mxu0 %v8792
  %9123 = vmatpush.bf16.msra.mxu0 %v8790
  %9124 = vmatpush.bf16.msra.mxu0 %v8788
  %9125 = vmatpush.bf16.msra.mxu0 %v8786
  %9126 = vmatpush.bf16.msra.mxu0 %v8784
  %9127 = vmatpush.bf16.msra.mxu0 %v8782
  %9128 = vmatpush.bf16.msra.mxu0 %v8780
  %9129 = vmatpush.bf16.msra.mxu0 %v8778
  %9130 = vmatmul.bf16.gmra.mxu0 %v8176
  %v9131 = vpop.f32.mrf.mxu0
  %v9132 = vadd.f32 %v9119, %v9131
  %v9133 = vpop.f32.mrf.mxu0
  %9134 = vdwg.mxu0
  %9135 = vmatpush.bf16.msra.mxu0 %v8808
  %9136 = vmatpush.bf16.msra.mxu0 %v8806
  %9137 = vmatpush.bf16.msra.mxu0 %v8804
  %9138 = vmatpush.bf16.msra.mxu0 %v8802
  %9139 = vmatpush.bf16.msra.mxu0 %v8800
  %9140 = vmatpush.bf16.msra.mxu0 %v8798
  %9141 = vmatpush.bf16.msra.mxu0 %v8796
  %9142 = vmatpush.bf16.msra.mxu0 %v8794
  %9143 = vmatmul.bf16.gmra.mxu0 %v8177
  %v9144 = vpop.f32.mrf.mxu0
  %v9145 = vadd.f32 %v9132, %v9144
  %v9146 = vpop.f32.mrf.mxu0
  %9147 = vdwg.mxu0
  %9148 = vmatpush.bf16.msra.mxu0 %v8824
  %9149 = vmatpush.bf16.msra.mxu0 %v8822
  %9150 = vmatpush.bf16.msra.mxu0 %v8820
  %9151 = vmatpush.bf16.msra.mxu0 %v8818
  %9152 = vmatpush.bf16.msra.mxu0 %v8816
  %9153 = vmatpush.bf16.msra.mxu0 %v8814
  %9154 = vmatpush.bf16.msra.mxu0 %v8812
  %9155 = vmatpush.bf16.msra.mxu0 %v8810
  %9156 = vmatmul.bf16.gmra.mxu0 %v8178
  %v9157 = vpop.f32.mrf.mxu0
  %v9158 = vadd.f32 %v9145, %v9157
  %v9159 = vpop.f32.mrf.mxu0
  %9160 = vdwg.mxu0
  %v9161 = vmax.f32 %v9054, 0.0
  %v9162 = vmax.f32 %v9158, 0.0
  %v9163 = vpack.c.bf16 %v9161, %v9161
  %v9164 = vpack.c.bf16 %v9162, %v9162
  %v9165 = vld [vmem:[%s5] sm:$0xf]
  %v9166 = vld [vmem:[%s5 + $0x4] sm:$0xf]
  %v9167 = vld [vmem:[%s5 + $0x8] sm:$0xf]
  %v9168 = vld [vmem:[%s5 + $0xc] sm:$0xf]
  %v9169 = vld [vmem:[%s5 + $0x10] sm:$0xf]
  %v9170 = vld [vmem:[%s5 + $0x14] sm:$0xf]
  %v9171 = vld [vmem:[%s5 + $0x18] sm:$0xf]
  %v9172 = vld [vmem:[%s5 + $0x1c] sm:$0xf]
  %v9173 = vld [vmem:[%s5 + $0x20] sm:$0xf]
  %v9174 = vld [vmem:[%s5 + $0x24] sm:$0xf]
  %v9175 = vld [vmem:[%s5 + $0x28] sm:$0xf]
  %v9176 = vld [vmem:[%s5 + $0x2c] sm:$0xf]
  %v9177 = vld [vmem:[%s5 + $0x30] sm:$0xf]
  %v9178 = vld [vmem:[%s5 + $0x34] sm:$0xf]
  %v9179 = vld [vmem:[%s5 + $0x38] sm:$0xf]
  %v9180 = vld [vmem:[%s5 + $0x3c] sm:$0xf]
  %v9181 = vld [vmem:[%s5 + $0x40] sm:$0xf]
  %v9182 = vld [vmem:[%s5 + $0x44] sm:$0xf]
  %v9183 = vld [vmem:[%s5 + $0x48] sm:$0xf]
  %v9184 = vld [vmem:[%s5 + $0x4c] sm:$0xf]
  %v9185 = vld [vmem:[%s5 + $0x50] sm:$0xf]
  %v9186 = vld [vmem:[%s5 + $0x54] sm:$0xf]
  %v9187 = vld [vmem:[%s5 + $0x58] sm:$0xf]
  %v9188 = vld [vmem:[%s5 + $0x5c] sm:$0xf]
  %v9189 = vld [vmem:[%s5 + $0x60] sm:$0xf]
  %v9190 = vld [vmem:[%s5 + $0x64] sm:$0xf]
  %v9191 = vld [vmem:[%s5 + $0x68] sm:$0xf]
  %v9192 = vld [vmem:[%s5 + $0x6c] sm:$0xf]
  %v9193 = vld [vmem:[%s5 + $0x70] sm:$0xf]
  %v9194 = vld [vmem:[%s5 + $0x74] sm:$0xf]
  %v9195 = vld [vmem:[%s5 + $0x78] sm:$0xf]
  %v9196 = vld [vmem:[%s5 + $0x7c] sm:$0xf]
  %v9197 = vld [vmem:[%s6] sm:$0x1]
  %v9199 = vperm.slane %v9197, 0
  %v9233 = vunpack.c.l.b16 %v9165
  %v9234 = vunpack.c.l.b16 %v9166
  %v9235 = vunpack.c.l.b16 %v9167
  %v9236 = vunpack.c.l.b16 %v9168
  %v9237 = vunpack.c.l.b16 %v9169
  %v9238 = vunpack.c.l.b16 %v9170
  %v9239 = vunpack.c.l.b16 %v9171
  %v9240 = vunpack.c.l.b16 %v9172
  %v9241 = vunpack.c.l.b16 %v9173
  %v9242 = vunpack.c.l.b16 %v9174
  %v9243 = vunpack.c.l.b16 %v9175
  %v9244 = vunpack.c.l.b16 %v9176
  %v9245 = vunpack.c.l.b16 %v9177
  %v9246 = vunpack.c.l.b16 %v9178
  %v9247 = vunpack.c.l.b16 %v9179
  %v9248 = vunpack.c.l.b16 %v9180
  %v9249 = vunpack.c.l.b16 %v9181
  %v9250 = vunpack.c.l.b16 %v9182
  %v9251 = vunpack.c.l.b16 %v9183
  %v9252 = vunpack.c.l.b16 %v9184
  %v9253 = vunpack.c.l.b16 %v9185
  %v9254 = vunpack.c.l.b16 %v9186
  %v9255 = vunpack.c.l.b16 %v9187
  %v9256 = vunpack.c.l.b16 %v9188
  %v9257 = vunpack.c.l.b16 %v9189
  %v9258 = vunpack.c.l.b16 %v9190
  %v9259 = vunpack.c.l.b16 %v9191
  %v9260 = vunpack.c.l.b16 %v9192
  %v9261 = vunpack.c.l.b16 %v9193
  %v9262 = vunpack.c.l.b16 %v9194
  %v9263 = vunpack.c.l.b16 %v9195
  %v9264 = vunpack.c.l.b16 %v9196
  %v9265 = vpack.c.b16 %v9234, %v9233
  %v9266 = vpack.c.b16 %v9236, %v9235
  %v9267 = vpack.c.b16 %v9238, %v9237
  %v9268 = vpack.c.b16 %v9240, %v9239
  %v9269 = vpack.c.b16 %v9242, %v9241
  %v9270 = vpack.c.b16 %v9244, %v9243
  %v9271 = vpack.c.b16 %v9246, %v9245
  %v9272 = vpack.c.b16 %v9248, %v9247
  %v9273 = vpack.c.b16 %v9250, %v9249
  %v9274 = vpack.c.b16 %v9252, %v9251
  %v9275 = vpack.c.b16 %v9254, %v9253
  %v9276 = vpack.c.b16 %v9256, %v9255
  %v9277 = vpack.c.b16 %v9258, %v9257
  %v9278 = vpack.c.b16 %v9260, %v9259
  %v9279 = vpack.c.b16 %v9262, %v9261
  %v9280 = vpack.c.b16 %v9264, %v9263
  %9297 = vmatpush.bf16.msra.mxu0 %v9272
  %9298 = vmatpush.bf16.msra.mxu0 %v9271
  %9299 = vmatpush.bf16.msra.mxu0 %v9270
  %9300 = vmatpush.bf16.msra.mxu0 %v9269
  %9301 = vmatpush.bf16.msra.mxu0 %v9268
  %9302 = vmatpush.bf16.msra.mxu0 %v9267
  %9303 = vmatpush.bf16.msra.mxu0 %v9266
  %9304 = vmatpush.bf16.msra.mxu0 %v9265
  %9305 = vmatmul.bf16.gmra.mxu0 %v9163
  %v9306 = vpop.f32.mrf.mxu0
  %v9307 = vadd.f32 %v9199, %v9306
  %v9308 = vpop.f32.mrf.mxu0
  %9309 = vdwg.mxu0
  %9310 = vmatpush.bf16.msra.mxu0 %v9280
  %9311 = vmatpush.bf16.msra.mxu0 %v9279
  %9312 = vmatpush.bf16.msra.mxu0 %v9278
  %9313 = vmatpush.bf16.msra.mxu0 %v9277
  %9314 = vmatpush.bf16.msra.mxu0 %v9276
  %9315 = vmatpush.bf16.msra.mxu0 %v9275
  %9316 = vmatpush.bf16.msra.mxu0 %v9274
  %9317 = vmatpush.bf16.msra.mxu0 %v9273
  %9318 = vmatmul.bf16.gmra.mxu0 %v9164
  %v9319 = vpop.f32.mrf.mxu0
  %v9320 = vadd.f32 %v9307, %v9319
  %v9321 = vpop.f32.mrf.mxu0
  %9322 = vdwg.mxu0
  %9323 = vst [vmem:[%s7] sm:$0xff] %v9320
  // Predicated region
  $region30: #{lstm_relation_predictor.1} parent=0 // pred_check
    _
  $region31: #{lstm_relation_predictor.1} parent=0 // pred_check_branch
    %9325 = sbr.rel (0) target = $region33
  $region32: #{lstm_relation_predictor.1} parent=0 // pred_region
    _
  $region33: #{lstm_relation_predictor.1} parent=0 // pred_fallthru
    _
  // Predicated region
  $region34: #{lstm_relation_predictor.1} parent=0 // pred_check
    _
  $region35: #{lstm_relation_predictor.1} parent=0 // pred_check_branch
    %9327 = sbr.rel (0) target = $region37
  $region36: #{lstm_relation_predictor.1} parent=0 // pred_region
    _
  $region37: #{lstm_relation_predictor.1} parent=0 // pred_fallthru
    _

</llo_original>
